<compile_context>
chip_gen: v5e
topology: v5e:2x2
jax: 0.10.0
libtpu: 0.0.40
codegen_flags: <defaults>
</compile_context>

<pallas_src>
import functools

import jax
import jax.numpy as jnp
from jax.experimental import pallas as pl
from jax.experimental.pallas import tpu as pltpu

BN_EPS = 1e-5  # PyTorch BatchNorm2d default


def _round_up(x, m):
    return (x + m - 1) // m * m


def _pick_tile(dim, pref, step):
    """Largest multiple of `step` that divides `dim`, capped near `pref`."""
    t = min(dim, pref)
    t -= t % step
    t = max(t, step)
    while dim % t:
        t -= step
    return t


# ----------------------------------------------------------------------------
# Pallas kernel: o = act(A @ W + bias [+ shortcut]), K-accumulated into o_ref
# ----------------------------------------------------------------------------
def _fused_gemm_kernel(a_ref, w_ref, b_ref, *rest, apply_relu, has_residual):
    if has_residual:
        sc_ref, o_ref = rest
    else:
        (o_ref,) = rest

    @pl.when(pl.program_id(2) == 0)
    def _():
        o_ref[...] = jnp.zeros_like(o_ref)

    o_ref[...] += jnp.dot(a_ref[...], w_ref[...],
                          preferred_element_type=jnp.float32)

    @pl.when(pl.program_id(2) == pl.num_programs(2) - 1)
    def _():
        out = o_ref[...] + b_ref[...]
        if has_residual:
            out = out + sc_ref[...]
        if apply_relu:
            out = jnp.maximum(out, 0.0)
        o_ref[...] = out


def fused_gemm(a, w_mat, bias, shortcut=None, apply_relu=False):
    """act(a @ w_mat + bias [+ shortcut]).

    a:        [M, K]  float32 (K <= w_mat rows; padded here, cast to bf16)
    w_mat:    [Kp, Np] bfloat16, Kp/Np multiples of 128, BN scale pre-folded
    bias:     [1, Np]  float32
    shortcut: [M, Np]  float32 or None (fused residual add)
    returns   [M, Np]  float32
    """
    M, K = a.shape
    Kp, Np = w_mat.shape
    Mp = _round_up(M, 8)

    tm = _pick_tile(Mp, 256, 8)
    tn = _pick_tile(Np, 256, 128)
    tk = _pick_tile(Kp, 512, 128)

    a_p = a
    if (Mp, Kp) != (M, K):
        a_p = jnp.pad(a, ((0, Mp - M), (0, Kp - K)))
    a_p = a_p.astype(jnp.bfloat16)

    in_specs = [
        pl.BlockSpec((tm, tk), lambda i, j, k: (i, k)),
        pl.BlockSpec((tk, tn), lambda i, j, k: (k, j)),
        pl.BlockSpec((1, tn), lambda i, j, k: (0, j)),
    ]
    inputs = [a_p, w_mat, bias]

    has_residual = shortcut is not None
    if has_residual:
        sc_p = shortcut.astype(jnp.float32)
        if Mp != M:
            sc_p = jnp.pad(sc_p, ((0, Mp - M), (0, 0)))
        in_specs.append(pl.BlockSpec((tm, tn), lambda i, j, k: (i, j)))
        inputs.append(sc_p)

    out = pl.pallas_call(
        functools.partial(_fused_gemm_kernel, apply_relu=apply_relu,
                          has_residual=has_residual),
        out_shape=jax.ShapeDtypeStruct((Mp, Np), jnp.float32),
        grid=(Mp // tm, Np // tn, Kp // tk),
        in_specs=in_specs,
        out_specs=pl.BlockSpec((tm, tn), lambda i, j, k: (i, j)),
        compiler_params=pltpu.CompilerParams(
            dimension_semantics=("parallel", "parallel", "arbitrary")),
    )(*inputs)
    return out[:M] if Mp != M else out


# ----------------------------------------------------------------------------
# Conv / block glue (data layout only; compute lives in the kernel above)
# ----------------------------------------------------------------------------
def im2col(x, ksize, stride, pad):
    """x: [B,H,W,C] -> ([B*OH*OW, ksize*ksize*C], (B, OH, OW))."""
    if pad > 0:
        x = jnp.pad(x, ((0, 0), (pad, pad), (pad, pad), (0, 0)))
    B, H, W, C = x.shape
    OH = (H - ksize) // stride + 1
    OW = (W - ksize) // stride + 1
    cols = []
    for i in range(ksize):
        for j in range(ksize):
            cols.append(x[:, i:i + stride * OH:stride,
                          j:j + stride * OW:stride, :])
    a = cols[0] if len(cols) == 1 else jnp.concatenate(cols, axis=-1)
    return a.reshape(B * OH * OW, ksize * ksize * C), (B, OH, OW)


def conv_bn(x, cp, ksize, stride, pad, relu):
    """Conv2d + folded BatchNorm2d (inference), optional ReLU."""
    a, (B, OH, OW) = im2col(x, ksize, stride, pad)
    out = fused_gemm(a, cp['w_mat'], cp['bias'], apply_relu=relu)
    return out.reshape(B, OH, OW, out.shape[1])


def res_blk(x, p, stride):
    # Shortcut path (1x1 projection conv+BN, or identity).
    if 'extra' in p:
        sc = conv_bn(x, p['extra'], 1, stride, 0, relu=False)
    else:
        sc = x

    out1 = conv_bn(x, p['cb1'], 3, stride, 1, relu=True)

    # Second conv: residual add + ReLU fused into the GEMM epilogue.
    a2, (B, oh, ow) = im2col(out1, 3, 1, 1)
    _, sh, sw, Cp = sc.shape
    th, tw = jnp.broadcast_shapes((oh, ow), (sh, sw))
    if (oh, ow) != (th, tw):
        # Faithful PyTorch '+' broadcast (blk4: out [B,512,1,1] vs sc
        # [B,512,2,2]); replicate im2col rows so the fused epilogue M matches.
        kdim = a2.shape[1]
        a2 = jnp.broadcast_to(a2.reshape(B, oh, ow, kdim),
                              (B, th, tw, kdim)).reshape(B * th * tw, kdim)
    if (sh, sw) != (th, tw):
        sc = jnp.broadcast_to(sc, (B, th, tw, Cp))
    out = fused_gemm(a2, p['cb2']['w_mat'], p['cb2']['bias'],
                     shortcut=sc.reshape(B * th * tw, Cp), apply_relu=True)
    return out.reshape(B, th, tw, out.shape[1])


def resnet18_forward(prep, x_nchw):
    x = jnp.transpose(x_nchw, (0, 2, 3, 1)).astype(jnp.float32)  # NCHW -> NHWC
    # conv1 = Conv2d(3,64,k=3,s=3,p=0) + BN, then F.relu (channels padded to 128)
    x = conv_bn(x, prep['conv1'], 3, 3, 0, relu=True)
    x = res_blk(x, prep['blk1'], stride=2)
    x = res_blk(x, prep['blk2'], stride=2)
    x = res_blk(x, prep['blk3'], stride=2)
    x = res_blk(x, prep['blk4'], stride=2)
    # adaptive_avg_pool2d([1,1]) + flatten (glue)
    B, H, W, C = x.shape
    x = jnp.mean(x.reshape(B, H * W, C), axis=1)       # [B, 512]
    logits = fused_gemm(x, prep['fc_w'], prep['fc_b'], apply_relu=False)
    return logits[:, :10]


# ----------------------------------------------------------------------------
# One-time parameter preparation: fold BN, pad to lane-dense shapes, cast bf16
# ----------------------------------------------------------------------------
def _prep_conv_bn(p, cin_act):
    cout, cin, k, _ = p['w'].shape
    scale = p['gamma'] / jnp.sqrt(p['var'] + BN_EPS)
    bias = p['beta'] + scale * (p['b'] - p['mean'])
    w_t = jnp.transpose(p['w'], (2, 3, 1, 0))            # [k,k,cin,cout]
    if cin_act > cin:
        w_t = jnp.pad(w_t, ((0, 0), (0, 0), (0, cin_act - cin), (0, 0)))
    w_mat = (w_t * scale).reshape(k * k * cin_act, cout)  # BN scale folded in
    K, N = w_mat.shape
    Kp, Np = _round_up(K, 128), _round_up(N, 128)
    w_mat = jnp.pad(w_mat, ((0, Kp - K), (0, Np - N))).astype(jnp.bfloat16)
    b_p = jnp.pad(bias, (0, Np - N)).reshape(1, Np).astype(jnp.float32)
    return {'w_mat': w_mat, 'bias': b_p}


def _prep_blk(p, cin_act):
    cout = p['cb1']['w'].shape[0]
    out = {'cb1': _prep_conv_bn(p['cb1'], cin_act),
           'cb2': _prep_conv_bn(p['cb2'], _round_up(cout, 128))}
    if 'extra' in p:
        out['extra'] = _prep_conv_bn(p['extra'], cin_act)
    return out


def prepare_params(params):
    prep = {'conv1': _prep_conv_bn(params['conv1'], cin_act=3)}
    prep['blk1'] = _prep_blk(params['blk1'], 128)   # conv1 out 64 -> padded 128
    prep['blk2'] = _prep_blk(params['blk2'], 128)
    prep['blk3'] = _prep_blk(params['blk3'], 256)
    prep['blk4'] = _prep_blk(params['blk4'], 512)
    w, b = params['fc_w'], params['fc_b']           # [10,512], [10]
    n = w.shape[0]
    Np = _round_up(n, 128)
    prep['fc_w'] = jnp.pad(w.T, ((0, 0), (0, Np - n))).astype(jnp.bfloat16)
    prep['fc_b'] = jnp.pad(b, (0, Np - n)).reshape(1, Np).astype(jnp.float32)
    return prep


# ----------------------------------------------------------------------------
# Deterministic parameter initialization (shapes from the nn.Module __init__)
# ----------------------------------------------------------------------------
def _conv_bn_init(key, cin, cout, k):
    k1, k2, k3, k4, k5, k6 = jax.random.split(key, 6)
    fan_in = cin * k * k
    return {
        'w': jax.random.normal(k1, (cout, cin, k, k), jnp.float32)
             * (2.0 / fan_in) ** 0.5,
        'b': 0.01 * jax.random.normal(k2, (cout,), jnp.float32),
        'gamma': jax.random.uniform(k3, (cout,), jnp.float32, 0.5, 1.5),
        'beta': 0.1 * jax.random.normal(k4, (cout,), jnp.float32),
        'mean': 0.1 * jax.random.normal(k5, (cout,), jnp.float32),
        'var': jax.random.uniform(k6, (cout,), jnp.float32, 0.5, 1.5),
    }


def _resblk_init(key, cin, cout):
    k1, k2, k3 = jax.random.split(key, 3)
    p = {'cb1': _conv_bn_init(k1, cin, cout, 3),
         'cb2': _conv_bn_init(k2, cout, cout, 3)}
    if cin != cout:  # 1x1 projection shortcut + BN
        p['extra'] = _conv_bn_init(k3, cin, cout, 1)
    return p


def init_resnet18_params(key):
    ks = jax.random.split(key, 7)
    return {
        'conv1': _conv_bn_init(ks[0], 3, 64, 3),
        'blk1': _resblk_init(ks[1], 64, 128),
        'blk2': _resblk_init(ks[2], 128, 256),
        'blk3': _resblk_init(ks[3], 256, 512),
        'blk4': _resblk_init(ks[4], 512, 512),
        'fc_w': jax.random.normal(ks[5], (10, 512), jnp.float32)
                * (1.0 / 512) ** 0.5,
        'fc_b': 0.01 * jax.random.normal(ks[6], (10,), jnp.float32),
    }


if __name__ == "__main__":
    key = jax.random.PRNGKey(0)
    pkey, xkey = jax.random.split(key)
    params = init_resnet18_params(pkey)
    prep = prepare_params(params)   # one-time weight prep, off the hot path
    # CIFAR-10-like input, NCHW, small batch.
    x = jax.random.normal(xkey, (2, 3, 32, 32), jnp.float32)

    logits = jax.jit(resnet18_forward)(prep, x)
    jax.block_until_ready(logits)

    assert logits.shape == (2, 10), logits.shape
    assert bool(jnp.all(jnp.isfinite(logits)))
    print("KERNEL_OK")
</pallas_src>

<mosaic_0001>
module attributes {stable_mosaic.version = 11 : i64} {
  func.func @_fused_gemm_kernel(%arg0: i32, %arg1: i32, %arg2: i32, %arg3: memref<200x128xbf16, #tpu.memory_space<vmem>>, %arg4: memref<128x128xbf16, #tpu.memory_space<vmem>>, %arg5: memref<1x128xf32, #tpu.memory_space<vmem>>, %arg6: memref<200x128xf32, #tpu.memory_space<vmem>>) attributes {dimension_semantics = [#tpu.dimension_semantics<parallel>, #tpu.dimension_semantics<parallel>, #tpu.dimension_semantics<arbitrary>], iteration_bounds = array<i64: 1, 1, 1>, scalar_prefetch = 0 : i64, scratch_operands = 0 : i64, tpu.core_type = #tpu.core_type<tc>, window_params = [{transform_indices = @transform_0, window_bounds = array<i64: 200, 128>}, {transform_indices = @transform_1, window_bounds = array<i64: 128, 128>}, {transform_indices = @transform_2, window_bounds = array<i64: 1, 128>}, {transform_indices = @transform_3, window_bounds = array<i64: 200, 128>}]} {
    %c0_i32 = arith.constant 0 : i32
    %0 = arith.cmpi eq, %arg2, %c0_i32 : i32
    %1 = arith.extui %0 : i1 to i32
    %c0_i32_0 = arith.constant 0 : i32
    %2 = arith.cmpi ne, %1, %c0_i32_0 : i32
    scf.if %2 {
      %cst_10 = arith.constant 0.000000e+00 : f32
      %12 = vector.broadcast %cst_10 : f32 to vector<200x128xf32>
      %c0_11 = arith.constant 0 : index
      %c0_12 = arith.constant 0 : index
      %13 = vector.load %arg6[%c0_11, %c0_12] : memref<200x128xf32, #tpu.memory_space<vmem>>, vector<200x128xf32>
      tpu.vector_store %arg6[%c0_11, %c0_12], %12 {strides = array<i32>} : memref<200x128xf32, #tpu.memory_space<vmem>>, vector<200x128xf32>,
    } else {
    }
    %c0 = arith.constant 0 : index
    %c0_1 = arith.constant 0 : index
    %3 = vector.load %arg6[%c0, %c0_1] : memref<200x128xf32, #tpu.memory_space<vmem>>, vector<200x128xf32>
    %c0_2 = arith.constant 0 : index
    %c0_3 = arith.constant 0 : index
    %4 = vector.load %arg3[%c0_2, %c0_3] : memref<200x128xbf16, #tpu.memory_space<vmem>>, vector<200x128xbf16>
    %c0_4 = arith.constant 0 : index
    %c0_5 = arith.constant 0 : index
    %5 = vector.load %arg4[%c0_4, %c0_5] : memref<128x128xbf16, #tpu.memory_space<vmem>>, vector<128x128xbf16>
    %cst = arith.constant dense<0.000000e+00> : vector<200x128xf32>
    %6 = tpu.matmul %4, %5, %cst {dimension_numbers = #tpu.dot_dimension_numbers<[1], [0], [0], [1], [0, 0, 1, 1], [], []>} : vector<200x128xbf16>, vector<128x128xbf16>, vector<200x128xf32> -> vector<200x128xf32>
    %7 = arith.addf %3, %6 : vector<200x128xf32>
    %c0_6 = arith.constant 0 : index
    %c0_7 = arith.constant 0 : index
    %8 = vector.load %arg6[%c0_6, %c0_7] : memref<200x128xf32, #tpu.memory_space<vmem>>, vector<200x128xf32>
    tpu.vector_store %arg6[%c0_6, %c0_7], %7 {strides = array<i32>} : memref<200x128xf32, #tpu.memory_space<vmem>>, vector<200x128xf32>,
    %c0_i32_8 = arith.constant 0 : i32
    %9 = arith.cmpi eq, %arg2, %c0_i32_8 : i32
    %10 = arith.extui %9 : i1 to i32
    %c0_i32_9 = arith.constant 0 : i32
    %11 = arith.cmpi ne, %10, %c0_i32_9 : i32
    scf.if %11 {
      %c0_10 = arith.constant 0 : index
      %c0_11 = arith.constant 0 : index
      %12 = vector.load %arg6[%c0_10, %c0_11] : memref<200x128xf32, #tpu.memory_space<vmem>>, vector<200x128xf32>
      %c0_12 = arith.constant 0 : index
      %c0_13 = arith.constant 0 : index
      %13 = vector.load %arg5[%c0_12, %c0_13] : memref<1x128xf32, #tpu.memory_space<vmem>>, vector<1x128xf32>
      %14 = vector.broadcast %13 : vector<1x128xf32> to vector<200x128xf32>
      %15 = arith.addf %12, %14 : vector<200x128xf32>
      %cst_14 = arith.constant 0.000000e+00 : f32
      %16 = vector.broadcast %cst_14 : f32 to vector<200x128xf32>
      %17 = arith.maximumf %15, %16 : vector<200x128xf32>
      %c0_15 = arith.constant 0 : index
      %c0_16 = arith.constant 0 : index
      %18 = vector.load %arg6[%c0_15, %c0_16] : memref<200x128xf32, #tpu.memory_space<vmem>>, vector<200x128xf32>
      tpu.vector_store %arg6[%c0_15, %c0_16], %17 {strides = array<i32>} : memref<200x128xf32, #tpu.memory_space<vmem>>, vector<200x128xf32>,
    } else {
    }
    return
  }
  func.func @transform_0(%arg0: i32, %arg1: i32, %arg2: i32) -> (i32, i32) {
    %c0_i32 = arith.constant 0 : i32
    return %arg0, %arg2 : i32, i32
  }
  func.func @transform_1(%arg0: i32, %arg1: i32, %arg2: i32) -> (i32, i32) {
    %c0_i32 = arith.constant 0 : i32
    return %arg2, %arg1 : i32, i32
  }
  func.func @transform_2(%arg0: i32, %arg1: i32, %arg2: i32) -> (i32, i32) {
    %c0_i32 = arith.constant 0 : i32
    %c0_i32_0 = arith.constant 0 : i32
    return %c0_i32, %arg1 : i32, i32
  }
  func.func @transform_3(%arg0: i32, %arg1: i32, %arg2: i32) -> (i32, i32) {
    %c0_i32 = arith.constant 0 : i32
    return %arg0, %arg1 : i32, i32
  }
}

module attributes {stable_mosaic.version = 11 : i64} {
  func.func @_fused_gemm_kernel(%arg0: i32, %arg1: i32, %arg2: i32, %arg3: memref<56x384xbf16, #tpu.memory_space<vmem>>, %arg4: memref<384x128xbf16, #tpu.memory_space<vmem>>, %arg5: memref<1x128xf32, #tpu.memory_space<vmem>>, %arg6: memref<56x128xf32, #tpu.memory_space<vmem>>) attributes {dimension_semantics = [#tpu.dimension_semantics<parallel>, #tpu.dimension_semantics<parallel>, #tpu.dimension_semantics<arbitrary>], iteration_bounds = array<i64: 1, 1, 3>, scalar_prefetch = 0 : i64, scratch_operands = 0 : i64, tpu.core_type = #tpu.core_type<tc>, window_params = [{transform_indices = @transform_0, window_bounds = array<i64: 56, 384>}, {transform_indices = @transform_1, window_bounds = array<i64: 384, 128>}, {transform_indices = @transform_2, window_bounds = array<i64: 1, 128>}, {transform_indices = @transform_3, window_bounds = array<i64: 56, 128>}]} {
    %c0_i32 = arith.constant 0 : i32
    %0 = arith.cmpi eq, %arg2, %c0_i32 : i32
    %1 = arith.extui %0 : i1 to i32
    %c0_i32_0 = arith.constant 0 : i32
    %2 = arith.cmpi ne, %1, %c0_i32_0 : i32
    scf.if %2 {
      %cst_9 = arith.constant 0.000000e+00 : f32
      %12 = vector.broadcast %cst_9 : f32 to vector<56x128xf32>
      %c0_10 = arith.constant 0 : index
      %c0_11 = arith.constant 0 : index
      %13 = vector.load %arg6[%c0_10, %c0_11] : memref<56x128xf32, #tpu.memory_space<vmem>>, vector<56x128xf32>
      tpu.vector_store %arg6[%c0_10, %c0_11], %12 {strides = array<i32>} : memref<56x128xf32, #tpu.memory_space<vmem>>, vector<56x128xf32>,
    } else {
    }
    %c0 = arith.constant 0 : index
    %c0_1 = arith.constant 0 : index
    %3 = vector.load %arg6[%c0, %c0_1] : memref<56x128xf32, #tpu.memory_space<vmem>>, vector<56x128xf32>
    %c0_2 = arith.constant 0 : index
    %c0_3 = arith.constant 0 : index
    %4 = vector.load %arg3[%c0_2, %c0_3] : memref<56x384xbf16, #tpu.memory_space<vmem>>, vector<56x384xbf16>
    %c0_4 = arith.constant 0 : index
    %c0_5 = arith.constant 0 : index
    %5 = vector.load %arg4[%c0_4, %c0_5] : memref<384x128xbf16, #tpu.memory_space<vmem>>, vector<384x128xbf16>
    %cst = arith.constant dense<0.000000e+00> : vector<56x128xf32>
    %6 = tpu.matmul %4, %5, %cst {dimension_numbers = #tpu.dot_dimension_numbers<[1], [0], [0], [1], [0, 0, 1, 1], [], []>} : vector<56x384xbf16>, vector<384x128xbf16>, vector<56x128xf32> -> vector<56x128xf32>
    %7 = arith.addf %3, %6 : vector<56x128xf32>
    %c0_6 = arith.constant 0 : index
    %c0_7 = arith.constant 0 : index
    %8 = vector.load %arg6[%c0_6, %c0_7] : memref<56x128xf32, #tpu.memory_space<vmem>>, vector<56x128xf32>
    tpu.vector_store %arg6[%c0_6, %c0_7], %7 {strides = array<i32>} : memref<56x128xf32, #tpu.memory_space<vmem>>, vector<56x128xf32>,
    %c2_i32 = arith.constant 2 : i32
    %9 = arith.cmpi eq, %arg2, %c2_i32 : i32
    %10 = arith.extui %9 : i1 to i32
    %c0_i32_8 = arith.constant 0 : i32
    %11 = arith.cmpi ne, %10, %c0_i32_8 : i32
    scf.if %11 {
      %c0_9 = arith.constant 0 : index
      %c0_10 = arith.constant 0 : index
      %12 = vector.load %arg6[%c0_9, %c0_10] : memref<56x128xf32, #tpu.memory_space<vmem>>, vector<56x128xf32>
      %c0_11 = arith.constant 0 : index
      %c0_12 = arith.constant 0 : index
      %13 = vector.load %arg5[%c0_11, %c0_12] : memref<1x128xf32, #tpu.memory_space<vmem>>, vector<1x128xf32>
      %14 = vector.broadcast %13 : vector<1x128xf32> to vector<56x128xf32>
      %15 = arith.addf %12, %14 : vector<56x128xf32>
      %cst_13 = arith.constant 0.000000e+00 : f32
      %16 = vector.broadcast %cst_13 : f32 to vector<56x128xf32>
      %17 = arith.maximumf %15, %16 : vector<56x128xf32>
      %c0_14 = arith.constant 0 : index
      %c0_15 = arith.constant 0 : index
      %18 = vector.load %arg6[%c0_14, %c0_15] : memref<56x128xf32, #tpu.memory_space<vmem>>, vector<56x128xf32>
      tpu.vector_store %arg6[%c0_14, %c0_15], %17 {strides = array<i32>} : memref<56x128xf32, #tpu.memory_space<vmem>>, vector<56x128xf32>,
    } else {
    }
    return
  }
  func.func @transform_0(%arg0: i32, %arg1: i32, %arg2: i32) -> (i32, i32) {
    %c0_i32 = arith.constant 0 : i32
    return %arg0, %arg2 : i32, i32
  }
  func.func @transform_1(%arg0: i32, %arg1: i32, %arg2: i32) -> (i32, i32) {
    %c0_i32 = arith.constant 0 : i32
    return %arg2, %arg1 : i32, i32
  }
  func.func @transform_2(%arg0: i32, %arg1: i32, %arg2: i32) -> (i32, i32) {
    %c0_i32 = arith.constant 0 : i32
    %c0_i32_0 = arith.constant 0 : i32
    return %c0_i32, %arg1 : i32, i32
  }
  func.func @transform_3(%arg0: i32, %arg1: i32, %arg2: i32) -> (i32, i32) {
    %c0_i32 = arith.constant 0 : i32
    return %arg0, %arg1 : i32, i32
  }
}

module attributes {stable_mosaic.version = 11 : i64} {
  func.func @_fused_gemm_kernel(%arg0: i32, %arg1: i32, %arg2: i32, %arg3: memref<56x384xbf16, #tpu.memory_space<vmem>>, %arg4: memref<384x128xbf16, #tpu.memory_space<vmem>>, %arg5: memref<1x128xf32, #tpu.memory_space<vmem>>, %arg6: memref<56x128xf32, #tpu.memory_space<vmem>>, %arg7: memref<56x128xf32, #tpu.memory_space<vmem>>) attributes {dimension_semantics = [#tpu.dimension_semantics<parallel>, #tpu.dimension_semantics<parallel>, #tpu.dimension_semantics<arbitrary>], iteration_bounds = array<i64: 1, 1, 3>, scalar_prefetch = 0 : i64, scratch_operands = 0 : i64, tpu.core_type = #tpu.core_type<tc>, window_params = [{transform_indices = @transform_0, window_bounds = array<i64: 56, 384>}, {transform_indices = @transform_1, window_bounds = array<i64: 384, 128>}, {transform_indices = @transform_2, window_bounds = array<i64: 1, 128>}, {transform_indices = @transform_3, window_bounds = array<i64: 56, 128>}, {transform_indices = @transform_4, window_bounds = array<i64: 56, 128>}]} {
    %c0_i32 = arith.constant 0 : i32
    %0 = arith.cmpi eq, %arg2, %c0_i32 : i32
    %1 = arith.extui %0 : i1 to i32
    %c0_i32_0 = arith.constant 0 : i32
    %2 = arith.cmpi ne, %1, %c0_i32_0 : i32
    scf.if %2 {
      %cst_9 = arith.constant 0.000000e+00 : f32
      %12 = vector.broadcast %cst_9 : f32 to vector<56x128xf32>
      %c0_10 = arith.constant 0 : index
      %c0_11 = arith.constant 0 : index
      %13 = vector.load %arg7[%c0_10, %c0_11] : memref<56x128xf32, #tpu.memory_space<vmem>>, vector<56x128xf32>
      tpu.vector_store %arg7[%c0_10, %c0_11], %12 {strides = array<i32>} : memref<56x128xf32, #tpu.memory_space<vmem>>, vector<56x128xf32>,
    } else {
    }
    %c0 = arith.constant 0 : index
    %c0_1 = arith.constant 0 : index
    %3 = vector.load %arg7[%c0, %c0_1] : memref<56x128xf32, #tpu.memory_space<vmem>>, vector<56x128xf32>
    %c0_2 = arith.constant 0 : index
    %c0_3 = arith.constant 0 : index
    %4 = vector.load %arg3[%c0_2, %c0_3] : memref<56x384xbf16, #tpu.memory_space<vmem>>, vector<56x384xbf16>
    %c0_4 = arith.constant 0 : index
    %c0_5 = arith.constant 0 : index
    %5 = vector.load %arg4[%c0_4, %c0_5] : memref<384x128xbf16, #tpu.memory_space<vmem>>, vector<384x128xbf16>
    %cst = arith.constant dense<0.000000e+00> : vector<56x128xf32>
    %6 = tpu.matmul %4, %5, %cst {dimension_numbers = #tpu.dot_dimension_numbers<[1], [0], [0], [1], [0, 0, 1, 1], [], []>} : vector<56x384xbf16>, vector<384x128xbf16>, vector<56x128xf32> -> vector<56x128xf32>
    %7 = arith.addf %3, %6 : vector<56x128xf32>
    %c0_6 = arith.constant 0 : index
    %c0_7 = arith.constant 0 : index
    %8 = vector.load %arg7[%c0_6, %c0_7] : memref<56x128xf32, #tpu.memory_space<vmem>>, vector<56x128xf32>
    tpu.vector_store %arg7[%c0_6, %c0_7], %7 {strides = array<i32>} : memref<56x128xf32, #tpu.memory_space<vmem>>, vector<56x128xf32>,
    %c2_i32 = arith.constant 2 : i32
    %9 = arith.cmpi eq, %arg2, %c2_i32 : i32
    %10 = arith.extui %9 : i1 to i32
    %c0_i32_8 = arith.constant 0 : i32
    %11 = arith.cmpi ne, %10, %c0_i32_8 : i32
    scf.if %11 {
      %c0_9 = arith.constant 0 : index
      %c0_10 = arith.constant 0 : index
      %12 = vector.load %arg7[%c0_9, %c0_10] : memref<56x128xf32, #tpu.memory_space<vmem>>, vector<56x128xf32>
      %c0_11 = arith.constant 0 : index
      %c0_12 = arith.constant 0 : index
      %13 = vector.load %arg5[%c0_11, %c0_12] : memref<1x128xf32, #tpu.memory_space<vmem>>, vector<1x128xf32>
      %14 = vector.broadcast %13 : vector<1x128xf32> to vector<56x128xf32>
      %15 = arith.addf %12, %14 : vector<56x128xf32>
      %c0_13 = arith.constant 0 : index
      %c0_14 = arith.constant 0 : index
      %16 = vector.load %arg6[%c0_13, %c0_14] : memref<56x128xf32, #tpu.memory_space<vmem>>, vector<56x128xf32>
      %17 = arith.addf %15, %16 : vector<56x128xf32>
      %cst_15 = arith.constant 0.000000e+00 : f32
      %18 = vector.broadcast %cst_15 : f32 to vector<56x128xf32>
      %19 = arith.maximumf %17, %18 : vector<56x128xf32>
      %c0_16 = arith.constant 0 : index
      %c0_17 = arith.constant 0 : index
      %20 = vector.load %arg7[%c0_16, %c0_17] : memref<56x128xf32, #tpu.memory_space<vmem>>, vector<56x128xf32>
      tpu.vector_store %arg7[%c0_16, %c0_17], %19 {strides = array<i32>} : memref<56x128xf32, #tpu.memory_space<vmem>>, vector<56x128xf32>,
    } else {
    }
    return
  }
  func.func @transform_0(%arg0: i32, %arg1: i32, %arg2: i32) -> (i32, i32) {
    %c0_i32 = arith.constant 0 : i32
    return %arg0, %arg2 : i32, i32
  }
  func.func @transform_1(%arg0: i32, %arg1: i32, %arg2: i32) -> (i32, i32) {
    %c0_i32 = arith.constant 0 : i32
    return %arg2, %arg1 : i32, i32
  }
  func.func @transform_2(%arg0: i32, %arg1: i32, %arg2: i32) -> (i32, i32) {
    %c0_i32 = arith.constant 0 : i32
    %c0_i32_0 = arith.constant 0 : i32
    return %c0_i32, %arg1 : i32, i32
  }
  func.func @transform_3(%arg0: i32, %arg1: i32, %arg2: i32) -> (i32, i32) {
    %c0_i32 = arith.constant 0 : i32
    return %arg0, %arg1 : i32, i32
  }
  func.func @transform_4(%arg0: i32, %arg1: i32, %arg2: i32) -> (i32, i32) {
    %c0_i32 = arith.constant 0 : i32
    return %arg0, %arg1 : i32, i32
  }
}

module attributes {stable_mosaic.version = 11 : i64} {
  func.func @_fused_gemm_kernel(%arg0: i32, %arg1: i32, %arg2: i32, %arg3: memref<56x128xbf16, #tpu.memory_space<vmem>>, %arg4: memref<128x128xbf16, #tpu.memory_space<vmem>>, %arg5: memref<1x128xf32, #tpu.memory_space<vmem>>, %arg6: memref<56x128xf32, #tpu.memory_space<vmem>>) attributes {dimension_semantics = [#tpu.dimension_semantics<parallel>, #tpu.dimension_semantics<parallel>, #tpu.dimension_semantics<arbitrary>], iteration_bounds = array<i64: 1, 1, 1>, scalar_prefetch = 0 : i64, scratch_operands = 0 : i64, tpu.core_type = #tpu.core_type<tc>, window_params = [{transform_indices = @transform_0, window_bounds = array<i64: 56, 128>}, {transform_indices = @transform_1, window_bounds = array<i64: 128, 128>}, {transform_indices = @transform_2, window_bounds = array<i64: 1, 128>}, {transform_indices = @transform_3, window_bounds = array<i64: 56, 128>}]} {
    %c0_i32 = arith.constant 0 : i32
    %0 = arith.cmpi eq, %arg2, %c0_i32 : i32
    %1 = arith.extui %0 : i1 to i32
    %c0_i32_0 = arith.constant 0 : i32
    %2 = arith.cmpi ne, %1, %c0_i32_0 : i32
    scf.if %2 {
      %cst_10 = arith.constant 0.000000e+00 : f32
      %12 = vector.broadcast %cst_10 : f32 to vector<56x128xf32>
      %c0_11 = arith.constant 0 : index
      %c0_12 = arith.constant 0 : index
      %13 = vector.load %arg6[%c0_11, %c0_12] : memref<56x128xf32, #tpu.memory_space<vmem>>, vector<56x128xf32>
      tpu.vector_store %arg6[%c0_11, %c0_12], %12 {strides = array<i32>} : memref<56x128xf32, #tpu.memory_space<vmem>>, vector<56x128xf32>,
    } else {
    }
    %c0 = arith.constant 0 : index
    %c0_1 = arith.constant 0 : index
    %3 = vector.load %arg6[%c0, %c0_1] : memref<56x128xf32, #tpu.memory_space<vmem>>, vector<56x128xf32>
    %c0_2 = arith.constant 0 : index
    %c0_3 = arith.constant 0 : index
    %4 = vector.load %arg3[%c0_2, %c0_3] : memref<56x128xbf16, #tpu.memory_space<vmem>>, vector<56x128xbf16>
    %c0_4 = arith.constant 0 : index
    %c0_5 = arith.constant 0 : index
    %5 = vector.load %arg4[%c0_4, %c0_5] : memref<128x128xbf16, #tpu.memory_space<vmem>>, vector<128x128xbf16>
    %cst = arith.constant dense<0.000000e+00> : vector<56x128xf32>
    %6 = tpu.matmul %4, %5, %cst {dimension_numbers = #tpu.dot_dimension_numbers<[1], [0], [0], [1], [0, 0, 1, 1], [], []>} : vector<56x128xbf16>, vector<128x128xbf16>, vector<56x128xf32> -> vector<56x128xf32>
    %7 = arith.addf %3, %6 : vector<56x128xf32>
    %c0_6 = arith.constant 0 : index
    %c0_7 = arith.constant 0 : index
    %8 = vector.load %arg6[%c0_6, %c0_7] : memref<56x128xf32, #tpu.memory_space<vmem>>, vector<56x128xf32>
    tpu.vector_store %arg6[%c0_6, %c0_7], %7 {strides = array<i32>} : memref<56x128xf32, #tpu.memory_space<vmem>>, vector<56x128xf32>,
    %c0_i32_8 = arith.constant 0 : i32
    %9 = arith.cmpi eq, %arg2, %c0_i32_8 : i32
    %10 = arith.extui %9 : i1 to i32
    %c0_i32_9 = arith.constant 0 : i32
    %11 = arith.cmpi ne, %10, %c0_i32_9 : i32
    scf.if %11 {
      %c0_10 = arith.constant 0 : index
      %c0_11 = arith.constant 0 : index
      %12 = vector.load %arg6[%c0_10, %c0_11] : memref<56x128xf32, #tpu.memory_space<vmem>>, vector<56x128xf32>
      %c0_12 = arith.constant 0 : index
      %c0_13 = arith.constant 0 : index
      %13 = vector.load %arg5[%c0_12, %c0_13] : memref<1x128xf32, #tpu.memory_space<vmem>>, vector<1x128xf32>
      %14 = vector.broadcast %13 : vector<1x128xf32> to vector<56x128xf32>
      %15 = arith.addf %12, %14 : vector<56x128xf32>
      %c0_14 = arith.constant 0 : index
      %c0_15 = arith.constant 0 : index
      %16 = vector.load %arg6[%c0_14, %c0_15] : memref<56x128xf32, #tpu.memory_space<vmem>>, vector<56x128xf32>
      tpu.vector_store %arg6[%c0_14, %c0_15], %15 {strides = array<i32>} : memref<56x128xf32, #tpu.memory_space<vmem>>, vector<56x128xf32>,
    } else {
    }
    return
  }
  func.func @transform_0(%arg0: i32, %arg1: i32, %arg2: i32) -> (i32, i32) {
    %c0_i32 = arith.constant 0 : i32
    return %arg0, %arg2 : i32, i32
  }
  func.func @transform_1(%arg0: i32, %arg1: i32, %arg2: i32) -> (i32, i32) {
    %c0_i32 = arith.constant 0 : i32
    return %arg2, %arg1 : i32, i32
  }
  func.func @transform_2(%arg0: i32, %arg1: i32, %arg2: i32) -> (i32, i32) {
    %c0_i32 = arith.constant 0 : i32
    %c0_i32_0 = arith.constant 0 : i32
    return %c0_i32, %arg1 : i32, i32
  }
  func.func @transform_3(%arg0: i32, %arg1: i32, %arg2: i32) -> (i32, i32) {
    %c0_i32 = arith.constant 0 : i32
    return %arg0, %arg1 : i32, i32
  }
}

module attributes {stable_mosaic.version = 11 : i64} {
  func.func @_fused_gemm_kernel(%arg0: i32, %arg1: i32, %arg2: i32, %arg3: memref<24x384xbf16, #tpu.memory_space<vmem>>, %arg4: memref<384x256xbf16, #tpu.memory_space<vmem>>, %arg5: memref<1x256xf32, #tpu.memory_space<vmem>>, %arg6: memref<24x256xf32, #tpu.memory_space<vmem>>) attributes {dimension_semantics = [#tpu.dimension_semantics<parallel>, #tpu.dimension_semantics<parallel>, #tpu.dimension_semantics<arbitrary>], iteration_bounds = array<i64: 1, 1, 3>, scalar_prefetch = 0 : i64, scratch_operands = 0 : i64, tpu.core_type = #tpu.core_type<tc>, window_params = [{transform_indices = @transform_0, window_bounds = array<i64: 24, 384>}, {transform_indices = @transform_1, window_bounds = array<i64: 384, 256>}, {transform_indices = @transform_2, window_bounds = array<i64: 1, 256>}, {transform_indices = @transform_3, window_bounds = array<i64: 24, 256>}]} {
    %c0_i32 = arith.constant 0 : i32
    %0 = arith.cmpi eq, %arg2, %c0_i32 : i32
    %1 = arith.extui %0 : i1 to i32
    %c0_i32_0 = arith.constant 0 : i32
    %2 = arith.cmpi ne, %1, %c0_i32_0 : i32
    scf.if %2 {
      %cst_9 = arith.constant 0.000000e+00 : f32
      %12 = vector.broadcast %cst_9 : f32 to vector<24x256xf32>
      %c0_10 = arith.constant 0 : index
      %c0_11 = arith.constant 0 : index
      %13 = vector.load %arg6[%c0_10, %c0_11] : memref<24x256xf32, #tpu.memory_space<vmem>>, vector<24x256xf32>
      tpu.vector_store %arg6[%c0_10, %c0_11], %12 {strides = array<i32>} : memref<24x256xf32, #tpu.memory_space<vmem>>, vector<24x256xf32>,
    } else {
    }
    %c0 = arith.constant 0 : index
    %c0_1 = arith.constant 0 : index
    %3 = vector.load %arg6[%c0, %c0_1] : memref<24x256xf32, #tpu.memory_space<vmem>>, vector<24x256xf32>
    %c0_2 = arith.constant 0 : index
    %c0_3 = arith.constant 0 : index
    %4 = vector.load %arg3[%c0_2, %c0_3] : memref<24x384xbf16, #tpu.memory_space<vmem>>, vector<24x384xbf16>
    %c0_4 = arith.constant 0 : index
    %c0_5 = arith.constant 0 : index
    %5 = vector.load %arg4[%c0_4, %c0_5] : memref<384x256xbf16, #tpu.memory_space<vmem>>, vector<384x256xbf16>
    %cst = arith.constant dense<0.000000e+00> : vector<24x256xf32>
    %6 = tpu.matmul %4, %5, %cst {dimension_numbers = #tpu.dot_dimension_numbers<[1], [0], [0], [1], [0, 0, 1, 1], [], []>} : vector<24x384xbf16>, vector<384x256xbf16>, vector<24x256xf32> -> vector<24x256xf32>
    %7 = arith.addf %3, %6 : vector<24x256xf32>
    %c0_6 = arith.constant 0 : index
    %c0_7 = arith.constant 0 : index
    %8 = vector.load %arg6[%c0_6, %c0_7] : memref<24x256xf32, #tpu.memory_space<vmem>>, vector<24x256xf32>
    tpu.vector_store %arg6[%c0_6, %c0_7], %7 {strides = array<i32>} : memref<24x256xf32, #tpu.memory_space<vmem>>, vector<24x256xf32>,
    %c2_i32 = arith.constant 2 : i32
    %9 = arith.cmpi eq, %arg2, %c2_i32 : i32
    %10 = arith.extui %9 : i1 to i32
    %c0_i32_8 = arith.constant 0 : i32
    %11 = arith.cmpi ne, %10, %c0_i32_8 : i32
    scf.if %11 {
      %c0_9 = arith.constant 0 : index
      %c0_10 = arith.constant 0 : index
      %12 = vector.load %arg6[%c0_9, %c0_10] : memref<24x256xf32, #tpu.memory_space<vmem>>, vector<24x256xf32>
      %c0_11 = arith.constant 0 : index
      %c0_12 = arith.constant 0 : index
      %13 = vector.load %arg5[%c0_11, %c0_12] : memref<1x256xf32, #tpu.memory_space<vmem>>, vector<1x256xf32>
      %14 = vector.broadcast %13 : vector<1x256xf32> to vector<24x256xf32>
      %15 = arith.addf %12, %14 : vector<24x256xf32>
      %cst_13 = arith.constant 0.000000e+00 : f32
      %16 = vector.broadcast %cst_13 : f32 to vector<24x256xf32>
      %17 = arith.maximumf %15, %16 : vector<24x256xf32>
      %c0_14 = arith.constant 0 : index
      %c0_15 = arith.constant 0 : index
      %18 = vector.load %arg6[%c0_14, %c0_15] : memref<24x256xf32, #tpu.memory_space<vmem>>, vector<24x256xf32>
      tpu.vector_store %arg6[%c0_14, %c0_15], %17 {strides = array<i32>} : memref<24x256xf32, #tpu.memory_space<vmem>>, vector<24x256xf32>,
    } else {
    }
    return
  }
  func.func @transform_0(%arg0: i32, %arg1: i32, %arg2: i32) -> (i32, i32) {
    %c0_i32 = arith.constant 0 : i32
    return %arg0, %arg2 : i32, i32
  }
  func.func @transform_1(%arg0: i32, %arg1: i32, %arg2: i32) -> (i32, i32) {
    %c0_i32 = arith.constant 0 : i32
    return %arg2, %arg1 : i32, i32
  }
  func.func @transform_2(%arg0: i32, %arg1: i32, %arg2: i32) -> (i32, i32) {
    %c0_i32 = arith.constant 0 : i32
    %c0_i32_0 = arith.constant 0 : i32
    return %c0_i32, %arg1 : i32, i32
  }
  func.func @transform_3(%arg0: i32, %arg1: i32, %arg2: i32) -> (i32, i32) {
    %c0_i32 = arith.constant 0 : i32
    return %arg0, %arg1 : i32, i32
  }
}

module attributes {stable_mosaic.version = 11 : i64} {
  func.func @_fused_gemm_kernel(%arg0: i32, %arg1: i32, %arg2: i32, %arg3: memref<24x128xbf16, #tpu.memory_space<vmem>>, %arg4: memref<128x256xbf16, #tpu.memory_space<vmem>>, %arg5: memref<1x256xf32, #tpu.memory_space<vmem>>, %arg6: memref<24x256xf32, #tpu.memory_space<vmem>>) attributes {dimension_semantics = [#tpu.dimension_semantics<parallel>, #tpu.dimension_semantics<parallel>, #tpu.dimension_semantics<arbitrary>], iteration_bounds = array<i64: 1, 1, 1>, scalar_prefetch = 0 : i64, scratch_operands = 0 : i64, tpu.core_type = #tpu.core_type<tc>, window_params = [{transform_indices = @transform_0, window_bounds = array<i64: 24, 128>}, {transform_indices = @transform_1, window_bounds = array<i64: 128, 256>}, {transform_indices = @transform_2, window_bounds = array<i64: 1, 256>}, {transform_indices = @transform_3, window_bounds = array<i64: 24, 256>}]} {
    %c0_i32 = arith.constant 0 : i32
    %0 = arith.cmpi eq, %arg2, %c0_i32 : i32
    %1 = arith.extui %0 : i1 to i32
    %c0_i32_0 = arith.constant 0 : i32
    %2 = arith.cmpi ne, %1, %c0_i32_0 : i32
    scf.if %2 {
      %cst_10 = arith.constant 0.000000e+00 : f32
      %12 = vector.broadcast %cst_10 : f32 to vector<24x256xf32>
      %c0_11 = arith.constant 0 : index
      %c0_12 = arith.constant 0 : index
      %13 = vector.load %arg6[%c0_11, %c0_12] : memref<24x256xf32, #tpu.memory_space<vmem>>, vector<24x256xf32>
      tpu.vector_store %arg6[%c0_11, %c0_12], %12 {strides = array<i32>} : memref<24x256xf32, #tpu.memory_space<vmem>>, vector<24x256xf32>,
    } else {
    }
    %c0 = arith.constant 0 : index
    %c0_1 = arith.constant 0 : index
    %3 = vector.load %arg6[%c0, %c0_1] : memref<24x256xf32, #tpu.memory_space<vmem>>, vector<24x256xf32>
    %c0_2 = arith.constant 0 : index
    %c0_3 = arith.constant 0 : index
    %4 = vector.load %arg3[%c0_2, %c0_3] : memref<24x128xbf16, #tpu.memory_space<vmem>>, vector<24x128xbf16>
    %c0_4 = arith.constant 0 : index
    %c0_5 = arith.constant 0 : index
    %5 = vector.load %arg4[%c0_4, %c0_5] : memref<128x256xbf16, #tpu.memory_space<vmem>>, vector<128x256xbf16>
    %cst = arith.constant dense<0.000000e+00> : vector<24x256xf32>
    %6 = tpu.matmul %4, %5, %cst {dimension_numbers = #tpu.dot_dimension_numbers<[1], [0], [0], [1], [0, 0, 1, 1], [], []>} : vector<24x128xbf16>, vector<128x256xbf16>, vector<24x256xf32> -> vector<24x256xf32>
    %7 = arith.addf %3, %6 : vector<24x256xf32>
    %c0_6 = arith.constant 0 : index
    %c0_7 = arith.constant 0 : index
    %8 = vector.load %arg6[%c0_6, %c0_7] : memref<24x256xf32, #tpu.memory_space<vmem>>, vector<24x256xf32>
    tpu.vector_store %arg6[%c0_6, %c0_7], %7 {strides = array<i32>} : memref<24x256xf32, #tpu.memory_space<vmem>>, vector<24x256xf32>,
    %c0_i32_8 = arith.constant 0 : i32
    %9 = arith.cmpi eq, %arg2, %c0_i32_8 : i32
    %10 = arith.extui %9 : i1 to i32
    %c0_i32_9 = arith.constant 0 : i32
    %11 = arith.cmpi ne, %10, %c0_i32_9 : i32
    scf.if %11 {
      %c0_10 = arith.constant 0 : index
      %c0_11 = arith.constant 0 : index
      %12 = vector.load %arg6[%c0_10, %c0_11] : memref<24x256xf32, #tpu.memory_space<vmem>>, vector<24x256xf32>
      %c0_12 = arith.constant 0 : index
      %c0_13 = arith.constant 0 : index
      %13 = vector.load %arg5[%c0_12, %c0_13] : memref<1x256xf32, #tpu.memory_space<vmem>>, vector<1x256xf32>
      %14 = vector.broadcast %13 : vector<1x256xf32> to vector<24x256xf32>
      %15 = arith.addf %12, %14 : vector<24x256xf32>
      %c0_14 = arith.constant 0 : index
      %c0_15 = arith.constant 0 : index
      %16 = vector.load %arg6[%c0_14, %c0_15] : memref<24x256xf32, #tpu.memory_space<vmem>>, vector<24x256xf32>
      tpu.vector_store %arg6[%c0_14, %c0_15], %15 {strides = array<i32>} : memref<24x256xf32, #tpu.memory_space<vmem>>, vector<24x256xf32>,
    } else {
    }
    return
  }
  func.func @transform_0(%arg0: i32, %arg1: i32, %arg2: i32) -> (i32, i32) {
    %c0_i32 = arith.constant 0 : i32
    return %arg0, %arg2 : i32, i32
  }
  func.func @transform_1(%arg0: i32, %arg1: i32, %arg2: i32) -> (i32, i32) {
    %c0_i32 = arith.constant 0 : i32
    return %arg2, %arg1 : i32, i32
  }
  func.func @transform_2(%arg0: i32, %arg1: i32, %arg2: i32) -> (i32, i32) {
    %c0_i32 = arith.constant 0 : i32
    %c0_i32_0 = arith.constant 0 : i32
    return %c0_i32, %arg1 : i32, i32
  }
  func.func @transform_3(%arg0: i32, %arg1: i32, %arg2: i32) -> (i32, i32) {
    %c0_i32 = arith.constant 0 : i32
    return %arg0, %arg1 : i32, i32
  }
}

module attributes {stable_mosaic.version = 11 : i64} {
  func.func @_fused_gemm_kernel(%arg0: i32, %arg1: i32, %arg2: i32, %arg3: memref<24x384xbf16, #tpu.memory_space<vmem>>, %arg4: memref<384x256xbf16, #tpu.memory_space<vmem>>, %arg5: memref<1x256xf32, #tpu.memory_space<vmem>>, %arg6: memref<24x256xf32, #tpu.memory_space<vmem>>, %arg7: memref<24x256xf32, #tpu.memory_space<vmem>>) attributes {dimension_semantics = [#tpu.dimension_semantics<parallel>, #tpu.dimension_semantics<parallel>, #tpu.dimension_semantics<arbitrary>], iteration_bounds = array<i64: 1, 1, 6>, scalar_prefetch = 0 : i64, scratch_operands = 0 : i64, tpu.core_type = #tpu.core_type<tc>, window_params = [{transform_indices = @transform_0, window_bounds = array<i64: 24, 384>}, {transform_indices = @transform_1, window_bounds = array<i64: 384, 256>}, {transform_indices = @transform_2, window_bounds = array<i64: 1, 256>}, {transform_indices = @transform_3, window_bounds = array<i64: 24, 256>}, {transform_indices = @transform_4, window_bounds = array<i64: 24, 256>}]} {
    %c0_i32 = arith.constant 0 : i32
    %0 = arith.cmpi eq, %arg2, %c0_i32 : i32
    %1 = arith.extui %0 : i1 to i32
    %c0_i32_0 = arith.constant 0 : i32
    %2 = arith.cmpi ne, %1, %c0_i32_0 : i32
    scf.if %2 {
      %cst_9 = arith.constant 0.000000e+00 : f32
      %12 = vector.broadcast %cst_9 : f32 to vector<24x256xf32>
      %c0_10 = arith.constant 0 : index
      %c0_11 = arith.constant 0 : index
      %13 = vector.load %arg7[%c0_10, %c0_11] : memref<24x256xf32, #tpu.memory_space<vmem>>, vector<24x256xf32>
      tpu.vector_store %arg7[%c0_10, %c0_11], %12 {strides = array<i32>} : memref<24x256xf32, #tpu.memory_space<vmem>>, vector<24x256xf32>,
    } else {
    }
    %c0 = arith.constant 0 : index
    %c0_1 = arith.constant 0 : index
    %3 = vector.load %arg7[%c0, %c0_1] : memref<24x256xf32, #tpu.memory_space<vmem>>, vector<24x256xf32>
    %c0_2 = arith.constant 0 : index
    %c0_3 = arith.constant 0 : index
    %4 = vector.load %arg3[%c0_2, %c0_3] : memref<24x384xbf16, #tpu.memory_space<vmem>>, vector<24x384xbf16>
    %c0_4 = arith.constant 0 : index
    %c0_5 = arith.constant 0 : index
    %5 = vector.load %arg4[%c0_4, %c0_5] : memref<384x256xbf16, #tpu.memory_space<vmem>>, vector<384x256xbf16>
    %cst = arith.constant dense<0.000000e+00> : vector<24x256xf32>
    %6 = tpu.matmul %4, %5, %cst {dimension_numbers = #tpu.dot_dimension_numbers<[1], [0], [0], [1], [0, 0, 1, 1], [], []>} : vector<24x384xbf16>, vector<384x256xbf16>, vector<24x256xf32> -> vector<24x256xf32>
    %7 = arith.addf %3, %6 : vector<24x256xf32>
    %c0_6 = arith.constant 0 : index
    %c0_7 = arith.constant 0 : index
    %8 = vector.load %arg7[%c0_6, %c0_7] : memref<24x256xf32, #tpu.memory_space<vmem>>, vector<24x256xf32>
    tpu.vector_store %arg7[%c0_6, %c0_7], %7 {strides = array<i32>} : memref<24x256xf32, #tpu.memory_space<vmem>>, vector<24x256xf32>,
    %c5_i32 = arith.constant 5 : i32
    %9 = arith.cmpi eq, %arg2, %c5_i32 : i32
    %10 = arith.extui %9 : i1 to i32
    %c0_i32_8 = arith.constant 0 : i32
    %11 = arith.cmpi ne, %10, %c0_i32_8 : i32
    scf.if %11 {
      %c0_9 = arith.constant 0 : index
      %c0_10 = arith.constant 0 : index
      %12 = vector.load %arg7[%c0_9, %c0_10] : memref<24x256xf32, #tpu.memory_space<vmem>>, vector<24x256xf32>
      %c0_11 = arith.constant 0 : index
      %c0_12 = arith.constant 0 : index
      %13 = vector.load %arg5[%c0_11, %c0_12] : memref<1x256xf32, #tpu.memory_space<vmem>>, vector<1x256xf32>
      %14 = vector.broadcast %13 : vector<1x256xf32> to vector<24x256xf32>
      %15 = arith.addf %12, %14 : vector<24x256xf32>
      %c0_13 = arith.constant 0 : index
      %c0_14 = arith.constant 0 : index
      %16 = vector.load %arg6[%c0_13, %c0_14] : memref<24x256xf32, #tpu.memory_space<vmem>>, vector<24x256xf32>
      %17 = arith.addf %15, %16 : vector<24x256xf32>
      %cst_15 = arith.constant 0.000000e+00 : f32
      %18 = vector.broadcast %cst_15 : f32 to vector<24x256xf32>
      %19 = arith.maximumf %17, %18 : vector<24x256xf32>
      %c0_16 = arith.constant 0 : index
      %c0_17 = arith.constant 0 : index
      %20 = vector.load %arg7[%c0_16, %c0_17] : memref<24x256xf32, #tpu.memory_space<vmem>>, vector<24x256xf32>
      tpu.vector_store %arg7[%c0_16, %c0_17], %19 {strides = array<i32>} : memref<24x256xf32, #tpu.memory_space<vmem>>, vector<24x256xf32>,
    } else {
    }
    return
  }
  func.func @transform_0(%arg0: i32, %arg1: i32, %arg2: i32) -> (i32, i32) {
    %c0_i32 = arith.constant 0 : i32
    return %arg0, %arg2 : i32, i32
  }
  func.func @transform_1(%arg0: i32, %arg1: i32, %arg2: i32) -> (i32, i32) {
    %c0_i32 = arith.constant 0 : i32
    return %arg2, %arg1 : i32, i32
  }
  func.func @transform_2(%arg0: i32, %arg1: i32, %arg2: i32) -> (i32, i32) {
    %c0_i32 = arith.constant 0 : i32
    %c0_i32_0 = arith.constant 0 : i32
    return %c0_i32, %arg1 : i32, i32
  }
  func.func @transform_3(%arg0: i32, %arg1: i32, %arg2: i32) -> (i32, i32) {
    %c0_i32 = arith.constant 0 : i32
    return %arg0, %arg1 : i32, i32
  }
  func.func @transform_4(%arg0: i32, %arg1: i32, %arg2: i32) -> (i32, i32) {
    %c0_i32 = arith.constant 0 : i32
    return %arg0, %arg1 : i32, i32
  }
}

module attributes {stable_mosaic.version = 11 : i64} {
  func.func @_fused_gemm_kernel(%arg0: i32, %arg1: i32, %arg2: i32, %arg3: memref<8x384xbf16, #tpu.memory_space<vmem>>, %arg4: memref<384x256xbf16, #tpu.memory_space<vmem>>, %arg5: memref<1x256xf32, #tpu.memory_space<vmem>>, %arg6: memref<8x256xf32, #tpu.memory_space<vmem>>) attributes {dimension_semantics = [#tpu.dimension_semantics<parallel>, #tpu.dimension_semantics<parallel>, #tpu.dimension_semantics<arbitrary>], iteration_bounds = array<i64: 1, 2, 6>, scalar_prefetch = 0 : i64, scratch_operands = 0 : i64, tpu.core_type = #tpu.core_type<tc>, window_params = [{transform_indices = @transform_0, window_bounds = array<i64: 8, 384>}, {transform_indices = @transform_1, window_bounds = array<i64: 384, 256>}, {transform_indices = @transform_2, window_bounds = array<i64: 1, 256>}, {transform_indices = @transform_3, window_bounds = array<i64: 8, 256>}]} {
    %c0_i32 = arith.constant 0 : i32
    %0 = arith.cmpi eq, %arg2, %c0_i32 : i32
    %1 = arith.extui %0 : i1 to i32
    %c0_i32_0 = arith.constant 0 : i32
    %2 = arith.cmpi ne, %1, %c0_i32_0 : i32
    scf.if %2 {
      %cst_9 = arith.constant 0.000000e+00 : f32
      %12 = vector.broadcast %cst_9 : f32 to vector<8x256xf32>
      %c0_10 = arith.constant 0 : index
      %c0_11 = arith.constant 0 : index
      %13 = vector.load %arg6[%c0_10, %c0_11] : memref<8x256xf32, #tpu.memory_space<vmem>>, vector<8x256xf32>
      tpu.vector_store %arg6[%c0_10, %c0_11], %12 {strides = array<i32>} : memref<8x256xf32, #tpu.memory_space<vmem>>, vector<8x256xf32>,
    } else {
    }
    %c0 = arith.constant 0 : index
    %c0_1 = arith.constant 0 : index
    %3 = vector.load %arg6[%c0, %c0_1] : memref<8x256xf32, #tpu.memory_space<vmem>>, vector<8x256xf32>
    %c0_2 = arith.constant 0 : index
    %c0_3 = arith.constant 0 : index
    %4 = vector.load %arg3[%c0_2, %c0_3] : memref<8x384xbf16, #tpu.memory_space<vmem>>, vector<8x384xbf16>
    %c0_4 = arith.constant 0 : index
    %c0_5 = arith.constant 0 : index
    %5 = vector.load %arg4[%c0_4, %c0_5] : memref<384x256xbf16, #tpu.memory_space<vmem>>, vector<384x256xbf16>
    %cst = arith.constant dense<0.000000e+00> : vector<8x256xf32>
    %6 = tpu.matmul %4, %5, %cst {dimension_numbers = #tpu.dot_dimension_numbers<[1], [0], [0], [1], [0, 0, 1, 1], [], []>} : vector<8x384xbf16>, vector<384x256xbf16>, vector<8x256xf32> -> vector<8x256xf32>
    %7 = arith.addf %3, %6 : vector<8x256xf32>
    %c0_6 = arith.constant 0 : index
    %c0_7 = arith.constant 0 : index
    %8 = vector.load %arg6[%c0_6, %c0_7] : memref<8x256xf32, #tpu.memory_space<vmem>>, vector<8x256xf32>
    tpu.vector_store %arg6[%c0_6, %c0_7], %7 {strides = array<i32>} : memref<8x256xf32, #tpu.memory_space<vmem>>, vector<8x256xf32>,
    %c5_i32 = arith.constant 5 : i32
    %9 = arith.cmpi eq, %arg2, %c5_i32 : i32
    %10 = arith.extui %9 : i1 to i32
    %c0_i32_8 = arith.constant 0 : i32
    %11 = arith.cmpi ne, %10, %c0_i32_8 : i32
    scf.if %11 {
      %c0_9 = arith.constant 0 : index
      %c0_10 = arith.constant 0 : index
      %12 = vector.load %arg6[%c0_9, %c0_10] : memref<8x256xf32, #tpu.memory_space<vmem>>, vector<8x256xf32>
      %c0_11 = arith.constant 0 : index
      %c0_12 = arith.constant 0 : index
      %13 = vector.load %arg5[%c0_11, %c0_12] : memref<1x256xf32, #tpu.memory_space<vmem>>, vector<1x256xf32>
      %14 = vector.broadcast %13 : vector<1x256xf32> to vector<8x256xf32>
      %15 = arith.addf %12, %14 : vector<8x256xf32>
      %cst_13 = arith.constant 0.000000e+00 : f32
      %16 = vector.broadcast %cst_13 : f32 to vector<8x256xf32>
      %17 = arith.maximumf %15, %16 : vector<8x256xf32>
      %c0_14 = arith.constant 0 : index
      %c0_15 = arith.constant 0 : index
      %18 = vector.load %arg6[%c0_14, %c0_15] : memref<8x256xf32, #tpu.memory_space<vmem>>, vector<8x256xf32>
      tpu.vector_store %arg6[%c0_14, %c0_15], %17 {strides = array<i32>} : memref<8x256xf32, #tpu.memory_space<vmem>>, vector<8x256xf32>,
    } else {
    }
    return
  }
  func.func @transform_0(%arg0: i32, %arg1: i32, %arg2: i32) -> (i32, i32) {
    %c0_i32 = arith.constant 0 : i32
    return %arg0, %arg2 : i32, i32
  }
  func.func @transform_1(%arg0: i32, %arg1: i32, %arg2: i32) -> (i32, i32) {
    %c0_i32 = arith.constant 0 : i32
    return %arg2, %arg1 : i32, i32
  }
  func.func @transform_2(%arg0: i32, %arg1: i32, %arg2: i32) -> (i32, i32) {
    %c0_i32 = arith.constant 0 : i32
    %c0_i32_0 = arith.constant 0 : i32
    return %c0_i32, %arg1 : i32, i32
  }
  func.func @transform_3(%arg0: i32, %arg1: i32, %arg2: i32) -> (i32, i32) {
    %c0_i32 = arith.constant 0 : i32
    return %arg0, %arg1 : i32, i32
  }
}

module attributes {stable_mosaic.version = 11 : i64} {
  func.func @_fused_gemm_kernel(%arg0: i32, %arg1: i32, %arg2: i32, %arg3: memref<8x256xbf16, #tpu.memory_space<vmem>>, %arg4: memref<256x256xbf16, #tpu.memory_space<vmem>>, %arg5: memref<1x256xf32, #tpu.memory_space<vmem>>, %arg6: memref<8x256xf32, #tpu.memory_space<vmem>>) attributes {dimension_semantics = [#tpu.dimension_semantics<parallel>, #tpu.dimension_semantics<parallel>, #tpu.dimension_semantics<arbitrary>], iteration_bounds = array<i64: 1, 2, 1>, scalar_prefetch = 0 : i64, scratch_operands = 0 : i64, tpu.core_type = #tpu.core_type<tc>, window_params = [{transform_indices = @transform_0, window_bounds = array<i64: 8, 256>}, {transform_indices = @transform_1, window_bounds = array<i64: 256, 256>}, {transform_indices = @transform_2, window_bounds = array<i64: 1, 256>}, {transform_indices = @transform_3, window_bounds = array<i64: 8, 256>}]} {
    %c0_i32 = arith.constant 0 : i32
    %0 = arith.cmpi eq, %arg2, %c0_i32 : i32
    %1 = arith.extui %0 : i1 to i32
    %c0_i32_0 = arith.constant 0 : i32
    %2 = arith.cmpi ne, %1, %c0_i32_0 : i32
    scf.if %2 {
      %cst_10 = arith.constant 0.000000e+00 : f32
      %12 = vector.broadcast %cst_10 : f32 to vector<8x256xf32>
      %c0_11 = arith.constant 0 : index
      %c0_12 = arith.constant 0 : index
      %13 = vector.load %arg6[%c0_11, %c0_12] : memref<8x256xf32, #tpu.memory_space<vmem>>, vector<8x256xf32>
      tpu.vector_store %arg6[%c0_11, %c0_12], %12 {strides = array<i32>} : memref<8x256xf32, #tpu.memory_space<vmem>>, vector<8x256xf32>,
    } else {
    }
    %c0 = arith.constant 0 : index
    %c0_1 = arith.constant 0 : index
    %3 = vector.load %arg6[%c0, %c0_1] : memref<8x256xf32, #tpu.memory_space<vmem>>, vector<8x256xf32>
    %c0_2 = arith.constant 0 : index
    %c0_3 = arith.constant 0 : index
    %4 = vector.load %arg3[%c0_2, %c0_3] : memref<8x256xbf16, #tpu.memory_space<vmem>>, vector<8x256xbf16>
    %c0_4 = arith.constant 0 : index
    %c0_5 = arith.constant 0 : index
    %5 = vector.load %arg4[%c0_4, %c0_5] : memref<256x256xbf16, #tpu.memory_space<vmem>>, vector<256x256xbf16>
    %cst = arith.constant dense<0.000000e+00> : vector<8x256xf32>
    %6 = tpu.matmul %4, %5, %cst {dimension_numbers = #tpu.dot_dimension_numbers<[1], [0], [0], [1], [0, 0, 1, 1], [], []>} : vector<8x256xbf16>, vector<256x256xbf16>, vector<8x256xf32> -> vector<8x256xf32>
    %7 = arith.addf %3, %6 : vector<8x256xf32>
    %c0_6 = arith.constant 0 : index
    %c0_7 = arith.constant 0 : index
    %8 = vector.load %arg6[%c0_6, %c0_7] : memref<8x256xf32, #tpu.memory_space<vmem>>, vector<8x256xf32>
    tpu.vector_store %arg6[%c0_6, %c0_7], %7 {strides = array<i32>} : memref<8x256xf32, #tpu.memory_space<vmem>>, vector<8x256xf32>,
    %c0_i32_8 = arith.constant 0 : i32
    %9 = arith.cmpi eq, %arg2, %c0_i32_8 : i32
    %10 = arith.extui %9 : i1 to i32
    %c0_i32_9 = arith.constant 0 : i32
    %11 = arith.cmpi ne, %10, %c0_i32_9 : i32
    scf.if %11 {
      %c0_10 = arith.constant 0 : index
      %c0_11 = arith.constant 0 : index
      %12 = vector.load %arg6[%c0_10, %c0_11] : memref<8x256xf32, #tpu.memory_space<vmem>>, vector<8x256xf32>
      %c0_12 = arith.constant 0 : index
      %c0_13 = arith.constant 0 : index
      %13 = vector.load %arg5[%c0_12, %c0_13] : memref<1x256xf32, #tpu.memory_space<vmem>>, vector<1x256xf32>
      %14 = vector.broadcast %13 : vector<1x256xf32> to vector<8x256xf32>
      %15 = arith.addf %12, %14 : vector<8x256xf32>
      %c0_14 = arith.constant 0 : index
      %c0_15 = arith.constant 0 : index
      %16 = vector.load %arg6[%c0_14, %c0_15] : memref<8x256xf32, #tpu.memory_space<vmem>>, vector<8x256xf32>
      tpu.vector_store %arg6[%c0_14, %c0_15], %15 {strides = array<i32>} : memref<8x256xf32, #tpu.memory_space<vmem>>, vector<8x256xf32>,
    } else {
    }
    return
  }
  func.func @transform_0(%arg0: i32, %arg1: i32, %arg2: i32) -> (i32, i32) {
    %c0_i32 = arith.constant 0 : i32
    return %arg0, %arg2 : i32, i32
  }
  func.func @transform_1(%arg0: i32, %arg1: i32, %arg2: i32) -> (i32, i32) {
    %c0_i32 = arith.constant 0 : i32
    return %arg2, %arg1 : i32, i32
  }
  func.func @transform_2(%arg0: i32, %arg1: i32, %arg2: i32) -> (i32, i32) {
    %c0_i32 = arith.constant 0 : i32
    %c0_i32_0 = arith.constant 0 : i32
    return %c0_i32, %arg1 : i32, i32
  }
  func.func @transform_3(%arg0: i32, %arg1: i32, %arg2: i32) -> (i32, i32) {
    %c0_i32 = arith.constant 0 : i32
    return %arg0, %arg1 : i32, i32
  }
}

module attributes {stable_mosaic.version = 11 : i64} {
  func.func @_fused_gemm_kernel(%arg0: i32, %arg1: i32, %arg2: i32, %arg3: memref<8x512xbf16, #tpu.memory_space<vmem>>, %arg4: memref<512x256xbf16, #tpu.memory_space<vmem>>, %arg5: memref<1x256xf32, #tpu.memory_space<vmem>>, %arg6: memref<8x256xf32, #tpu.memory_space<vmem>>, %arg7: memref<8x256xf32, #tpu.memory_space<vmem>>) attributes {dimension_semantics = [#tpu.dimension_semantics<parallel>, #tpu.dimension_semantics<parallel>, #tpu.dimension_semantics<arbitrary>], iteration_bounds = array<i64: 1, 2, 9>, scalar_prefetch = 0 : i64, scratch_operands = 0 : i64, tpu.core_type = #tpu.core_type<tc>, window_params = [{transform_indices = @transform_0, window_bounds = array<i64: 8, 512>}, {transform_indices = @transform_1, window_bounds = array<i64: 512, 256>}, {transform_indices = @transform_2, window_bounds = array<i64: 1, 256>}, {transform_indices = @transform_3, window_bounds = array<i64: 8, 256>}, {transform_indices = @transform_4, window_bounds = array<i64: 8, 256>}]} {
    %c0_i32 = arith.constant 0 : i32
    %0 = arith.cmpi eq, %arg2, %c0_i32 : i32
    %1 = arith.extui %0 : i1 to i32
    %c0_i32_0 = arith.constant 0 : i32
    %2 = arith.cmpi ne, %1, %c0_i32_0 : i32
    scf.if %2 {
      %cst_9 = arith.constant 0.000000e+00 : f32
      %12 = vector.broadcast %cst_9 : f32 to vector<8x256xf32>
      %c0_10 = arith.constant 0 : index
      %c0_11 = arith.constant 0 : index
      %13 = vector.load %arg7[%c0_10, %c0_11] : memref<8x256xf32, #tpu.memory_space<vmem>>, vector<8x256xf32>
      tpu.vector_store %arg7[%c0_10, %c0_11], %12 {strides = array<i32>} : memref<8x256xf32, #tpu.memory_space<vmem>>, vector<8x256xf32>,
    } else {
    }
    %c0 = arith.constant 0 : index
    %c0_1 = arith.constant 0 : index
    %3 = vector.load %arg7[%c0, %c0_1] : memref<8x256xf32, #tpu.memory_space<vmem>>, vector<8x256xf32>
    %c0_2 = arith.constant 0 : index
    %c0_3 = arith.constant 0 : index
    %4 = vector.load %arg3[%c0_2, %c0_3] : memref<8x512xbf16, #tpu.memory_space<vmem>>, vector<8x512xbf16>
    %c0_4 = arith.constant 0 : index
    %c0_5 = arith.constant 0 : index
    %5 = vector.load %arg4[%c0_4, %c0_5] : memref<512x256xbf16, #tpu.memory_space<vmem>>, vector<512x256xbf16>
    %cst = arith.constant dense<0.000000e+00> : vector<8x256xf32>
    %6 = tpu.matmul %4, %5, %cst {dimension_numbers = #tpu.dot_dimension_numbers<[1], [0], [0], [1], [0, 0, 1, 1], [], []>} : vector<8x512xbf16>, vector<512x256xbf16>, vector<8x256xf32> -> vector<8x256xf32>
    %7 = arith.addf %3, %6 : vector<8x256xf32>
    %c0_6 = arith.constant 0 : index
    %c0_7 = arith.constant 0 : index
    %8 = vector.load %arg7[%c0_6, %c0_7] : memref<8x256xf32, #tpu.memory_space<vmem>>, vector<8x256xf32>
    tpu.vector_store %arg7[%c0_6, %c0_7], %7 {strides = array<i32>} : memref<8x256xf32, #tpu.memory_space<vmem>>, vector<8x256xf32>,
    %c8_i32 = arith.constant 8 : i32
    %9 = arith.cmpi eq, %arg2, %c8_i32 : i32
    %10 = arith.extui %9 : i1 to i32
    %c0_i32_8 = arith.constant 0 : i32
    %11 = arith.cmpi ne, %10, %c0_i32_8 : i32
    scf.if %11 {
      %c0_9 = arith.constant 0 : index
      %c0_10 = arith.constant 0 : index
      %12 = vector.load %arg7[%c0_9, %c0_10] : memref<8x256xf32, #tpu.memory_space<vmem>>, vector<8x256xf32>
      %c0_11 = arith.constant 0 : index
      %c0_12 = arith.constant 0 : index
      %13 = vector.load %arg5[%c0_11, %c0_12] : memref<1x256xf32, #tpu.memory_space<vmem>>, vector<1x256xf32>
      %14 = vector.broadcast %13 : vector<1x256xf32> to vector<8x256xf32>
      %15 = arith.addf %12, %14 : vector<8x256xf32>
      %c0_13 = arith.constant 0 : index
      %c0_14 = arith.constant 0 : index
      %16 = vector.load %arg6[%c0_13, %c0_14] : memref<8x256xf32, #tpu.memory_space<vmem>>, vector<8x256xf32>
      %17 = arith.addf %15, %16 : vector<8x256xf32>
      %cst_15 = arith.constant 0.000000e+00 : f32
      %18 = vector.broadcast %cst_15 : f32 to vector<8x256xf32>
      %19 = arith.maximumf %17, %18 : vector<8x256xf32>
      %c0_16 = arith.constant 0 : index
      %c0_17 = arith.constant 0 : index
      %20 = vector.load %arg7[%c0_16, %c0_17] : memref<8x256xf32, #tpu.memory_space<vmem>>, vector<8x256xf32>
      tpu.vector_store %arg7[%c0_16, %c0_17], %19 {strides = array<i32>} : memref<8x256xf32, #tpu.memory_space<vmem>>, vector<8x256xf32>,
    } else {
    }
    return
  }
  func.func @transform_0(%arg0: i32, %arg1: i32, %arg2: i32) -> (i32, i32) {
    %c0_i32 = arith.constant 0 : i32
    return %arg0, %arg2 : i32, i32
  }
  func.func @transform_1(%arg0: i32, %arg1: i32, %arg2: i32) -> (i32, i32) {
    %c0_i32 = arith.constant 0 : i32
    return %arg2, %arg1 : i32, i32
  }
  func.func @transform_2(%arg0: i32, %arg1: i32, %arg2: i32) -> (i32, i32) {
    %c0_i32 = arith.constant 0 : i32
    %c0_i32_0 = arith.constant 0 : i32
    return %c0_i32, %arg1 : i32, i32
  }
  func.func @transform_3(%arg0: i32, %arg1: i32, %arg2: i32) -> (i32, i32) {
    %c0_i32 = arith.constant 0 : i32
    return %arg0, %arg1 : i32, i32
  }
  func.func @transform_4(%arg0: i32, %arg1: i32, %arg2: i32) -> (i32, i32) {
    %c0_i32 = arith.constant 0 : i32
    return %arg0, %arg1 : i32, i32
  }
}

module attributes {stable_mosaic.version = 11 : i64} {
  func.func @_fused_gemm_kernel(%arg0: i32, %arg1: i32, %arg2: i32, %arg3: memref<8x512xbf16, #tpu.memory_space<vmem>>, %arg4: memref<512x256xbf16, #tpu.memory_space<vmem>>, %arg5: memref<1x256xf32, #tpu.memory_space<vmem>>, %arg6: memref<8x256xf32, #tpu.memory_space<vmem>>) attributes {dimension_semantics = [#tpu.dimension_semantics<parallel>, #tpu.dimension_semantics<parallel>, #tpu.dimension_semantics<arbitrary>], iteration_bounds = array<i64: 1, 2, 9>, scalar_prefetch = 0 : i64, scratch_operands = 0 : i64, tpu.core_type = #tpu.core_type<tc>, window_params = [{transform_indices = @transform_0, window_bounds = array<i64: 8, 512>}, {transform_indices = @transform_1, window_bounds = array<i64: 512, 256>}, {transform_indices = @transform_2, window_bounds = array<i64: 1, 256>}, {transform_indices = @transform_3, window_bounds = array<i64: 8, 256>}]} {
    %c0_i32 = arith.constant 0 : i32
    %0 = arith.cmpi eq, %arg2, %c0_i32 : i32
    %1 = arith.extui %0 : i1 to i32
    %c0_i32_0 = arith.constant 0 : i32
    %2 = arith.cmpi ne, %1, %c0_i32_0 : i32
    scf.if %2 {
      %cst_9 = arith.constant 0.000000e+00 : f32
      %12 = vector.broadcast %cst_9 : f32 to vector<8x256xf32>
      %c0_10 = arith.constant 0 : index
      %c0_11 = arith.constant 0 : index
      %13 = vector.load %arg6[%c0_10, %c0_11] : memref<8x256xf32, #tpu.memory_space<vmem>>, vector<8x256xf32>
      tpu.vector_store %arg6[%c0_10, %c0_11], %12 {strides = array<i32>} : memref<8x256xf32, #tpu.memory_space<vmem>>, vector<8x256xf32>,
    } else {
    }
    %c0 = arith.constant 0 : index
    %c0_1 = arith.constant 0 : index
    %3 = vector.load %arg6[%c0, %c0_1] : memref<8x256xf32, #tpu.memory_space<vmem>>, vector<8x256xf32>
    %c0_2 = arith.constant 0 : index
    %c0_3 = arith.constant 0 : index
    %4 = vector.load %arg3[%c0_2, %c0_3] : memref<8x512xbf16, #tpu.memory_space<vmem>>, vector<8x512xbf16>
    %c0_4 = arith.constant 0 : index
    %c0_5 = arith.constant 0 : index
    %5 = vector.load %arg4[%c0_4, %c0_5] : memref<512x256xbf16, #tpu.memory_space<vmem>>, vector<512x256xbf16>
    %cst = arith.constant dense<0.000000e+00> : vector<8x256xf32>
    %6 = tpu.matmul %4, %5, %cst {dimension_numbers = #tpu.dot_dimension_numbers<[1], [0], [0], [1], [0, 0, 1, 1], [], []>} : vector<8x512xbf16>, vector<512x256xbf16>, vector<8x256xf32> -> vector<8x256xf32>
    %7 = arith.addf %3, %6 : vector<8x256xf32>
    %c0_6 = arith.constant 0 : index
    %c0_7 = arith.constant 0 : index
    %8 = vector.load %arg6[%c0_6, %c0_7] : memref<8x256xf32, #tpu.memory_space<vmem>>, vector<8x256xf32>
    tpu.vector_store %arg6[%c0_6, %c0_7], %7 {strides = array<i32>} : memref<8x256xf32, #tpu.memory_space<vmem>>, vector<8x256xf32>,
    %c8_i32 = arith.constant 8 : i32
    %9 = arith.cmpi eq, %arg2, %c8_i32 : i32
    %10 = arith.extui %9 : i1 to i32
    %c0_i32_8 = arith.constant 0 : i32
    %11 = arith.cmpi ne, %10, %c0_i32_8 : i32
    scf.if %11 {
      %c0_9 = arith.constant 0 : index
      %c0_10 = arith.constant 0 : index
      %12 = vector.load %arg6[%c0_9, %c0_10] : memref<8x256xf32, #tpu.memory_space<vmem>>, vector<8x256xf32>
      %c0_11 = arith.constant 0 : index
      %c0_12 = arith.constant 0 : index
      %13 = vector.load %arg5[%c0_11, %c0_12] : memref<1x256xf32, #tpu.memory_space<vmem>>, vector<1x256xf32>
      %14 = vector.broadcast %13 : vector<1x256xf32> to vector<8x256xf32>
      %15 = arith.addf %12, %14 : vector<8x256xf32>
      %cst_13 = arith.constant 0.000000e+00 : f32
      %16 = vector.broadcast %cst_13 : f32 to vector<8x256xf32>
      %17 = arith.maximumf %15, %16 : vector<8x256xf32>
      %c0_14 = arith.constant 0 : index
      %c0_15 = arith.constant 0 : index
      %18 = vector.load %arg6[%c0_14, %c0_15] : memref<8x256xf32, #tpu.memory_space<vmem>>, vector<8x256xf32>
      tpu.vector_store %arg6[%c0_14, %c0_15], %17 {strides = array<i32>} : memref<8x256xf32, #tpu.memory_space<vmem>>, vector<8x256xf32>,
    } else {
    }
    return
  }
  func.func @transform_0(%arg0: i32, %arg1: i32, %arg2: i32) -> (i32, i32) {
    %c0_i32 = arith.constant 0 : i32
    return %arg0, %arg2 : i32, i32
  }
  func.func @transform_1(%arg0: i32, %arg1: i32, %arg2: i32) -> (i32, i32) {
    %c0_i32 = arith.constant 0 : i32
    return %arg2, %arg1 : i32, i32
  }
  func.func @transform_2(%arg0: i32, %arg1: i32, %arg2: i32) -> (i32, i32) {
    %c0_i32 = arith.constant 0 : i32
    %c0_i32_0 = arith.constant 0 : i32
    return %c0_i32, %arg1 : i32, i32
  }
  func.func @transform_3(%arg0: i32, %arg1: i32, %arg2: i32) -> (i32, i32) {
    %c0_i32 = arith.constant 0 : i32
    return %arg0, %arg1 : i32, i32
  }
}

module attributes {stable_mosaic.version = 11 : i64} {
  func.func @_fused_gemm_kernel(%arg0: i32, %arg1: i32, %arg2: i32, %arg3: memref<8x512xbf16, #tpu.memory_space<vmem>>, %arg4: memref<512x256xbf16, #tpu.memory_space<vmem>>, %arg5: memref<1x256xf32, #tpu.memory_space<vmem>>, %arg6: memref<8x256xf32, #tpu.memory_space<vmem>>, %arg7: memref<8x256xf32, #tpu.memory_space<vmem>>) attributes {dimension_semantics = [#tpu.dimension_semantics<parallel>, #tpu.dimension_semantics<parallel>, #tpu.dimension_semantics<arbitrary>], iteration_bounds = array<i64: 1, 2, 9>, scalar_prefetch = 0 : i64, scratch_operands = 0 : i64, tpu.core_type = #tpu.core_type<tc>, window_params = [{transform_indices = @transform_0, window_bounds = array<i64: 8, 512>}, {transform_indices = @transform_1, window_bounds = array<i64: 512, 256>}, {transform_indices = @transform_2, window_bounds = array<i64: 1, 256>}, {transform_indices = @transform_3, window_bounds = array<i64: 8, 256>}, {transform_indices = @transform_4, window_bounds = array<i64: 8, 256>}]} {
    %c0_i32 = arith.constant 0 : i32
    %0 = arith.cmpi eq, %arg2, %c0_i32 : i32
    %1 = arith.extui %0 : i1 to i32
    %c0_i32_0 = arith.constant 0 : i32
    %2 = arith.cmpi ne, %1, %c0_i32_0 : i32
    scf.if %2 {
      %cst_9 = arith.constant 0.000000e+00 : f32
      %12 = vector.broadcast %cst_9 : f32 to vector<8x256xf32>
      %c0_10 = arith.constant 0 : index
      %c0_11 = arith.constant 0 : index
      %13 = vector.load %arg7[%c0_10, %c0_11] : memref<8x256xf32, #tpu.memory_space<vmem>>, vector<8x256xf32>
      tpu.vector_store %arg7[%c0_10, %c0_11], %12 {strides = array<i32>} : memref<8x256xf32, #tpu.memory_space<vmem>>, vector<8x256xf32>,
    } else {
    }
    %c0 = arith.constant 0 : index
    %c0_1 = arith.constant 0 : index
    %3 = vector.load %arg7[%c0, %c0_1] : memref<8x256xf32, #tpu.memory_space<vmem>>, vector<8x256xf32>
    %c0_2 = arith.constant 0 : index
    %c0_3 = arith.constant 0 : index
    %4 = vector.load %arg3[%c0_2, %c0_3] : memref<8x512xbf16, #tpu.memory_space<vmem>>, vector<8x512xbf16>
    %c0_4 = arith.constant 0 : index
    %c0_5 = arith.constant 0 : index
    %5 = vector.load %arg4[%c0_4, %c0_5] : memref<512x256xbf16, #tpu.memory_space<vmem>>, vector<512x256xbf16>
    %cst = arith.constant dense<0.000000e+00> : vector<8x256xf32>
    %6 = tpu.matmul %4, %5, %cst {dimension_numbers = #tpu.dot_dimension_numbers<[1], [0], [0], [1], [0, 0, 1, 1], [], []>} : vector<8x512xbf16>, vector<512x256xbf16>, vector<8x256xf32> -> vector<8x256xf32>
    %7 = arith.addf %3, %6 : vector<8x256xf32>
    %c0_6 = arith.constant 0 : index
    %c0_7 = arith.constant 0 : index
    %8 = vector.load %arg7[%c0_6, %c0_7] : memref<8x256xf32, #tpu.memory_space<vmem>>, vector<8x256xf32>
    tpu.vector_store %arg7[%c0_6, %c0_7], %7 {strides = array<i32>} : memref<8x256xf32, #tpu.memory_space<vmem>>, vector<8x256xf32>,
    %c8_i32 = arith.constant 8 : i32
    %9 = arith.cmpi eq, %arg2, %c8_i32 : i32
    %10 = arith.extui %9 : i1 to i32
    %c0_i32_8 = arith.constant 0 : i32
    %11 = arith.cmpi ne, %10, %c0_i32_8 : i32
    scf.if %11 {
      %c0_9 = arith.constant 0 : index
      %c0_10 = arith.constant 0 : index
      %12 = vector.load %arg7[%c0_9, %c0_10] : memref<8x256xf32, #tpu.memory_space<vmem>>, vector<8x256xf32>
      %c0_11 = arith.constant 0 : index
      %c0_12 = arith.constant 0 : index
      %13 = vector.load %arg5[%c0_11, %c0_12] : memref<1x256xf32, #tpu.memory_space<vmem>>, vector<1x256xf32>
      %14 = vector.broadcast %13 : vector<1x256xf32> to vector<8x256xf32>
      %15 = arith.addf %12, %14 : vector<8x256xf32>
      %c0_13 = arith.constant 0 : index
      %c0_14 = arith.constant 0 : index
      %16 = vector.load %arg6[%c0_13, %c0_14] : memref<8x256xf32, #tpu.memory_space<vmem>>, vector<8x256xf32>
      %17 = arith.addf %15, %16 : vector<8x256xf32>
      %cst_15 = arith.constant 0.000000e+00 : f32
      %18 = vector.broadcast %cst_15 : f32 to vector<8x256xf32>
      %19 = arith.maximumf %17, %18 : vector<8x256xf32>
      %c0_16 = arith.constant 0 : index
      %c0_17 = arith.constant 0 : index
      %20 = vector.load %arg7[%c0_16, %c0_17] : memref<8x256xf32, #tpu.memory_space<vmem>>, vector<8x256xf32>
      tpu.vector_store %arg7[%c0_16, %c0_17], %19 {strides = array<i32>} : memref<8x256xf32, #tpu.memory_space<vmem>>, vector<8x256xf32>,
    } else {
    }
    return
  }
  func.func @transform_0(%arg0: i32, %arg1: i32, %arg2: i32) -> (i32, i32) {
    %c0_i32 = arith.constant 0 : i32
    return %arg0, %arg2 : i32, i32
  }
  func.func @transform_1(%arg0: i32, %arg1: i32, %arg2: i32) -> (i32, i32) {
    %c0_i32 = arith.constant 0 : i32
    return %arg2, %arg1 : i32, i32
  }
  func.func @transform_2(%arg0: i32, %arg1: i32, %arg2: i32) -> (i32, i32) {
    %c0_i32 = arith.constant 0 : i32
    %c0_i32_0 = arith.constant 0 : i32
    return %c0_i32, %arg1 : i32, i32
  }
  func.func @transform_3(%arg0: i32, %arg1: i32, %arg2: i32) -> (i32, i32) {
    %c0_i32 = arith.constant 0 : i32
    return %arg0, %arg1 : i32, i32
  }
  func.func @transform_4(%arg0: i32, %arg1: i32, %arg2: i32) -> (i32, i32) {
    %c0_i32 = arith.constant 0 : i32
    return %arg0, %arg1 : i32, i32
  }
}

module attributes {stable_mosaic.version = 11 : i64} {
  func.func @_fused_gemm_kernel(%arg0: i32, %arg1: i32, %arg2: i32, %arg3: memref<8x512xbf16, #tpu.memory_space<vmem>>, %arg4: memref<512x128xbf16, #tpu.memory_space<vmem>>, %arg5: memref<1x128xf32, #tpu.memory_space<vmem>>, %arg6: memref<8x128xf32, #tpu.memory_space<vmem>>) attributes {dimension_semantics = [#tpu.dimension_semantics<parallel>, #tpu.dimension_semantics<parallel>, #tpu.dimension_semantics<arbitrary>], iteration_bounds = array<i64: 1, 1, 1>, scalar_prefetch = 0 : i64, scratch_operands = 0 : i64, tpu.core_type = #tpu.core_type<tc>, window_params = [{transform_indices = @transform_0, window_bounds = array<i64: 8, 512>}, {transform_indices = @transform_1, window_bounds = array<i64: 512, 128>}, {transform_indices = @transform_2, window_bounds = array<i64: 1, 128>}, {transform_indices = @transform_3, window_bounds = array<i64: 8, 128>}]} {
    %c0_i32 = arith.constant 0 : i32
    %0 = arith.cmpi eq, %arg2, %c0_i32 : i32
    %1 = arith.extui %0 : i1 to i32
    %c0_i32_0 = arith.constant 0 : i32
    %2 = arith.cmpi ne, %1, %c0_i32_0 : i32
    scf.if %2 {
      %cst_10 = arith.constant 0.000000e+00 : f32
      %12 = vector.broadcast %cst_10 : f32 to vector<8x128xf32>
      %c0_11 = arith.constant 0 : index
      %c0_12 = arith.constant 0 : index
      %13 = vector.load %arg6[%c0_11, %c0_12] : memref<8x128xf32, #tpu.memory_space<vmem>>, vector<8x128xf32>
      tpu.vector_store %arg6[%c0_11, %c0_12], %12 {strides = array<i32>} : memref<8x128xf32, #tpu.memory_space<vmem>>, vector<8x128xf32>,
    } else {
    }
    %c0 = arith.constant 0 : index
    %c0_1 = arith.constant 0 : index
    %3 = vector.load %arg6[%c0, %c0_1] : memref<8x128xf32, #tpu.memory_space<vmem>>, vector<8x128xf32>
    %c0_2 = arith.constant 0 : index
    %c0_3 = arith.constant 0 : index
    %4 = vector.load %arg3[%c0_2, %c0_3] : memref<8x512xbf16, #tpu.memory_space<vmem>>, vector<8x512xbf16>
    %c0_4 = arith.constant 0 : index
    %c0_5 = arith.constant 0 : index
    %5 = vector.load %arg4[%c0_4, %c0_5] : memref<512x128xbf16, #tpu.memory_space<vmem>>, vector<512x128xbf16>
    %cst = arith.constant dense<0.000000e+00> : vector<8x128xf32>
    %6 = tpu.matmul %4, %5, %cst {dimension_numbers = #tpu.dot_dimension_numbers<[1], [0], [0], [1], [0, 0, 1, 1], [], []>} : vector<8x512xbf16>, vector<512x128xbf16>, vector<8x128xf32> -> vector<8x128xf32>
    %7 = arith.addf %3, %6 : vector<8x128xf32>
    %c0_6 = arith.constant 0 : index
    %c0_7 = arith.constant 0 : index
    %8 = vector.load %arg6[%c0_6, %c0_7] : memref<8x128xf32, #tpu.memory_space<vmem>>, vector<8x128xf32>
    tpu.vector_store %arg6[%c0_6, %c0_7], %7 {strides = array<i32>} : memref<8x128xf32, #tpu.memory_space<vmem>>, vector<8x128xf32>,
    %c0_i32_8 = arith.constant 0 : i32
    %9 = arith.cmpi eq, %arg2, %c0_i32_8 : i32
    %10 = arith.extui %9 : i1 to i32
    %c0_i32_9 = arith.constant 0 : i32
    %11 = arith.cmpi ne, %10, %c0_i32_9 : i32
    scf.if %11 {
      %c0_10 = arith.constant 0 : index
      %c0_11 = arith.constant 0 : index
      %12 = vector.load %arg6[%c0_10, %c0_11] : memref<8x128xf32, #tpu.memory_space<vmem>>, vector<8x128xf32>
      %c0_12 = arith.constant 0 : index
      %c0_13 = arith.constant 0 : index
      %13 = vector.load %arg5[%c0_12, %c0_13] : memref<1x128xf32, #tpu.memory_space<vmem>>, vector<1x128xf32>
      %14 = vector.broadcast %13 : vector<1x128xf32> to vector<8x128xf32>
      %15 = arith.addf %12, %14 : vector<8x128xf32>
      %c0_14 = arith.constant 0 : index
      %c0_15 = arith.constant 0 : index
      %16 = vector.load %arg6[%c0_14, %c0_15] : memref<8x128xf32, #tpu.memory_space<vmem>>, vector<8x128xf32>
      tpu.vector_store %arg6[%c0_14, %c0_15], %15 {strides = array<i32>} : memref<8x128xf32, #tpu.memory_space<vmem>>, vector<8x128xf32>,
    } else {
    }
    return
  }
  func.func @transform_0(%arg0: i32, %arg1: i32, %arg2: i32) -> (i32, i32) {
    %c0_i32 = arith.constant 0 : i32
    return %arg0, %arg2 : i32, i32
  }
  func.func @transform_1(%arg0: i32, %arg1: i32, %arg2: i32) -> (i32, i32) {
    %c0_i32 = arith.constant 0 : i32
    return %arg2, %arg1 : i32, i32
  }
  func.func @transform_2(%arg0: i32, %arg1: i32, %arg2: i32) -> (i32, i32) {
    %c0_i32 = arith.constant 0 : i32
    %c0_i32_0 = arith.constant 0 : i32
    return %c0_i32, %arg1 : i32, i32
  }
  func.func @transform_3(%arg0: i32, %arg1: i32, %arg2: i32) -> (i32, i32) {
    %c0_i32 = arith.constant 0 : i32
    return %arg0, %arg1 : i32, i32
  }
}

</mosaic_0001>

<llo_original>
// kernel: resnet18_forward.13
$region0: #{resnet18_forward.13}
  #allocation0 [shape = 'u32[]', space=smem, size = 0x4, offset = 0x4, fixed_abs, tag = 'smem constant byte address 0x4 - core index']
  #allocation1 [shape = 'u32[72,128]{1,0:T(1,128)}', space=vmem, size = 0x9000, scoped, tag = 'internal scratch']
  %s0 = inlined_call_operand.vmem [shape: bf16[200,128], index: 0, kind: input, shape index: {}]
  %s1 = inlined_call_operand.hbm [shape: bf16[128,128], index: 1, kind: input, shape index: {}]
  %s2 = inlined_call_operand.hbm [shape: f32[1,128], index: 2, kind: input, shape index: {}]
  %s3 = inlined_call_operand.vmem [shape: f32[200,128], index: 3, kind: output, shape index: {}]
  %s4 = sld [smem:[#allocation0]]
  $region38: #{resnet18_forward.13} parent=0
    _
  %s6 = ssub.s32 1, %s4
  %s7 = scalar_select 0, %s6, %s4
  $region1: #{resnet18_forward.13} parent=0
    #allocation2 [shape = 'u8[32768]{0}', space=vmem, size = 0x8000, scoped, tag = 'input window, operand 1, single buffered']
    #allocation3 [shape = 's32[1]{0}', space=sflag, size = 0x4, scoped, tag = 'scoped memory for resnet18_forward.13']
    #allocation4 [shape = 'u8[512]{0}', space=vmem, size = 0x400, scoped, tag = 'input window, operand 2, single buffered']
    #allocation5 [shape = 's32[1]{0}', space=sflag, size = 0x4, scoped, tag = 'scoped memory for resnet18_forward.13']
    %8 = vsyncpa [#allocation3], 0
    %9 = vsyncpa [#allocation5], 0
    // Predicated region
    $region2: #{resnet18_forward.13} parent=1 // pred_check
      _
    $region3: #{resnet18_forward.13} parent=1 // pred_check_branch
      %11 = sbr.rel (0) target = $region5
    $region4: #{resnet18_forward.13} parent=1 // pred_region
      _
    $region5: #{resnet18_forward.13} parent=1 // pred_fallthru
      _
    // Predicated region
    $region6: #{resnet18_forward.13} parent=1 // pred_check
      _
    $region7: #{resnet18_forward.13} parent=1 // pred_check_branch
      %13 = sbr.rel (0) target = $region9
    $region8: #{resnet18_forward.13} parent=1 // pred_region
      %15 = vsyncadd [#allocation3], 0
      %s16 = sshll.u32 %s1, 4
      %s17 = int_to_ptr.hbm [resolvable:$true] %s16
      %s18 = sshll.u32 [#allocation2], 4
      %s19 = int_to_ptr.vmem [resolvable:$true] %s18
      %24 = dma.hbm_to_vmem [thread:$0]  %s17, 1024, %s19, [#allocation3], 64, 64, 4
    $region9: #{resnet18_forward.13} parent=1 // pred_fallthru
      _
    // Predicated region
    $region10: #{resnet18_forward.13} parent=1 // pred_check
      _
    $region11: #{resnet18_forward.13} parent=1 // pred_check_branch
      %26 = sbr.rel (0) target = $region13
    $region12: #{resnet18_forward.13} parent=1 // pred_region
      %28 = vsyncadd [#allocation5], 0
      %s30 = sshll.u32 %s2, 4
      %s31 = int_to_ptr.hbm [resolvable:$true] %s30
      %s32 = sshll.u32 [#allocation4], 4
      %s33 = int_to_ptr.vmem [resolvable:$true] %s32
      %35 = dma.hbm_to_vmem [thread:$0]  %s31, 16, %s33, [#allocation5]
    $region13: #{resnet18_forward.13} parent=1 // pred_fallthru
      _
    // Predicated region
    $region14: #{resnet18_forward.13} parent=1 // pred_check
      _
    $region15: #{resnet18_forward.13} parent=1 // pred_check_branch
      %37 = sbr.rel (0) target = $region17
    $region16: #{resnet18_forward.13} parent=1 // pred_region
      %39 = dma.done [#allocation3], 1024
    $region17: #{resnet18_forward.13} parent=1 // pred_fallthru
      _
    // Predicated region
    $region18: #{resnet18_forward.13} parent=1 // pred_check
      _
    $region19: #{resnet18_forward.13} parent=1 // pred_check_branch
      %41 = sbr.rel (0) target = $region21
    $region20: #{resnet18_forward.13} parent=1 // pred_region
      %43 = dma.done [#allocation5], 16
    $region21: #{resnet18_forward.13} parent=1 // pred_fallthru
      _
    %p44 = scmp.eq.s32.totalorder 0, 0
    // Predicated region
    $region22: #{resnet18_forward.13} parent=1 // pred_check
      %p45 = pneg %p44
    $region23: #{resnet18_forward.13} parent=1 // pred_check_branch
      %47 = sbr.rel (%p45) target = $region25
    $region24: #{resnet18_forward.13} parent=1 // pred_region
      %48 = vst [vmem:[%s3] sm:$0xff] 0.0
      %49 = vst [vmem:[%s3 + $0x8] sm:$0xff] 0.0
      %50 = vst [vmem:[%s3 + $0x10] sm:$0xff] 0.0
      %51 = vst [vmem:[%s3 + $0x18] sm:$0xff] 0.0
      %52 = vst [vmem:[%s3 + $0x20] sm:$0xff] 0.0
      %53 = vst [vmem:[%s3 + $0x28] sm:$0xff] 0.0
      %54 = vst [vmem:[%s3 + $0x30] sm:$0xff] 0.0
      %55 = vst [vmem:[%s3 + $0x38] sm:$0xff] 0.0
      %56 = vst [vmem:[%s3 + $0x40] sm:$0xff] 0.0
      %57 = vst [vmem:[%s3 + $0x48] sm:$0xff] 0.0
      %58 = vst [vmem:[%s3 + $0x50] sm:$0xff] 0.0
      %59 = vst [vmem:[%s3 + $0x58] sm:$0xff] 0.0
      %60 = vst [vmem:[%s3 + $0x60] sm:$0xff] 0.0
      %61 = vst [vmem:[%s3 + $0x68] sm:$0xff] 0.0
      %62 = vst [vmem:[%s3 + $0x70] sm:$0xff] 0.0
      %63 = vst [vmem:[%s3 + $0x78] sm:$0xff] 0.0
      %64 = vst [vmem:[%s3 + $0x80] sm:$0xff] 0.0
      %65 = vst [vmem:[%s3 + $0x88] sm:$0xff] 0.0
      %66 = vst [vmem:[%s3 + $0x90] sm:$0xff] 0.0
      %67 = vst [vmem:[%s3 + $0x98] sm:$0xff] 0.0
      %68 = vst [vmem:[%s3 + $0xa0] sm:$0xff] 0.0
      %69 = vst [vmem:[%s3 + $0xa8] sm:$0xff] 0.0
      %70 = vst [vmem:[%s3 + $0xb0] sm:$0xff] 0.0
      %71 = vst [vmem:[%s3 + $0xb8] sm:$0xff] 0.0
      %72 = vst [vmem:[%s3 + $0xc0] sm:$0xff] 0.0
    $region25: #{resnet18_forward.13} parent=1 // pred_fallthru
      _
    %v73 = vld [vmem:[%s3] sm:$0xff]
    %v74 = vld [vmem:[%s3 + $0x8] sm:$0xff]
    %v75 = vld [vmem:[%s3 + $0x10] sm:$0xff]
    %v76 = vld [vmem:[%s3 + $0x18] sm:$0xff]
    %v77 = vld [vmem:[%s3 + $0x20] sm:$0xff]
    %v78 = vld [vmem:[%s3 + $0x28] sm:$0xff]
    %v79 = vld [vmem:[%s3 + $0x30] sm:$0xff]
    %v80 = vld [vmem:[%s3 + $0x38] sm:$0xff]
    %v81 = vld [vmem:[%s3 + $0x40] sm:$0xff]
    %v82 = vld [vmem:[%s3 + $0x48] sm:$0xff]
    %v83 = vld [vmem:[%s3 + $0x50] sm:$0xff]
    %v84 = vld [vmem:[%s3 + $0x58] sm:$0xff]
    %v85 = vld [vmem:[%s3 + $0x60] sm:$0xff]
    %v86 = vld [vmem:[%s3 + $0x68] sm:$0xff]
    %v87 = vld [vmem:[%s3 + $0x70] sm:$0xff]
    %v88 = vld [vmem:[%s3 + $0x78] sm:$0xff]
    %v89 = vld [vmem:[%s3 + $0x80] sm:$0xff]
    %v90 = vld [vmem:[%s3 + $0x88] sm:$0xff]
    %v91 = vld [vmem:[%s3 + $0x90] sm:$0xff]
    %v92 = vld [vmem:[%s3 + $0x98] sm:$0xff]
    %v93 = vld [vmem:[%s3 + $0xa0] sm:$0xff]
    %v94 = vld [vmem:[%s3 + $0xa8] sm:$0xff]
    %v95 = vld [vmem:[%s3 + $0xb0] sm:$0xff]
    %v96 = vld [vmem:[%s3 + $0xb8] sm:$0xff]
    %v97 = vld [vmem:[%s3 + $0xc0] sm:$0xff]
    %v98 = vld [vmem:[%s0] sm:$0xf]
    %v99 = vld [vmem:[%s0 + $0x4] sm:$0xf]
    %v100 = vld [vmem:[%s0 + $0x8] sm:$0xf]
    %v101 = vld [vmem:[%s0 + $0xc] sm:$0xf]
    %v102 = vld [vmem:[%s0 + $0x10] sm:$0xf]
    %v103 = vld [vmem:[%s0 + $0x14] sm:$0xf]
    %v104 = vld [vmem:[%s0 + $0x18] sm:$0xf]
    %v105 = vld [vmem:[%s0 + $0x1c] sm:$0xf]
    %v106 = vld [vmem:[%s0 + $0x20] sm:$0xf]
    %v107 = vld [vmem:[%s0 + $0x24] sm:$0xf]
    %v108 = vld [vmem:[%s0 + $0x28] sm:$0xf]
    %v109 = vld [vmem:[%s0 + $0x2c] sm:$0xf]
    %v110 = vld [vmem:[%s0 + $0x30] sm:$0xf]
    %v111 = vld [vmem:[%s0 + $0x34] sm:$0xf]
    %v112 = vld [vmem:[%s0 + $0x38] sm:$0xf]
    %v113 = vld [vmem:[%s0 + $0x3c] sm:$0xf]
    %v114 = vld [vmem:[%s0 + $0x40] sm:$0xf]
    %v115 = vld [vmem:[%s0 + $0x44] sm:$0xf]
    %v116 = vld [vmem:[%s0 + $0x48] sm:$0xf]
    %v117 = vld [vmem:[%s0 + $0x4c] sm:$0xf]
    %v118 = vld [vmem:[%s0 + $0x50] sm:$0xf]
    %v119 = vld [vmem:[%s0 + $0x54] sm:$0xf]
    %v120 = vld [vmem:[%s0 + $0x58] sm:$0xf]
    %v121 = vld [vmem:[%s0 + $0x5c] sm:$0xf]
    %v122 = vld [vmem:[%s0 + $0x60] sm:$0xf]
    %v123 = vld [vmem:[#allocation2] sm:$0xf]
    %v124 = vld [vmem:[#allocation2 + $0x4] sm:$0xf]
    %v125 = vld [vmem:[#allocation2 + $0x8] sm:$0xf]
    %v126 = vld [vmem:[#allocation2 + $0xc] sm:$0xf]
    %v127 = vld [vmem:[#allocation2 + $0x10] sm:$0xf]
    %v128 = vld [vmem:[#allocation2 + $0x14] sm:$0xf]
    %v129 = vld [vmem:[#allocation2 + $0x18] sm:$0xf]
    %v130 = vld [vmem:[#allocation2 + $0x1c] sm:$0xf]
    %v131 = vld [vmem:[#allocation2 + $0x20] sm:$0xf]
    %v132 = vld [vmem:[#allocation2 + $0x24] sm:$0xf]
    %v133 = vld [vmem:[#allocation2 + $0x28] sm:$0xf]
    %v134 = vld [vmem:[#allocation2 + $0x2c] sm:$0xf]
    %v135 = vld [vmem:[#allocation2 + $0x30] sm:$0xf]
    %v136 = vld [vmem:[#allocation2 + $0x34] sm:$0xf]
    %v137 = vld [vmem:[#allocation2 + $0x38] sm:$0xf]
    %v138 = vld [vmem:[#allocation2 + $0x3c] sm:$0xf]
    %v164 = vunpack.c.l.b16 %v98
    %v165 = vunpack.c.l.b16 %v99
    %v166 = vunpack.c.l.b16 %v100
    %v167 = vunpack.c.l.b16 %v101
    %v168 = vunpack.c.l.b16 %v102
    %v169 = vunpack.c.l.b16 %v103
    %v170 = vunpack.c.l.b16 %v104
    %v171 = vunpack.c.l.b16 %v105
    %v172 = vunpack.c.l.b16 %v106
    %v173 = vunpack.c.l.b16 %v107
    %v174 = vunpack.c.l.b16 %v108
    %v175 = vunpack.c.l.b16 %v109
    %v176 = vunpack.c.l.b16 %v110
    %v177 = vunpack.c.l.b16 %v111
    %v178 = vunpack.c.l.b16 %v112
    %v179 = vunpack.c.l.b16 %v113
    %v180 = vunpack.c.l.b16 %v114
    %v181 = vunpack.c.l.b16 %v115
    %v182 = vunpack.c.l.b16 %v116
    %v183 = vunpack.c.l.b16 %v117
    %v184 = vunpack.c.l.b16 %v118
    %v185 = vunpack.c.l.b16 %v119
    %v186 = vunpack.c.l.b16 %v120
    %v187 = vunpack.c.l.b16 %v121
    %v188 = vunpack.c.l.b16 %v122
    %v189 = vpack.c.b16 %v165, %v164
    %v190 = vpack.c.b16 %v167, %v166
    %v191 = vpack.c.b16 %v169, %v168
    %v192 = vpack.c.b16 %v171, %v170
    %v193 = vpack.c.b16 %v173, %v172
    %v194 = vpack.c.b16 %v175, %v174
    %v195 = vpack.c.b16 %v177, %v176
    %v196 = vpack.c.b16 %v179, %v178
    %v197 = vpack.c.b16 %v181, %v180
    %v198 = vpack.c.b16 %v183, %v182
    %v199 = vpack.c.b16 %v185, %v184
    %v200 = vpack.c.b16 %v187, %v186
    %v201 = vpack.c.b16 %v188, %v188
    %v231 = vunpack.c.l.b16 %v123
    %v232 = vunpack.c.l.b16 %v124
    %v233 = vunpack.c.l.b16 %v125
    %v234 = vunpack.c.l.b16 %v126
    %v235 = vunpack.c.l.b16 %v127
    %v236 = vunpack.c.l.b16 %v128
    %v237 = vunpack.c.l.b16 %v129
    %v238 = vunpack.c.l.b16 %v130
    %v239 = vunpack.c.l.b16 %v131
    %v240 = vunpack.c.l.b16 %v132
    %v241 = vunpack.c.l.b16 %v133
    %v242 = vunpack.c.l.b16 %v134
    %v243 = vunpack.c.l.b16 %v135
    %v244 = vunpack.c.l.b16 %v136
    %v245 = vunpack.c.l.b16 %v137
    %v246 = vunpack.c.l.b16 %v138
    %v247 = vpack.c.b16 %v232, %v231
    %v248 = vpack.c.b16 %v234, %v233
    %v249 = vpack.c.b16 %v236, %v235
    %v250 = vpack.c.b16 %v238, %v237
    %v251 = vpack.c.b16 %v240, %v239
    %v252 = vpack.c.b16 %v242, %v241
    %v253 = vpack.c.b16 %v244, %v243
    %v254 = vpack.c.b16 %v246, %v245
    %263 = vmatpush.bf16.msra.mxu0 %v254
    %264 = vmatpush.bf16.msra.mxu0 %v253
    %265 = vmatpush.bf16.msra.mxu0 %v252
    %266 = vmatpush.bf16.msra.mxu0 %v251
    %267 = vmatpush.bf16.msra.mxu0 %v250
    %268 = vmatpush.bf16.msra.mxu0 %v249
    %269 = vmatpush.bf16.msra.mxu0 %v248
    %270 = vmatpush.bf16.msra.mxu0 %v247
    %271 = vmatmul.bf16.gmra.mxu0 %v189
    %v272 = vpop.f32.mrf.mxu0
    %v273 = vadd.f32 0.0, %v272
    %v274 = vpop.f32.mrf.mxu0
    %v275 = vadd.f32 0.0, %v274
    %276 = vmatmul.bf16.gmra.mxu0 %v190
    %v277 = vpop.f32.mrf.mxu0
    %v278 = vadd.f32 0.0, %v277
    %v279 = vpop.f32.mrf.mxu0
    %v280 = vadd.f32 0.0, %v279
    %281 = vmatmul.bf16.gmra.mxu0 %v191
    %v282 = vpop.f32.mrf.mxu0
    %v283 = vadd.f32 0.0, %v282
    %v284 = vpop.f32.mrf.mxu0
    %v285 = vadd.f32 0.0, %v284
    %286 = vmatmul.bf16.gmra.mxu0 %v192
    %v287 = vpop.f32.mrf.mxu0
    %v288 = vadd.f32 0.0, %v287
    %v289 = vpop.f32.mrf.mxu0
    %v290 = vadd.f32 0.0, %v289
    %291 = vmatmul.bf16.gmra.mxu0 %v193
    %v292 = vpop.f32.mrf.mxu0
    %v293 = vadd.f32 0.0, %v292
    %v294 = vpop.f32.mrf.mxu0
    %v295 = vadd.f32 0.0, %v294
    %296 = vmatmul.bf16.gmra.mxu0 %v194
    %v297 = vpop.f32.mrf.mxu0
    %v298 = vadd.f32 0.0, %v297
    %v299 = vpop.f32.mrf.mxu0
    %v300 = vadd.f32 0.0, %v299
    %301 = vmatmul.bf16.gmra.mxu0 %v195
    %v302 = vpop.f32.mrf.mxu0
    %v303 = vadd.f32 0.0, %v302
    %v304 = vpop.f32.mrf.mxu0
    %v305 = vadd.f32 0.0, %v304
    %306 = vmatmul.bf16.gmra.mxu0 %v196
    %v307 = vpop.f32.mrf.mxu0
    %v308 = vadd.f32 0.0, %v307
    %v309 = vpop.f32.mrf.mxu0
    %v310 = vadd.f32 0.0, %v309
    %311 = vmatmul.bf16.gmra.mxu0 %v197
    %v312 = vpop.f32.mrf.mxu0
    %v313 = vadd.f32 0.0, %v312
    %v314 = vpop.f32.mrf.mxu0
    %v315 = vadd.f32 0.0, %v314
    %316 = vmatmul.bf16.gmra.mxu0 %v198
    %v317 = vpop.f32.mrf.mxu0
    %v318 = vadd.f32 0.0, %v317
    %v319 = vpop.f32.mrf.mxu0
    %v320 = vadd.f32 0.0, %v319
    %321 = vmatmul.bf16.gmra.mxu0 %v199
    %v322 = vpop.f32.mrf.mxu0
    %v323 = vadd.f32 0.0, %v322
    %v324 = vpop.f32.mrf.mxu0
    %v325 = vadd.f32 0.0, %v324
    %326 = vmatmul.bf16.gmra.mxu0 %v200
    %v327 = vpop.f32.mrf.mxu0
    %v328 = vadd.f32 0.0, %v327
    %v329 = vpop.f32.mrf.mxu0
    %v330 = vadd.f32 0.0, %v329
    %331 = vmatmul.bf16.gmra.mxu0 %v201
    %v332 = vpop.f32.mrf.mxu0
    %v333 = vadd.f32 0.0, %v332
    %v334 = vpop.f32.mrf.mxu0
    %335 = vdwg.mxu0
    %v336 = vadd.f32 %v73, %v273
    %v337 = vadd.f32 %v74, %v275
    %v338 = vadd.f32 %v75, %v278
    %v339 = vadd.f32 %v76, %v280
    %v340 = vadd.f32 %v77, %v283
    %v341 = vadd.f32 %v78, %v285
    %v342 = vadd.f32 %v79, %v288
    %v343 = vadd.f32 %v80, %v290
    %v344 = vadd.f32 %v81, %v293
    %v345 = vadd.f32 %v82, %v295
    %v346 = vadd.f32 %v83, %v298
    %v347 = vadd.f32 %v84, %v300
    %v348 = vadd.f32 %v85, %v303
    %v349 = vadd.f32 %v86, %v305
    %v350 = vadd.f32 %v87, %v308
    %v351 = vadd.f32 %v88, %v310
    %v352 = vadd.f32 %v89, %v313
    %v353 = vadd.f32 %v90, %v315
    %v354 = vadd.f32 %v91, %v318
    %v355 = vadd.f32 %v92, %v320
    %v356 = vadd.f32 %v93, %v323
    %v357 = vadd.f32 %v94, %v325
    %v358 = vadd.f32 %v95, %v328
    %v359 = vadd.f32 %v96, %v330
    %v360 = vadd.f32 %v97, %v333
    %361 = vst [vmem:[%s3] sm:$0xff] %v336
    %362 = vst [vmem:[%s3 + $0x8] sm:$0xff] %v337
    %363 = vst [vmem:[%s3 + $0x10] sm:$0xff] %v338
    %364 = vst [vmem:[%s3 + $0x18] sm:$0xff] %v339
    %365 = vst [vmem:[%s3 + $0x20] sm:$0xff] %v340
    %366 = vst [vmem:[%s3 + $0x28] sm:$0xff] %v341
    %367 = vst [vmem:[%s3 + $0x30] sm:$0xff] %v342
    %368 = vst [vmem:[%s3 + $0x38] sm:$0xff] %v343
    %369 = vst [vmem:[%s3 + $0x40] sm:$0xff] %v344
    %370 = vst [vmem:[%s3 + $0x48] sm:$0xff] %v345
    %371 = vst [vmem:[%s3 + $0x50] sm:$0xff] %v346
    %372 = vst [vmem:[%s3 + $0x58] sm:$0xff] %v347
    %373 = vst [vmem:[%s3 + $0x60] sm:$0xff] %v348
    %374 = vst [vmem:[%s3 + $0x68] sm:$0xff] %v349
    %375 = vst [vmem:[%s3 + $0x70] sm:$0xff] %v350
    %376 = vst [vmem:[%s3 + $0x78] sm:$0xff] %v351
    %377 = vst [vmem:[%s3 + $0x80] sm:$0xff] %v352
    %378 = vst [vmem:[%s3 + $0x88] sm:$0xff] %v353
    %379 = vst [vmem:[%s3 + $0x90] sm:$0xff] %v354
    %380 = vst [vmem:[%s3 + $0x98] sm:$0xff] %v355
    %381 = vst [vmem:[%s3 + $0xa0] sm:$0xff] %v356
    %382 = vst [vmem:[%s3 + $0xa8] sm:$0xff] %v357
    %383 = vst [vmem:[%s3 + $0xb0] sm:$0xff] %v358
    %384 = vst [vmem:[%s3 + $0xb8] sm:$0xff] %v359
    %385 = vst [vmem:[%s3 + $0xc0] sm:$0xff] %v360
    // Predicated region
    $region26: #{resnet18_forward.13} parent=1 // pred_check
      %p386 = pneg %p44
    $region27: #{resnet18_forward.13} parent=1 // pred_check_branch
      %388 = sbr.rel (%p386) target = $region29
    $region28: #{resnet18_forward.13} parent=1 // pred_region
      %v389 = vld [vmem:[%s3] sm:$0xff]
      %v390 = vld [vmem:[%s3 + $0x8] sm:$0xff]
      %v391 = vld [vmem:[%s3 + $0x10] sm:$0xff]
      %v392 = vld [vmem:[%s3 + $0x18] sm:$0xff]
      %v393 = vld [vmem:[%s3 + $0x20] sm:$0xff]
      %v394 = vld [vmem:[%s3 + $0x28] sm:$0xff]
      %v395 = vld [vmem:[%s3 + $0x30] sm:$0xff]
      %v396 = vld [vmem:[%s3 + $0x38] sm:$0xff]
      %v397 = vld [vmem:[%s3 + $0x40] sm:$0xff]
      %v398 = vld [vmem:[%s3 + $0x48] sm:$0xff]
      %v399 = vld [vmem:[%s3 + $0x50] sm:$0xff]
      %v400 = vld [vmem:[%s3 + $0x58] sm:$0xff]
      %v401 = vld [vmem:[%s3 + $0x60] sm:$0xff]
      %v402 = vld [vmem:[%s3 + $0x68] sm:$0xff]
      %v403 = vld [vmem:[%s3 + $0x70] sm:$0xff]
      %v404 = vld [vmem:[%s3 + $0x78] sm:$0xff]
      %v405 = vld [vmem:[%s3 + $0x80] sm:$0xff]
      %v406 = vld [vmem:[%s3 + $0x88] sm:$0xff]
      %v407 = vld [vmem:[%s3 + $0x90] sm:$0xff]
      %v408 = vld [vmem:[%s3 + $0x98] sm:$0xff]
      %v409 = vld [vmem:[%s3 + $0xa0] sm:$0xff]
      %v410 = vld [vmem:[%s3 + $0xa8] sm:$0xff]
      %v411 = vld [vmem:[%s3 + $0xb0] sm:$0xff]
      %v412 = vld [vmem:[%s3 + $0xb8] sm:$0xff]
      %v413 = vld [vmem:[%s3 + $0xc0] sm:$0xff]
      %v414 = vld [vmem:[#allocation4] sm:$0x1]
      %v416 = vperm.slane %v414, 0
      %v418 = vadd.f32 %v389, %v416
      %v419 = vadd.f32 %v390, %v416
      %v420 = vadd.f32 %v391, %v416
      %v421 = vadd.f32 %v392, %v416
      %v422 = vadd.f32 %v393, %v416
      %v423 = vadd.f32 %v394, %v416
      %v424 = vadd.f32 %v395, %v416
      %v425 = vadd.f32 %v396, %v416
      %v426 = vadd.f32 %v397, %v416
      %v427 = vadd.f32 %v398, %v416
      %v428 = vadd.f32 %v399, %v416
      %v429 = vadd.f32 %v400, %v416
      %v430 = vadd.f32 %v401, %v416
      %v431 = vadd.f32 %v402, %v416
      %v432 = vadd.f32 %v403, %v416
      %v433 = vadd.f32 %v404, %v416
      %v434 = vadd.f32 %v405, %v416
      %v435 = vadd.f32 %v406, %v416
      %v436 = vadd.f32 %v407, %v416
      %v437 = vadd.f32 %v408, %v416
      %v438 = vadd.f32 %v409, %v416
      %v439 = vadd.f32 %v410, %v416
      %v440 = vadd.f32 %v411, %v416
      %v441 = vadd.f32 %v412, %v416
      %v442 = vadd.f32 %v413, %v416
      %v443 = vmax.f32 %v418, 0.0
      %v444 = vmax.f32 %v419, 0.0
      %v445 = vmax.f32 %v420, 0.0
      %v446 = vmax.f32 %v421, 0.0
      %v447 = vmax.f32 %v422, 0.0
      %v448 = vmax.f32 %v423, 0.0
      %v449 = vmax.f32 %v424, 0.0
      %v450 = vmax.f32 %v425, 0.0
      %v451 = vmax.f32 %v426, 0.0
      %v452 = vmax.f32 %v427, 0.0
      %v453 = vmax.f32 %v428, 0.0
      %v454 = vmax.f32 %v429, 0.0
      %v455 = vmax.f32 %v430, 0.0
      %v456 = vmax.f32 %v431, 0.0
      %v457 = vmax.f32 %v432, 0.0
      %v458 = vmax.f32 %v433, 0.0
      %v459 = vmax.f32 %v434, 0.0
      %v460 = vmax.f32 %v435, 0.0
      %v461 = vmax.f32 %v436, 0.0
      %v462 = vmax.f32 %v437, 0.0
      %v463 = vmax.f32 %v438, 0.0
      %v464 = vmax.f32 %v439, 0.0
      %v465 = vmax.f32 %v440, 0.0
      %v466 = vmax.f32 %v441, 0.0
      %v467 = vmax.f32 %v442, 0.0
      %468 = vst [vmem:[%s3] sm:$0xff] %v443
      %469 = vst [vmem:[%s3 + $0x8] sm:$0xff] %v444
      %470 = vst [vmem:[%s3 + $0x10] sm:$0xff] %v445
      %471 = vst [vmem:[%s3 + $0x18] sm:$0xff] %v446
      %472 = vst [vmem:[%s3 + $0x20] sm:$0xff] %v447
      %473 = vst [vmem:[%s3 + $0x28] sm:$0xff] %v448
      %474 = vst [vmem:[%s3 + $0x30] sm:$0xff] %v449
      %475 = vst [vmem:[%s3 + $0x38] sm:$0xff] %v450
      %476 = vst [vmem:[%s3 + $0x40] sm:$0xff] %v451
      %477 = vst [vmem:[%s3 + $0x48] sm:$0xff] %v452
      %478 = vst [vmem:[%s3 + $0x50] sm:$0xff] %v453
      %479 = vst [vmem:[%s3 + $0x58] sm:$0xff] %v454
      %480 = vst [vmem:[%s3 + $0x60] sm:$0xff] %v455
      %481 = vst [vmem:[%s3 + $0x68] sm:$0xff] %v456
      %482 = vst [vmem:[%s3 + $0x70] sm:$0xff] %v457
      %483 = vst [vmem:[%s3 + $0x78] sm:$0xff] %v458
      %484 = vst [vmem:[%s3 + $0x80] sm:$0xff] %v459
      %485 = vst [vmem:[%s3 + $0x88] sm:$0xff] %v460
      %486 = vst [vmem:[%s3 + $0x90] sm:$0xff] %v461
      %487 = vst [vmem:[%s3 + $0x98] sm:$0xff] %v462
      %488 = vst [vmem:[%s3 + $0xa0] sm:$0xff] %v463
      %489 = vst [vmem:[%s3 + $0xa8] sm:$0xff] %v464
      %490 = vst [vmem:[%s3 + $0xb0] sm:$0xff] %v465
      %491 = vst [vmem:[%s3 + $0xb8] sm:$0xff] %v466
      %492 = vst [vmem:[%s3 + $0xc0] sm:$0xff] %v467
    $region29: #{resnet18_forward.13} parent=1 // pred_fallthru
      _
    // Predicated region
    $region30: #{resnet18_forward.13} parent=1 // pred_check
      _
    $region31: #{resnet18_forward.13} parent=1 // pred_check_branch
      %494 = sbr.rel (0) target = $region33
    $region32: #{resnet18_forward.13} parent=1 // pred_region
      _
    $region33: #{resnet18_forward.13} parent=1 // pred_fallthru
      _
    // Predicated region
    $region34: #{resnet18_forward.13} parent=1 // pred_check
      _
    $region35: #{resnet18_forward.13} parent=1 // pred_check_branch
      %496 = sbr.rel (0) target = $region37
    $region36: #{resnet18_forward.13} parent=1 // pred_region
      _
    $region37: #{resnet18_forward.13} parent=1 // pred_fallthru
      _
    %497 = vsyncpa [#allocation3], 1
    %498 = vsyncpa [#allocation5], 1

// kernel: resnet18_forward.15
$region0: #{resnet18_forward.15}
  #allocation0 [shape = 'u32[]', space=smem, size = 0x4, offset = 0x4, fixed_abs, tag = 'smem constant byte address 0x4 - core index']
  #allocation1 [shape = 'u32[72,128]{1,0:T(1,128)}', space=vmem, size = 0x9000, scoped, tag = 'internal scratch']
  %s0 = inlined_call_operand.vmem [shape: bf16[56,1152], index: 0, kind: input, shape index: {}]
  %s1 = inlined_call_operand.hbm [shape: bf16[1152,128], index: 1, kind: input, shape index: {}]
  %s2 = inlined_call_operand.hbm [shape: f32[1,128], index: 2, kind: input, shape index: {}]
  %s3 = inlined_call_operand.vmem [shape: f32[56,128], index: 3, kind: output, shape index: {}]
  %s4 = sld [smem:[#allocation0]]
  $region87: #{resnet18_forward.15} parent=0
    _
  %s6 = ssub.s32 1, %s4
  %s7 = scalar_select 0, %s6, %s4
  $region1: #{resnet18_forward.15} parent=0
    #allocation2 [shape = 'u8[86016]{0}', space=vmem, size = 0x15000, scoped, tag = 'input window, operand 0']
    #allocation3 [shape = 'u8[196608]{0}', space=vmem, size = 0x30000, scoped, tag = 'input window, operand 1']
    #allocation4 [shape = 's32[2]{0}', space=sflag, size = 0x8, scoped, tag = 'scoped memory for resnet18_forward.15']
    #allocation5 [shape = 'u8[512]{0}', space=vmem, size = 0x400, scoped, tag = 'input window, operand 2, single buffered']
    #allocation6 [shape = 's32[1]{0}', space=sflag, size = 0x4, scoped, tag = 'scoped memory for resnet18_forward.15']
    %8 = vsyncpa [#allocation4], 0
    %s9 = scalar_lea.sflag [#allocation4], 1
    %10 = vsyncpa %s9, 0
    %11 = vsyncpa [#allocation6], 0
    loop: start=0, step=1, limit=5
    $region2: #{resnet18_forward.15} parent=1 // loop_pre_header
      _
    $region3: #{resnet18_forward.15} parent=1 // loop_header
      %s13 = sphi 0, %s17
      %p14 = scmp.ge.s32.totalorder %s13, 5
      %s20 = sphi 0, %s39
      %s21 = sphi 0, %s35
      %s22 = sphi 0, %s31
      %s23 = sphi 0, %s20
      %s24 = sphi 0, %s21
      %s25 = sphi 0, %s22
      %s26 = sphi 0, %s23
      %s27 = sphi 0, %s24
      %s28 = sphi 0, %s25
      %s44 = sphi 0, %s46
      %s47 = sphi 0, %s44
      %s48 = sphi 0, %s47
      %s64 = sphi 0, %s48
      %s72 = sphi 0, %s74
      %s75 = sphi 0, %s72
      %s76 = sphi 0, %s75
      %s92 = sphi 0, %s76
      %s98 = sphi 0, %s100
      %s101 = sphi 0, %s98
      %s102 = sphi 0, %s101
      %s118 = sphi 0, %s102
      %s126 = sphi 0, %s128
      %s129 = sphi 0, %s126
      %s130 = sphi 0, %s129
      %s146 = sphi 0, %s130
    $region4: #{resnet18_forward.15} parent=1 // loop_header_branch
      %16 = sbr.rel (%p14) target = $region8
    $region5: #{resnet18_forward.15} parent=1 // loop_body
      %s18 = ssub.s32 %s13, 1
      %s19 = ssub.s32 %s13, 2
      %s29 = sadd.s32 1, %s22
      %p30 = scmp.ge.s32.totalorder %s29, 3
      %s31 = scalar_select %p30, 0, %s29
      %s32 = sadd.s32 1, %s21
      %s33 = scalar_select %p30, %s32, %s21
      %p34 = scmp.ge.s32.totalorder %s33, 1
      %s35 = scalar_select %p34, 0, %s33
      %s36 = sadd.s32 1, %s20
      %s37 = scalar_select %p34, %s36, %s20
      %p38 = scmp.ge.s32.totalorder %s37, 1
      %s39 = scalar_select %p38, 0, %s37
      %s40 = ssub.s32 %s20, %s39
      %s41 = ssub.s32 %s22, %s31
      %s42 = sor.u32 %s40, %s41
      %p43 = scmp.eq.s32.totalorder %s42, 0
      %s45 = sadd.s32 %s44, 1
      %s46 = scalar_select %p43, %s44, %s45
      %p49 = pneg %p43
      %p50 = scmp.eq.s32.totalorder %s13, 2
      %p51 = por %p49, %p50
      %p52 = scmp.ne.s32.totalorder %s44, %s47
      %p53 = scmp.eq.s32.totalorder %s13, 0
      %p54 = por %p52, %p53
      %p55 = scmp.ne.s32.totalorder %s44, %s47
      %p56 = scmp.eq.s32.totalorder %s18, 2
      %p57 = por %p55, %p56
      %p58 = scmp.ne.s32.totalorder %s47, %s48
      %p59 = scmp.eq.s32.totalorder %s18, 0
      %p60 = por %p58, %p59
      %p61 = scmp.ne.s32.totalorder %s47, %s48
      %p62 = scmp.eq.s32.totalorder %s19, 2
      %p63 = por %p61, %p62
      %p65 = scmp.ne.s32.totalorder %s48, %s64
      %p66 = scmp.eq.s32.totalorder %s19, 0
      %p67 = por %p65, %p66
      %s68 = ssub.s32 %s22, %s31
      %s69 = ssub.s32 %s21, %s35
      %s70 = sor.u32 %s68, %s69
      %p71 = scmp.eq.s32.totalorder %s70, 0
      %s73 = sadd.s32 %s72, 1
      %s74 = scalar_select %p71, %s72, %s73
      %p77 = pneg %p71
      %p78 = scmp.eq.s32.totalorder %s13, 2
      %p79 = por %p77, %p78
      %p80 = scmp.ne.s32.totalorder %s72, %s75
      %p81 = scmp.eq.s32.totalorder %s13, 0
      %p82 = por %p80, %p81
      %p83 = scmp.ne.s32.totalorder %s72, %s75
      %p84 = scmp.eq.s32.totalorder %s18, 2
      %p85 = por %p83, %p84
      %p86 = scmp.ne.s32.totalorder %s75, %s76
      %p87 = scmp.eq.s32.totalorder %s18, 0
      %p88 = por %p86, %p87
      %p89 = scmp.ne.s32.totalorder %s75, %s76
      %p90 = scmp.eq.s32.totalorder %s19, 2
      %p91 = por %p89, %p90
      %p93 = scmp.ne.s32.totalorder %s76, %s92
      %p94 = scmp.eq.s32.totalorder %s19, 0
      %p95 = por %p93, %p94
      %s96 = ssub.s32 %s21, %s35
      %p97 = scmp.eq.s32.totalorder %s96, 0
      %s99 = sadd.s32 %s98, 1
      %s100 = scalar_select %p97, %s98, %s99
      %p103 = pneg %p97
      %p104 = scmp.eq.s32.totalorder %s13, 2
      %p105 = por %p103, %p104
      %p106 = scmp.ne.s32.totalorder %s98, %s101
      %p107 = scmp.eq.s32.totalorder %s13, 0
      %p108 = por %p106, %p107
      %p109 = scmp.ne.s32.totalorder %s98, %s101
      %p110 = scmp.eq.s32.totalorder %s18, 2
      %p111 = por %p109, %p110
      %p112 = scmp.ne.s32.totalorder %s101, %s102
      %p113 = scmp.eq.s32.totalorder %s18, 0
      %p114 = por %p112, %p113
      %p115 = scmp.ne.s32.totalorder %s101, %s102
      %p116 = scmp.eq.s32.totalorder %s19, 2
      %p117 = por %p115, %p116
      %p119 = scmp.ne.s32.totalorder %s102, %s118
      %p120 = scmp.eq.s32.totalorder %s19, 0
      %p121 = por %p119, %p120
      %s122 = ssub.s32 %s20, %s39
      %s123 = ssub.s32 %s21, %s35
      %s124 = sor.u32 %s122, %s123
      %p125 = scmp.eq.s32.totalorder %s124, 0
      %s127 = sadd.s32 %s126, 1
      %s128 = scalar_select %p125, %s126, %s127
      %p131 = pneg %p125
      %p132 = scmp.eq.s32.totalorder %s13, 2
      %p133 = por %p131, %p132
      %p134 = scmp.ne.s32.totalorder %s126, %s129
      %p135 = scmp.eq.s32.totalorder %s13, 0
      %p136 = por %p134, %p135
      %p137 = scmp.ne.s32.totalorder %s126, %s129
      %p138 = scmp.eq.s32.totalorder %s18, 2
      %p139 = por %p137, %p138
      %p140 = scmp.ne.s32.totalorder %s129, %s130
      %p141 = scmp.eq.s32.totalorder %s18, 0
      %p142 = por %p140, %p141
      %p143 = scmp.ne.s32.totalorder %s129, %s130
      %p144 = scmp.eq.s32.totalorder %s19, 2
      %p145 = por %p143, %p144
      %p147 = scmp.ne.s32.totalorder %s130, %s146
      %p148 = scmp.eq.s32.totalorder %s19, 0
      %p149 = por %p147, %p148
      %p150 = scmp.le.s32.totalorder 1, %s13
      %p151 = scmp.lt.s32.totalorder %s13, 4
      %p152 = pnand %p150, %p151
      %p153 = pneg %p152
      // Predicated region
      $region9: #{resnet18_forward.15} parent=5 // pred_check
        _
      $region10: #{resnet18_forward.15} parent=5 // pred_check_branch
        %155 = sbr.rel (%p152) target = $region12
      $region11: #{resnet18_forward.15} parent=5 // pred_region
        %s156 = ssub.s32 %s13, 1
        // Predicated region
        $region13: #{resnet18_forward.15} parent=11 // pred_check
          %p157 = pneg %p114
        $region14: #{resnet18_forward.15} parent=11 // pred_check_branch
          %159 = sbr.rel (%p157) target = $region16
        $region15: #{resnet18_forward.15} parent=11 // pred_region
          %161 = vsyncadd [#allocation6], 0
          %s162 = scalar_lea.hbm %s2, %s24
          %s164 = sshll.u32 %s162, 4
          %s165 = int_to_ptr.hbm [resolvable:$true] %s164
          %s166 = sshll.u32 [#allocation5], 4
          %s167 = int_to_ptr.vmem [resolvable:$true] %s166
          %169 = dma.hbm_to_vmem [thread:$0]  %s165, 16, %s167, [#allocation6]
        $region16: #{resnet18_forward.15} parent=11 // pred_fallthru
          _
      $region12: #{resnet18_forward.15} parent=5 // pred_fallthru
        _
      %p170 = scmp.lt.s32.totalorder %s13, 3
      // Predicated region
      $region17: #{resnet18_forward.15} parent=5 // pred_check
        %p171 = pneg %p170
      $region18: #{resnet18_forward.15} parent=5 // pred_check_branch
        %173 = sbr.rel (%p171) target = $region20
      $region19: #{resnet18_forward.15} parent=5 // pred_region
        // Predicated region
        $region21: #{resnet18_forward.15} parent=19 // pred_check
          %p174 = pneg %p54
        $region22: #{resnet18_forward.15} parent=19 // pred_check_branch
          %176 = sbr.rel (%p174) target = $region24
        $region23: #{resnet18_forward.15} parent=19 // pred_region
          %s177 = sand.u32 %s44, 1
          %s178 = sand.u32 %s44, 1
          %s179 = smul.addr %s178, 84
          %s180 = scalar_lea.vmem [#allocation2], %s179
          %s181 = smul.u32 7, %s20
          %s182 = smul.u32 3, %s22
          %s183 = smul.addr %s181, 9
          %s184 = sadd.s32 %s182, %s183
          %s185 = smul.addr %s184, 4
          %s186 = scalar_lea.vmem %s0, %s185
          // Predicated region
          $region25: #{resnet18_forward.15} parent=23 // pred_check
            _
          $region26: #{resnet18_forward.15} parent=23 // pred_check_branch
            %188 = sbr.rel (0) target = $region28
          $region27: #{resnet18_forward.15} parent=23 // pred_region
            // Predicated region
            $region29: #{resnet18_forward.15} parent=27 // pred_check
              _
            $region30: #{resnet18_forward.15} parent=27 // pred_check_branch
              %190 = sbr.rel (0) target = $region32
            $region31: #{resnet18_forward.15} parent=27 // pred_region
              %s191 = scalar_lea.vmem %s186, 8
              %s192 = scalar_lea.vmem %s180, 8 [#allocation2]
              loop: start=0, step=1, limit=1
              $region33: #{resnet18_forward.15} parent=31 // loop_pre_header
                _
              $region34: #{resnet18_forward.15} parent=31 // loop_header
                %s194 = sphi 0, %s198
                %p195 = scmp.ge.s32.totalorder %s194, 1
                %s199 = sphi %s186, %s186
                %s200 = sphi %s180, %s180
              $region35: #{resnet18_forward.15} parent=31 // loop_header_branch
                %197 = sbr.rel (%p195) target = $region39
              $region36: #{resnet18_forward.15} parent=31 // loop_body
                %v201 = vld [vmem:[%s199] sm:$0xff]
                %202 = vst [vmem:[%s200] sm:$0xff] %v201
                %v203 = vld [vmem:[%s199 + $0x24] sm:$0xff]
                %204 = vst [vmem:[%s200 + $0xc] sm:$0xff] %v203
                %v205 = vld [vmem:[%s199 + $0x48] sm:$0xff]
                %206 = vst [vmem:[%s200 + $0x18] sm:$0xff] %v205
                %v207 = vld [vmem:[%s199 + $0x6c] sm:$0xff]
                %208 = vst [vmem:[%s200 + $0x24] sm:$0xff] %v207
                %v209 = vld [vmem:[%s199 + $0x90] sm:$0xff]
                %210 = vst [vmem:[%s200 + $0x30] sm:$0xff] %v209
                %v211 = vld [vmem:[%s199 + $0xb4] sm:$0xff]
                %212 = vst [vmem:[%s200 + $0x3c] sm:$0xff] %v211
                %v213 = vld [vmem:[%s199 + $0xd8] sm:$0xff]
                %214 = vst [vmem:[%s200 + $0x48] sm:$0xff] %v213
              $region37: #{resnet18_forward.15} parent=31 // loop_footer
                %s198 = sadd.s32 1, %s194
              $region38: #{resnet18_forward.15} parent=31 // loop_footer_branch
                %193 = sbr.rel target = $region34
              $region39: #{resnet18_forward.15} parent=31 // loop_exit
                _
              %s216 = ssub.s32 16, 1
              loop: start=0, step=1, limit=1
              $region40: #{resnet18_forward.15} parent=31 // loop_pre_header
                _
              $region41: #{resnet18_forward.15} parent=31 // loop_header
                %s218 = sphi 0, %s222
                %p219 = scmp.ge.s32.totalorder %s218, 1
                %s223 = sphi %s191, %s191
                %s224 = sphi %s192, %s192
              $region42: #{resnet18_forward.15} parent=31 // loop_header_branch
                %221 = sbr.rel (%p219) target = $region46
              $region43: #{resnet18_forward.15} parent=31 // loop_body
                %v225 = vld [vmem:[%s223] sm:%s216]
                %226 = vst [vmem:[%s224] sm:%s216] %v225
                %v227 = vld [vmem:[%s223 + $0x24] sm:%s216]
                %228 = vst [vmem:[%s224 + $0xc] sm:%s216] %v227
                %v229 = vld [vmem:[%s223 + $0x48] sm:%s216]
                %230 = vst [vmem:[%s224 + $0x18] sm:%s216] %v229
                %v231 = vld [vmem:[%s223 + $0x6c] sm:%s216]
                %232 = vst [vmem:[%s224 + $0x24] sm:%s216] %v231
                %v233 = vld [vmem:[%s223 + $0x90] sm:%s216]
                %234 = vst [vmem:[%s224 + $0x30] sm:%s216] %v233
                %v235 = vld [vmem:[%s223 + $0xb4] sm:%s216]
                %236 = vst [vmem:[%s224 + $0x3c] sm:%s216] %v235
                %v237 = vld [vmem:[%s223 + $0xd8] sm:%s216]
                %238 = vst [vmem:[%s224 + $0x48] sm:%s216] %v237
              $region44: #{resnet18_forward.15} parent=31 // loop_footer
                %s222 = sadd.s32 1, %s218
              $region45: #{resnet18_forward.15} parent=31 // loop_footer_branch
                %217 = sbr.rel target = $region41
              $region46: #{resnet18_forward.15} parent=31 // loop_exit
                _
            $region32: #{resnet18_forward.15} parent=27 // pred_fallthru
              _
          $region28: #{resnet18_forward.15} parent=23 // pred_fallthru
            _
          %239 = vnop
        $region24: #{resnet18_forward.15} parent=19 // pred_fallthru
          _
        // Predicated region
        $region47: #{resnet18_forward.15} parent=19 // pred_check
          %p240 = pneg %p82
        $region48: #{resnet18_forward.15} parent=19 // pred_check_branch
          %242 = sbr.rel (%p240) target = $region50
        $region49: #{resnet18_forward.15} parent=19 // pred_region
          %s243 = sand.u32 %s72, 1
          %s244 = scalar_lea.sflag [#allocation4], %s243
          %s245 = sand.u32 %s72, 1
          %s246 = smul.addr %s245, 192
          %s247 = scalar_lea.vmem [#allocation3], %s246
          %s248 = smul.u32 48, %s22
          %250 = vsyncadd %s244, 0
          %s251 = sadd.s32 %s21, %s248
          %s252 = smul.addr %s251, 4
          %s253 = scalar_lea.hbm %s1, %s252
          %s254 = sshll.u32 %s253, 4
          %s255 = int_to_ptr.hbm [resolvable:$true] %s254
          %s256 = sshll.u32 %s247, 4
          %s257 = int_to_ptr.vmem [resolvable:$true] %s256
          %262 = dma.hbm_to_vmem [thread:$0]  %s255, 3072, %s257, %s244, 64, 64, 4
        $region50: #{resnet18_forward.15} parent=19 // pred_fallthru
          _
      $region20: #{resnet18_forward.15} parent=5 // pred_fallthru
        _
      %p263 = scmp.le.s32.totalorder 1, %s13
      %p264 = scmp.lt.s32.totalorder %s13, 4
      %p265 = pnand %p263, %p264
      %p266 = pneg %p265
      // Predicated region
      $region51: #{resnet18_forward.15} parent=5 // pred_check
        _
      $region52: #{resnet18_forward.15} parent=5 // pred_check_branch
        %268 = sbr.rel (%p265) target = $region54
      $region53: #{resnet18_forward.15} parent=5 // pred_region
        %s269 = ssub.s32 %s13, 1
        %s270 = sand.u32 %s47, 1
        %s271 = sand.u32 %s47, 1
        %s272 = smul.addr %s271, 84
        %s273 = scalar_lea.vmem [#allocation2], %s272
        // Predicated region
        $region55: #{resnet18_forward.15} parent=53 // pred_check
          %p274 = pneg %p60
        $region56: #{resnet18_forward.15} parent=53 // pred_check_branch
          %276 = sbr.rel (%p274) target = $region58
        $region57: #{resnet18_forward.15} parent=53 // pred_region
          _
        $region58: #{resnet18_forward.15} parent=53 // pred_fallthru
          _
        %s277 = sand.u32 %s75, 1
        %s278 = scalar_lea.sflag [#allocation4], %s277
        %s279 = sand.u32 %s75, 1
        %s280 = smul.addr %s279, 192
        %s281 = scalar_lea.vmem [#allocation3], %s280
        // Predicated region
        $region59: #{resnet18_forward.15} parent=53 // pred_check
          %p282 = pneg %p88
        $region60: #{resnet18_forward.15} parent=53 // pred_check_branch
          %284 = sbr.rel (%p282) target = $region62
        $region61: #{resnet18_forward.15} parent=53 // pred_region
          %286 = dma.done %s278, 3072
        $region62: #{resnet18_forward.15} parent=53 // pred_fallthru
          _
        // Predicated region
        $region63: #{resnet18_forward.15} parent=53 // pred_check
          %p287 = pneg %p114
        $region64: #{resnet18_forward.15} parent=53 // pred_check_branch
          %289 = sbr.rel (%p287) target = $region66
        $region65: #{resnet18_forward.15} parent=53 // pred_region
          %291 = dma.done [#allocation6], 16
        $region66: #{resnet18_forward.15} parent=53 // pred_fallthru
          _
        %s292 = sand.u32 %s47, 1
        %s293 = sand.u32 %s47, 1
        %s294 = smul.addr %s293, 84
        %s295 = scalar_lea.vmem [#allocation2], %s294
        %p296 = pneg %p60
        %p297 = pneg %p57
        %s298 = sand.u32 %s75, 1
        %s299 = scalar_lea.sflag [#allocation4], %s298
        %s300 = sand.u32 %s75, 1
        %s301 = smul.addr %s300, 192
        %s302 = scalar_lea.vmem [#allocation3], %s301
        %p303 = pneg %p88
        %p304 = pneg %p85
        %p305 = pneg %p114
        %p306 = pneg %p111
        %p307 = pneg %p142
        %p308 = pneg %p139
        %s309 = smul.u32 7, %s23
        %p310 = scmp.lt.s32.totalorder %s309, 6
        %s311 = scalar_select %p310, %s309, 6
        %p312 = scmp.lt.s32.totalorder %s24, 0
        %s313 = scalar_select %p312, %s24, 0
        %s314 = sadd.s32 %s313, %s311
        %s315 = smul.addr %s314, 8
        %s316 = scalar_lea.vmem %s3, %s315
        %s317 = smul.u32 7, %s23
        %s318 = smul.u32 3, %s25
        %s319 = smul.u32 48, %s25
        %s320 = smul.u32 7, %s23
        %p321 = scmp.lt.s32.totalorder %s320, 6
        %s322 = scalar_select %p321, %s320, 6
        %p323 = scmp.lt.s32.totalorder %s24, 0
        %s324 = scalar_select %p323, %s24, 0
        %s325 = sadd.s32 %s324, %s322
        %s326 = smul.addr %s325, 8
        %s327 = scalar_lea.vmem %s3, %s326
        %s328 = smul.u32 7, %s23
        %p329 = scmp.eq.s32.totalorder %s25, 0
        // Predicated region
        $region67: #{resnet18_forward.15} parent=53 // pred_check
          %p330 = pneg %p329
        $region68: #{resnet18_forward.15} parent=53 // pred_check_branch
          %332 = sbr.rel (%p330) target = $region70
        $region69: #{resnet18_forward.15} parent=53 // pred_region
          %333 = vst [vmem:[%s327] sm:$0xff] 0.0
          %334 = vst [vmem:[%s327 + $0x8] sm:$0xff] 0.0
          %335 = vst [vmem:[%s327 + $0x10] sm:$0xff] 0.0
          %336 = vst [vmem:[%s327 + $0x18] sm:$0xff] 0.0
          %337 = vst [vmem:[%s327 + $0x20] sm:$0xff] 0.0
          %338 = vst [vmem:[%s327 + $0x28] sm:$0xff] 0.0
          %339 = vst [vmem:[%s327 + $0x30] sm:$0xff] 0.0
        $region70: #{resnet18_forward.15} parent=53 // pred_fallthru
          _
        %v340 = vld [vmem:[%s327] sm:$0xff]
        %v341 = vld [vmem:[%s327 + $0x8] sm:$0xff]
        %v342 = vld [vmem:[%s327 + $0x10] sm:$0xff]
        %v343 = vld [vmem:[%s327 + $0x18] sm:$0xff]
        %v344 = vld [vmem:[%s327 + $0x20] sm:$0xff]
        %v345 = vld [vmem:[%s327 + $0x28] sm:$0xff]
        %v346 = vld [vmem:[%s327 + $0x30] sm:$0xff]
        %v347 = vld [vmem:[%s273] sm:$0xff]
        %v348 = vld [vmem:[%s273 + $0x8] sm:$0xf]
        %v349 = vld [vmem:[%s273 + $0xc] sm:$0xff]
        %v350 = vld [vmem:[%s273 + $0x14] sm:$0xf]
        %v351 = vld [vmem:[%s273 + $0x18] sm:$0xff]
        %v352 = vld [vmem:[%s273 + $0x20] sm:$0xf]
        %v353 = vld [vmem:[%s273 + $0x24] sm:$0xff]
        %v354 = vld [vmem:[%s273 + $0x2c] sm:$0xf]
        %v355 = vld [vmem:[%s273 + $0x30] sm:$0xff]
        %v356 = vld [vmem:[%s273 + $0x38] sm:$0xf]
        %v357 = vld [vmem:[%s273 + $0x3c] sm:$0xff]
        %v358 = vld [vmem:[%s273 + $0x44] sm:$0xf]
        %v359 = vld [vmem:[%s273 + $0x48] sm:$0xff]
        %v360 = vld [vmem:[%s273 + $0x50] sm:$0xf]
        %v361 = vld [vmem:[%s281] sm:$0xf]
        %v362 = vld [vmem:[%s281 + $0x4] sm:$0xf]
        %v363 = vld [vmem:[%s281 + $0x8] sm:$0xf]
        %v364 = vld [vmem:[%s281 + $0xc] sm:$0xf]
        %v365 = vld [vmem:[%s281 + $0x10] sm:$0xf]
        %v366 = vld [vmem:[%s281 + $0x14] sm:$0xf]
        %v367 = vld [vmem:[%s281 + $0x18] sm:$0xf]
        %v368 = vld [vmem:[%s281 + $0x1c] sm:$0xf]
        %v369 = vld [vmem:[%s281 + $0x20] sm:$0xf]
        %v370 = vld [vmem:[%s281 + $0x24] sm:$0xf]
        %v371 = vld [vmem:[%s281 + $0x28] sm:$0xf]
        %v372 = vld [vmem:[%s281 + $0x2c] sm:$0xf]
        %v373 = vld [vmem:[%s281 + $0x30] sm:$0xf]
        %v374 = vld [vmem:[%s281 + $0x34] sm:$0xf]
        %v375 = vld [vmem:[%s281 + $0x38] sm:$0xf]
        %v376 = vld [vmem:[%s281 + $0x3c] sm:$0xf]
        %v377 = vld [vmem:[%s281 + $0x40] sm:$0xf]
        %v378 = vld [vmem:[%s281 + $0x44] sm:$0xf]
        %v379 = vld [vmem:[%s281 + $0x48] sm:$0xf]
        %v380 = vld [vmem:[%s281 + $0x4c] sm:$0xf]
        %v381 = vld [vmem:[%s281 + $0x50] sm:$0xf]
        %v382 = vld [vmem:[%s281 + $0x54] sm:$0xf]
        %v383 = vld [vmem:[%s281 + $0x58] sm:$0xf]
        %v384 = vld [vmem:[%s281 + $0x5c] sm:$0xf]
        %v385 = vld [vmem:[%s281 + $0x60] sm:$0xf]
        %v386 = vld [vmem:[%s281 + $0x64] sm:$0xf]
        %v387 = vld [vmem:[%s281 + $0x68] sm:$0xf]
        %v388 = vld [vmem:[%s281 + $0x6c] sm:$0xf]
        %v389 = vld [vmem:[%s281 + $0x70] sm:$0xf]
        %v390 = vld [vmem:[%s281 + $0x74] sm:$0xf]
        %v391 = vld [vmem:[%s281 + $0x78] sm:$0xf]
        %v392 = vld [vmem:[%s281 + $0x7c] sm:$0xf]
        %v393 = vld [vmem:[%s281 + $0x80] sm:$0xf]
        %v394 = vld [vmem:[%s281 + $0x84] sm:$0xf]
        %v395 = vld [vmem:[%s281 + $0x88] sm:$0xf]
        %v396 = vld [vmem:[%s281 + $0x8c] sm:$0xf]
        %v397 = vld [vmem:[%s281 + $0x90] sm:$0xf]
        %v398 = vld [vmem:[%s281 + $0x94] sm:$0xf]
        %v399 = vld [vmem:[%s281 + $0x98] sm:$0xf]
        %v400 = vld [vmem:[%s281 + $0x9c] sm:$0xf]
        %v401 = vld [vmem:[%s281 + $0xa0] sm:$0xf]
        %v402 = vld [vmem:[%s281 + $0xa4] sm:$0xf]
        %v403 = vld [vmem:[%s281 + $0xa8] sm:$0xf]
        %v404 = vld [vmem:[%s281 + $0xac] sm:$0xf]
        %v405 = vld [vmem:[%s281 + $0xb0] sm:$0xf]
        %v406 = vld [vmem:[%s281 + $0xb4] sm:$0xf]
        %v407 = vld [vmem:[%s281 + $0xb8] sm:$0xf]
        %v408 = vld [vmem:[%s281 + $0xbc] sm:$0xf]
        %v423 = vunpack.c.l.b16 %v347
        %v424 = vunpack.c.h.b16 %v347
        %v425 = vunpack.c.l.b16 %v348
        %v426 = vunpack.c.l.b16 %v349
        %v427 = vunpack.c.h.b16 %v349
        %v428 = vunpack.c.l.b16 %v350
        %v429 = vunpack.c.l.b16 %v351
        %v430 = vunpack.c.h.b16 %v351
        %v431 = vunpack.c.l.b16 %v352
        %v432 = vunpack.c.l.b16 %v353
        %v433 = vunpack.c.h.b16 %v353
        %v434 = vunpack.c.l.b16 %v354
        %v435 = vunpack.c.l.b16 %v355
        %v436 = vunpack.c.h.b16 %v355
        %v437 = vunpack.c.l.b16 %v356
        %v438 = vunpack.c.l.b16 %v357
        %v439 = vunpack.c.h.b16 %v357
        %v440 = vunpack.c.l.b16 %v358
        %v441 = vunpack.c.l.b16 %v359
        %v442 = vunpack.c.h.b16 %v359
        %v443 = vunpack.c.l.b16 %v360
        %v444 = vpack.c.b16 %v426, %v423
        %v445 = vpack.c.b16 %v427, %v424
        %v446 = vpack.c.b16 %v428, %v425
        %v447 = vpack.c.b16 %v432, %v429
        %v448 = vpack.c.b16 %v433, %v430
        %v449 = vpack.c.b16 %v434, %v431
        %v450 = vpack.c.b16 %v438, %v435
        %v451 = vpack.c.b16 %v439, %v436
        %v452 = vpack.c.b16 %v440, %v437
        %v453 = vpack.c.b16 %v441, %v441
        %v454 = vpack.c.b16 %v442, %v442
        %v455 = vpack.c.b16 %v443, %v443
        %v516 = vunpack.c.l.b16 %v361
        %v517 = vunpack.c.l.b16 %v362
        %v518 = vunpack.c.l.b16 %v363
        %v519 = vunpack.c.l.b16 %v364
        %v520 = vunpack.c.l.b16 %v365
        %v521 = vunpack.c.l.b16 %v366
        %v522 = vunpack.c.l.b16 %v367
        %v523 = vunpack.c.l.b16 %v368
        %v524 = vunpack.c.l.b16 %v369
        %v525 = vunpack.c.l.b16 %v370
        %v526 = vunpack.c.l.b16 %v371
        %v527 = vunpack.c.l.b16 %v372
        %v528 = vunpack.c.l.b16 %v373
        %v529 = vunpack.c.l.b16 %v374
        %v530 = vunpack.c.l.b16 %v375
        %v531 = vunpack.c.l.b16 %v376
        %v532 = vunpack.c.l.b16 %v377
        %v533 = vunpack.c.l.b16 %v378
        %v534 = vunpack.c.l.b16 %v379
        %v535 = vunpack.c.l.b16 %v380
        %v536 = vunpack.c.l.b16 %v381
        %v537 = vunpack.c.l.b16 %v382
        %v538 = vunpack.c.l.b16 %v383
        %v539 = vunpack.c.l.b16 %v384
        %v540 = vunpack.c.l.b16 %v385
        %v541 = vunpack.c.l.b16 %v386
        %v542 = vunpack.c.l.b16 %v387
        %v543 = vunpack.c.l.b16 %v388
        %v544 = vunpack.c.l.b16 %v389
        %v545 = vunpack.c.l.b16 %v390
        %v546 = vunpack.c.l.b16 %v391
        %v547 = vunpack.c.l.b16 %v392
        %v548 = vunpack.c.l.b16 %v393
        %v549 = vunpack.c.l.b16 %v394
        %v550 = vunpack.c.l.b16 %v395
        %v551 = vunpack.c.l.b16 %v396
        %v552 = vunpack.c.l.b16 %v397
        %v553 = vunpack.c.l.b16 %v398
        %v554 = vunpack.c.l.b16 %v399
        %v555 = vunpack.c.l.b16 %v400
        %v556 = vunpack.c.l.b16 %v401
        %v557 = vunpack.c.l.b16 %v402
        %v558 = vunpack.c.l.b16 %v403
        %v559 = vunpack.c.l.b16 %v404
        %v560 = vunpack.c.l.b16 %v405
        %v561 = vunpack.c.l.b16 %v406
        %v562 = vunpack.c.l.b16 %v407
        %v563 = vunpack.c.l.b16 %v408
        %v564 = vpack.c.b16 %v517, %v516
        %v565 = vpack.c.b16 %v519, %v518
        %v566 = vpack.c.b16 %v521, %v520
        %v567 = vpack.c.b16 %v523, %v522
        %v568 = vpack.c.b16 %v525, %v524
        %v569 = vpack.c.b16 %v527, %v526
        %v570 = vpack.c.b16 %v529, %v528
        %v571 = vpack.c.b16 %v531, %v530
        %v572 = vpack.c.b16 %v533, %v532
        %v573 = vpack.c.b16 %v535, %v534
        %v574 = vpack.c.b16 %v537, %v536
        %v575 = vpack.c.b16 %v539, %v538
        %v576 = vpack.c.b16 %v541, %v540
        %v577 = vpack.c.b16 %v543, %v542
        %v578 = vpack.c.b16 %v545, %v544
        %v579 = vpack.c.b16 %v547, %v546
        %v580 = vpack.c.b16 %v549, %v548
        %v581 = vpack.c.b16 %v551, %v550
        %v582 = vpack.c.b16 %v553, %v552
        %v583 = vpack.c.b16 %v555, %v554
        %v584 = vpack.c.b16 %v557, %v556
        %v585 = vpack.c.b16 %v559, %v558
        %v586 = vpack.c.b16 %v561, %v560
        %v587 = vpack.c.b16 %v563, %v562
        %612 = vmatpush.bf16.msra.mxu0 %v571
        %613 = vmatpush.bf16.msra.mxu0 %v570
        %614 = vmatpush.bf16.msra.mxu0 %v569
        %615 = vmatpush.bf16.msra.mxu0 %v568
        %616 = vmatpush.bf16.msra.mxu0 %v567
        %617 = vmatpush.bf16.msra.mxu0 %v566
        %618 = vmatpush.bf16.msra.mxu0 %v565
        %619 = vmatpush.bf16.msra.mxu0 %v564
        %620 = vmatmul.bf16.gmra.mxu0 %v444
        %v621 = vpop.f32.mrf.mxu0
        %v622 = vadd.f32 0.0, %v621
        %v623 = vpop.f32.mrf.mxu0
        %v624 = vadd.f32 0.0, %v623
        %625 = vmatmul.bf16.gmra.mxu0 %v447
        %v626 = vpop.f32.mrf.mxu0
        %v627 = vadd.f32 0.0, %v626
        %v628 = vpop.f32.mrf.mxu0
        %v629 = vadd.f32 0.0, %v628
        %630 = vmatmul.bf16.gmra.mxu0 %v450
        %v631 = vpop.f32.mrf.mxu0
        %v632 = vadd.f32 0.0, %v631
        %v633 = vpop.f32.mrf.mxu0
        %v634 = vadd.f32 0.0, %v633
        %635 = vmatmul.bf16.gmra.mxu0 %v453
        %v636 = vpop.f32.mrf.mxu0
        %v637 = vadd.f32 0.0, %v636
        %v638 = vpop.f32.mrf.mxu0
        %639 = vdwg.mxu0
        %640 = vmatpush.bf16.msra.mxu0 %v579
        %641 = vmatpush.bf16.msra.mxu0 %v578
        %642 = vmatpush.bf16.msra.mxu0 %v577
        %643 = vmatpush.bf16.msra.mxu0 %v576
        %644 = vmatpush.bf16.msra.mxu0 %v575
        %645 = vmatpush.bf16.msra.mxu0 %v574
        %646 = vmatpush.bf16.msra.mxu0 %v573
        %647 = vmatpush.bf16.msra.mxu0 %v572
        %648 = vmatmul.bf16.gmra.mxu0 %v445
        %v649 = vpop.f32.mrf.mxu0
        %v650 = vadd.f32 %v622, %v649
        %v651 = vpop.f32.mrf.mxu0
        %v652 = vadd.f32 %v624, %v651
        %653 = vmatmul.bf16.gmra.mxu0 %v448
        %v654 = vpop.f32.mrf.mxu0
        %v655 = vadd.f32 %v627, %v654
        %v656 = vpop.f32.mrf.mxu0
        %v657 = vadd.f32 %v629, %v656
        %658 = vmatmul.bf16.gmra.mxu0 %v451
        %v659 = vpop.f32.mrf.mxu0
        %v660 = vadd.f32 %v632, %v659
        %v661 = vpop.f32.mrf.mxu0
        %v662 = vadd.f32 %v634, %v661
        %663 = vmatmul.bf16.gmra.mxu0 %v454
        %v664 = vpop.f32.mrf.mxu0
        %v665 = vadd.f32 %v637, %v664
        %v666 = vpop.f32.mrf.mxu0
        %667 = vdwg.mxu0
        %668 = vmatpush.bf16.msra.mxu0 %v587
        %669 = vmatpush.bf16.msra.mxu0 %v586
        %670 = vmatpush.bf16.msra.mxu0 %v585
        %671 = vmatpush.bf16.msra.mxu0 %v584
        %672 = vmatpush.bf16.msra.mxu0 %v583
        %673 = vmatpush.bf16.msra.mxu0 %v582
        %674 = vmatpush.bf16.msra.mxu0 %v581
        %675 = vmatpush.bf16.msra.mxu0 %v580
        %676 = vmatmul.bf16.gmra.mxu0 %v446
        %v677 = vpop.f32.mrf.mxu0
        %v678 = vadd.f32 %v650, %v677
        %v679 = vpop.f32.mrf.mxu0
        %v680 = vadd.f32 %v652, %v679
        %681 = vmatmul.bf16.gmra.mxu0 %v449
        %v682 = vpop.f32.mrf.mxu0
        %v683 = vadd.f32 %v655, %v682
        %v684 = vpop.f32.mrf.mxu0
        %v685 = vadd.f32 %v657, %v684
        %686 = vmatmul.bf16.gmra.mxu0 %v452
        %v687 = vpop.f32.mrf.mxu0
        %v688 = vadd.f32 %v660, %v687
        %v689 = vpop.f32.mrf.mxu0
        %v690 = vadd.f32 %v662, %v689
        %691 = vmatmul.bf16.gmra.mxu0 %v455
        %v692 = vpop.f32.mrf.mxu0
        %v693 = vadd.f32 %v665, %v692
        %v694 = vpop.f32.mrf.mxu0
        %695 = vdwg.mxu0
        %v696 = vadd.f32 %v340, %v678
        %v697 = vadd.f32 %v341, %v680
        %v698 = vadd.f32 %v342, %v683
        %v699 = vadd.f32 %v343, %v685
        %v700 = vadd.f32 %v344, %v688
        %v701 = vadd.f32 %v345, %v690
        %v702 = vadd.f32 %v346, %v693
        %703 = vst [vmem:[%s327] sm:$0xff] %v696
        %704 = vst [vmem:[%s327 + $0x8] sm:$0xff] %v697
        %705 = vst [vmem:[%s327 + $0x10] sm:$0xff] %v698
        %706 = vst [vmem:[%s327 + $0x18] sm:$0xff] %v699
        %707 = vst [vmem:[%s327 + $0x20] sm:$0xff] %v700
        %708 = vst [vmem:[%s327 + $0x28] sm:$0xff] %v701
        %709 = vst [vmem:[%s327 + $0x30] sm:$0xff] %v702
        %p710 = scmp.eq.s32.totalorder %s25, 2
        // Predicated region
        $region71: #{resnet18_forward.15} parent=53 // pred_check
          %p711 = pneg %p710
        $region72: #{resnet18_forward.15} parent=53 // pred_check_branch
          %713 = sbr.rel (%p711) target = $region74
        $region73: #{resnet18_forward.15} parent=53 // pred_region
          %v714 = vld [vmem:[%s327] sm:$0xff]
          %v715 = vld [vmem:[%s327 + $0x8] sm:$0xff]
          %v716 = vld [vmem:[%s327 + $0x10] sm:$0xff]
          %v717 = vld [vmem:[%s327 + $0x18] sm:$0xff]
          %v718 = vld [vmem:[%s327 + $0x20] sm:$0xff]
          %v719 = vld [vmem:[%s327 + $0x28] sm:$0xff]
          %v720 = vld [vmem:[%s327 + $0x30] sm:$0xff]
          %v721 = vld [vmem:[#allocation5] sm:$0x1]
          %v723 = vperm.slane %v721, 0
          %v725 = vadd.f32 %v714, %v723
          %v726 = vadd.f32 %v715, %v723
          %v727 = vadd.f32 %v716, %v723
          %v728 = vadd.f32 %v717, %v723
          %v729 = vadd.f32 %v718, %v723
          %v730 = vadd.f32 %v719, %v723
          %v731 = vadd.f32 %v720, %v723
          %v732 = vmax.f32 %v725, 0.0
          %v733 = vmax.f32 %v726, 0.0
          %v734 = vmax.f32 %v727, 0.0
          %v735 = vmax.f32 %v728, 0.0
          %v736 = vmax.f32 %v729, 0.0
          %v737 = vmax.f32 %v730, 0.0
          %v738 = vmax.f32 %v731, 0.0
          %739 = vst [vmem:[%s327] sm:$0xff] %v732
          %740 = vst [vmem:[%s327 + $0x8] sm:$0xff] %v733
          %741 = vst [vmem:[%s327 + $0x10] sm:$0xff] %v734
          %742 = vst [vmem:[%s327 + $0x18] sm:$0xff] %v735
          %743 = vst [vmem:[%s327 + $0x20] sm:$0xff] %v736
          %744 = vst [vmem:[%s327 + $0x28] sm:$0xff] %v737
          %745 = vst [vmem:[%s327 + $0x30] sm:$0xff] %v738
        $region74: #{resnet18_forward.15} parent=53 // pred_fallthru
          _
        %s746 = smul.u32 7, %s23
        %p747 = scmp.lt.s32.totalorder %s746, 6
        %s748 = scalar_select %p747, %s746, 6
        %p749 = scmp.lt.s32.totalorder %s24, 0
        %s750 = scalar_select %p749, %s24, 0
        %s751 = sadd.s32 %s750, %s748
        %s752 = smul.addr %s751, 8
        %s753 = scalar_lea.vmem %s3, %s752
        // Predicated region
        $region75: #{resnet18_forward.15} parent=53 // pred_check
          %p754 = pneg %p139
        $region76: #{resnet18_forward.15} parent=53 // pred_check_branch
          %756 = sbr.rel (%p754) target = $region78
        $region77: #{resnet18_forward.15} parent=53 // pred_region
          %s757 = smul.u32 7, %s23
        $region78: #{resnet18_forward.15} parent=53 // pred_fallthru
          _
        // Predicated region
        $region79: #{resnet18_forward.15} parent=53 // pred_check
          %p758 = pneg %p139
        $region80: #{resnet18_forward.15} parent=53 // pred_check_branch
          %760 = sbr.rel (%p758) target = $region82
        $region81: #{resnet18_forward.15} parent=53 // pred_region
          %s761 = smul.u32 7, %s23
          %p762 = scmp.lt.s32.totalorder %s761, 6
          %s763 = scalar_select %p762, %s761, 6
          %p764 = scmp.lt.s32.totalorder %s24, 0
          %s765 = scalar_select %p764, %s24, 0
          %s766 = sadd.s32 %s765, %s763
          %s767 = smul.addr %s766, 8
          %s768 = scalar_lea.vmem %s3, %s767
        $region82: #{resnet18_forward.15} parent=53 // pred_fallthru
          _
      $region54: #{resnet18_forward.15} parent=5 // pred_fallthru
        _
      %p769 = scmp.le.s32.totalorder 2, %s13
      // Predicated region
      $region83: #{resnet18_forward.15} parent=5 // pred_check
        %p770 = pneg %p769
      $region84: #{resnet18_forward.15} parent=5 // pred_check_branch
        %772 = sbr.rel (%p770) target = $region86
      $region85: #{resnet18_forward.15} parent=5 // pred_region
        %s773 = ssub.s32 %s13, 2
      $region86: #{resnet18_forward.15} parent=5 // pred_fallthru
        _
    $region6: #{resnet18_forward.15} parent=1 // loop_footer
      %s17 = sadd.s32 1, %s13
    $region7: #{resnet18_forward.15} parent=1 // loop_footer_branch
      %12 = sbr.rel target = $region3
    $region8: #{resnet18_forward.15} parent=1 // loop_exit
      _
    %774 = vsyncpa [#allocation4], 1
    %s775 = scalar_lea.sflag [#allocation4], 1
    %776 = vsyncpa %s775, 1
    %777 = vsyncpa [#allocation6], 1

// kernel: resnet18_forward.14
$region0: #{resnet18_forward.14}
  #allocation0 [shape = 'u32[]', space=smem, size = 0x4, offset = 0x4, fixed_abs, tag = 'smem constant byte address 0x4 - core index']
  #allocation1 [shape = 'u32[72,128]{1,0:T(1,128)}', space=vmem, size = 0x9000, scoped, tag = 'internal scratch']
  %s0 = inlined_call_operand.vmem [shape: bf16[56,128], index: 0, kind: input, shape index: {}]
  %s1 = inlined_call_operand.hbm [shape: bf16[128,128], index: 1, kind: input, shape index: {}]
  %s2 = inlined_call_operand.vmem [shape: f32[1,128], index: 2, kind: input, shape index: {}]
  %s3 = inlined_call_operand.vmem [shape: f32[56,128], index: 3, kind: output, shape index: {}]
  %s4 = sld [smem:[#allocation0]]
  $region34: #{resnet18_forward.14} parent=0
    _
  %s6 = ssub.s32 1, %s4
  %s7 = scalar_select 0, %s6, %s4
  $region1: #{resnet18_forward.14} parent=0
    #allocation2 [shape = 'u8[32768]{0}', space=vmem, size = 0x8000, scoped, tag = 'input window, operand 1, single buffered']
    #allocation3 [shape = 's32[1]{0}', space=sflag, size = 0x4, scoped, tag = 'scoped memory for resnet18_forward.14']
    %8 = vsyncpa [#allocation3], 0
    // Predicated region
    $region2: #{resnet18_forward.14} parent=1 // pred_check
      _
    $region3: #{resnet18_forward.14} parent=1 // pred_check_branch
      %10 = sbr.rel (0) target = $region5
    $region4: #{resnet18_forward.14} parent=1 // pred_region
      _
    $region5: #{resnet18_forward.14} parent=1 // pred_fallthru
      _
    // Predicated region
    $region6: #{resnet18_forward.14} parent=1 // pred_check
      _
    $region7: #{resnet18_forward.14} parent=1 // pred_check_branch
      %12 = sbr.rel (0) target = $region9
    $region8: #{resnet18_forward.14} parent=1 // pred_region
      %14 = vsyncadd [#allocation3], 0
      %s15 = sshll.u32 %s1, 4
      %s16 = int_to_ptr.hbm [resolvable:$true] %s15
      %s17 = sshll.u32 [#allocation2], 4
      %s18 = int_to_ptr.vmem [resolvable:$true] %s17
      %23 = dma.hbm_to_vmem [thread:$0]  %s16, 1024, %s18, [#allocation3], 64, 64, 4
    $region9: #{resnet18_forward.14} parent=1 // pred_fallthru
      _
    // Predicated region
    $region10: #{resnet18_forward.14} parent=1 // pred_check
      _
    $region11: #{resnet18_forward.14} parent=1 // pred_check_branch
      %25 = sbr.rel (0) target = $region13
    $region12: #{resnet18_forward.14} parent=1 // pred_region
      _
    $region13: #{resnet18_forward.14} parent=1 // pred_fallthru
      _
    // Predicated region
    $region14: #{resnet18_forward.14} parent=1 // pred_check
      _
    $region15: #{resnet18_forward.14} parent=1 // pred_check_branch
      %27 = sbr.rel (0) target = $region17
    $region16: #{resnet18_forward.14} parent=1 // pred_region
      %29 = dma.done [#allocation3], 1024
    $region17: #{resnet18_forward.14} parent=1 // pred_fallthru
      _
    %p30 = scmp.eq.s32.totalorder 0, 0
    // Predicated region
    $region18: #{resnet18_forward.14} parent=1 // pred_check
      %p31 = pneg %p30
    $region19: #{resnet18_forward.14} parent=1 // pred_check_branch
      %33 = sbr.rel (%p31) target = $region21
    $region20: #{resnet18_forward.14} parent=1 // pred_region
      %34 = vst [vmem:[%s3] sm:$0xff] 0.0
      %35 = vst [vmem:[%s3 + $0x8] sm:$0xff] 0.0
      %36 = vst [vmem:[%s3 + $0x10] sm:$0xff] 0.0
      %37 = vst [vmem:[%s3 + $0x18] sm:$0xff] 0.0
      %38 = vst [vmem:[%s3 + $0x20] sm:$0xff] 0.0
      %39 = vst [vmem:[%s3 + $0x28] sm:$0xff] 0.0
      %40 = vst [vmem:[%s3 + $0x30] sm:$0xff] 0.0
    $region21: #{resnet18_forward.14} parent=1 // pred_fallthru
      _
    %v41 = vld [vmem:[%s3] sm:$0xff]
    %v42 = vld [vmem:[%s3 + $0x8] sm:$0xff]
    %v43 = vld [vmem:[%s3 + $0x10] sm:$0xff]
    %v44 = vld [vmem:[%s3 + $0x18] sm:$0xff]
    %v45 = vld [vmem:[%s3 + $0x20] sm:$0xff]
    %v46 = vld [vmem:[%s3 + $0x28] sm:$0xff]
    %v47 = vld [vmem:[%s3 + $0x30] sm:$0xff]
    %v48 = vld [vmem:[%s0] sm:$0xf]
    %v49 = vld [vmem:[%s0 + $0x4] sm:$0xf]
    %v50 = vld [vmem:[%s0 + $0x8] sm:$0xf]
    %v51 = vld [vmem:[%s0 + $0xc] sm:$0xf]
    %v52 = vld [vmem:[%s0 + $0x10] sm:$0xf]
    %v53 = vld [vmem:[%s0 + $0x14] sm:$0xf]
    %v54 = vld [vmem:[%s0 + $0x18] sm:$0xf]
    %v55 = vld [vmem:[#allocation2] sm:$0xf]
    %v56 = vld [vmem:[#allocation2 + $0x4] sm:$0xf]
    %v57 = vld [vmem:[#allocation2 + $0x8] sm:$0xf]
    %v58 = vld [vmem:[#allocation2 + $0xc] sm:$0xf]
    %v59 = vld [vmem:[#allocation2 + $0x10] sm:$0xf]
    %v60 = vld [vmem:[#allocation2 + $0x14] sm:$0xf]
    %v61 = vld [vmem:[#allocation2 + $0x18] sm:$0xf]
    %v62 = vld [vmem:[#allocation2 + $0x1c] sm:$0xf]
    %v63 = vld [vmem:[#allocation2 + $0x20] sm:$0xf]
    %v64 = vld [vmem:[#allocation2 + $0x24] sm:$0xf]
    %v65 = vld [vmem:[#allocation2 + $0x28] sm:$0xf]
    %v66 = vld [vmem:[#allocation2 + $0x2c] sm:$0xf]
    %v67 = vld [vmem:[#allocation2 + $0x30] sm:$0xf]
    %v68 = vld [vmem:[#allocation2 + $0x34] sm:$0xf]
    %v69 = vld [vmem:[#allocation2 + $0x38] sm:$0xf]
    %v70 = vld [vmem:[#allocation2 + $0x3c] sm:$0xf]
    %v78 = vunpack.c.l.b16 %v48
    %v79 = vunpack.c.l.b16 %v49
    %v80 = vunpack.c.l.b16 %v50
    %v81 = vunpack.c.l.b16 %v51
    %v82 = vunpack.c.l.b16 %v52
    %v83 = vunpack.c.l.b16 %v53
    %v84 = vunpack.c.l.b16 %v54
    %v85 = vpack.c.b16 %v79, %v78
    %v86 = vpack.c.b16 %v81, %v80
    %v87 = vpack.c.b16 %v83, %v82
    %v88 = vpack.c.b16 %v84, %v84
    %v109 = vunpack.c.l.b16 %v55
    %v110 = vunpack.c.l.b16 %v56
    %v111 = vunpack.c.l.b16 %v57
    %v112 = vunpack.c.l.b16 %v58
    %v113 = vunpack.c.l.b16 %v59
    %v114 = vunpack.c.l.b16 %v60
    %v115 = vunpack.c.l.b16 %v61
    %v116 = vunpack.c.l.b16 %v62
    %v117 = vunpack.c.l.b16 %v63
    %v118 = vunpack.c.l.b16 %v64
    %v119 = vunpack.c.l.b16 %v65
    %v120 = vunpack.c.l.b16 %v66
    %v121 = vunpack.c.l.b16 %v67
    %v122 = vunpack.c.l.b16 %v68
    %v123 = vunpack.c.l.b16 %v69
    %v124 = vunpack.c.l.b16 %v70
    %v125 = vpack.c.b16 %v110, %v109
    %v126 = vpack.c.b16 %v112, %v111
    %v127 = vpack.c.b16 %v114, %v113
    %v128 = vpack.c.b16 %v116, %v115
    %v129 = vpack.c.b16 %v118, %v117
    %v130 = vpack.c.b16 %v120, %v119
    %v131 = vpack.c.b16 %v122, %v121
    %v132 = vpack.c.b16 %v124, %v123
    %141 = vmatpush.bf16.msra.mxu0 %v132
    %142 = vmatpush.bf16.msra.mxu0 %v131
    %143 = vmatpush.bf16.msra.mxu0 %v130
    %144 = vmatpush.bf16.msra.mxu0 %v129
    %145 = vmatpush.bf16.msra.mxu0 %v128
    %146 = vmatpush.bf16.msra.mxu0 %v127
    %147 = vmatpush.bf16.msra.mxu0 %v126
    %148 = vmatpush.bf16.msra.mxu0 %v125
    %149 = vmatmul.bf16.gmra.mxu0 %v85
    %v150 = vpop.f32.mrf.mxu0
    %v151 = vadd.f32 0.0, %v150
    %v152 = vpop.f32.mrf.mxu0
    %v153 = vadd.f32 0.0, %v152
    %154 = vmatmul.bf16.gmra.mxu0 %v86
    %v155 = vpop.f32.mrf.mxu0
    %v156 = vadd.f32 0.0, %v155
    %v157 = vpop.f32.mrf.mxu0
    %v158 = vadd.f32 0.0, %v157
    %159 = vmatmul.bf16.gmra.mxu0 %v87
    %v160 = vpop.f32.mrf.mxu0
    %v161 = vadd.f32 0.0, %v160
    %v162 = vpop.f32.mrf.mxu0
    %v163 = vadd.f32 0.0, %v162
    %164 = vmatmul.bf16.gmra.mxu0 %v88
    %v165 = vpop.f32.mrf.mxu0
    %v166 = vadd.f32 0.0, %v165
    %v167 = vpop.f32.mrf.mxu0
    %168 = vdwg.mxu0
    %v169 = vadd.f32 %v41, %v151
    %v170 = vadd.f32 %v42, %v153
    %v171 = vadd.f32 %v43, %v156
    %v172 = vadd.f32 %v44, %v158
    %v173 = vadd.f32 %v45, %v161
    %v174 = vadd.f32 %v46, %v163
    %v175 = vadd.f32 %v47, %v166
    %176 = vst [vmem:[%s3] sm:$0xff] %v169
    %177 = vst [vmem:[%s3 + $0x8] sm:$0xff] %v170
    %178 = vst [vmem:[%s3 + $0x10] sm:$0xff] %v171
    %179 = vst [vmem:[%s3 + $0x18] sm:$0xff] %v172
    %180 = vst [vmem:[%s3 + $0x20] sm:$0xff] %v173
    %181 = vst [vmem:[%s3 + $0x28] sm:$0xff] %v174
    %182 = vst [vmem:[%s3 + $0x30] sm:$0xff] %v175
    // Predicated region
    $region22: #{resnet18_forward.14} parent=1 // pred_check
      %p183 = pneg %p30
    $region23: #{resnet18_forward.14} parent=1 // pred_check_branch
      %185 = sbr.rel (%p183) target = $region25
    $region24: #{resnet18_forward.14} parent=1 // pred_region
      %v186 = vld [vmem:[%s3] sm:$0xff]
      %v187 = vld [vmem:[%s3 + $0x8] sm:$0xff]
      %v188 = vld [vmem:[%s3 + $0x10] sm:$0xff]
      %v189 = vld [vmem:[%s3 + $0x18] sm:$0xff]
      %v190 = vld [vmem:[%s3 + $0x20] sm:$0xff]
      %v191 = vld [vmem:[%s3 + $0x28] sm:$0xff]
      %v192 = vld [vmem:[%s3 + $0x30] sm:$0xff]
      %v193 = vld [vmem:[%s2] sm:$0x1]
      %v195 = vperm.slane %v193, 0
      %v197 = vadd.f32 %v186, %v195
      %v198 = vadd.f32 %v187, %v195
      %v199 = vadd.f32 %v188, %v195
      %v200 = vadd.f32 %v189, %v195
      %v201 = vadd.f32 %v190, %v195
      %v202 = vadd.f32 %v191, %v195
      %v203 = vadd.f32 %v192, %v195
      %204 = vst [vmem:[%s3] sm:$0xff] %v197
      %205 = vst [vmem:[%s3 + $0x8] sm:$0xff] %v198
      %206 = vst [vmem:[%s3 + $0x10] sm:$0xff] %v199
      %207 = vst [vmem:[%s3 + $0x18] sm:$0xff] %v200
      %208 = vst [vmem:[%s3 + $0x20] sm:$0xff] %v201
      %209 = vst [vmem:[%s3 + $0x28] sm:$0xff] %v202
      %210 = vst [vmem:[%s3 + $0x30] sm:$0xff] %v203
    $region25: #{resnet18_forward.14} parent=1 // pred_fallthru
      _
    // Predicated region
    $region26: #{resnet18_forward.14} parent=1 // pred_check
      _
    $region27: #{resnet18_forward.14} parent=1 // pred_check_branch
      %212 = sbr.rel (0) target = $region29
    $region28: #{resnet18_forward.14} parent=1 // pred_region
      _
    $region29: #{resnet18_forward.14} parent=1 // pred_fallthru
      _
    // Predicated region
    $region30: #{resnet18_forward.14} parent=1 // pred_check
      _
    $region31: #{resnet18_forward.14} parent=1 // pred_check_branch
      %214 = sbr.rel (0) target = $region33
    $region32: #{resnet18_forward.14} parent=1 // pred_region
      _
    $region33: #{resnet18_forward.14} parent=1 // pred_fallthru
      _
    %215 = vsyncpa [#allocation3], 1

// kernel: resnet18_forward.16
$region0: #{resnet18_forward.16}
  #allocation0 [shape = 'u32[]', space=smem, size = 0x4, offset = 0x4, fixed_abs, tag = 'smem constant byte address 0x4 - core index']
  #allocation1 [shape = 'u32[72,128]{1,0:T(1,128)}', space=vmem, size = 0x9000, scoped, tag = 'internal scratch']
  %s0 = inlined_call_operand.vmem [shape: bf16[56,1152], index: 0, kind: input, shape index: {}]
  %s1 = inlined_call_operand.vmem [shape: bf16[1152,128], index: 1, kind: input, shape index: {}]
  %s2 = inlined_call_operand.vmem [shape: f32[1,128], index: 2, kind: input, shape index: {}]
  %s3 = inlined_call_operand.vmem [shape: f32[56,128], index: 3, kind: input, shape index: {}]
  %s4 = inlined_call_operand.vmem [shape: f32[56,128], index: 4, kind: output, shape index: {}]
  %s5 = sld [smem:[#allocation0]]
  $region83: #{resnet18_forward.16} parent=0
    _
  %s7 = ssub.s32 1, %s5
  %s8 = scalar_select 0, %s7, %s5
  $region1: #{resnet18_forward.16} parent=0
    #allocation2 [shape = 'u8[86016]{0}', space=vmem, size = 0x15000, scoped, tag = 'input window, operand 0']
    loop: start=0, step=1, limit=5
    $region2: #{resnet18_forward.16} parent=1 // loop_pre_header
      _
    $region3: #{resnet18_forward.16} parent=1 // loop_header
      %s10 = sphi 0, %s14
      %p11 = scmp.ge.s32.totalorder %s10, 5
      %s17 = sphi 0, %s36
      %s18 = sphi 0, %s32
      %s19 = sphi 0, %s28
      %s20 = sphi 0, %s17
      %s21 = sphi 0, %s18
      %s22 = sphi 0, %s19
      %s23 = sphi 0, %s20
      %s24 = sphi 0, %s21
      %s25 = sphi 0, %s22
      %s41 = sphi 0, %s43
      %s44 = sphi 0, %s41
      %s45 = sphi 0, %s44
      %s61 = sphi 0, %s45
      %s69 = sphi 0, %s71
      %s72 = sphi 0, %s69
      %s73 = sphi 0, %s72
      %s89 = sphi 0, %s73
      %s95 = sphi 0, %s97
      %s98 = sphi 0, %s95
      %s99 = sphi 0, %s98
      %s115 = sphi 0, %s99
      %s123 = sphi 0, %s125
      %s126 = sphi 0, %s123
      %s127 = sphi 0, %s126
      %s143 = sphi 0, %s127
      %s151 = sphi 0, %s153
      %s154 = sphi 0, %s151
      %s155 = sphi 0, %s154
      %s171 = sphi 0, %s155
    $region4: #{resnet18_forward.16} parent=1 // loop_header_branch
      %13 = sbr.rel (%p11) target = $region8
    $region5: #{resnet18_forward.16} parent=1 // loop_body
      %s15 = ssub.s32 %s10, 1
      %s16 = ssub.s32 %s10, 2
      %s26 = sadd.s32 1, %s19
      %p27 = scmp.ge.s32.totalorder %s26, 3
      %s28 = scalar_select %p27, 0, %s26
      %s29 = sadd.s32 1, %s18
      %s30 = scalar_select %p27, %s29, %s18
      %p31 = scmp.ge.s32.totalorder %s30, 1
      %s32 = scalar_select %p31, 0, %s30
      %s33 = sadd.s32 1, %s17
      %s34 = scalar_select %p31, %s33, %s17
      %p35 = scmp.ge.s32.totalorder %s34, 1
      %s36 = scalar_select %p35, 0, %s34
      %s37 = ssub.s32 %s17, %s36
      %s38 = ssub.s32 %s19, %s28
      %s39 = sor.u32 %s37, %s38
      %p40 = scmp.eq.s32.totalorder %s39, 0
      %s42 = sadd.s32 %s41, 1
      %s43 = scalar_select %p40, %s41, %s42
      %p46 = pneg %p40
      %p47 = scmp.eq.s32.totalorder %s10, 2
      %p48 = por %p46, %p47
      %p49 = scmp.ne.s32.totalorder %s41, %s44
      %p50 = scmp.eq.s32.totalorder %s10, 0
      %p51 = por %p49, %p50
      %p52 = scmp.ne.s32.totalorder %s41, %s44
      %p53 = scmp.eq.s32.totalorder %s15, 2
      %p54 = por %p52, %p53
      %p55 = scmp.ne.s32.totalorder %s44, %s45
      %p56 = scmp.eq.s32.totalorder %s15, 0
      %p57 = por %p55, %p56
      %p58 = scmp.ne.s32.totalorder %s44, %s45
      %p59 = scmp.eq.s32.totalorder %s16, 2
      %p60 = por %p58, %p59
      %p62 = scmp.ne.s32.totalorder %s45, %s61
      %p63 = scmp.eq.s32.totalorder %s16, 0
      %p64 = por %p62, %p63
      %s65 = ssub.s32 %s19, %s28
      %s66 = ssub.s32 %s18, %s32
      %s67 = sor.u32 %s65, %s66
      %p68 = scmp.eq.s32.totalorder %s67, 0
      %s70 = sadd.s32 %s69, 1
      %s71 = scalar_select %p68, %s69, %s70
      %p74 = pneg %p68
      %p75 = scmp.eq.s32.totalorder %s10, 2
      %p76 = por %p74, %p75
      %p77 = scmp.ne.s32.totalorder %s69, %s72
      %p78 = scmp.eq.s32.totalorder %s10, 0
      %p79 = por %p77, %p78
      %p80 = scmp.ne.s32.totalorder %s69, %s72
      %p81 = scmp.eq.s32.totalorder %s15, 2
      %p82 = por %p80, %p81
      %p83 = scmp.ne.s32.totalorder %s72, %s73
      %p84 = scmp.eq.s32.totalorder %s15, 0
      %p85 = por %p83, %p84
      %p86 = scmp.ne.s32.totalorder %s72, %s73
      %p87 = scmp.eq.s32.totalorder %s16, 2
      %p88 = por %p86, %p87
      %p90 = scmp.ne.s32.totalorder %s73, %s89
      %p91 = scmp.eq.s32.totalorder %s16, 0
      %p92 = por %p90, %p91
      %s93 = ssub.s32 %s18, %s32
      %p94 = scmp.eq.s32.totalorder %s93, 0
      %s96 = sadd.s32 %s95, 1
      %s97 = scalar_select %p94, %s95, %s96
      %p100 = pneg %p94
      %p101 = scmp.eq.s32.totalorder %s10, 2
      %p102 = por %p100, %p101
      %p103 = scmp.ne.s32.totalorder %s95, %s98
      %p104 = scmp.eq.s32.totalorder %s10, 0
      %p105 = por %p103, %p104
      %p106 = scmp.ne.s32.totalorder %s95, %s98
      %p107 = scmp.eq.s32.totalorder %s15, 2
      %p108 = por %p106, %p107
      %p109 = scmp.ne.s32.totalorder %s98, %s99
      %p110 = scmp.eq.s32.totalorder %s15, 0
      %p111 = por %p109, %p110
      %p112 = scmp.ne.s32.totalorder %s98, %s99
      %p113 = scmp.eq.s32.totalorder %s16, 2
      %p114 = por %p112, %p113
      %p116 = scmp.ne.s32.totalorder %s99, %s115
      %p117 = scmp.eq.s32.totalorder %s16, 0
      %p118 = por %p116, %p117
      %s119 = ssub.s32 %s17, %s36
      %s120 = ssub.s32 %s18, %s32
      %s121 = sor.u32 %s119, %s120
      %p122 = scmp.eq.s32.totalorder %s121, 0
      %s124 = sadd.s32 %s123, 1
      %s125 = scalar_select %p122, %s123, %s124
      %p128 = pneg %p122
      %p129 = scmp.eq.s32.totalorder %s10, 2
      %p130 = por %p128, %p129
      %p131 = scmp.ne.s32.totalorder %s123, %s126
      %p132 = scmp.eq.s32.totalorder %s10, 0
      %p133 = por %p131, %p132
      %p134 = scmp.ne.s32.totalorder %s123, %s126
      %p135 = scmp.eq.s32.totalorder %s15, 2
      %p136 = por %p134, %p135
      %p137 = scmp.ne.s32.totalorder %s126, %s127
      %p138 = scmp.eq.s32.totalorder %s15, 0
      %p139 = por %p137, %p138
      %p140 = scmp.ne.s32.totalorder %s126, %s127
      %p141 = scmp.eq.s32.totalorder %s16, 2
      %p142 = por %p140, %p141
      %p144 = scmp.ne.s32.totalorder %s127, %s143
      %p145 = scmp.eq.s32.totalorder %s16, 0
      %p146 = por %p144, %p145
      %s147 = ssub.s32 %s17, %s36
      %s148 = ssub.s32 %s18, %s32
      %s149 = sor.u32 %s147, %s148
      %p150 = scmp.eq.s32.totalorder %s149, 0
      %s152 = sadd.s32 %s151, 1
      %s153 = scalar_select %p150, %s151, %s152
      %p156 = pneg %p150
      %p157 = scmp.eq.s32.totalorder %s10, 2
      %p158 = por %p156, %p157
      %p159 = scmp.ne.s32.totalorder %s151, %s154
      %p160 = scmp.eq.s32.totalorder %s10, 0
      %p161 = por %p159, %p160
      %p162 = scmp.ne.s32.totalorder %s151, %s154
      %p163 = scmp.eq.s32.totalorder %s15, 2
      %p164 = por %p162, %p163
      %p165 = scmp.ne.s32.totalorder %s154, %s155
      %p166 = scmp.eq.s32.totalorder %s15, 0
      %p167 = por %p165, %p166
      %p168 = scmp.ne.s32.totalorder %s154, %s155
      %p169 = scmp.eq.s32.totalorder %s16, 2
      %p170 = por %p168, %p169
      %p172 = scmp.ne.s32.totalorder %s155, %s171
      %p173 = scmp.eq.s32.totalorder %s16, 0
      %p174 = por %p172, %p173
      %p175 = scmp.le.s32.totalorder 1, %s10
      %p176 = scmp.lt.s32.totalorder %s10, 4
      %p177 = pnand %p175, %p176
      %p178 = pneg %p177
      // Predicated region
      $region9: #{resnet18_forward.16} parent=5 // pred_check
        _
      $region10: #{resnet18_forward.16} parent=5 // pred_check_branch
        %180 = sbr.rel (%p177) target = $region12
      $region11: #{resnet18_forward.16} parent=5 // pred_region
        %s181 = ssub.s32 %s10, 1
        // Predicated region
        $region13: #{resnet18_forward.16} parent=11 // pred_check
          %p182 = pneg %p111
        $region14: #{resnet18_forward.16} parent=11 // pred_check_branch
          %184 = sbr.rel (%p182) target = $region16
        $region15: #{resnet18_forward.16} parent=11 // pred_region
          %p185 = scmp.lt.s32.totalorder %s21, 0
          %s186 = scalar_select %p185, %s21, 0
          %s187 = scalar_lea.vmem %s2, %s186
        $region16: #{resnet18_forward.16} parent=11 // pred_fallthru
          _
        // Predicated region
        $region17: #{resnet18_forward.16} parent=11 // pred_check
          %p188 = pneg %p139
        $region18: #{resnet18_forward.16} parent=11 // pred_check_branch
          %190 = sbr.rel (%p188) target = $region20
        $region19: #{resnet18_forward.16} parent=11 // pred_region
          %s191 = smul.u32 7, %s20
          %p192 = scmp.lt.s32.totalorder %s191, 6
          %s193 = scalar_select %p192, %s191, 6
          %p194 = scmp.lt.s32.totalorder %s21, 0
          %s195 = scalar_select %p194, %s21, 0
          %s196 = sadd.s32 %s195, %s193
          %s197 = smul.addr %s196, 8
          %s198 = scalar_lea.vmem %s3, %s197
          %s199 = smul.u32 7, %s20
        $region20: #{resnet18_forward.16} parent=11 // pred_fallthru
          _
      $region12: #{resnet18_forward.16} parent=5 // pred_fallthru
        _
      %p200 = scmp.lt.s32.totalorder %s10, 3
      // Predicated region
      $region21: #{resnet18_forward.16} parent=5 // pred_check
        %p201 = pneg %p200
      $region22: #{resnet18_forward.16} parent=5 // pred_check_branch
        %203 = sbr.rel (%p201) target = $region24
      $region23: #{resnet18_forward.16} parent=5 // pred_region
        // Predicated region
        $region25: #{resnet18_forward.16} parent=23 // pred_check
          %p204 = pneg %p51
        $region26: #{resnet18_forward.16} parent=23 // pred_check_branch
          %206 = sbr.rel (%p204) target = $region28
        $region27: #{resnet18_forward.16} parent=23 // pred_region
          %s207 = sand.u32 %s41, 1
          %s208 = sand.u32 %s41, 1
          %s209 = smul.addr %s208, 84
          %s210 = scalar_lea.vmem [#allocation2], %s209
          %s211 = smul.u32 7, %s17
          %s212 = smul.u32 3, %s19
          %s213 = smul.addr %s211, 9
          %s214 = sadd.s32 %s212, %s213
          %s215 = smul.addr %s214, 4
          %s216 = scalar_lea.vmem %s0, %s215
          // Predicated region
          $region29: #{resnet18_forward.16} parent=27 // pred_check
            _
          $region30: #{resnet18_forward.16} parent=27 // pred_check_branch
            %218 = sbr.rel (0) target = $region32
          $region31: #{resnet18_forward.16} parent=27 // pred_region
            // Predicated region
            $region33: #{resnet18_forward.16} parent=31 // pred_check
              _
            $region34: #{resnet18_forward.16} parent=31 // pred_check_branch
              %220 = sbr.rel (0) target = $region36
            $region35: #{resnet18_forward.16} parent=31 // pred_region
              %s221 = scalar_lea.vmem %s216, 8
              %s222 = scalar_lea.vmem %s210, 8 [#allocation2]
              loop: start=0, step=1, limit=1
              $region37: #{resnet18_forward.16} parent=35 // loop_pre_header
                _
              $region38: #{resnet18_forward.16} parent=35 // loop_header
                %s224 = sphi 0, %s228
                %p225 = scmp.ge.s32.totalorder %s224, 1
                %s229 = sphi %s216, %s216
                %s230 = sphi %s210, %s210
              $region39: #{resnet18_forward.16} parent=35 // loop_header_branch
                %227 = sbr.rel (%p225) target = $region43
              $region40: #{resnet18_forward.16} parent=35 // loop_body
                %v231 = vld [vmem:[%s229] sm:$0xff]
                %232 = vst [vmem:[%s230] sm:$0xff] %v231
                %v233 = vld [vmem:[%s229 + $0x24] sm:$0xff]
                %234 = vst [vmem:[%s230 + $0xc] sm:$0xff] %v233
                %v235 = vld [vmem:[%s229 + $0x48] sm:$0xff]
                %236 = vst [vmem:[%s230 + $0x18] sm:$0xff] %v235
                %v237 = vld [vmem:[%s229 + $0x6c] sm:$0xff]
                %238 = vst [vmem:[%s230 + $0x24] sm:$0xff] %v237
                %v239 = vld [vmem:[%s229 + $0x90] sm:$0xff]
                %240 = vst [vmem:[%s230 + $0x30] sm:$0xff] %v239
                %v241 = vld [vmem:[%s229 + $0xb4] sm:$0xff]
                %242 = vst [vmem:[%s230 + $0x3c] sm:$0xff] %v241
                %v243 = vld [vmem:[%s229 + $0xd8] sm:$0xff]
                %244 = vst [vmem:[%s230 + $0x48] sm:$0xff] %v243
              $region41: #{resnet18_forward.16} parent=35 // loop_footer
                %s228 = sadd.s32 1, %s224
              $region42: #{resnet18_forward.16} parent=35 // loop_footer_branch
                %223 = sbr.rel target = $region38
              $region43: #{resnet18_forward.16} parent=35 // loop_exit
                _
              %s246 = ssub.s32 16, 1
              loop: start=0, step=1, limit=1
              $region44: #{resnet18_forward.16} parent=35 // loop_pre_header
                _
              $region45: #{resnet18_forward.16} parent=35 // loop_header
                %s248 = sphi 0, %s252
                %p249 = scmp.ge.s32.totalorder %s248, 1
                %s253 = sphi %s221, %s221
                %s254 = sphi %s222, %s222
              $region46: #{resnet18_forward.16} parent=35 // loop_header_branch
                %251 = sbr.rel (%p249) target = $region50
              $region47: #{resnet18_forward.16} parent=35 // loop_body
                %v255 = vld [vmem:[%s253] sm:%s246]
                %256 = vst [vmem:[%s254] sm:%s246] %v255
                %v257 = vld [vmem:[%s253 + $0x24] sm:%s246]
                %258 = vst [vmem:[%s254 + $0xc] sm:%s246] %v257
                %v259 = vld [vmem:[%s253 + $0x48] sm:%s246]
                %260 = vst [vmem:[%s254 + $0x18] sm:%s246] %v259
                %v261 = vld [vmem:[%s253 + $0x6c] sm:%s246]
                %262 = vst [vmem:[%s254 + $0x24] sm:%s246] %v261
                %v263 = vld [vmem:[%s253 + $0x90] sm:%s246]
                %264 = vst [vmem:[%s254 + $0x30] sm:%s246] %v263
                %v265 = vld [vmem:[%s253 + $0xb4] sm:%s246]
                %266 = vst [vmem:[%s254 + $0x3c] sm:%s246] %v265
                %v267 = vld [vmem:[%s253 + $0xd8] sm:%s246]
                %268 = vst [vmem:[%s254 + $0x48] sm:%s246] %v267
              $region48: #{resnet18_forward.16} parent=35 // loop_footer
                %s252 = sadd.s32 1, %s248
              $region49: #{resnet18_forward.16} parent=35 // loop_footer_branch
                %247 = sbr.rel target = $region45
              $region50: #{resnet18_forward.16} parent=35 // loop_exit
                _
            $region36: #{resnet18_forward.16} parent=31 // pred_fallthru
              _
          $region32: #{resnet18_forward.16} parent=27 // pred_fallthru
            _
          %269 = vnop
        $region28: #{resnet18_forward.16} parent=23 // pred_fallthru
          _
        // Predicated region
        $region51: #{resnet18_forward.16} parent=23 // pred_check
          %p270 = pneg %p79
        $region52: #{resnet18_forward.16} parent=23 // pred_check_branch
          %272 = sbr.rel (%p270) target = $region54
        $region53: #{resnet18_forward.16} parent=23 // pred_region
          %s273 = smul.u32 48, %s19
          %p274 = scmp.lt.s32.totalorder %s273, 143
          %s275 = scalar_select %p274, %s273, 143
          %p276 = scmp.lt.s32.totalorder %s18, 0
          %s277 = scalar_select %p276, %s18, 0
          %s278 = sadd.s32 %s277, %s275
          %s279 = smul.addr %s278, 4
          %s280 = scalar_lea.vmem %s1, %s279
          %s281 = smul.u32 48, %s19
        $region54: #{resnet18_forward.16} parent=23 // pred_fallthru
          _
      $region24: #{resnet18_forward.16} parent=5 // pred_fallthru
        _
      %p282 = scmp.le.s32.totalorder 1, %s10
      %p283 = scmp.lt.s32.totalorder %s10, 4
      %p284 = pnand %p282, %p283
      %p285 = pneg %p284
      // Predicated region
      $region55: #{resnet18_forward.16} parent=5 // pred_check
        _
      $region56: #{resnet18_forward.16} parent=5 // pred_check_branch
        %287 = sbr.rel (%p284) target = $region58
      $region57: #{resnet18_forward.16} parent=5 // pred_region
        %s288 = ssub.s32 %s10, 1
        %s289 = sand.u32 %s44, 1
        %s290 = sand.u32 %s44, 1
        %s291 = smul.addr %s290, 84
        %s292 = scalar_lea.vmem [#allocation2], %s291
        // Predicated region
        $region59: #{resnet18_forward.16} parent=57 // pred_check
          %p293 = pneg %p57
        $region60: #{resnet18_forward.16} parent=57 // pred_check_branch
          %295 = sbr.rel (%p293) target = $region62
        $region61: #{resnet18_forward.16} parent=57 // pred_region
          _
        $region62: #{resnet18_forward.16} parent=57 // pred_fallthru
          _
        %s296 = sand.u32 %s44, 1
        %s297 = sand.u32 %s44, 1
        %s298 = smul.addr %s297, 84
        %s299 = scalar_lea.vmem [#allocation2], %s298
        %p300 = pneg %p57
        %p301 = pneg %p54
        %s302 = smul.u32 48, %s22
        %p303 = scmp.lt.s32.totalorder %s302, 143
        %s304 = scalar_select %p303, %s302, 143
        %p305 = scmp.lt.s32.totalorder %s21, 0
        %s306 = scalar_select %p305, %s21, 0
        %s307 = sadd.s32 %s306, %s304
        %s308 = smul.addr %s307, 4
        %s309 = scalar_lea.vmem %s1, %s308
        %p310 = pneg %p85
        %p311 = pneg %p82
        %p312 = scmp.lt.s32.totalorder %s21, 0
        %s313 = scalar_select %p312, %s21, 0
        %s314 = scalar_lea.vmem %s2, %s313
        %p315 = pneg %p111
        %p316 = pneg %p108
        %s317 = smul.u32 7, %s20
        %p318 = scmp.lt.s32.totalorder %s317, 6
        %s319 = scalar_select %p318, %s317, 6
        %p320 = scmp.lt.s32.totalorder %s21, 0
        %s321 = scalar_select %p320, %s21, 0
        %s322 = sadd.s32 %s321, %s319
        %s323 = smul.addr %s322, 8
        %s324 = scalar_lea.vmem %s3, %s323
        %p325 = pneg %p139
        %p326 = pneg %p136
        %p327 = pneg %p167
        %p328 = pneg %p164
        %s329 = smul.u32 7, %s20
        %p330 = scmp.lt.s32.totalorder %s329, 6
        %s331 = scalar_select %p330, %s329, 6
        %p332 = scmp.lt.s32.totalorder %s21, 0
        %s333 = scalar_select %p332, %s21, 0
        %s334 = sadd.s32 %s333, %s331
        %s335 = smul.addr %s334, 8
        %s336 = scalar_lea.vmem %s4, %s335
        %s337 = smul.u32 7, %s20
        %s338 = smul.u32 3, %s22
        %s339 = smul.u32 48, %s22
        %p340 = scmp.lt.s32.totalorder %s339, 143
        %s341 = scalar_select %p340, %s339, 143
        %p342 = scmp.lt.s32.totalorder %s21, 0
        %s343 = scalar_select %p342, %s21, 0
        %s344 = sadd.s32 %s343, %s341
        %s345 = smul.addr %s344, 4
        %s346 = scalar_lea.vmem %s1, %s345
        %s347 = smul.u32 48, %s22
        %p348 = scmp.lt.s32.totalorder %s21, 0
        %s349 = scalar_select %p348, %s21, 0
        %s350 = scalar_lea.vmem %s2, %s349
        %s351 = smul.u32 7, %s20
        %p352 = scmp.lt.s32.totalorder %s351, 6
        %s353 = scalar_select %p352, %s351, 6
        %p354 = scmp.lt.s32.totalorder %s21, 0
        %s355 = scalar_select %p354, %s21, 0
        %s356 = sadd.s32 %s355, %s353
        %s357 = smul.addr %s356, 8
        %s358 = scalar_lea.vmem %s3, %s357
        %s359 = smul.u32 7, %s20
        %s360 = smul.u32 7, %s20
        %p361 = scmp.lt.s32.totalorder %s360, 6
        %s362 = scalar_select %p361, %s360, 6
        %p363 = scmp.lt.s32.totalorder %s21, 0
        %s364 = scalar_select %p363, %s21, 0
        %s365 = sadd.s32 %s364, %s362
        %s366 = smul.addr %s365, 8
        %s367 = scalar_lea.vmem %s4, %s366
        %s368 = smul.u32 7, %s20
        %p369 = scmp.eq.s32.totalorder %s22, 0
        // Predicated region
        $region63: #{resnet18_forward.16} parent=57 // pred_check
          %p370 = pneg %p369
        $region64: #{resnet18_forward.16} parent=57 // pred_check_branch
          %372 = sbr.rel (%p370) target = $region66
        $region65: #{resnet18_forward.16} parent=57 // pred_region
          %373 = vst [vmem:[%s367] sm:$0xff] 0.0
          %374 = vst [vmem:[%s367 + $0x8] sm:$0xff] 0.0
          %375 = vst [vmem:[%s367 + $0x10] sm:$0xff] 0.0
          %376 = vst [vmem:[%s367 + $0x18] sm:$0xff] 0.0
          %377 = vst [vmem:[%s367 + $0x20] sm:$0xff] 0.0
          %378 = vst [vmem:[%s367 + $0x28] sm:$0xff] 0.0
          %379 = vst [vmem:[%s367 + $0x30] sm:$0xff] 0.0
        $region66: #{resnet18_forward.16} parent=57 // pred_fallthru
          _
        %v380 = vld [vmem:[%s367] sm:$0xff]
        %v381 = vld [vmem:[%s367 + $0x8] sm:$0xff]
        %v382 = vld [vmem:[%s367 + $0x10] sm:$0xff]
        %v383 = vld [vmem:[%s367 + $0x18] sm:$0xff]
        %v384 = vld [vmem:[%s367 + $0x20] sm:$0xff]
        %v385 = vld [vmem:[%s367 + $0x28] sm:$0xff]
        %v386 = vld [vmem:[%s367 + $0x30] sm:$0xff]
        %v387 = vld [vmem:[%s292] sm:$0xff]
        %v388 = vld [vmem:[%s292 + $0x8] sm:$0xf]
        %v389 = vld [vmem:[%s292 + $0xc] sm:$0xff]
        %v390 = vld [vmem:[%s292 + $0x14] sm:$0xf]
        %v391 = vld [vmem:[%s292 + $0x18] sm:$0xff]
        %v392 = vld [vmem:[%s292 + $0x20] sm:$0xf]
        %v393 = vld [vmem:[%s292 + $0x24] sm:$0xff]
        %v394 = vld [vmem:[%s292 + $0x2c] sm:$0xf]
        %v395 = vld [vmem:[%s292 + $0x30] sm:$0xff]
        %v396 = vld [vmem:[%s292 + $0x38] sm:$0xf]
        %v397 = vld [vmem:[%s292 + $0x3c] sm:$0xff]
        %v398 = vld [vmem:[%s292 + $0x44] sm:$0xf]
        %v399 = vld [vmem:[%s292 + $0x48] sm:$0xff]
        %v400 = vld [vmem:[%s292 + $0x50] sm:$0xf]
        %v401 = vld [vmem:[%s346] sm:$0xf]
        %v402 = vld [vmem:[%s346 + $0x4] sm:$0xf]
        %v403 = vld [vmem:[%s346 + $0x8] sm:$0xf]
        %v404 = vld [vmem:[%s346 + $0xc] sm:$0xf]
        %v405 = vld [vmem:[%s346 + $0x10] sm:$0xf]
        %v406 = vld [vmem:[%s346 + $0x14] sm:$0xf]
        %v407 = vld [vmem:[%s346 + $0x18] sm:$0xf]
        %v408 = vld [vmem:[%s346 + $0x1c] sm:$0xf]
        %v409 = vld [vmem:[%s346 + $0x20] sm:$0xf]
        %v410 = vld [vmem:[%s346 + $0x24] sm:$0xf]
        %v411 = vld [vmem:[%s346 + $0x28] sm:$0xf]
        %v412 = vld [vmem:[%s346 + $0x2c] sm:$0xf]
        %v413 = vld [vmem:[%s346 + $0x30] sm:$0xf]
        %v414 = vld [vmem:[%s346 + $0x34] sm:$0xf]
        %v415 = vld [vmem:[%s346 + $0x38] sm:$0xf]
        %v416 = vld [vmem:[%s346 + $0x3c] sm:$0xf]
        %v417 = vld [vmem:[%s346 + $0x40] sm:$0xf]
        %v418 = vld [vmem:[%s346 + $0x44] sm:$0xf]
        %v419 = vld [vmem:[%s346 + $0x48] sm:$0xf]
        %v420 = vld [vmem:[%s346 + $0x4c] sm:$0xf]
        %v421 = vld [vmem:[%s346 + $0x50] sm:$0xf]
        %v422 = vld [vmem:[%s346 + $0x54] sm:$0xf]
        %v423 = vld [vmem:[%s346 + $0x58] sm:$0xf]
        %v424 = vld [vmem:[%s346 + $0x5c] sm:$0xf]
        %v425 = vld [vmem:[%s346 + $0x60] sm:$0xf]
        %v426 = vld [vmem:[%s346 + $0x64] sm:$0xf]
        %v427 = vld [vmem:[%s346 + $0x68] sm:$0xf]
        %v428 = vld [vmem:[%s346 + $0x6c] sm:$0xf]
        %v429 = vld [vmem:[%s346 + $0x70] sm:$0xf]
        %v430 = vld [vmem:[%s346 + $0x74] sm:$0xf]
        %v431 = vld [vmem:[%s346 + $0x78] sm:$0xf]
        %v432 = vld [vmem:[%s346 + $0x7c] sm:$0xf]
        %v433 = vld [vmem:[%s346 + $0x80] sm:$0xf]
        %v434 = vld [vmem:[%s346 + $0x84] sm:$0xf]
        %v435 = vld [vmem:[%s346 + $0x88] sm:$0xf]
        %v436 = vld [vmem:[%s346 + $0x8c] sm:$0xf]
        %v437 = vld [vmem:[%s346 + $0x90] sm:$0xf]
        %v438 = vld [vmem:[%s346 + $0x94] sm:$0xf]
        %v439 = vld [vmem:[%s346 + $0x98] sm:$0xf]
        %v440 = vld [vmem:[%s346 + $0x9c] sm:$0xf]
        %v441 = vld [vmem:[%s346 + $0xa0] sm:$0xf]
        %v442 = vld [vmem:[%s346 + $0xa4] sm:$0xf]
        %v443 = vld [vmem:[%s346 + $0xa8] sm:$0xf]
        %v444 = vld [vmem:[%s346 + $0xac] sm:$0xf]
        %v445 = vld [vmem:[%s346 + $0xb0] sm:$0xf]
        %v446 = vld [vmem:[%s346 + $0xb4] sm:$0xf]
        %v447 = vld [vmem:[%s346 + $0xb8] sm:$0xf]
        %v448 = vld [vmem:[%s346 + $0xbc] sm:$0xf]
        %v463 = vunpack.c.l.b16 %v387
        %v464 = vunpack.c.h.b16 %v387
        %v465 = vunpack.c.l.b16 %v388
        %v466 = vunpack.c.l.b16 %v389
        %v467 = vunpack.c.h.b16 %v389
        %v468 = vunpack.c.l.b16 %v390
        %v469 = vunpack.c.l.b16 %v391
        %v470 = vunpack.c.h.b16 %v391
        %v471 = vunpack.c.l.b16 %v392
        %v472 = vunpack.c.l.b16 %v393
        %v473 = vunpack.c.h.b16 %v393
        %v474 = vunpack.c.l.b16 %v394
        %v475 = vunpack.c.l.b16 %v395
        %v476 = vunpack.c.h.b16 %v395
        %v477 = vunpack.c.l.b16 %v396
        %v478 = vunpack.c.l.b16 %v397
        %v479 = vunpack.c.h.b16 %v397
        %v480 = vunpack.c.l.b16 %v398
        %v481 = vunpack.c.l.b16 %v399
        %v482 = vunpack.c.h.b16 %v399
        %v483 = vunpack.c.l.b16 %v400
        %v484 = vpack.c.b16 %v466, %v463
        %v485 = vpack.c.b16 %v467, %v464
        %v486 = vpack.c.b16 %v468, %v465
        %v487 = vpack.c.b16 %v472, %v469
        %v488 = vpack.c.b16 %v473, %v470
        %v489 = vpack.c.b16 %v474, %v471
        %v490 = vpack.c.b16 %v478, %v475
        %v491 = vpack.c.b16 %v479, %v476
        %v492 = vpack.c.b16 %v480, %v477
        %v493 = vpack.c.b16 %v481, %v481
        %v494 = vpack.c.b16 %v482, %v482
        %v495 = vpack.c.b16 %v483, %v483
        %v556 = vunpack.c.l.b16 %v401
        %v557 = vunpack.c.l.b16 %v402
        %v558 = vunpack.c.l.b16 %v403
        %v559 = vunpack.c.l.b16 %v404
        %v560 = vunpack.c.l.b16 %v405
        %v561 = vunpack.c.l.b16 %v406
        %v562 = vunpack.c.l.b16 %v407
        %v563 = vunpack.c.l.b16 %v408
        %v564 = vunpack.c.l.b16 %v409
        %v565 = vunpack.c.l.b16 %v410
        %v566 = vunpack.c.l.b16 %v411
        %v567 = vunpack.c.l.b16 %v412
        %v568 = vunpack.c.l.b16 %v413
        %v569 = vunpack.c.l.b16 %v414
        %v570 = vunpack.c.l.b16 %v415
        %v571 = vunpack.c.l.b16 %v416
        %v572 = vunpack.c.l.b16 %v417
        %v573 = vunpack.c.l.b16 %v418
        %v574 = vunpack.c.l.b16 %v419
        %v575 = vunpack.c.l.b16 %v420
        %v576 = vunpack.c.l.b16 %v421
        %v577 = vunpack.c.l.b16 %v422
        %v578 = vunpack.c.l.b16 %v423
        %v579 = vunpack.c.l.b16 %v424
        %v580 = vunpack.c.l.b16 %v425
        %v581 = vunpack.c.l.b16 %v426
        %v582 = vunpack.c.l.b16 %v427
        %v583 = vunpack.c.l.b16 %v428
        %v584 = vunpack.c.l.b16 %v429
        %v585 = vunpack.c.l.b16 %v430
        %v586 = vunpack.c.l.b16 %v431
        %v587 = vunpack.c.l.b16 %v432
        %v588 = vunpack.c.l.b16 %v433
        %v589 = vunpack.c.l.b16 %v434
        %v590 = vunpack.c.l.b16 %v435
        %v591 = vunpack.c.l.b16 %v436
        %v592 = vunpack.c.l.b16 %v437
        %v593 = vunpack.c.l.b16 %v438
        %v594 = vunpack.c.l.b16 %v439
        %v595 = vunpack.c.l.b16 %v440
        %v596 = vunpack.c.l.b16 %v441
        %v597 = vunpack.c.l.b16 %v442
        %v598 = vunpack.c.l.b16 %v443
        %v599 = vunpack.c.l.b16 %v444
        %v600 = vunpack.c.l.b16 %v445
        %v601 = vunpack.c.l.b16 %v446
        %v602 = vunpack.c.l.b16 %v447
        %v603 = vunpack.c.l.b16 %v448
        %v604 = vpack.c.b16 %v557, %v556
        %v605 = vpack.c.b16 %v559, %v558
        %v606 = vpack.c.b16 %v561, %v560
        %v607 = vpack.c.b16 %v563, %v562
        %v608 = vpack.c.b16 %v565, %v564
        %v609 = vpack.c.b16 %v567, %v566
        %v610 = vpack.c.b16 %v569, %v568
        %v611 = vpack.c.b16 %v571, %v570
        %v612 = vpack.c.b16 %v573, %v572
        %v613 = vpack.c.b16 %v575, %v574
        %v614 = vpack.c.b16 %v577, %v576
        %v615 = vpack.c.b16 %v579, %v578
        %v616 = vpack.c.b16 %v581, %v580
        %v617 = vpack.c.b16 %v583, %v582
        %v618 = vpack.c.b16 %v585, %v584
        %v619 = vpack.c.b16 %v587, %v586
        %v620 = vpack.c.b16 %v589, %v588
        %v621 = vpack.c.b16 %v591, %v590
        %v622 = vpack.c.b16 %v593, %v592
        %v623 = vpack.c.b16 %v595, %v594
        %v624 = vpack.c.b16 %v597, %v596
        %v625 = vpack.c.b16 %v599, %v598
        %v626 = vpack.c.b16 %v601, %v600
        %v627 = vpack.c.b16 %v603, %v602
        %652 = vmatpush.bf16.msra.mxu0 %v611
        %653 = vmatpush.bf16.msra.mxu0 %v610
        %654 = vmatpush.bf16.msra.mxu0 %v609
        %655 = vmatpush.bf16.msra.mxu0 %v608
        %656 = vmatpush.bf16.msra.mxu0 %v607
        %657 = vmatpush.bf16.msra.mxu0 %v606
        %658 = vmatpush.bf16.msra.mxu0 %v605
        %659 = vmatpush.bf16.msra.mxu0 %v604
        %660 = vmatmul.bf16.gmra.mxu0 %v484
        %v661 = vpop.f32.mrf.mxu0
        %v662 = vadd.f32 0.0, %v661
        %v663 = vpop.f32.mrf.mxu0
        %v664 = vadd.f32 0.0, %v663
        %665 = vmatmul.bf16.gmra.mxu0 %v487
        %v666 = vpop.f32.mrf.mxu0
        %v667 = vadd.f32 0.0, %v666
        %v668 = vpop.f32.mrf.mxu0
        %v669 = vadd.f32 0.0, %v668
        %670 = vmatmul.bf16.gmra.mxu0 %v490
        %v671 = vpop.f32.mrf.mxu0
        %v672 = vadd.f32 0.0, %v671
        %v673 = vpop.f32.mrf.mxu0
        %v674 = vadd.f32 0.0, %v673
        %675 = vmatmul.bf16.gmra.mxu0 %v493
        %v676 = vpop.f32.mrf.mxu0
        %v677 = vadd.f32 0.0, %v676
        %v678 = vpop.f32.mrf.mxu0
        %679 = vdwg.mxu0
        %680 = vmatpush.bf16.msra.mxu0 %v619
        %681 = vmatpush.bf16.msra.mxu0 %v618
        %682 = vmatpush.bf16.msra.mxu0 %v617
        %683 = vmatpush.bf16.msra.mxu0 %v616
        %684 = vmatpush.bf16.msra.mxu0 %v615
        %685 = vmatpush.bf16.msra.mxu0 %v614
        %686 = vmatpush.bf16.msra.mxu0 %v613
        %687 = vmatpush.bf16.msra.mxu0 %v612
        %688 = vmatmul.bf16.gmra.mxu0 %v485
        %v689 = vpop.f32.mrf.mxu0
        %v690 = vadd.f32 %v662, %v689
        %v691 = vpop.f32.mrf.mxu0
        %v692 = vadd.f32 %v664, %v691
        %693 = vmatmul.bf16.gmra.mxu0 %v488
        %v694 = vpop.f32.mrf.mxu0
        %v695 = vadd.f32 %v667, %v694
        %v696 = vpop.f32.mrf.mxu0
        %v697 = vadd.f32 %v669, %v696
        %698 = vmatmul.bf16.gmra.mxu0 %v491
        %v699 = vpop.f32.mrf.mxu0
        %v700 = vadd.f32 %v672, %v699
        %v701 = vpop.f32.mrf.mxu0
        %v702 = vadd.f32 %v674, %v701
        %703 = vmatmul.bf16.gmra.mxu0 %v494
        %v704 = vpop.f32.mrf.mxu0
        %v705 = vadd.f32 %v677, %v704
        %v706 = vpop.f32.mrf.mxu0
        %707 = vdwg.mxu0
        %708 = vmatpush.bf16.msra.mxu0 %v627
        %709 = vmatpush.bf16.msra.mxu0 %v626
        %710 = vmatpush.bf16.msra.mxu0 %v625
        %711 = vmatpush.bf16.msra.mxu0 %v624
        %712 = vmatpush.bf16.msra.mxu0 %v623
        %713 = vmatpush.bf16.msra.mxu0 %v622
        %714 = vmatpush.bf16.msra.mxu0 %v621
        %715 = vmatpush.bf16.msra.mxu0 %v620
        %716 = vmatmul.bf16.gmra.mxu0 %v486
        %v717 = vpop.f32.mrf.mxu0
        %v718 = vadd.f32 %v690, %v717
        %v719 = vpop.f32.mrf.mxu0
        %v720 = vadd.f32 %v692, %v719
        %721 = vmatmul.bf16.gmra.mxu0 %v489
        %v722 = vpop.f32.mrf.mxu0
        %v723 = vadd.f32 %v695, %v722
        %v724 = vpop.f32.mrf.mxu0
        %v725 = vadd.f32 %v697, %v724
        %726 = vmatmul.bf16.gmra.mxu0 %v492
        %v727 = vpop.f32.mrf.mxu0
        %v728 = vadd.f32 %v700, %v727
        %v729 = vpop.f32.mrf.mxu0
        %v730 = vadd.f32 %v702, %v729
        %731 = vmatmul.bf16.gmra.mxu0 %v495
        %v732 = vpop.f32.mrf.mxu0
        %v733 = vadd.f32 %v705, %v732
        %v734 = vpop.f32.mrf.mxu0
        %735 = vdwg.mxu0
        %v736 = vadd.f32 %v380, %v718
        %v737 = vadd.f32 %v381, %v720
        %v738 = vadd.f32 %v382, %v723
        %v739 = vadd.f32 %v383, %v725
        %v740 = vadd.f32 %v384, %v728
        %v741 = vadd.f32 %v385, %v730
        %v742 = vadd.f32 %v386, %v733
        %743 = vst [vmem:[%s367] sm:$0xff] %v736
        %744 = vst [vmem:[%s367 + $0x8] sm:$0xff] %v737
        %745 = vst [vmem:[%s367 + $0x10] sm:$0xff] %v738
        %746 = vst [vmem:[%s367 + $0x18] sm:$0xff] %v739
        %747 = vst [vmem:[%s367 + $0x20] sm:$0xff] %v740
        %748 = vst [vmem:[%s367 + $0x28] sm:$0xff] %v741
        %749 = vst [vmem:[%s367 + $0x30] sm:$0xff] %v742
        %p750 = scmp.eq.s32.totalorder %s22, 2
        // Predicated region
        $region67: #{resnet18_forward.16} parent=57 // pred_check
          %p751 = pneg %p750
        $region68: #{resnet18_forward.16} parent=57 // pred_check_branch
          %753 = sbr.rel (%p751) target = $region70
        $region69: #{resnet18_forward.16} parent=57 // pred_region
          %v754 = vld [vmem:[%s367] sm:$0xff]
          %v755 = vld [vmem:[%s367 + $0x8] sm:$0xff]
          %v756 = vld [vmem:[%s367 + $0x10] sm:$0xff]
          %v757 = vld [vmem:[%s367 + $0x18] sm:$0xff]
          %v758 = vld [vmem:[%s367 + $0x20] sm:$0xff]
          %v759 = vld [vmem:[%s367 + $0x28] sm:$0xff]
          %v760 = vld [vmem:[%s367 + $0x30] sm:$0xff]
          %v761 = vld [vmem:[%s350] sm:$0x1]
          %v763 = vperm.slane %v761, 0
          %v765 = vadd.f32 %v754, %v763
          %v766 = vadd.f32 %v755, %v763
          %v767 = vadd.f32 %v756, %v763
          %v768 = vadd.f32 %v757, %v763
          %v769 = vadd.f32 %v758, %v763
          %v770 = vadd.f32 %v759, %v763
          %v771 = vadd.f32 %v760, %v763
          %v772 = vld [vmem:[%s358] sm:$0xff]
          %v773 = vld [vmem:[%s358 + $0x8] sm:$0xff]
          %v774 = vld [vmem:[%s358 + $0x10] sm:$0xff]
          %v775 = vld [vmem:[%s358 + $0x18] sm:$0xff]
          %v776 = vld [vmem:[%s358 + $0x20] sm:$0xff]
          %v777 = vld [vmem:[%s358 + $0x28] sm:$0xff]
          %v778 = vld [vmem:[%s358 + $0x30] sm:$0xff]
          %v779 = vadd.f32 %v765, %v772
          %v780 = vadd.f32 %v766, %v773
          %v781 = vadd.f32 %v767, %v774
          %v782 = vadd.f32 %v768, %v775
          %v783 = vadd.f32 %v769, %v776
          %v784 = vadd.f32 %v770, %v777
          %v785 = vadd.f32 %v771, %v778
          %v786 = vmax.f32 %v779, 0.0
          %v787 = vmax.f32 %v780, 0.0
          %v788 = vmax.f32 %v781, 0.0
          %v789 = vmax.f32 %v782, 0.0
          %v790 = vmax.f32 %v783, 0.0
          %v791 = vmax.f32 %v784, 0.0
          %v792 = vmax.f32 %v785, 0.0
          %793 = vst [vmem:[%s367] sm:$0xff] %v786
          %794 = vst [vmem:[%s367 + $0x8] sm:$0xff] %v787
          %795 = vst [vmem:[%s367 + $0x10] sm:$0xff] %v788
          %796 = vst [vmem:[%s367 + $0x18] sm:$0xff] %v789
          %797 = vst [vmem:[%s367 + $0x20] sm:$0xff] %v790
          %798 = vst [vmem:[%s367 + $0x28] sm:$0xff] %v791
          %799 = vst [vmem:[%s367 + $0x30] sm:$0xff] %v792
        $region70: #{resnet18_forward.16} parent=57 // pred_fallthru
          _
        %s800 = smul.u32 7, %s20
        %p801 = scmp.lt.s32.totalorder %s800, 6
        %s802 = scalar_select %p801, %s800, 6
        %p803 = scmp.lt.s32.totalorder %s21, 0
        %s804 = scalar_select %p803, %s21, 0
        %s805 = sadd.s32 %s804, %s802
        %s806 = smul.addr %s805, 8
        %s807 = scalar_lea.vmem %s4, %s806
        // Predicated region
        $region71: #{resnet18_forward.16} parent=57 // pred_check
          %p808 = pneg %p164
        $region72: #{resnet18_forward.16} parent=57 // pred_check_branch
          %810 = sbr.rel (%p808) target = $region74
        $region73: #{resnet18_forward.16} parent=57 // pred_region
          %s811 = smul.u32 7, %s20
        $region74: #{resnet18_forward.16} parent=57 // pred_fallthru
          _
        // Predicated region
        $region75: #{resnet18_forward.16} parent=57 // pred_check
          %p812 = pneg %p164
        $region76: #{resnet18_forward.16} parent=57 // pred_check_branch
          %814 = sbr.rel (%p812) target = $region78
        $region77: #{resnet18_forward.16} parent=57 // pred_region
          %s815 = smul.u32 7, %s20
          %p816 = scmp.lt.s32.totalorder %s815, 6
          %s817 = scalar_select %p816, %s815, 6
          %p818 = scmp.lt.s32.totalorder %s21, 0
          %s819 = scalar_select %p818, %s21, 0
          %s820 = sadd.s32 %s819, %s817
          %s821 = smul.addr %s820, 8
          %s822 = scalar_lea.vmem %s4, %s821
        $region78: #{resnet18_forward.16} parent=57 // pred_fallthru
          _
      $region58: #{resnet18_forward.16} parent=5 // pred_fallthru
        _
      %p823 = scmp.le.s32.totalorder 2, %s10
      // Predicated region
      $region79: #{resnet18_forward.16} parent=5 // pred_check
        %p824 = pneg %p823
      $region80: #{resnet18_forward.16} parent=5 // pred_check_branch
        %826 = sbr.rel (%p824) target = $region82
      $region81: #{resnet18_forward.16} parent=5 // pred_region
        %s827 = ssub.s32 %s10, 2
      $region82: #{resnet18_forward.16} parent=5 // pred_fallthru
        _
    $region6: #{resnet18_forward.16} parent=1 // loop_footer
      %s14 = sadd.s32 1, %s10
    $region7: #{resnet18_forward.16} parent=1 // loop_footer_branch
      %9 = sbr.rel target = $region3
    $region8: #{resnet18_forward.16} parent=1 // loop_exit
      _

// kernel: resnet18_forward.17
$region0: #{resnet18_forward.17}
  #allocation0 [shape = 'u32[]', space=smem, size = 0x4, offset = 0x4, fixed_abs, tag = 'smem constant byte address 0x4 - core index']
  #allocation1 [shape = 'u32[72,128]{1,0:T(1,128)}', space=vmem, size = 0x9000, scoped, tag = 'internal scratch']
  %s0 = inlined_call_operand.vmem [shape: bf16[24,128], index: 0, kind: input, shape index: {}]
  %s1 = inlined_call_operand.vmem [shape: bf16[128,256], index: 1, kind: input, shape index: {}]
  %s2 = inlined_call_operand.hbm [shape: f32[1,256], index: 2, kind: input, shape index: {}]
  %s3 = inlined_call_operand.vmem [shape: f32[24,256], index: 3, kind: output, shape index: {}]
  %s4 = sld [smem:[#allocation0]]
  $region34: #{resnet18_forward.17} parent=0
    _
  %s6 = ssub.s32 1, %s4
  %s7 = scalar_select 0, %s6, %s4
  $region1: #{resnet18_forward.17} parent=0
    #allocation2 [shape = 'u8[1024]{0}', space=vmem, size = 0x400, scoped, tag = 'input window, operand 2, single buffered']
    #allocation3 [shape = 's32[1]{0}', space=sflag, size = 0x4, scoped, tag = 'scoped memory for resnet18_forward.17']
    %8 = vsyncpa [#allocation3], 0
    // Predicated region
    $region2: #{resnet18_forward.17} parent=1 // pred_check
      _
    $region3: #{resnet18_forward.17} parent=1 // pred_check_branch
      %10 = sbr.rel (0) target = $region5
    $region4: #{resnet18_forward.17} parent=1 // pred_region
      _
    $region5: #{resnet18_forward.17} parent=1 // pred_fallthru
      _
    // Predicated region
    $region6: #{resnet18_forward.17} parent=1 // pred_check
      _
    $region7: #{resnet18_forward.17} parent=1 // pred_check_branch
      %12 = sbr.rel (0) target = $region9
    $region8: #{resnet18_forward.17} parent=1 // pred_region
      _
    $region9: #{resnet18_forward.17} parent=1 // pred_fallthru
      _
    // Predicated region
    $region10: #{resnet18_forward.17} parent=1 // pred_check
      _
    $region11: #{resnet18_forward.17} parent=1 // pred_check_branch
      %14 = sbr.rel (0) target = $region13
    $region12: #{resnet18_forward.17} parent=1 // pred_region
      %16 = vsyncadd [#allocation3], 0
      %s18 = sshll.u32 %s2, 4
      %s19 = int_to_ptr.hbm [resolvable:$true] %s18
      %s20 = sshll.u32 [#allocation2], 4
      %s21 = int_to_ptr.vmem [resolvable:$true] %s20
      %23 = dma.hbm_to_vmem [thread:$0]  %s19, 32, %s21, [#allocation3]
    $region13: #{resnet18_forward.17} parent=1 // pred_fallthru
      _
    // Predicated region
    $region14: #{resnet18_forward.17} parent=1 // pred_check
      _
    $region15: #{resnet18_forward.17} parent=1 // pred_check_branch
      %25 = sbr.rel (0) target = $region17
    $region16: #{resnet18_forward.17} parent=1 // pred_region
      %27 = dma.done [#allocation3], 32
    $region17: #{resnet18_forward.17} parent=1 // pred_fallthru
      _
    %p28 = scmp.eq.s32.totalorder 0, 0
    // Predicated region
    $region18: #{resnet18_forward.17} parent=1 // pred_check
      %p29 = pneg %p28
    $region19: #{resnet18_forward.17} parent=1 // pred_check_branch
      %31 = sbr.rel (%p29) target = $region21
    $region20: #{resnet18_forward.17} parent=1 // pred_region
      %32 = vst [vmem:[%s3] sm:$0xff] 0.0
      %33 = vst [vmem:[%s3 + $0x8] sm:$0xff] 0.0
      %34 = vst [vmem:[%s3 + $0x10] sm:$0xff] 0.0
      %35 = vst [vmem:[%s3 + $0x18] sm:$0xff] 0.0
      %36 = vst [vmem:[%s3 + $0x20] sm:$0xff] 0.0
      %37 = vst [vmem:[%s3 + $0x28] sm:$0xff] 0.0
    $region21: #{resnet18_forward.17} parent=1 // pred_fallthru
      _
    %v38 = vld [vmem:[%s3] sm:$0xff]
    %v39 = vld [vmem:[%s3 + $0x8] sm:$0xff]
    %v40 = vld [vmem:[%s3 + $0x10] sm:$0xff]
    %v41 = vld [vmem:[%s3 + $0x18] sm:$0xff]
    %v42 = vld [vmem:[%s3 + $0x20] sm:$0xff]
    %v43 = vld [vmem:[%s3 + $0x28] sm:$0xff]
    %v44 = vld [vmem:[%s0] sm:$0xf]
    %v45 = vld [vmem:[%s0 + $0x4] sm:$0xf]
    %v46 = vld [vmem:[%s0 + $0x8] sm:$0xf]
    %v47 = vld [vmem:[%s1] sm:$0xff]
    %v48 = vld [vmem:[%s1 + $0x8] sm:$0xff]
    %v49 = vld [vmem:[%s1 + $0x10] sm:$0xff]
    %v50 = vld [vmem:[%s1 + $0x18] sm:$0xff]
    %v51 = vld [vmem:[%s1 + $0x20] sm:$0xff]
    %v52 = vld [vmem:[%s1 + $0x28] sm:$0xff]
    %v53 = vld [vmem:[%s1 + $0x30] sm:$0xff]
    %v54 = vld [vmem:[%s1 + $0x38] sm:$0xff]
    %v55 = vld [vmem:[%s1 + $0x40] sm:$0xff]
    %v56 = vld [vmem:[%s1 + $0x48] sm:$0xff]
    %v57 = vld [vmem:[%s1 + $0x50] sm:$0xff]
    %v58 = vld [vmem:[%s1 + $0x58] sm:$0xff]
    %v59 = vld [vmem:[%s1 + $0x60] sm:$0xff]
    %v60 = vld [vmem:[%s1 + $0x68] sm:$0xff]
    %v61 = vld [vmem:[%s1 + $0x70] sm:$0xff]
    %v62 = vld [vmem:[%s1 + $0x78] sm:$0xff]
    %v66 = vunpack.c.l.b16 %v44
    %v67 = vunpack.c.l.b16 %v45
    %v68 = vunpack.c.l.b16 %v46
    %v69 = vpack.c.b16 %v67, %v66
    %v70 = vpack.c.b16 %v68, %v68
    %v89 = vunpack.c.l.b16 %v47
    %v90 = vunpack.c.h.b16 %v47
    %v91 = vunpack.c.l.b16 %v48
    %v92 = vunpack.c.h.b16 %v48
    %v93 = vunpack.c.l.b16 %v49
    %v94 = vunpack.c.h.b16 %v49
    %v95 = vunpack.c.l.b16 %v50
    %v96 = vunpack.c.h.b16 %v50
    %v97 = vunpack.c.l.b16 %v51
    %v98 = vunpack.c.h.b16 %v51
    %v99 = vunpack.c.l.b16 %v52
    %v100 = vunpack.c.h.b16 %v52
    %v101 = vunpack.c.l.b16 %v53
    %v102 = vunpack.c.h.b16 %v53
    %v103 = vunpack.c.l.b16 %v54
    %v104 = vunpack.c.h.b16 %v54
    %v105 = vunpack.c.l.b16 %v55
    %v106 = vunpack.c.h.b16 %v55
    %v107 = vunpack.c.l.b16 %v56
    %v108 = vunpack.c.h.b16 %v56
    %v109 = vunpack.c.l.b16 %v57
    %v110 = vunpack.c.h.b16 %v57
    %v111 = vunpack.c.l.b16 %v58
    %v112 = vunpack.c.h.b16 %v58
    %v113 = vunpack.c.l.b16 %v59
    %v114 = vunpack.c.h.b16 %v59
    %v115 = vunpack.c.l.b16 %v60
    %v116 = vunpack.c.h.b16 %v60
    %v117 = vunpack.c.l.b16 %v61
    %v118 = vunpack.c.h.b16 %v61
    %v119 = vunpack.c.l.b16 %v62
    %v120 = vunpack.c.h.b16 %v62
    %v121 = vpack.c.b16 %v91, %v89
    %v122 = vpack.c.b16 %v92, %v90
    %v123 = vpack.c.b16 %v95, %v93
    %v124 = vpack.c.b16 %v96, %v94
    %v125 = vpack.c.b16 %v99, %v97
    %v126 = vpack.c.b16 %v100, %v98
    %v127 = vpack.c.b16 %v103, %v101
    %v128 = vpack.c.b16 %v104, %v102
    %v129 = vpack.c.b16 %v107, %v105
    %v130 = vpack.c.b16 %v108, %v106
    %v131 = vpack.c.b16 %v111, %v109
    %v132 = vpack.c.b16 %v112, %v110
    %v133 = vpack.c.b16 %v115, %v113
    %v134 = vpack.c.b16 %v116, %v114
    %v135 = vpack.c.b16 %v119, %v117
    %v136 = vpack.c.b16 %v120, %v118
    %153 = vmatpush.bf16.msra.mxu0 %v135
    %154 = vmatpush.bf16.msra.mxu0 %v133
    %155 = vmatpush.bf16.msra.mxu0 %v131
    %156 = vmatpush.bf16.msra.mxu0 %v129
    %157 = vmatpush.bf16.msra.mxu0 %v127
    %158 = vmatpush.bf16.msra.mxu0 %v125
    %159 = vmatpush.bf16.msra.mxu0 %v123
    %160 = vmatpush.bf16.msra.mxu0 %v121
    %161 = vmatmul.bf16.gmra.mxu0 %v69
    %v162 = vpop.f32.mrf.mxu0
    %v163 = vadd.f32 0.0, %v162
    %v164 = vpop.f32.mrf.mxu0
    %v165 = vadd.f32 0.0, %v164
    %166 = vmatmul.bf16.gmra.mxu0 %v70
    %v167 = vpop.f32.mrf.mxu0
    %v168 = vadd.f32 0.0, %v167
    %v169 = vpop.f32.mrf.mxu0
    %170 = vdwg.mxu0
    %171 = vmatpush.bf16.msra.mxu0 %v136
    %172 = vmatpush.bf16.msra.mxu0 %v134
    %173 = vmatpush.bf16.msra.mxu0 %v132
    %174 = vmatpush.bf16.msra.mxu0 %v130
    %175 = vmatpush.bf16.msra.mxu0 %v128
    %176 = vmatpush.bf16.msra.mxu0 %v126
    %177 = vmatpush.bf16.msra.mxu0 %v124
    %178 = vmatpush.bf16.msra.mxu0 %v122
    %179 = vmatmul.bf16.gmra.mxu0 %v69
    %v180 = vpop.f32.mrf.mxu0
    %v181 = vadd.f32 0.0, %v180
    %v182 = vpop.f32.mrf.mxu0
    %v183 = vadd.f32 0.0, %v182
    %184 = vmatmul.bf16.gmra.mxu0 %v70
    %v185 = vpop.f32.mrf.mxu0
    %v186 = vadd.f32 0.0, %v185
    %v187 = vpop.f32.mrf.mxu0
    %188 = vdwg.mxu0
    %v189 = vadd.f32 %v38, %v163
    %v190 = vadd.f32 %v39, %v181
    %v191 = vadd.f32 %v40, %v165
    %v192 = vadd.f32 %v41, %v183
    %v193 = vadd.f32 %v42, %v168
    %v194 = vadd.f32 %v43, %v186
    %195 = vst [vmem:[%s3] sm:$0xff] %v189
    %196 = vst [vmem:[%s3 + $0x8] sm:$0xff] %v190
    %197 = vst [vmem:[%s3 + $0x10] sm:$0xff] %v191
    %198 = vst [vmem:[%s3 + $0x18] sm:$0xff] %v192
    %199 = vst [vmem:[%s3 + $0x20] sm:$0xff] %v193
    %200 = vst [vmem:[%s3 + $0x28] sm:$0xff] %v194
    // Predicated region
    $region22: #{resnet18_forward.17} parent=1 // pred_check
      %p201 = pneg %p28
    $region23: #{resnet18_forward.17} parent=1 // pred_check_branch
      %203 = sbr.rel (%p201) target = $region25
    $region24: #{resnet18_forward.17} parent=1 // pred_region
      %v204 = vld [vmem:[%s3] sm:$0xff]
      %v205 = vld [vmem:[%s3 + $0x8] sm:$0xff]
      %v206 = vld [vmem:[%s3 + $0x10] sm:$0xff]
      %v207 = vld [vmem:[%s3 + $0x18] sm:$0xff]
      %v208 = vld [vmem:[%s3 + $0x20] sm:$0xff]
      %v209 = vld [vmem:[%s3 + $0x28] sm:$0xff]
      %v210 = vld [vmem:[#allocation2] sm:$0x3]
      %v212 = vperm.slane %v210, 0
      %v213 = vperm.slane %v210, 1
      %v216 = vadd.f32 %v204, %v212
      %v217 = vadd.f32 %v205, %v213
      %v218 = vadd.f32 %v206, %v212
      %v219 = vadd.f32 %v207, %v213
      %v220 = vadd.f32 %v208, %v212
      %v221 = vadd.f32 %v209, %v213
      %222 = vst [vmem:[%s3] sm:$0xff] %v216
      %223 = vst [vmem:[%s3 + $0x8] sm:$0xff] %v217
      %224 = vst [vmem:[%s3 + $0x10] sm:$0xff] %v218
      %225 = vst [vmem:[%s3 + $0x18] sm:$0xff] %v219
      %226 = vst [vmem:[%s3 + $0x20] sm:$0xff] %v220
      %227 = vst [vmem:[%s3 + $0x28] sm:$0xff] %v221
    $region25: #{resnet18_forward.17} parent=1 // pred_fallthru
      _
    // Predicated region
    $region26: #{resnet18_forward.17} parent=1 // pred_check
      _
    $region27: #{resnet18_forward.17} parent=1 // pred_check_branch
      %229 = sbr.rel (0) target = $region29
    $region28: #{resnet18_forward.17} parent=1 // pred_region
      _
    $region29: #{resnet18_forward.17} parent=1 // pred_fallthru
      _
    // Predicated region
    $region30: #{resnet18_forward.17} parent=1 // pred_check
      _
    $region31: #{resnet18_forward.17} parent=1 // pred_check_branch
      %231 = sbr.rel (0) target = $region33
    $region32: #{resnet18_forward.17} parent=1 // pred_region
      _
    $region33: #{resnet18_forward.17} parent=1 // pred_fallthru
      _
    %232 = vsyncpa [#allocation3], 1

// kernel: resnet18_forward.18
$region0: #{resnet18_forward.18}
  #allocation0 [shape = 'u32[]', space=smem, size = 0x4, offset = 0x4, fixed_abs, tag = 'smem constant byte address 0x4 - core index']
  #allocation1 [shape = 'u32[72,128]{1,0:T(1,128)}', space=vmem, size = 0x9000, scoped, tag = 'internal scratch']
  %s0 = inlined_call_operand.vmem [shape: bf16[24,1152], index: 0, kind: input, shape index: {}]
  %s1 = inlined_call_operand.vmem [shape: bf16[1152,256], index: 1, kind: input, shape index: {}]
  %s2 = inlined_call_operand.vmem [shape: f32[1,256], index: 2, kind: input, shape index: {}]
  %s3 = inlined_call_operand.vmem [shape: f32[24,256], index: 3, kind: output, shape index: {}]
  %s4 = sld [smem:[#allocation0]]
  $region79: #{resnet18_forward.18} parent=0
    _
  %s6 = ssub.s32 1, %s4
  %s7 = scalar_select 0, %s6, %s4
  $region1: #{resnet18_forward.18} parent=0
    #allocation2 [shape = 'u8[36864]{0}', space=vmem, size = 0x9000, scoped, tag = 'input window, operand 0']
    loop: start=0, step=1, limit=5
    $region2: #{resnet18_forward.18} parent=1 // loop_pre_header
      _
    $region3: #{resnet18_forward.18} parent=1 // loop_header
      %s9 = sphi 0, %s13
      %p10 = scmp.ge.s32.totalorder %s9, 5
      %s16 = sphi 0, %s35
      %s17 = sphi 0, %s31
      %s18 = sphi 0, %s27
      %s19 = sphi 0, %s16
      %s20 = sphi 0, %s17
      %s21 = sphi 0, %s18
      %s22 = sphi 0, %s19
      %s23 = sphi 0, %s20
      %s24 = sphi 0, %s21
      %s40 = sphi 0, %s42
      %s43 = sphi 0, %s40
      %s44 = sphi 0, %s43
      %s60 = sphi 0, %s44
      %s68 = sphi 0, %s70
      %s71 = sphi 0, %s68
      %s72 = sphi 0, %s71
      %s88 = sphi 0, %s72
      %s94 = sphi 0, %s96
      %s97 = sphi 0, %s94
      %s98 = sphi 0, %s97
      %s114 = sphi 0, %s98
      %s122 = sphi 0, %s124
      %s125 = sphi 0, %s122
      %s126 = sphi 0, %s125
      %s142 = sphi 0, %s126
    $region4: #{resnet18_forward.18} parent=1 // loop_header_branch
      %12 = sbr.rel (%p10) target = $region8
    $region5: #{resnet18_forward.18} parent=1 // loop_body
      %s14 = ssub.s32 %s9, 1
      %s15 = ssub.s32 %s9, 2
      %s25 = sadd.s32 1, %s18
      %p26 = scmp.ge.s32.totalorder %s25, 3
      %s27 = scalar_select %p26, 0, %s25
      %s28 = sadd.s32 1, %s17
      %s29 = scalar_select %p26, %s28, %s17
      %p30 = scmp.ge.s32.totalorder %s29, 1
      %s31 = scalar_select %p30, 0, %s29
      %s32 = sadd.s32 1, %s16
      %s33 = scalar_select %p30, %s32, %s16
      %p34 = scmp.ge.s32.totalorder %s33, 1
      %s35 = scalar_select %p34, 0, %s33
      %s36 = ssub.s32 %s16, %s35
      %s37 = ssub.s32 %s18, %s27
      %s38 = sor.u32 %s36, %s37
      %p39 = scmp.eq.s32.totalorder %s38, 0
      %s41 = sadd.s32 %s40, 1
      %s42 = scalar_select %p39, %s40, %s41
      %p45 = pneg %p39
      %p46 = scmp.eq.s32.totalorder %s9, 2
      %p47 = por %p45, %p46
      %p48 = scmp.ne.s32.totalorder %s40, %s43
      %p49 = scmp.eq.s32.totalorder %s9, 0
      %p50 = por %p48, %p49
      %p51 = scmp.ne.s32.totalorder %s40, %s43
      %p52 = scmp.eq.s32.totalorder %s14, 2
      %p53 = por %p51, %p52
      %p54 = scmp.ne.s32.totalorder %s43, %s44
      %p55 = scmp.eq.s32.totalorder %s14, 0
      %p56 = por %p54, %p55
      %p57 = scmp.ne.s32.totalorder %s43, %s44
      %p58 = scmp.eq.s32.totalorder %s15, 2
      %p59 = por %p57, %p58
      %p61 = scmp.ne.s32.totalorder %s44, %s60
      %p62 = scmp.eq.s32.totalorder %s15, 0
      %p63 = por %p61, %p62
      %s64 = ssub.s32 %s18, %s27
      %s65 = ssub.s32 %s17, %s31
      %s66 = sor.u32 %s64, %s65
      %p67 = scmp.eq.s32.totalorder %s66, 0
      %s69 = sadd.s32 %s68, 1
      %s70 = scalar_select %p67, %s68, %s69
      %p73 = pneg %p67
      %p74 = scmp.eq.s32.totalorder %s9, 2
      %p75 = por %p73, %p74
      %p76 = scmp.ne.s32.totalorder %s68, %s71
      %p77 = scmp.eq.s32.totalorder %s9, 0
      %p78 = por %p76, %p77
      %p79 = scmp.ne.s32.totalorder %s68, %s71
      %p80 = scmp.eq.s32.totalorder %s14, 2
      %p81 = por %p79, %p80
      %p82 = scmp.ne.s32.totalorder %s71, %s72
      %p83 = scmp.eq.s32.totalorder %s14, 0
      %p84 = por %p82, %p83
      %p85 = scmp.ne.s32.totalorder %s71, %s72
      %p86 = scmp.eq.s32.totalorder %s15, 2
      %p87 = por %p85, %p86
      %p89 = scmp.ne.s32.totalorder %s72, %s88
      %p90 = scmp.eq.s32.totalorder %s15, 0
      %p91 = por %p89, %p90
      %s92 = ssub.s32 %s17, %s31
      %p93 = scmp.eq.s32.totalorder %s92, 0
      %s95 = sadd.s32 %s94, 1
      %s96 = scalar_select %p93, %s94, %s95
      %p99 = pneg %p93
      %p100 = scmp.eq.s32.totalorder %s9, 2
      %p101 = por %p99, %p100
      %p102 = scmp.ne.s32.totalorder %s94, %s97
      %p103 = scmp.eq.s32.totalorder %s9, 0
      %p104 = por %p102, %p103
      %p105 = scmp.ne.s32.totalorder %s94, %s97
      %p106 = scmp.eq.s32.totalorder %s14, 2
      %p107 = por %p105, %p106
      %p108 = scmp.ne.s32.totalorder %s97, %s98
      %p109 = scmp.eq.s32.totalorder %s14, 0
      %p110 = por %p108, %p109
      %p111 = scmp.ne.s32.totalorder %s97, %s98
      %p112 = scmp.eq.s32.totalorder %s15, 2
      %p113 = por %p111, %p112
      %p115 = scmp.ne.s32.totalorder %s98, %s114
      %p116 = scmp.eq.s32.totalorder %s15, 0
      %p117 = por %p115, %p116
      %s118 = ssub.s32 %s16, %s35
      %s119 = ssub.s32 %s17, %s31
      %s120 = sor.u32 %s118, %s119
      %p121 = scmp.eq.s32.totalorder %s120, 0
      %s123 = sadd.s32 %s122, 1
      %s124 = scalar_select %p121, %s122, %s123
      %p127 = pneg %p121
      %p128 = scmp.eq.s32.totalorder %s9, 2
      %p129 = por %p127, %p128
      %p130 = scmp.ne.s32.totalorder %s122, %s125
      %p131 = scmp.eq.s32.totalorder %s9, 0
      %p132 = por %p130, %p131
      %p133 = scmp.ne.s32.totalorder %s122, %s125
      %p134 = scmp.eq.s32.totalorder %s14, 2
      %p135 = por %p133, %p134
      %p136 = scmp.ne.s32.totalorder %s125, %s126
      %p137 = scmp.eq.s32.totalorder %s14, 0
      %p138 = por %p136, %p137
      %p139 = scmp.ne.s32.totalorder %s125, %s126
      %p140 = scmp.eq.s32.totalorder %s15, 2
      %p141 = por %p139, %p140
      %p143 = scmp.ne.s32.totalorder %s126, %s142
      %p144 = scmp.eq.s32.totalorder %s15, 0
      %p145 = por %p143, %p144
      %p146 = scmp.le.s32.totalorder 1, %s9
      %p147 = scmp.lt.s32.totalorder %s9, 4
      %p148 = pnand %p146, %p147
      %p149 = pneg %p148
      // Predicated region
      $region9: #{resnet18_forward.18} parent=5 // pred_check
        _
      $region10: #{resnet18_forward.18} parent=5 // pred_check_branch
        %151 = sbr.rel (%p148) target = $region12
      $region11: #{resnet18_forward.18} parent=5 // pred_region
        %s152 = ssub.s32 %s9, 1
        // Predicated region
        $region13: #{resnet18_forward.18} parent=11 // pred_check
          %p153 = pneg %p110
        $region14: #{resnet18_forward.18} parent=11 // pred_check_branch
          %155 = sbr.rel (%p153) target = $region16
        $region15: #{resnet18_forward.18} parent=11 // pred_region
          %s156 = smul.u32 2, %s20
          %p157 = scmp.lt.s32.totalorder %s156, 1
          %s158 = scalar_select %p157, %s156, 1
          %s159 = scalar_lea.vmem %s2, %s158
          %s160 = smul.u32 2, %s20
        $region16: #{resnet18_forward.18} parent=11 // pred_fallthru
          _
      $region12: #{resnet18_forward.18} parent=5 // pred_fallthru
        _
      %p161 = scmp.lt.s32.totalorder %s9, 3
      // Predicated region
      $region17: #{resnet18_forward.18} parent=5 // pred_check
        %p162 = pneg %p161
      $region18: #{resnet18_forward.18} parent=5 // pred_check_branch
        %164 = sbr.rel (%p162) target = $region20
      $region19: #{resnet18_forward.18} parent=5 // pred_region
        // Predicated region
        $region21: #{resnet18_forward.18} parent=19 // pred_check
          %p165 = pneg %p50
        $region22: #{resnet18_forward.18} parent=19 // pred_check_branch
          %167 = sbr.rel (%p165) target = $region24
        $region23: #{resnet18_forward.18} parent=19 // pred_region
          %s168 = sand.u32 %s40, 1
          %s169 = sand.u32 %s40, 1
          %s170 = smul.addr %s169, 36
          %s171 = scalar_lea.vmem [#allocation2], %s170
          %s172 = smul.u32 3, %s16
          %s173 = smul.u32 3, %s18
          %s174 = smul.addr %s172, 9
          %s175 = sadd.s32 %s173, %s174
          %s176 = smul.addr %s175, 4
          %s177 = scalar_lea.vmem %s0, %s176
          // Predicated region
          $region25: #{resnet18_forward.18} parent=23 // pred_check
            _
          $region26: #{resnet18_forward.18} parent=23 // pred_check_branch
            %179 = sbr.rel (0) target = $region28
          $region27: #{resnet18_forward.18} parent=23 // pred_region
            // Predicated region
            $region29: #{resnet18_forward.18} parent=27 // pred_check
              _
            $region30: #{resnet18_forward.18} parent=27 // pred_check_branch
              %181 = sbr.rel (0) target = $region32
            $region31: #{resnet18_forward.18} parent=27 // pred_region
              %s182 = scalar_lea.vmem %s177, 8
              %s183 = scalar_lea.vmem %s171, 8 [#allocation2]
              loop: start=0, step=1, limit=1
              $region33: #{resnet18_forward.18} parent=31 // loop_pre_header
                _
              $region34: #{resnet18_forward.18} parent=31 // loop_header
                %s185 = sphi 0, %s189
                %p186 = scmp.ge.s32.totalorder %s185, 1
                %s190 = sphi %s177, %s177
                %s191 = sphi %s171, %s171
              $region35: #{resnet18_forward.18} parent=31 // loop_header_branch
                %188 = sbr.rel (%p186) target = $region39
              $region36: #{resnet18_forward.18} parent=31 // loop_body
                %v192 = vld [vmem:[%s190] sm:$0xff]
                %193 = vst [vmem:[%s191] sm:$0xff] %v192
                %v194 = vld [vmem:[%s190 + $0x24] sm:$0xff]
                %195 = vst [vmem:[%s191 + $0xc] sm:$0xff] %v194
                %v196 = vld [vmem:[%s190 + $0x48] sm:$0xff]
                %197 = vst [vmem:[%s191 + $0x18] sm:$0xff] %v196
              $region37: #{resnet18_forward.18} parent=31 // loop_footer
                %s189 = sadd.s32 1, %s185
              $region38: #{resnet18_forward.18} parent=31 // loop_footer_branch
                %184 = sbr.rel target = $region34
              $region39: #{resnet18_forward.18} parent=31 // loop_exit
                _
              %s199 = ssub.s32 16, 1
              loop: start=0, step=1, limit=1
              $region40: #{resnet18_forward.18} parent=31 // loop_pre_header
                _
              $region41: #{resnet18_forward.18} parent=31 // loop_header
                %s201 = sphi 0, %s205
                %p202 = scmp.ge.s32.totalorder %s201, 1
                %s206 = sphi %s182, %s182
                %s207 = sphi %s183, %s183
              $region42: #{resnet18_forward.18} parent=31 // loop_header_branch
                %204 = sbr.rel (%p202) target = $region46
              $region43: #{resnet18_forward.18} parent=31 // loop_body
                %v208 = vld [vmem:[%s206] sm:%s199]
                %209 = vst [vmem:[%s207] sm:%s199] %v208
                %v210 = vld [vmem:[%s206 + $0x24] sm:%s199]
                %211 = vst [vmem:[%s207 + $0xc] sm:%s199] %v210
                %v212 = vld [vmem:[%s206 + $0x48] sm:%s199]
                %213 = vst [vmem:[%s207 + $0x18] sm:%s199] %v212
              $region44: #{resnet18_forward.18} parent=31 // loop_footer
                %s205 = sadd.s32 1, %s201
              $region45: #{resnet18_forward.18} parent=31 // loop_footer_branch
                %200 = sbr.rel target = $region41
              $region46: #{resnet18_forward.18} parent=31 // loop_exit
                _
            $region32: #{resnet18_forward.18} parent=27 // pred_fallthru
              _
          $region28: #{resnet18_forward.18} parent=23 // pred_fallthru
            _
          %214 = vnop
        $region24: #{resnet18_forward.18} parent=19 // pred_fallthru
          _
        // Predicated region
        $region47: #{resnet18_forward.18} parent=19 // pred_check
          %p215 = pneg %p78
        $region48: #{resnet18_forward.18} parent=19 // pred_check_branch
          %217 = sbr.rel (%p215) target = $region50
        $region49: #{resnet18_forward.18} parent=19 // pred_region
          %s218 = smul.u32 48, %s18
          %s219 = smul.u32 2, %s17
          %p220 = scmp.lt.s32.totalorder %s218, 143
          %s221 = scalar_select %p220, %s218, 143
          %p222 = scmp.lt.s32.totalorder %s219, 1
          %s223 = scalar_select %p222, %s219, 1
          %s224 = smul.addr %s221, 2
          %s225 = sadd.s32 %s223, %s224
          %s226 = smul.addr %s225, 4
          %s227 = scalar_lea.vmem %s1, %s226
          %s228 = smul.u32 48, %s18
          %s229 = smul.u32 2, %s17
        $region50: #{resnet18_forward.18} parent=19 // pred_fallthru
          _
      $region20: #{resnet18_forward.18} parent=5 // pred_fallthru
        _
      %p230 = scmp.le.s32.totalorder 1, %s9
      %p231 = scmp.lt.s32.totalorder %s9, 4
      %p232 = pnand %p230, %p231
      %p233 = pneg %p232
      // Predicated region
      $region51: #{resnet18_forward.18} parent=5 // pred_check
        _
      $region52: #{resnet18_forward.18} parent=5 // pred_check_branch
        %235 = sbr.rel (%p232) target = $region54
      $region53: #{resnet18_forward.18} parent=5 // pred_region
        %s236 = ssub.s32 %s9, 1
        %s237 = sand.u32 %s43, 1
        %s238 = sand.u32 %s43, 1
        %s239 = smul.addr %s238, 36
        %s240 = scalar_lea.vmem [#allocation2], %s239
        // Predicated region
        $region55: #{resnet18_forward.18} parent=53 // pred_check
          %p241 = pneg %p56
        $region56: #{resnet18_forward.18} parent=53 // pred_check_branch
          %243 = sbr.rel (%p241) target = $region58
        $region57: #{resnet18_forward.18} parent=53 // pred_region
          _
        $region58: #{resnet18_forward.18} parent=53 // pred_fallthru
          _
        %s244 = sand.u32 %s43, 1
        %s245 = sand.u32 %s43, 1
        %s246 = smul.addr %s245, 36
        %s247 = scalar_lea.vmem [#allocation2], %s246
        %p248 = pneg %p56
        %p249 = pneg %p53
        %s250 = smul.u32 48, %s21
        %s251 = smul.u32 2, %s20
        %p252 = scmp.lt.s32.totalorder %s250, 143
        %s253 = scalar_select %p252, %s250, 143
        %p254 = scmp.lt.s32.totalorder %s251, 1
        %s255 = scalar_select %p254, %s251, 1
        %s256 = smul.addr %s253, 2
        %s257 = sadd.s32 %s255, %s256
        %s258 = smul.addr %s257, 4
        %s259 = scalar_lea.vmem %s1, %s258
        %p260 = pneg %p84
        %p261 = pneg %p81
        %s262 = smul.u32 2, %s20
        %p263 = scmp.lt.s32.totalorder %s262, 1
        %s264 = scalar_select %p263, %s262, 1
        %s265 = scalar_lea.vmem %s2, %s264
        %p266 = pneg %p110
        %p267 = pneg %p107
        %p268 = pneg %p138
        %p269 = pneg %p135
        %s270 = smul.u32 3, %s19
        %s271 = smul.u32 2, %s20
        %p272 = scmp.lt.s32.totalorder %s270, 2
        %s273 = scalar_select %p272, %s270, 2
        %p274 = scmp.lt.s32.totalorder %s271, 1
        %s275 = scalar_select %p274, %s271, 1
        %s276 = smul.addr %s273, 2
        %s277 = sadd.s32 %s275, %s276
        %s278 = smul.addr %s277, 8
        %s279 = scalar_lea.vmem %s3, %s278
        %s280 = smul.u32 3, %s19
        %s281 = smul.u32 3, %s21
        %s282 = smul.u32 48, %s21
        %s283 = smul.u32 2, %s20
        %p284 = scmp.lt.s32.totalorder %s282, 143
        %s285 = scalar_select %p284, %s282, 143
        %p286 = scmp.lt.s32.totalorder %s283, 1
        %s287 = scalar_select %p286, %s283, 1
        %s288 = smul.addr %s285, 2
        %s289 = sadd.s32 %s287, %s288
        %s290 = smul.addr %s289, 4
        %s291 = scalar_lea.vmem %s1, %s290
        %s292 = smul.u32 48, %s21
        %s293 = smul.u32 2, %s20
        %s294 = smul.u32 2, %s20
        %p295 = scmp.lt.s32.totalorder %s294, 1
        %s296 = scalar_select %p295, %s294, 1
        %s297 = scalar_lea.vmem %s2, %s296
        %s298 = smul.u32 2, %s20
        %s299 = smul.u32 3, %s19
        %s300 = smul.u32 2, %s20
        %p301 = scmp.lt.s32.totalorder %s299, 2
        %s302 = scalar_select %p301, %s299, 2
        %p303 = scmp.lt.s32.totalorder %s300, 1
        %s304 = scalar_select %p303, %s300, 1
        %s305 = smul.addr %s302, 2
        %s306 = sadd.s32 %s304, %s305
        %s307 = smul.addr %s306, 8
        %s308 = scalar_lea.vmem %s3, %s307
        %s309 = smul.u32 3, %s19
        %s310 = smul.u32 2, %s20
        %p311 = scmp.eq.s32.totalorder %s21, 0
        // Predicated region
        $region59: #{resnet18_forward.18} parent=53 // pred_check
          %p312 = pneg %p311
        $region60: #{resnet18_forward.18} parent=53 // pred_check_branch
          %314 = sbr.rel (%p312) target = $region62
        $region61: #{resnet18_forward.18} parent=53 // pred_region
          %315 = vst [vmem:[%s308] sm:$0xff] 0.0
          %316 = vst [vmem:[%s308 + $0x8] sm:$0xff] 0.0
          %317 = vst [vmem:[%s308 + $0x10] sm:$0xff] 0.0
          %318 = vst [vmem:[%s308 + $0x18] sm:$0xff] 0.0
          %319 = vst [vmem:[%s308 + $0x20] sm:$0xff] 0.0
          %320 = vst [vmem:[%s308 + $0x28] sm:$0xff] 0.0
        $region62: #{resnet18_forward.18} parent=53 // pred_fallthru
          _
        %v321 = vld [vmem:[%s308] sm:$0xff]
        %v322 = vld [vmem:[%s308 + $0x8] sm:$0xff]
        %v323 = vld [vmem:[%s308 + $0x10] sm:$0xff]
        %v324 = vld [vmem:[%s308 + $0x18] sm:$0xff]
        %v325 = vld [vmem:[%s308 + $0x20] sm:$0xff]
        %v326 = vld [vmem:[%s308 + $0x28] sm:$0xff]
        %v327 = vld [vmem:[%s240] sm:$0xff]
        %v328 = vld [vmem:[%s240 + $0x8] sm:$0xf]
        %v329 = vld [vmem:[%s240 + $0xc] sm:$0xff]
        %v330 = vld [vmem:[%s240 + $0x14] sm:$0xf]
        %v331 = vld [vmem:[%s240 + $0x18] sm:$0xff]
        %v332 = vld [vmem:[%s240 + $0x20] sm:$0xf]
        %v333 = vld [vmem:[%s291] sm:$0xff]
        %v334 = vld [vmem:[%s291 + $0x8] sm:$0xff]
        %v335 = vld [vmem:[%s291 + $0x10] sm:$0xff]
        %v336 = vld [vmem:[%s291 + $0x18] sm:$0xff]
        %v337 = vld [vmem:[%s291 + $0x20] sm:$0xff]
        %v338 = vld [vmem:[%s291 + $0x28] sm:$0xff]
        %v339 = vld [vmem:[%s291 + $0x30] sm:$0xff]
        %v340 = vld [vmem:[%s291 + $0x38] sm:$0xff]
        %v341 = vld [vmem:[%s291 + $0x40] sm:$0xff]
        %v342 = vld [vmem:[%s291 + $0x48] sm:$0xff]
        %v343 = vld [vmem:[%s291 + $0x50] sm:$0xff]
        %v344 = vld [vmem:[%s291 + $0x58] sm:$0xff]
        %v345 = vld [vmem:[%s291 + $0x60] sm:$0xff]
        %v346 = vld [vmem:[%s291 + $0x68] sm:$0xff]
        %v347 = vld [vmem:[%s291 + $0x70] sm:$0xff]
        %v348 = vld [vmem:[%s291 + $0x78] sm:$0xff]
        %v349 = vld [vmem:[%s291 + $0x80] sm:$0xff]
        %v350 = vld [vmem:[%s291 + $0x88] sm:$0xff]
        %v351 = vld [vmem:[%s291 + $0x90] sm:$0xff]
        %v352 = vld [vmem:[%s291 + $0x98] sm:$0xff]
        %v353 = vld [vmem:[%s291 + $0xa0] sm:$0xff]
        %v354 = vld [vmem:[%s291 + $0xa8] sm:$0xff]
        %v355 = vld [vmem:[%s291 + $0xb0] sm:$0xff]
        %v356 = vld [vmem:[%s291 + $0xb8] sm:$0xff]
        %v357 = vld [vmem:[%s291 + $0xc0] sm:$0xff]
        %v358 = vld [vmem:[%s291 + $0xc8] sm:$0xff]
        %v359 = vld [vmem:[%s291 + $0xd0] sm:$0xff]
        %v360 = vld [vmem:[%s291 + $0xd8] sm:$0xff]
        %v361 = vld [vmem:[%s291 + $0xe0] sm:$0xff]
        %v362 = vld [vmem:[%s291 + $0xe8] sm:$0xff]
        %v363 = vld [vmem:[%s291 + $0xf0] sm:$0xff]
        %v364 = vld [vmem:[%s291 + $0xf8] sm:$0xff]
        %v365 = vld [vmem:[%s291 + $0x100] sm:$0xff]
        %v366 = vld [vmem:[%s291 + $0x108] sm:$0xff]
        %v367 = vld [vmem:[%s291 + $0x110] sm:$0xff]
        %v368 = vld [vmem:[%s291 + $0x118] sm:$0xff]
        %v369 = vld [vmem:[%s291 + $0x120] sm:$0xff]
        %v370 = vld [vmem:[%s291 + $0x128] sm:$0xff]
        %v371 = vld [vmem:[%s291 + $0x130] sm:$0xff]
        %v372 = vld [vmem:[%s291 + $0x138] sm:$0xff]
        %v373 = vld [vmem:[%s291 + $0x140] sm:$0xff]
        %v374 = vld [vmem:[%s291 + $0x148] sm:$0xff]
        %v375 = vld [vmem:[%s291 + $0x150] sm:$0xff]
        %v376 = vld [vmem:[%s291 + $0x158] sm:$0xff]
        %v377 = vld [vmem:[%s291 + $0x160] sm:$0xff]
        %v378 = vld [vmem:[%s291 + $0x168] sm:$0xff]
        %v379 = vld [vmem:[%s291 + $0x170] sm:$0xff]
        %v380 = vld [vmem:[%s291 + $0x178] sm:$0xff]
        %v387 = vunpack.c.l.b16 %v327
        %v388 = vunpack.c.h.b16 %v327
        %v389 = vunpack.c.l.b16 %v328
        %v390 = vunpack.c.l.b16 %v329
        %v391 = vunpack.c.h.b16 %v329
        %v392 = vunpack.c.l.b16 %v330
        %v393 = vunpack.c.l.b16 %v331
        %v394 = vunpack.c.h.b16 %v331
        %v395 = vunpack.c.l.b16 %v332
        %v396 = vpack.c.b16 %v390, %v387
        %v397 = vpack.c.b16 %v391, %v388
        %v398 = vpack.c.b16 %v392, %v389
        %v399 = vpack.c.b16 %v393, %v393
        %v400 = vpack.c.b16 %v394, %v394
        %v401 = vpack.c.b16 %v395, %v395
        %v456 = vunpack.c.l.b16 %v333
        %v457 = vunpack.c.h.b16 %v333
        %v458 = vunpack.c.l.b16 %v334
        %v459 = vunpack.c.h.b16 %v334
        %v460 = vunpack.c.l.b16 %v335
        %v461 = vunpack.c.h.b16 %v335
        %v462 = vunpack.c.l.b16 %v336
        %v463 = vunpack.c.h.b16 %v336
        %v464 = vunpack.c.l.b16 %v337
        %v465 = vunpack.c.h.b16 %v337
        %v466 = vunpack.c.l.b16 %v338
        %v467 = vunpack.c.h.b16 %v338
        %v468 = vunpack.c.l.b16 %v339
        %v469 = vunpack.c.h.b16 %v339
        %v470 = vunpack.c.l.b16 %v340
        %v471 = vunpack.c.h.b16 %v340
        %v472 = vunpack.c.l.b16 %v341
        %v473 = vunpack.c.h.b16 %v341
        %v474 = vunpack.c.l.b16 %v342
        %v475 = vunpack.c.h.b16 %v342
        %v476 = vunpack.c.l.b16 %v343
        %v477 = vunpack.c.h.b16 %v343
        %v478 = vunpack.c.l.b16 %v344
        %v479 = vunpack.c.h.b16 %v344
        %v480 = vunpack.c.l.b16 %v345
        %v481 = vunpack.c.h.b16 %v345
        %v482 = vunpack.c.l.b16 %v346
        %v483 = vunpack.c.h.b16 %v346
        %v484 = vunpack.c.l.b16 %v347
        %v485 = vunpack.c.h.b16 %v347
        %v486 = vunpack.c.l.b16 %v348
        %v487 = vunpack.c.h.b16 %v348
        %v488 = vunpack.c.l.b16 %v349
        %v489 = vunpack.c.h.b16 %v349
        %v490 = vunpack.c.l.b16 %v350
        %v491 = vunpack.c.h.b16 %v350
        %v492 = vunpack.c.l.b16 %v351
        %v493 = vunpack.c.h.b16 %v351
        %v494 = vunpack.c.l.b16 %v352
        %v495 = vunpack.c.h.b16 %v352
        %v496 = vunpack.c.l.b16 %v353
        %v497 = vunpack.c.h.b16 %v353
        %v498 = vunpack.c.l.b16 %v354
        %v499 = vunpack.c.h.b16 %v354
        %v500 = vunpack.c.l.b16 %v355
        %v501 = vunpack.c.h.b16 %v355
        %v502 = vunpack.c.l.b16 %v356
        %v503 = vunpack.c.h.b16 %v356
        %v504 = vunpack.c.l.b16 %v357
        %v505 = vunpack.c.h.b16 %v357
        %v506 = vunpack.c.l.b16 %v358
        %v507 = vunpack.c.h.b16 %v358
        %v508 = vunpack.c.l.b16 %v359
        %v509 = vunpack.c.h.b16 %v359
        %v510 = vunpack.c.l.b16 %v360
        %v511 = vunpack.c.h.b16 %v360
        %v512 = vunpack.c.l.b16 %v361
        %v513 = vunpack.c.h.b16 %v361
        %v514 = vunpack.c.l.b16 %v362
        %v515 = vunpack.c.h.b16 %v362
        %v516 = vunpack.c.l.b16 %v363
        %v517 = vunpack.c.h.b16 %v363
        %v518 = vunpack.c.l.b16 %v364
        %v519 = vunpack.c.h.b16 %v364
        %v520 = vunpack.c.l.b16 %v365
        %v521 = vunpack.c.h.b16 %v365
        %v522 = vunpack.c.l.b16 %v366
        %v523 = vunpack.c.h.b16 %v366
        %v524 = vunpack.c.l.b16 %v367
        %v525 = vunpack.c.h.b16 %v367
        %v526 = vunpack.c.l.b16 %v368
        %v527 = vunpack.c.h.b16 %v368
        %v528 = vunpack.c.l.b16 %v369
        %v529 = vunpack.c.h.b16 %v369
        %v530 = vunpack.c.l.b16 %v370
        %v531 = vunpack.c.h.b16 %v370
        %v532 = vunpack.c.l.b16 %v371
        %v533 = vunpack.c.h.b16 %v371
        %v534 = vunpack.c.l.b16 %v372
        %v535 = vunpack.c.h.b16 %v372
        %v536 = vunpack.c.l.b16 %v373
        %v537 = vunpack.c.h.b16 %v373
        %v538 = vunpack.c.l.b16 %v374
        %v539 = vunpack.c.h.b16 %v374
        %v540 = vunpack.c.l.b16 %v375
        %v541 = vunpack.c.h.b16 %v375
        %v542 = vunpack.c.l.b16 %v376
        %v543 = vunpack.c.h.b16 %v376
        %v544 = vunpack.c.l.b16 %v377
        %v545 = vunpack.c.h.b16 %v377
        %v546 = vunpack.c.l.b16 %v378
        %v547 = vunpack.c.h.b16 %v378
        %v548 = vunpack.c.l.b16 %v379
        %v549 = vunpack.c.h.b16 %v379
        %v550 = vunpack.c.l.b16 %v380
        %v551 = vunpack.c.h.b16 %v380
        %v552 = vpack.c.b16 %v458, %v456
        %v553 = vpack.c.b16 %v459, %v457
        %v554 = vpack.c.b16 %v462, %v460
        %v555 = vpack.c.b16 %v463, %v461
        %v556 = vpack.c.b16 %v466, %v464
        %v557 = vpack.c.b16 %v467, %v465
        %v558 = vpack.c.b16 %v470, %v468
        %v559 = vpack.c.b16 %v471, %v469
        %v560 = vpack.c.b16 %v474, %v472
        %v561 = vpack.c.b16 %v475, %v473
        %v562 = vpack.c.b16 %v478, %v476
        %v563 = vpack.c.b16 %v479, %v477
        %v564 = vpack.c.b16 %v482, %v480
        %v565 = vpack.c.b16 %v483, %v481
        %v566 = vpack.c.b16 %v486, %v484
        %v567 = vpack.c.b16 %v487, %v485
        %v568 = vpack.c.b16 %v490, %v488
        %v569 = vpack.c.b16 %v491, %v489
        %v570 = vpack.c.b16 %v494, %v492
        %v571 = vpack.c.b16 %v495, %v493
        %v572 = vpack.c.b16 %v498, %v496
        %v573 = vpack.c.b16 %v499, %v497
        %v574 = vpack.c.b16 %v502, %v500
        %v575 = vpack.c.b16 %v503, %v501
        %v576 = vpack.c.b16 %v506, %v504
        %v577 = vpack.c.b16 %v507, %v505
        %v578 = vpack.c.b16 %v510, %v508
        %v579 = vpack.c.b16 %v511, %v509
        %v580 = vpack.c.b16 %v514, %v512
        %v581 = vpack.c.b16 %v515, %v513
        %v582 = vpack.c.b16 %v518, %v516
        %v583 = vpack.c.b16 %v519, %v517
        %v584 = vpack.c.b16 %v522, %v520
        %v585 = vpack.c.b16 %v523, %v521
        %v586 = vpack.c.b16 %v526, %v524
        %v587 = vpack.c.b16 %v527, %v525
        %v588 = vpack.c.b16 %v530, %v528
        %v589 = vpack.c.b16 %v531, %v529
        %v590 = vpack.c.b16 %v534, %v532
        %v591 = vpack.c.b16 %v535, %v533
        %v592 = vpack.c.b16 %v538, %v536
        %v593 = vpack.c.b16 %v539, %v537
        %v594 = vpack.c.b16 %v542, %v540
        %v595 = vpack.c.b16 %v543, %v541
        %v596 = vpack.c.b16 %v546, %v544
        %v597 = vpack.c.b16 %v547, %v545
        %v598 = vpack.c.b16 %v550, %v548
        %v599 = vpack.c.b16 %v551, %v549
        %648 = vmatpush.bf16.msra.mxu0 %v566
        %649 = vmatpush.bf16.msra.mxu0 %v564
        %650 = vmatpush.bf16.msra.mxu0 %v562
        %651 = vmatpush.bf16.msra.mxu0 %v560
        %652 = vmatpush.bf16.msra.mxu0 %v558
        %653 = vmatpush.bf16.msra.mxu0 %v556
        %654 = vmatpush.bf16.msra.mxu0 %v554
        %655 = vmatpush.bf16.msra.mxu0 %v552
        %656 = vmatmul.bf16.gmra.mxu0 %v396
        %v657 = vpop.f32.mrf.mxu0
        %v658 = vadd.f32 0.0, %v657
        %v659 = vpop.f32.mrf.mxu0
        %v660 = vadd.f32 0.0, %v659
        %661 = vmatmul.bf16.gmra.mxu0 %v399
        %v662 = vpop.f32.mrf.mxu0
        %v663 = vadd.f32 0.0, %v662
        %v664 = vpop.f32.mrf.mxu0
        %665 = vdwg.mxu0
        %666 = vmatpush.bf16.msra.mxu0 %v582
        %667 = vmatpush.bf16.msra.mxu0 %v580
        %668 = vmatpush.bf16.msra.mxu0 %v578
        %669 = vmatpush.bf16.msra.mxu0 %v576
        %670 = vmatpush.bf16.msra.mxu0 %v574
        %671 = vmatpush.bf16.msra.mxu0 %v572
        %672 = vmatpush.bf16.msra.mxu0 %v570
        %673 = vmatpush.bf16.msra.mxu0 %v568
        %674 = vmatmul.bf16.gmra.mxu0 %v397
        %v675 = vpop.f32.mrf.mxu0
        %v676 = vadd.f32 %v658, %v675
        %v677 = vpop.f32.mrf.mxu0
        %v678 = vadd.f32 %v660, %v677
        %679 = vmatmul.bf16.gmra.mxu0 %v400
        %v680 = vpop.f32.mrf.mxu0
        %v681 = vadd.f32 %v663, %v680
        %v682 = vpop.f32.mrf.mxu0
        %683 = vdwg.mxu0
        %684 = vmatpush.bf16.msra.mxu0 %v598
        %685 = vmatpush.bf16.msra.mxu0 %v596
        %686 = vmatpush.bf16.msra.mxu0 %v594
        %687 = vmatpush.bf16.msra.mxu0 %v592
        %688 = vmatpush.bf16.msra.mxu0 %v590
        %689 = vmatpush.bf16.msra.mxu0 %v588
        %690 = vmatpush.bf16.msra.mxu0 %v586
        %691 = vmatpush.bf16.msra.mxu0 %v584
        %692 = vmatmul.bf16.gmra.mxu0 %v398
        %v693 = vpop.f32.mrf.mxu0
        %v694 = vadd.f32 %v676, %v693
        %v695 = vpop.f32.mrf.mxu0
        %v696 = vadd.f32 %v678, %v695
        %697 = vmatmul.bf16.gmra.mxu0 %v401
        %v698 = vpop.f32.mrf.mxu0
        %v699 = vadd.f32 %v681, %v698
        %v700 = vpop.f32.mrf.mxu0
        %701 = vdwg.mxu0
        %702 = vmatpush.bf16.msra.mxu0 %v567
        %703 = vmatpush.bf16.msra.mxu0 %v565
        %704 = vmatpush.bf16.msra.mxu0 %v563
        %705 = vmatpush.bf16.msra.mxu0 %v561
        %706 = vmatpush.bf16.msra.mxu0 %v559
        %707 = vmatpush.bf16.msra.mxu0 %v557
        %708 = vmatpush.bf16.msra.mxu0 %v555
        %709 = vmatpush.bf16.msra.mxu0 %v553
        %710 = vmatmul.bf16.gmra.mxu0 %v396
        %v711 = vpop.f32.mrf.mxu0
        %v712 = vadd.f32 0.0, %v711
        %v713 = vpop.f32.mrf.mxu0
        %v714 = vadd.f32 0.0, %v713
        %715 = vmatmul.bf16.gmra.mxu0 %v399
        %v716 = vpop.f32.mrf.mxu0
        %v717 = vadd.f32 0.0, %v716
        %v718 = vpop.f32.mrf.mxu0
        %719 = vdwg.mxu0
        %720 = vmatpush.bf16.msra.mxu0 %v583
        %721 = vmatpush.bf16.msra.mxu0 %v581
        %722 = vmatpush.bf16.msra.mxu0 %v579
        %723 = vmatpush.bf16.msra.mxu0 %v577
        %724 = vmatpush.bf16.msra.mxu0 %v575
        %725 = vmatpush.bf16.msra.mxu0 %v573
        %726 = vmatpush.bf16.msra.mxu0 %v571
        %727 = vmatpush.bf16.msra.mxu0 %v569
        %728 = vmatmul.bf16.gmra.mxu0 %v397
        %v729 = vpop.f32.mrf.mxu0
        %v730 = vadd.f32 %v712, %v729
        %v731 = vpop.f32.mrf.mxu0
        %v732 = vadd.f32 %v714, %v731
        %733 = vmatmul.bf16.gmra.mxu0 %v400
        %v734 = vpop.f32.mrf.mxu0
        %v735 = vadd.f32 %v717, %v734
        %v736 = vpop.f32.mrf.mxu0
        %737 = vdwg.mxu0
        %738 = vmatpush.bf16.msra.mxu0 %v599
        %739 = vmatpush.bf16.msra.mxu0 %v597
        %740 = vmatpush.bf16.msra.mxu0 %v595
        %741 = vmatpush.bf16.msra.mxu0 %v593
        %742 = vmatpush.bf16.msra.mxu0 %v591
        %743 = vmatpush.bf16.msra.mxu0 %v589
        %744 = vmatpush.bf16.msra.mxu0 %v587
        %745 = vmatpush.bf16.msra.mxu0 %v585
        %746 = vmatmul.bf16.gmra.mxu0 %v398
        %v747 = vpop.f32.mrf.mxu0
        %v748 = vadd.f32 %v730, %v747
        %v749 = vpop.f32.mrf.mxu0
        %v750 = vadd.f32 %v732, %v749
        %751 = vmatmul.bf16.gmra.mxu0 %v401
        %v752 = vpop.f32.mrf.mxu0
        %v753 = vadd.f32 %v735, %v752
        %v754 = vpop.f32.mrf.mxu0
        %755 = vdwg.mxu0
        %v756 = vadd.f32 %v321, %v694
        %v757 = vadd.f32 %v322, %v748
        %v758 = vadd.f32 %v323, %v696
        %v759 = vadd.f32 %v324, %v750
        %v760 = vadd.f32 %v325, %v699
        %v761 = vadd.f32 %v326, %v753
        %762 = vst [vmem:[%s308] sm:$0xff] %v756
        %763 = vst [vmem:[%s308 + $0x8] sm:$0xff] %v757
        %764 = vst [vmem:[%s308 + $0x10] sm:$0xff] %v758
        %765 = vst [vmem:[%s308 + $0x18] sm:$0xff] %v759
        %766 = vst [vmem:[%s308 + $0x20] sm:$0xff] %v760
        %767 = vst [vmem:[%s308 + $0x28] sm:$0xff] %v761
        %p768 = scmp.eq.s32.totalorder %s21, 2
        // Predicated region
        $region63: #{resnet18_forward.18} parent=53 // pred_check
          %p769 = pneg %p768
        $region64: #{resnet18_forward.18} parent=53 // pred_check_branch
          %771 = sbr.rel (%p769) target = $region66
        $region65: #{resnet18_forward.18} parent=53 // pred_region
          %v772 = vld [vmem:[%s308] sm:$0xff]
          %v773 = vld [vmem:[%s308 + $0x8] sm:$0xff]
          %v774 = vld [vmem:[%s308 + $0x10] sm:$0xff]
          %v775 = vld [vmem:[%s308 + $0x18] sm:$0xff]
          %v776 = vld [vmem:[%s308 + $0x20] sm:$0xff]
          %v777 = vld [vmem:[%s308 + $0x28] sm:$0xff]
          %v778 = vld [vmem:[%s297] sm:$0x3]
          %v780 = vperm.slane %v778, 0
          %v781 = vperm.slane %v778, 1
          %v784 = vadd.f32 %v772, %v780
          %v785 = vadd.f32 %v773, %v781
          %v786 = vadd.f32 %v774, %v780
          %v787 = vadd.f32 %v775, %v781
          %v788 = vadd.f32 %v776, %v780
          %v789 = vadd.f32 %v777, %v781
          %v790 = vmax.f32 %v784, 0.0
          %v791 = vmax.f32 %v785, 0.0
          %v792 = vmax.f32 %v786, 0.0
          %v793 = vmax.f32 %v787, 0.0
          %v794 = vmax.f32 %v788, 0.0
          %v795 = vmax.f32 %v789, 0.0
          %796 = vst [vmem:[%s308] sm:$0xff] %v790
          %797 = vst [vmem:[%s308 + $0x8] sm:$0xff] %v791
          %798 = vst [vmem:[%s308 + $0x10] sm:$0xff] %v792
          %799 = vst [vmem:[%s308 + $0x18] sm:$0xff] %v793
          %800 = vst [vmem:[%s308 + $0x20] sm:$0xff] %v794
          %801 = vst [vmem:[%s308 + $0x28] sm:$0xff] %v795
        $region66: #{resnet18_forward.18} parent=53 // pred_fallthru
          _
        %s802 = smul.u32 3, %s19
        %s803 = smul.u32 2, %s20
        %p804 = scmp.lt.s32.totalorder %s802, 2
        %s805 = scalar_select %p804, %s802, 2
        %p806 = scmp.lt.s32.totalorder %s803, 1
        %s807 = scalar_select %p806, %s803, 1
        %s808 = smul.addr %s805, 2
        %s809 = sadd.s32 %s807, %s808
        %s810 = smul.addr %s809, 8
        %s811 = scalar_lea.vmem %s3, %s810
        // Predicated region
        $region67: #{resnet18_forward.18} parent=53 // pred_check
          %p812 = pneg %p135
        $region68: #{resnet18_forward.18} parent=53 // pred_check_branch
          %814 = sbr.rel (%p812) target = $region70
        $region69: #{resnet18_forward.18} parent=53 // pred_region
          %s815 = smul.u32 3, %s19
          %s816 = smul.u32 2, %s20
        $region70: #{resnet18_forward.18} parent=53 // pred_fallthru
          _
        // Predicated region
        $region71: #{resnet18_forward.18} parent=53 // pred_check
          %p817 = pneg %p135
        $region72: #{resnet18_forward.18} parent=53 // pred_check_branch
          %819 = sbr.rel (%p817) target = $region74
        $region73: #{resnet18_forward.18} parent=53 // pred_region
          %s820 = smul.u32 3, %s19
          %s821 = smul.u32 2, %s20
          %p822 = scmp.lt.s32.totalorder %s820, 2
          %s823 = scalar_select %p822, %s820, 2
          %p824 = scmp.lt.s32.totalorder %s821, 1
          %s825 = scalar_select %p824, %s821, 1
          %s826 = smul.addr %s823, 2
          %s827 = sadd.s32 %s825, %s826
          %s828 = smul.addr %s827, 8
          %s829 = scalar_lea.vmem %s3, %s828
        $region74: #{resnet18_forward.18} parent=53 // pred_fallthru
          _
      $region54: #{resnet18_forward.18} parent=5 // pred_fallthru
        _
      %p830 = scmp.le.s32.totalorder 2, %s9
      // Predicated region
      $region75: #{resnet18_forward.18} parent=5 // pred_check
        %p831 = pneg %p830
      $region76: #{resnet18_forward.18} parent=5 // pred_check_branch
        %833 = sbr.rel (%p831) target = $region78
      $region77: #{resnet18_forward.18} parent=5 // pred_region
        %s834 = ssub.s32 %s9, 2
      $region78: #{resnet18_forward.18} parent=5 // pred_fallthru
        _
    $region6: #{resnet18_forward.18} parent=1 // loop_footer
      %s13 = sadd.s32 1, %s9
    $region7: #{resnet18_forward.18} parent=1 // loop_footer_branch
      %8 = sbr.rel target = $region3
    $region8: #{resnet18_forward.18} parent=1 // loop_exit
      _

// kernel: resnet18_forward.19
$region0: #{resnet18_forward.19}
  #allocation0 [shape = 'u32[]', space=smem, size = 0x4, offset = 0x4, fixed_abs, tag = 'smem constant byte address 0x4 - core index']
  #allocation1 [shape = 'u32[72,128]{1,0:T(1,128)}', space=vmem, size = 0x9000, scoped, tag = 'internal scratch']
  %s0 = inlined_call_operand.vmem [shape: bf16[24,2304], index: 0, kind: input, shape index: {}]
  %s1 = inlined_call_operand.hbm [shape: bf16[2304,256], index: 1, kind: input, shape index: {}]
  %s2 = inlined_call_operand.hbm [shape: f32[1,256], index: 2, kind: input, shape index: {}]
  %s3 = inlined_call_operand.vmem [shape: f32[24,256], index: 3, kind: input, shape index: {}]
  %s4 = inlined_call_operand.vmem [shape: f32[24,256], index: 4, kind: output, shape index: {}]
  %s5 = sld [smem:[#allocation0]]
  $region91: #{resnet18_forward.19} parent=0
    _
  %s7 = ssub.s32 1, %s5
  %s8 = scalar_select 0, %s7, %s5
  $region1: #{resnet18_forward.19} parent=0
    #allocation2 [shape = 'u8[36864]{0}', space=vmem, size = 0x9000, scoped, tag = 'input window, operand 0']
    #allocation3 [shape = 'u8[393216]{0}', space=vmem, size = 0x60000, scoped, tag = 'input window, operand 1']
    #allocation4 [shape = 's32[2]{0}', space=sflag, size = 0x8, scoped, tag = 'scoped memory for resnet18_forward.19']
    #allocation5 [shape = 'u8[1024]{0}', space=vmem, size = 0x400, scoped, tag = 'input window, operand 2, single buffered']
    #allocation6 [shape = 's32[1]{0}', space=sflag, size = 0x4, scoped, tag = 'scoped memory for resnet18_forward.19']
    %9 = vsyncpa [#allocation4], 0
    %s10 = scalar_lea.sflag [#allocation4], 1
    %11 = vsyncpa %s10, 0
    %12 = vsyncpa [#allocation6], 0
    loop: start=0, step=1, limit=8
    $region2: #{resnet18_forward.19} parent=1 // loop_pre_header
      _
    $region3: #{resnet18_forward.19} parent=1 // loop_header
      %s14 = sphi 0, %s18
      %p15 = scmp.ge.s32.totalorder %s14, 8
      %s21 = sphi 0, %s40
      %s22 = sphi 0, %s36
      %s23 = sphi 0, %s32
      %s24 = sphi 0, %s21
      %s25 = sphi 0, %s22
      %s26 = sphi 0, %s23
      %s27 = sphi 0, %s24
      %s28 = sphi 0, %s25
      %s29 = sphi 0, %s26
      %s45 = sphi 0, %s47
      %s48 = sphi 0, %s45
      %s49 = sphi 0, %s48
      %s65 = sphi 0, %s49
      %s73 = sphi 0, %s75
      %s76 = sphi 0, %s73
      %s77 = sphi 0, %s76
      %s93 = sphi 0, %s77
      %s99 = sphi 0, %s101
      %s102 = sphi 0, %s99
      %s103 = sphi 0, %s102
      %s119 = sphi 0, %s103
      %s127 = sphi 0, %s129
      %s130 = sphi 0, %s127
      %s131 = sphi 0, %s130
      %s147 = sphi 0, %s131
      %s155 = sphi 0, %s157
      %s158 = sphi 0, %s155
      %s159 = sphi 0, %s158
      %s175 = sphi 0, %s159
    $region4: #{resnet18_forward.19} parent=1 // loop_header_branch
      %17 = sbr.rel (%p15) target = $region8
    $region5: #{resnet18_forward.19} parent=1 // loop_body
      %s19 = ssub.s32 %s14, 1
      %s20 = ssub.s32 %s14, 2
      %s30 = sadd.s32 1, %s23
      %p31 = scmp.ge.s32.totalorder %s30, 6
      %s32 = scalar_select %p31, 0, %s30
      %s33 = sadd.s32 1, %s22
      %s34 = scalar_select %p31, %s33, %s22
      %p35 = scmp.ge.s32.totalorder %s34, 1
      %s36 = scalar_select %p35, 0, %s34
      %s37 = sadd.s32 1, %s21
      %s38 = scalar_select %p35, %s37, %s21
      %p39 = scmp.ge.s32.totalorder %s38, 1
      %s40 = scalar_select %p39, 0, %s38
      %s41 = ssub.s32 %s21, %s40
      %s42 = ssub.s32 %s23, %s32
      %s43 = sor.u32 %s41, %s42
      %p44 = scmp.eq.s32.totalorder %s43, 0
      %s46 = sadd.s32 %s45, 1
      %s47 = scalar_select %p44, %s45, %s46
      %p50 = pneg %p44
      %p51 = scmp.eq.s32.totalorder %s14, 5
      %p52 = por %p50, %p51
      %p53 = scmp.ne.s32.totalorder %s45, %s48
      %p54 = scmp.eq.s32.totalorder %s14, 0
      %p55 = por %p53, %p54
      %p56 = scmp.ne.s32.totalorder %s45, %s48
      %p57 = scmp.eq.s32.totalorder %s19, 5
      %p58 = por %p56, %p57
      %p59 = scmp.ne.s32.totalorder %s48, %s49
      %p60 = scmp.eq.s32.totalorder %s19, 0
      %p61 = por %p59, %p60
      %p62 = scmp.ne.s32.totalorder %s48, %s49
      %p63 = scmp.eq.s32.totalorder %s20, 5
      %p64 = por %p62, %p63
      %p66 = scmp.ne.s32.totalorder %s49, %s65
      %p67 = scmp.eq.s32.totalorder %s20, 0
      %p68 = por %p66, %p67
      %s69 = ssub.s32 %s23, %s32
      %s70 = ssub.s32 %s22, %s36
      %s71 = sor.u32 %s69, %s70
      %p72 = scmp.eq.s32.totalorder %s71, 0
      %s74 = sadd.s32 %s73, 1
      %s75 = scalar_select %p72, %s73, %s74
      %p78 = pneg %p72
      %p79 = scmp.eq.s32.totalorder %s14, 5
      %p80 = por %p78, %p79
      %p81 = scmp.ne.s32.totalorder %s73, %s76
      %p82 = scmp.eq.s32.totalorder %s14, 0
      %p83 = por %p81, %p82
      %p84 = scmp.ne.s32.totalorder %s73, %s76
      %p85 = scmp.eq.s32.totalorder %s19, 5
      %p86 = por %p84, %p85
      %p87 = scmp.ne.s32.totalorder %s76, %s77
      %p88 = scmp.eq.s32.totalorder %s19, 0
      %p89 = por %p87, %p88
      %p90 = scmp.ne.s32.totalorder %s76, %s77
      %p91 = scmp.eq.s32.totalorder %s20, 5
      %p92 = por %p90, %p91
      %p94 = scmp.ne.s32.totalorder %s77, %s93
      %p95 = scmp.eq.s32.totalorder %s20, 0
      %p96 = por %p94, %p95
      %s97 = ssub.s32 %s22, %s36
      %p98 = scmp.eq.s32.totalorder %s97, 0
      %s100 = sadd.s32 %s99, 1
      %s101 = scalar_select %p98, %s99, %s100
      %p104 = pneg %p98
      %p105 = scmp.eq.s32.totalorder %s14, 5
      %p106 = por %p104, %p105
      %p107 = scmp.ne.s32.totalorder %s99, %s102
      %p108 = scmp.eq.s32.totalorder %s14, 0
      %p109 = por %p107, %p108
      %p110 = scmp.ne.s32.totalorder %s99, %s102
      %p111 = scmp.eq.s32.totalorder %s19, 5
      %p112 = por %p110, %p111
      %p113 = scmp.ne.s32.totalorder %s102, %s103
      %p114 = scmp.eq.s32.totalorder %s19, 0
      %p115 = por %p113, %p114
      %p116 = scmp.ne.s32.totalorder %s102, %s103
      %p117 = scmp.eq.s32.totalorder %s20, 5
      %p118 = por %p116, %p117
      %p120 = scmp.ne.s32.totalorder %s103, %s119
      %p121 = scmp.eq.s32.totalorder %s20, 0
      %p122 = por %p120, %p121
      %s123 = ssub.s32 %s21, %s40
      %s124 = ssub.s32 %s22, %s36
      %s125 = sor.u32 %s123, %s124
      %p126 = scmp.eq.s32.totalorder %s125, 0
      %s128 = sadd.s32 %s127, 1
      %s129 = scalar_select %p126, %s127, %s128
      %p132 = pneg %p126
      %p133 = scmp.eq.s32.totalorder %s14, 5
      %p134 = por %p132, %p133
      %p135 = scmp.ne.s32.totalorder %s127, %s130
      %p136 = scmp.eq.s32.totalorder %s14, 0
      %p137 = por %p135, %p136
      %p138 = scmp.ne.s32.totalorder %s127, %s130
      %p139 = scmp.eq.s32.totalorder %s19, 5
      %p140 = por %p138, %p139
      %p141 = scmp.ne.s32.totalorder %s130, %s131
      %p142 = scmp.eq.s32.totalorder %s19, 0
      %p143 = por %p141, %p142
      %p144 = scmp.ne.s32.totalorder %s130, %s131
      %p145 = scmp.eq.s32.totalorder %s20, 5
      %p146 = por %p144, %p145
      %p148 = scmp.ne.s32.totalorder %s131, %s147
      %p149 = scmp.eq.s32.totalorder %s20, 0
      %p150 = por %p148, %p149
      %s151 = ssub.s32 %s21, %s40
      %s152 = ssub.s32 %s22, %s36
      %s153 = sor.u32 %s151, %s152
      %p154 = scmp.eq.s32.totalorder %s153, 0
      %s156 = sadd.s32 %s155, 1
      %s157 = scalar_select %p154, %s155, %s156
      %p160 = pneg %p154
      %p161 = scmp.eq.s32.totalorder %s14, 5
      %p162 = por %p160, %p161
      %p163 = scmp.ne.s32.totalorder %s155, %s158
      %p164 = scmp.eq.s32.totalorder %s14, 0
      %p165 = por %p163, %p164
      %p166 = scmp.ne.s32.totalorder %s155, %s158
      %p167 = scmp.eq.s32.totalorder %s19, 5
      %p168 = por %p166, %p167
      %p169 = scmp.ne.s32.totalorder %s158, %s159
      %p170 = scmp.eq.s32.totalorder %s19, 0
      %p171 = por %p169, %p170
      %p172 = scmp.ne.s32.totalorder %s158, %s159
      %p173 = scmp.eq.s32.totalorder %s20, 5
      %p174 = por %p172, %p173
      %p176 = scmp.ne.s32.totalorder %s159, %s175
      %p177 = scmp.eq.s32.totalorder %s20, 0
      %p178 = por %p176, %p177
      %p179 = scmp.le.s32.totalorder 1, %s14
      %p180 = scmp.lt.s32.totalorder %s14, 7
      %p181 = pnand %p179, %p180
      %p182 = pneg %p181
      // Predicated region
      $region9: #{resnet18_forward.19} parent=5 // pred_check
        _
      $region10: #{resnet18_forward.19} parent=5 // pred_check_branch
        %184 = sbr.rel (%p181) target = $region12
      $region11: #{resnet18_forward.19} parent=5 // pred_region
        %s185 = ssub.s32 %s14, 1
        // Predicated region
        $region13: #{resnet18_forward.19} parent=11 // pred_check
          %p186 = pneg %p115
        $region14: #{resnet18_forward.19} parent=11 // pred_check_branch
          %188 = sbr.rel (%p186) target = $region16
        $region15: #{resnet18_forward.19} parent=11 // pred_region
          %s189 = smul.u32 2, %s25
          %191 = vsyncadd [#allocation6], 0
          %s192 = scalar_lea.hbm %s2, %s189
          %s194 = sshll.u32 %s192, 4
          %s195 = int_to_ptr.hbm [resolvable:$true] %s194
          %s196 = sshll.u32 [#allocation5], 4
          %s197 = int_to_ptr.vmem [resolvable:$true] %s196
          %199 = dma.hbm_to_vmem [thread:$0]  %s195, 32, %s197, [#allocation6]
        $region16: #{resnet18_forward.19} parent=11 // pred_fallthru
          _
        // Predicated region
        $region17: #{resnet18_forward.19} parent=11 // pred_check
          %p200 = pneg %p143
        $region18: #{resnet18_forward.19} parent=11 // pred_check_branch
          %202 = sbr.rel (%p200) target = $region20
        $region19: #{resnet18_forward.19} parent=11 // pred_region
          %s203 = smul.u32 3, %s24
          %s204 = smul.u32 2, %s25
          %p205 = scmp.lt.s32.totalorder %s203, 2
          %s206 = scalar_select %p205, %s203, 2
          %p207 = scmp.lt.s32.totalorder %s204, 1
          %s208 = scalar_select %p207, %s204, 1
          %s209 = smul.addr %s206, 2
          %s210 = sadd.s32 %s208, %s209
          %s211 = smul.addr %s210, 8
          %s212 = scalar_lea.vmem %s3, %s211
          %s213 = smul.u32 3, %s24
          %s214 = smul.u32 2, %s25
        $region20: #{resnet18_forward.19} parent=11 // pred_fallthru
          _
      $region12: #{resnet18_forward.19} parent=5 // pred_fallthru
        _
      %p215 = scmp.lt.s32.totalorder %s14, 6
      // Predicated region
      $region21: #{resnet18_forward.19} parent=5 // pred_check
        %p216 = pneg %p215
      $region22: #{resnet18_forward.19} parent=5 // pred_check_branch
        %218 = sbr.rel (%p216) target = $region24
      $region23: #{resnet18_forward.19} parent=5 // pred_region
        // Predicated region
        $region25: #{resnet18_forward.19} parent=23 // pred_check
          %p219 = pneg %p55
        $region26: #{resnet18_forward.19} parent=23 // pred_check_branch
          %221 = sbr.rel (%p219) target = $region28
        $region27: #{resnet18_forward.19} parent=23 // pred_region
          %s222 = sand.u32 %s45, 1
          %s223 = sand.u32 %s45, 1
          %s224 = smul.addr %s223, 36
          %s225 = scalar_lea.vmem [#allocation2], %s224
          %s226 = smul.u32 3, %s21
          %s227 = smul.u32 3, %s23
          %s228 = smul.addr %s226, 18
          %s229 = sadd.s32 %s227, %s228
          %s230 = smul.addr %s229, 4
          %s231 = scalar_lea.vmem %s0, %s230
          // Predicated region
          $region29: #{resnet18_forward.19} parent=27 // pred_check
            _
          $region30: #{resnet18_forward.19} parent=27 // pred_check_branch
            %233 = sbr.rel (0) target = $region32
          $region31: #{resnet18_forward.19} parent=27 // pred_region
            // Predicated region
            $region33: #{resnet18_forward.19} parent=31 // pred_check
              _
            $region34: #{resnet18_forward.19} parent=31 // pred_check_branch
              %235 = sbr.rel (0) target = $region36
            $region35: #{resnet18_forward.19} parent=31 // pred_region
              %s236 = scalar_lea.vmem %s231, 8
              %s237 = scalar_lea.vmem %s225, 8 [#allocation2]
              loop: start=0, step=1, limit=1
              $region37: #{resnet18_forward.19} parent=35 // loop_pre_header
                _
              $region38: #{resnet18_forward.19} parent=35 // loop_header
                %s239 = sphi 0, %s243
                %p240 = scmp.ge.s32.totalorder %s239, 1
                %s244 = sphi %s231, %s231
                %s245 = sphi %s225, %s225
              $region39: #{resnet18_forward.19} parent=35 // loop_header_branch
                %242 = sbr.rel (%p240) target = $region43
              $region40: #{resnet18_forward.19} parent=35 // loop_body
                %v246 = vld [vmem:[%s244] sm:$0xff]
                %247 = vst [vmem:[%s245] sm:$0xff] %v246
                %v248 = vld [vmem:[%s244 + $0x48] sm:$0xff]
                %249 = vst [vmem:[%s245 + $0xc] sm:$0xff] %v248
                %v250 = vld [vmem:[%s244 + $0x90] sm:$0xff]
                %251 = vst [vmem:[%s245 + $0x18] sm:$0xff] %v250
              $region41: #{resnet18_forward.19} parent=35 // loop_footer
                %s243 = sadd.s32 1, %s239
              $region42: #{resnet18_forward.19} parent=35 // loop_footer_branch
                %238 = sbr.rel target = $region38
              $region43: #{resnet18_forward.19} parent=35 // loop_exit
                _
              %s253 = ssub.s32 16, 1
              loop: start=0, step=1, limit=1
              $region44: #{resnet18_forward.19} parent=35 // loop_pre_header
                _
              $region45: #{resnet18_forward.19} parent=35 // loop_header
                %s255 = sphi 0, %s259
                %p256 = scmp.ge.s32.totalorder %s255, 1
                %s260 = sphi %s236, %s236
                %s261 = sphi %s237, %s237
              $region46: #{resnet18_forward.19} parent=35 // loop_header_branch
                %258 = sbr.rel (%p256) target = $region50
              $region47: #{resnet18_forward.19} parent=35 // loop_body
                %v262 = vld [vmem:[%s260] sm:%s253]
                %263 = vst [vmem:[%s261] sm:%s253] %v262
                %v264 = vld [vmem:[%s260 + $0x48] sm:%s253]
                %265 = vst [vmem:[%s261 + $0xc] sm:%s253] %v264
                %v266 = vld [vmem:[%s260 + $0x90] sm:%s253]
                %267 = vst [vmem:[%s261 + $0x18] sm:%s253] %v266
              $region48: #{resnet18_forward.19} parent=35 // loop_footer
                %s259 = sadd.s32 1, %s255
              $region49: #{resnet18_forward.19} parent=35 // loop_footer_branch
                %254 = sbr.rel target = $region45
              $region50: #{resnet18_forward.19} parent=35 // loop_exit
                _
            $region36: #{resnet18_forward.19} parent=31 // pred_fallthru
              _
          $region32: #{resnet18_forward.19} parent=27 // pred_fallthru
            _
          %268 = vnop
        $region28: #{resnet18_forward.19} parent=23 // pred_fallthru
          _
        // Predicated region
        $region51: #{resnet18_forward.19} parent=23 // pred_check
          %p269 = pneg %p83
        $region52: #{resnet18_forward.19} parent=23 // pred_check_branch
          %271 = sbr.rel (%p269) target = $region54
        $region53: #{resnet18_forward.19} parent=23 // pred_region
          %s272 = sand.u32 %s73, 1
          %s273 = scalar_lea.sflag [#allocation4], %s272
          %s274 = sand.u32 %s73, 1
          %s275 = smul.addr %s274, 384
          %s276 = scalar_lea.vmem [#allocation3], %s275
          %s277 = smul.u32 48, %s23
          %s278 = smul.u32 2, %s22
          %280 = vsyncadd %s273, 0
          %s281 = smul.addr %s277, 2
          %s282 = sadd.s32 %s278, %s281
          %s283 = smul.addr %s282, 4
          %s284 = scalar_lea.hbm %s1, %s283
          %s285 = sshll.u32 %s284, 4
          %s286 = int_to_ptr.hbm [resolvable:$true] %s285
          %s287 = sshll.u32 %s276, 4
          %s288 = int_to_ptr.vmem [resolvable:$true] %s287
          %293 = dma.hbm_to_vmem [thread:$0]  %s286, 6144, %s288, %s273, 128, 128, 8
        $region54: #{resnet18_forward.19} parent=23 // pred_fallthru
          _
      $region24: #{resnet18_forward.19} parent=5 // pred_fallthru
        _
      %p294 = scmp.le.s32.totalorder 1, %s14
      %p295 = scmp.lt.s32.totalorder %s14, 7
      %p296 = pnand %p294, %p295
      %p297 = pneg %p296
      // Predicated region
      $region55: #{resnet18_forward.19} parent=5 // pred_check
        _
      $region56: #{resnet18_forward.19} parent=5 // pred_check_branch
        %299 = sbr.rel (%p296) target = $region58
      $region57: #{resnet18_forward.19} parent=5 // pred_region
        %s300 = ssub.s32 %s14, 1
        %s301 = sand.u32 %s48, 1
        %s302 = sand.u32 %s48, 1
        %s303 = smul.addr %s302, 36
        %s304 = scalar_lea.vmem [#allocation2], %s303
        // Predicated region
        $region59: #{resnet18_forward.19} parent=57 // pred_check
          %p305 = pneg %p61
        $region60: #{resnet18_forward.19} parent=57 // pred_check_branch
          %307 = sbr.rel (%p305) target = $region62
        $region61: #{resnet18_forward.19} parent=57 // pred_region
          _
        $region62: #{resnet18_forward.19} parent=57 // pred_fallthru
          _
        %s308 = sand.u32 %s76, 1
        %s309 = scalar_lea.sflag [#allocation4], %s308
        %s310 = sand.u32 %s76, 1
        %s311 = smul.addr %s310, 384
        %s312 = scalar_lea.vmem [#allocation3], %s311
        // Predicated region
        $region63: #{resnet18_forward.19} parent=57 // pred_check
          %p313 = pneg %p89
        $region64: #{resnet18_forward.19} parent=57 // pred_check_branch
          %315 = sbr.rel (%p313) target = $region66
        $region65: #{resnet18_forward.19} parent=57 // pred_region
          %317 = dma.done %s309, 6144
        $region66: #{resnet18_forward.19} parent=57 // pred_fallthru
          _
        // Predicated region
        $region67: #{resnet18_forward.19} parent=57 // pred_check
          %p318 = pneg %p115
        $region68: #{resnet18_forward.19} parent=57 // pred_check_branch
          %320 = sbr.rel (%p318) target = $region70
        $region69: #{resnet18_forward.19} parent=57 // pred_region
          %322 = dma.done [#allocation6], 32
        $region70: #{resnet18_forward.19} parent=57 // pred_fallthru
          _
        %s323 = sand.u32 %s48, 1
        %s324 = sand.u32 %s48, 1
        %s325 = smul.addr %s324, 36
        %s326 = scalar_lea.vmem [#allocation2], %s325
        %p327 = pneg %p61
        %p328 = pneg %p58
        %s329 = sand.u32 %s76, 1
        %s330 = scalar_lea.sflag [#allocation4], %s329
        %s331 = sand.u32 %s76, 1
        %s332 = smul.addr %s331, 384
        %s333 = scalar_lea.vmem [#allocation3], %s332
        %p334 = pneg %p89
        %p335 = pneg %p86
        %p336 = pneg %p115
        %p337 = pneg %p112
        %s338 = smul.u32 3, %s24
        %s339 = smul.u32 2, %s25
        %p340 = scmp.lt.s32.totalorder %s338, 2
        %s341 = scalar_select %p340, %s338, 2
        %p342 = scmp.lt.s32.totalorder %s339, 1
        %s343 = scalar_select %p342, %s339, 1
        %s344 = smul.addr %s341, 2
        %s345 = sadd.s32 %s343, %s344
        %s346 = smul.addr %s345, 8
        %s347 = scalar_lea.vmem %s3, %s346
        %p348 = pneg %p143
        %p349 = pneg %p140
        %p350 = pneg %p171
        %p351 = pneg %p168
        %s352 = smul.u32 3, %s24
        %s353 = smul.u32 2, %s25
        %p354 = scmp.lt.s32.totalorder %s352, 2
        %s355 = scalar_select %p354, %s352, 2
        %p356 = scmp.lt.s32.totalorder %s353, 1
        %s357 = scalar_select %p356, %s353, 1
        %s358 = smul.addr %s355, 2
        %s359 = sadd.s32 %s357, %s358
        %s360 = smul.addr %s359, 8
        %s361 = scalar_lea.vmem %s4, %s360
        %s362 = smul.u32 3, %s24
        %s363 = smul.u32 3, %s26
        %s364 = smul.u32 48, %s26
        %s365 = smul.u32 2, %s25
        %s366 = smul.u32 2, %s25
        %s367 = smul.u32 3, %s24
        %s368 = smul.u32 2, %s25
        %p369 = scmp.lt.s32.totalorder %s367, 2
        %s370 = scalar_select %p369, %s367, 2
        %p371 = scmp.lt.s32.totalorder %s368, 1
        %s372 = scalar_select %p371, %s368, 1
        %s373 = smul.addr %s370, 2
        %s374 = sadd.s32 %s372, %s373
        %s375 = smul.addr %s374, 8
        %s376 = scalar_lea.vmem %s3, %s375
        %s377 = smul.u32 3, %s24
        %s378 = smul.u32 2, %s25
        %s379 = smul.u32 3, %s24
        %s380 = smul.u32 2, %s25
        %p381 = scmp.lt.s32.totalorder %s379, 2
        %s382 = scalar_select %p381, %s379, 2
        %p383 = scmp.lt.s32.totalorder %s380, 1
        %s384 = scalar_select %p383, %s380, 1
        %s385 = smul.addr %s382, 2
        %s386 = sadd.s32 %s384, %s385
        %s387 = smul.addr %s386, 8
        %s388 = scalar_lea.vmem %s4, %s387
        %s389 = smul.u32 3, %s24
        %s390 = smul.u32 2, %s25
        %p391 = scmp.eq.s32.totalorder %s26, 0
        // Predicated region
        $region71: #{resnet18_forward.19} parent=57 // pred_check
          %p392 = pneg %p391
        $region72: #{resnet18_forward.19} parent=57 // pred_check_branch
          %394 = sbr.rel (%p392) target = $region74
        $region73: #{resnet18_forward.19} parent=57 // pred_region
          %395 = vst [vmem:[%s388] sm:$0xff] 0.0
          %396 = vst [vmem:[%s388 + $0x8] sm:$0xff] 0.0
          %397 = vst [vmem:[%s388 + $0x10] sm:$0xff] 0.0
          %398 = vst [vmem:[%s388 + $0x18] sm:$0xff] 0.0
          %399 = vst [vmem:[%s388 + $0x20] sm:$0xff] 0.0
          %400 = vst [vmem:[%s388 + $0x28] sm:$0xff] 0.0
        $region74: #{resnet18_forward.19} parent=57 // pred_fallthru
          _
        %v401 = vld [vmem:[%s388] sm:$0xff]
        %v402 = vld [vmem:[%s388 + $0x8] sm:$0xff]
        %v403 = vld [vmem:[%s388 + $0x10] sm:$0xff]
        %v404 = vld [vmem:[%s388 + $0x18] sm:$0xff]
        %v405 = vld [vmem:[%s388 + $0x20] sm:$0xff]
        %v406 = vld [vmem:[%s388 + $0x28] sm:$0xff]
        %v407 = vld [vmem:[%s304] sm:$0xff]
        %v408 = vld [vmem:[%s304 + $0x8] sm:$0xf]
        %v409 = vld [vmem:[%s304 + $0xc] sm:$0xff]
        %v410 = vld [vmem:[%s304 + $0x14] sm:$0xf]
        %v411 = vld [vmem:[%s304 + $0x18] sm:$0xff]
        %v412 = vld [vmem:[%s304 + $0x20] sm:$0xf]
        %v413 = vld [vmem:[%s312] sm:$0xff]
        %v414 = vld [vmem:[%s312 + $0x8] sm:$0xff]
        %v415 = vld [vmem:[%s312 + $0x10] sm:$0xff]
        %v416 = vld [vmem:[%s312 + $0x18] sm:$0xff]
        %v417 = vld [vmem:[%s312 + $0x20] sm:$0xff]
        %v418 = vld [vmem:[%s312 + $0x28] sm:$0xff]
        %v419 = vld [vmem:[%s312 + $0x30] sm:$0xff]
        %v420 = vld [vmem:[%s312 + $0x38] sm:$0xff]
        %v421 = vld [vmem:[%s312 + $0x40] sm:$0xff]
        %v422 = vld [vmem:[%s312 + $0x48] sm:$0xff]
        %v423 = vld [vmem:[%s312 + $0x50] sm:$0xff]
        %v424 = vld [vmem:[%s312 + $0x58] sm:$0xff]
        %v425 = vld [vmem:[%s312 + $0x60] sm:$0xff]
        %v426 = vld [vmem:[%s312 + $0x68] sm:$0xff]
        %v427 = vld [vmem:[%s312 + $0x70] sm:$0xff]
        %v428 = vld [vmem:[%s312 + $0x78] sm:$0xff]
        %v429 = vld [vmem:[%s312 + $0x80] sm:$0xff]
        %v430 = vld [vmem:[%s312 + $0x88] sm:$0xff]
        %v431 = vld [vmem:[%s312 + $0x90] sm:$0xff]
        %v432 = vld [vmem:[%s312 + $0x98] sm:$0xff]
        %v433 = vld [vmem:[%s312 + $0xa0] sm:$0xff]
        %v434 = vld [vmem:[%s312 + $0xa8] sm:$0xff]
        %v435 = vld [vmem:[%s312 + $0xb0] sm:$0xff]
        %v436 = vld [vmem:[%s312 + $0xb8] sm:$0xff]
        %v437 = vld [vmem:[%s312 + $0xc0] sm:$0xff]
        %v438 = vld [vmem:[%s312 + $0xc8] sm:$0xff]
        %v439 = vld [vmem:[%s312 + $0xd0] sm:$0xff]
        %v440 = vld [vmem:[%s312 + $0xd8] sm:$0xff]
        %v441 = vld [vmem:[%s312 + $0xe0] sm:$0xff]
        %v442 = vld [vmem:[%s312 + $0xe8] sm:$0xff]
        %v443 = vld [vmem:[%s312 + $0xf0] sm:$0xff]
        %v444 = vld [vmem:[%s312 + $0xf8] sm:$0xff]
        %v445 = vld [vmem:[%s312 + $0x100] sm:$0xff]
        %v446 = vld [vmem:[%s312 + $0x108] sm:$0xff]
        %v447 = vld [vmem:[%s312 + $0x110] sm:$0xff]
        %v448 = vld [vmem:[%s312 + $0x118] sm:$0xff]
        %v449 = vld [vmem:[%s312 + $0x120] sm:$0xff]
        %v450 = vld [vmem:[%s312 + $0x128] sm:$0xff]
        %v451 = vld [vmem:[%s312 + $0x130] sm:$0xff]
        %v452 = vld [vmem:[%s312 + $0x138] sm:$0xff]
        %v453 = vld [vmem:[%s312 + $0x140] sm:$0xff]
        %v454 = vld [vmem:[%s312 + $0x148] sm:$0xff]
        %v455 = vld [vmem:[%s312 + $0x150] sm:$0xff]
        %v456 = vld [vmem:[%s312 + $0x158] sm:$0xff]
        %v457 = vld [vmem:[%s312 + $0x160] sm:$0xff]
        %v458 = vld [vmem:[%s312 + $0x168] sm:$0xff]
        %v459 = vld [vmem:[%s312 + $0x170] sm:$0xff]
        %v460 = vld [vmem:[%s312 + $0x178] sm:$0xff]
        %v467 = vunpack.c.l.b16 %v407
        %v468 = vunpack.c.h.b16 %v407
        %v469 = vunpack.c.l.b16 %v408
        %v470 = vunpack.c.l.b16 %v409
        %v471 = vunpack.c.h.b16 %v409
        %v472 = vunpack.c.l.b16 %v410
        %v473 = vunpack.c.l.b16 %v411
        %v474 = vunpack.c.h.b16 %v411
        %v475 = vunpack.c.l.b16 %v412
        %v476 = vpack.c.b16 %v470, %v467
        %v477 = vpack.c.b16 %v471, %v468
        %v478 = vpack.c.b16 %v472, %v469
        %v479 = vpack.c.b16 %v473, %v473
        %v480 = vpack.c.b16 %v474, %v474
        %v481 = vpack.c.b16 %v475, %v475
        %v536 = vunpack.c.l.b16 %v413
        %v537 = vunpack.c.h.b16 %v413
        %v538 = vunpack.c.l.b16 %v414
        %v539 = vunpack.c.h.b16 %v414
        %v540 = vunpack.c.l.b16 %v415
        %v541 = vunpack.c.h.b16 %v415
        %v542 = vunpack.c.l.b16 %v416
        %v543 = vunpack.c.h.b16 %v416
        %v544 = vunpack.c.l.b16 %v417
        %v545 = vunpack.c.h.b16 %v417
        %v546 = vunpack.c.l.b16 %v418
        %v547 = vunpack.c.h.b16 %v418
        %v548 = vunpack.c.l.b16 %v419
        %v549 = vunpack.c.h.b16 %v419
        %v550 = vunpack.c.l.b16 %v420
        %v551 = vunpack.c.h.b16 %v420
        %v552 = vunpack.c.l.b16 %v421
        %v553 = vunpack.c.h.b16 %v421
        %v554 = vunpack.c.l.b16 %v422
        %v555 = vunpack.c.h.b16 %v422
        %v556 = vunpack.c.l.b16 %v423
        %v557 = vunpack.c.h.b16 %v423
        %v558 = vunpack.c.l.b16 %v424
        %v559 = vunpack.c.h.b16 %v424
        %v560 = vunpack.c.l.b16 %v425
        %v561 = vunpack.c.h.b16 %v425
        %v562 = vunpack.c.l.b16 %v426
        %v563 = vunpack.c.h.b16 %v426
        %v564 = vunpack.c.l.b16 %v427
        %v565 = vunpack.c.h.b16 %v427
        %v566 = vunpack.c.l.b16 %v428
        %v567 = vunpack.c.h.b16 %v428
        %v568 = vunpack.c.l.b16 %v429
        %v569 = vunpack.c.h.b16 %v429
        %v570 = vunpack.c.l.b16 %v430
        %v571 = vunpack.c.h.b16 %v430
        %v572 = vunpack.c.l.b16 %v431
        %v573 = vunpack.c.h.b16 %v431
        %v574 = vunpack.c.l.b16 %v432
        %v575 = vunpack.c.h.b16 %v432
        %v576 = vunpack.c.l.b16 %v433
        %v577 = vunpack.c.h.b16 %v433
        %v578 = vunpack.c.l.b16 %v434
        %v579 = vunpack.c.h.b16 %v434
        %v580 = vunpack.c.l.b16 %v435
        %v581 = vunpack.c.h.b16 %v435
        %v582 = vunpack.c.l.b16 %v436
        %v583 = vunpack.c.h.b16 %v436
        %v584 = vunpack.c.l.b16 %v437
        %v585 = vunpack.c.h.b16 %v437
        %v586 = vunpack.c.l.b16 %v438
        %v587 = vunpack.c.h.b16 %v438
        %v588 = vunpack.c.l.b16 %v439
        %v589 = vunpack.c.h.b16 %v439
        %v590 = vunpack.c.l.b16 %v440
        %v591 = vunpack.c.h.b16 %v440
        %v592 = vunpack.c.l.b16 %v441
        %v593 = vunpack.c.h.b16 %v441
        %v594 = vunpack.c.l.b16 %v442
        %v595 = vunpack.c.h.b16 %v442
        %v596 = vunpack.c.l.b16 %v443
        %v597 = vunpack.c.h.b16 %v443
        %v598 = vunpack.c.l.b16 %v444
        %v599 = vunpack.c.h.b16 %v444
        %v600 = vunpack.c.l.b16 %v445
        %v601 = vunpack.c.h.b16 %v445
        %v602 = vunpack.c.l.b16 %v446
        %v603 = vunpack.c.h.b16 %v446
        %v604 = vunpack.c.l.b16 %v447
        %v605 = vunpack.c.h.b16 %v447
        %v606 = vunpack.c.l.b16 %v448
        %v607 = vunpack.c.h.b16 %v448
        %v608 = vunpack.c.l.b16 %v449
        %v609 = vunpack.c.h.b16 %v449
        %v610 = vunpack.c.l.b16 %v450
        %v611 = vunpack.c.h.b16 %v450
        %v612 = vunpack.c.l.b16 %v451
        %v613 = vunpack.c.h.b16 %v451
        %v614 = vunpack.c.l.b16 %v452
        %v615 = vunpack.c.h.b16 %v452
        %v616 = vunpack.c.l.b16 %v453
        %v617 = vunpack.c.h.b16 %v453
        %v618 = vunpack.c.l.b16 %v454
        %v619 = vunpack.c.h.b16 %v454
        %v620 = vunpack.c.l.b16 %v455
        %v621 = vunpack.c.h.b16 %v455
        %v622 = vunpack.c.l.b16 %v456
        %v623 = vunpack.c.h.b16 %v456
        %v624 = vunpack.c.l.b16 %v457
        %v625 = vunpack.c.h.b16 %v457
        %v626 = vunpack.c.l.b16 %v458
        %v627 = vunpack.c.h.b16 %v458
        %v628 = vunpack.c.l.b16 %v459
        %v629 = vunpack.c.h.b16 %v459
        %v630 = vunpack.c.l.b16 %v460
        %v631 = vunpack.c.h.b16 %v460
        %v632 = vpack.c.b16 %v538, %v536
        %v633 = vpack.c.b16 %v539, %v537
        %v634 = vpack.c.b16 %v542, %v540
        %v635 = vpack.c.b16 %v543, %v541
        %v636 = vpack.c.b16 %v546, %v544
        %v637 = vpack.c.b16 %v547, %v545
        %v638 = vpack.c.b16 %v550, %v548
        %v639 = vpack.c.b16 %v551, %v549
        %v640 = vpack.c.b16 %v554, %v552
        %v641 = vpack.c.b16 %v555, %v553
        %v642 = vpack.c.b16 %v558, %v556
        %v643 = vpack.c.b16 %v559, %v557
        %v644 = vpack.c.b16 %v562, %v560
        %v645 = vpack.c.b16 %v563, %v561
        %v646 = vpack.c.b16 %v566, %v564
        %v647 = vpack.c.b16 %v567, %v565
        %v648 = vpack.c.b16 %v570, %v568
        %v649 = vpack.c.b16 %v571, %v569
        %v650 = vpack.c.b16 %v574, %v572
        %v651 = vpack.c.b16 %v575, %v573
        %v652 = vpack.c.b16 %v578, %v576
        %v653 = vpack.c.b16 %v579, %v577
        %v654 = vpack.c.b16 %v582, %v580
        %v655 = vpack.c.b16 %v583, %v581
        %v656 = vpack.c.b16 %v586, %v584
        %v657 = vpack.c.b16 %v587, %v585
        %v658 = vpack.c.b16 %v590, %v588
        %v659 = vpack.c.b16 %v591, %v589
        %v660 = vpack.c.b16 %v594, %v592
        %v661 = vpack.c.b16 %v595, %v593
        %v662 = vpack.c.b16 %v598, %v596
        %v663 = vpack.c.b16 %v599, %v597
        %v664 = vpack.c.b16 %v602, %v600
        %v665 = vpack.c.b16 %v603, %v601
        %v666 = vpack.c.b16 %v606, %v604
        %v667 = vpack.c.b16 %v607, %v605
        %v668 = vpack.c.b16 %v610, %v608
        %v669 = vpack.c.b16 %v611, %v609
        %v670 = vpack.c.b16 %v614, %v612
        %v671 = vpack.c.b16 %v615, %v613
        %v672 = vpack.c.b16 %v618, %v616
        %v673 = vpack.c.b16 %v619, %v617
        %v674 = vpack.c.b16 %v622, %v620
        %v675 = vpack.c.b16 %v623, %v621
        %v676 = vpack.c.b16 %v626, %v624
        %v677 = vpack.c.b16 %v627, %v625
        %v678 = vpack.c.b16 %v630, %v628
        %v679 = vpack.c.b16 %v631, %v629
        %728 = vmatpush.bf16.msra.mxu0 %v646
        %729 = vmatpush.bf16.msra.mxu0 %v644
        %730 = vmatpush.bf16.msra.mxu0 %v642
        %731 = vmatpush.bf16.msra.mxu0 %v640
        %732 = vmatpush.bf16.msra.mxu0 %v638
        %733 = vmatpush.bf16.msra.mxu0 %v636
        %734 = vmatpush.bf16.msra.mxu0 %v634
        %735 = vmatpush.bf16.msra.mxu0 %v632
        %736 = vmatmul.bf16.gmra.mxu0 %v476
        %v737 = vpop.f32.mrf.mxu0
        %v738 = vadd.f32 0.0, %v737
        %v739 = vpop.f32.mrf.mxu0
        %v740 = vadd.f32 0.0, %v739
        %741 = vmatmul.bf16.gmra.mxu0 %v479
        %v742 = vpop.f32.mrf.mxu0
        %v743 = vadd.f32 0.0, %v742
        %v744 = vpop.f32.mrf.mxu0
        %745 = vdwg.mxu0
        %746 = vmatpush.bf16.msra.mxu0 %v662
        %747 = vmatpush.bf16.msra.mxu0 %v660
        %748 = vmatpush.bf16.msra.mxu0 %v658
        %749 = vmatpush.bf16.msra.mxu0 %v656
        %750 = vmatpush.bf16.msra.mxu0 %v654
        %751 = vmatpush.bf16.msra.mxu0 %v652
        %752 = vmatpush.bf16.msra.mxu0 %v650
        %753 = vmatpush.bf16.msra.mxu0 %v648
        %754 = vmatmul.bf16.gmra.mxu0 %v477
        %v755 = vpop.f32.mrf.mxu0
        %v756 = vadd.f32 %v738, %v755
        %v757 = vpop.f32.mrf.mxu0
        %v758 = vadd.f32 %v740, %v757
        %759 = vmatmul.bf16.gmra.mxu0 %v480
        %v760 = vpop.f32.mrf.mxu0
        %v761 = vadd.f32 %v743, %v760
        %v762 = vpop.f32.mrf.mxu0
        %763 = vdwg.mxu0
        %764 = vmatpush.bf16.msra.mxu0 %v678
        %765 = vmatpush.bf16.msra.mxu0 %v676
        %766 = vmatpush.bf16.msra.mxu0 %v674
        %767 = vmatpush.bf16.msra.mxu0 %v672
        %768 = vmatpush.bf16.msra.mxu0 %v670
        %769 = vmatpush.bf16.msra.mxu0 %v668
        %770 = vmatpush.bf16.msra.mxu0 %v666
        %771 = vmatpush.bf16.msra.mxu0 %v664
        %772 = vmatmul.bf16.gmra.mxu0 %v478
        %v773 = vpop.f32.mrf.mxu0
        %v774 = vadd.f32 %v756, %v773
        %v775 = vpop.f32.mrf.mxu0
        %v776 = vadd.f32 %v758, %v775
        %777 = vmatmul.bf16.gmra.mxu0 %v481
        %v778 = vpop.f32.mrf.mxu0
        %v779 = vadd.f32 %v761, %v778
        %v780 = vpop.f32.mrf.mxu0
        %781 = vdwg.mxu0
        %782 = vmatpush.bf16.msra.mxu0 %v647
        %783 = vmatpush.bf16.msra.mxu0 %v645
        %784 = vmatpush.bf16.msra.mxu0 %v643
        %785 = vmatpush.bf16.msra.mxu0 %v641
        %786 = vmatpush.bf16.msra.mxu0 %v639
        %787 = vmatpush.bf16.msra.mxu0 %v637
        %788 = vmatpush.bf16.msra.mxu0 %v635
        %789 = vmatpush.bf16.msra.mxu0 %v633
        %790 = vmatmul.bf16.gmra.mxu0 %v476
        %v791 = vpop.f32.mrf.mxu0
        %v792 = vadd.f32 0.0, %v791
        %v793 = vpop.f32.mrf.mxu0
        %v794 = vadd.f32 0.0, %v793
        %795 = vmatmul.bf16.gmra.mxu0 %v479
        %v796 = vpop.f32.mrf.mxu0
        %v797 = vadd.f32 0.0, %v796
        %v798 = vpop.f32.mrf.mxu0
        %799 = vdwg.mxu0
        %800 = vmatpush.bf16.msra.mxu0 %v663
        %801 = vmatpush.bf16.msra.mxu0 %v661
        %802 = vmatpush.bf16.msra.mxu0 %v659
        %803 = vmatpush.bf16.msra.mxu0 %v657
        %804 = vmatpush.bf16.msra.mxu0 %v655
        %805 = vmatpush.bf16.msra.mxu0 %v653
        %806 = vmatpush.bf16.msra.mxu0 %v651
        %807 = vmatpush.bf16.msra.mxu0 %v649
        %808 = vmatmul.bf16.gmra.mxu0 %v477
        %v809 = vpop.f32.mrf.mxu0
        %v810 = vadd.f32 %v792, %v809
        %v811 = vpop.f32.mrf.mxu0
        %v812 = vadd.f32 %v794, %v811
        %813 = vmatmul.bf16.gmra.mxu0 %v480
        %v814 = vpop.f32.mrf.mxu0
        %v815 = vadd.f32 %v797, %v814
        %v816 = vpop.f32.mrf.mxu0
        %817 = vdwg.mxu0
        %818 = vmatpush.bf16.msra.mxu0 %v679
        %819 = vmatpush.bf16.msra.mxu0 %v677
        %820 = vmatpush.bf16.msra.mxu0 %v675
        %821 = vmatpush.bf16.msra.mxu0 %v673
        %822 = vmatpush.bf16.msra.mxu0 %v671
        %823 = vmatpush.bf16.msra.mxu0 %v669
        %824 = vmatpush.bf16.msra.mxu0 %v667
        %825 = vmatpush.bf16.msra.mxu0 %v665
        %826 = vmatmul.bf16.gmra.mxu0 %v478
        %v827 = vpop.f32.mrf.mxu0
        %v828 = vadd.f32 %v810, %v827
        %v829 = vpop.f32.mrf.mxu0
        %v830 = vadd.f32 %v812, %v829
        %831 = vmatmul.bf16.gmra.mxu0 %v481
        %v832 = vpop.f32.mrf.mxu0
        %v833 = vadd.f32 %v815, %v832
        %v834 = vpop.f32.mrf.mxu0
        %835 = vdwg.mxu0
        %v836 = vadd.f32 %v401, %v774
        %v837 = vadd.f32 %v402, %v828
        %v838 = vadd.f32 %v403, %v776
        %v839 = vadd.f32 %v404, %v830
        %v840 = vadd.f32 %v405, %v779
        %v841 = vadd.f32 %v406, %v833
        %842 = vst [vmem:[%s388] sm:$0xff] %v836
        %843 = vst [vmem:[%s388 + $0x8] sm:$0xff] %v837
        %844 = vst [vmem:[%s388 + $0x10] sm:$0xff] %v838
        %845 = vst [vmem:[%s388 + $0x18] sm:$0xff] %v839
        %846 = vst [vmem:[%s388 + $0x20] sm:$0xff] %v840
        %847 = vst [vmem:[%s388 + $0x28] sm:$0xff] %v841
        %p848 = scmp.eq.s32.totalorder %s26, 5
        // Predicated region
        $region75: #{resnet18_forward.19} parent=57 // pred_check
          %p849 = pneg %p848
        $region76: #{resnet18_forward.19} parent=57 // pred_check_branch
          %851 = sbr.rel (%p849) target = $region78
        $region77: #{resnet18_forward.19} parent=57 // pred_region
          %v852 = vld [vmem:[%s388] sm:$0xff]
          %v853 = vld [vmem:[%s388 + $0x8] sm:$0xff]
          %v854 = vld [vmem:[%s388 + $0x10] sm:$0xff]
          %v855 = vld [vmem:[%s388 + $0x18] sm:$0xff]
          %v856 = vld [vmem:[%s388 + $0x20] sm:$0xff]
          %v857 = vld [vmem:[%s388 + $0x28] sm:$0xff]
          %v858 = vld [vmem:[#allocation5] sm:$0x3]
          %v860 = vperm.slane %v858, 0
          %v861 = vperm.slane %v858, 1
          %v864 = vadd.f32 %v852, %v860
          %v865 = vadd.f32 %v853, %v861
          %v866 = vadd.f32 %v854, %v860
          %v867 = vadd.f32 %v855, %v861
          %v868 = vadd.f32 %v856, %v860
          %v869 = vadd.f32 %v857, %v861
          %v870 = vld [vmem:[%s376] sm:$0xff]
          %v871 = vld [vmem:[%s376 + $0x8] sm:$0xff]
          %v872 = vld [vmem:[%s376 + $0x10] sm:$0xff]
          %v873 = vld [vmem:[%s376 + $0x18] sm:$0xff]
          %v874 = vld [vmem:[%s376 + $0x20] sm:$0xff]
          %v875 = vld [vmem:[%s376 + $0x28] sm:$0xff]
          %v876 = vadd.f32 %v864, %v870
          %v877 = vadd.f32 %v865, %v871
          %v878 = vadd.f32 %v866, %v872
          %v879 = vadd.f32 %v867, %v873
          %v880 = vadd.f32 %v868, %v874
          %v881 = vadd.f32 %v869, %v875
          %v882 = vmax.f32 %v876, 0.0
          %v883 = vmax.f32 %v877, 0.0
          %v884 = vmax.f32 %v878, 0.0
          %v885 = vmax.f32 %v879, 0.0
          %v886 = vmax.f32 %v880, 0.0
          %v887 = vmax.f32 %v881, 0.0
          %888 = vst [vmem:[%s388] sm:$0xff] %v882
          %889 = vst [vmem:[%s388 + $0x8] sm:$0xff] %v883
          %890 = vst [vmem:[%s388 + $0x10] sm:$0xff] %v884
          %891 = vst [vmem:[%s388 + $0x18] sm:$0xff] %v885
          %892 = vst [vmem:[%s388 + $0x20] sm:$0xff] %v886
          %893 = vst [vmem:[%s388 + $0x28] sm:$0xff] %v887
        $region78: #{resnet18_forward.19} parent=57 // pred_fallthru
          _
        %s894 = smul.u32 3, %s24
        %s895 = smul.u32 2, %s25
        %p896 = scmp.lt.s32.totalorder %s894, 2
        %s897 = scalar_select %p896, %s894, 2
        %p898 = scmp.lt.s32.totalorder %s895, 1
        %s899 = scalar_select %p898, %s895, 1
        %s900 = smul.addr %s897, 2
        %s901 = sadd.s32 %s899, %s900
        %s902 = smul.addr %s901, 8
        %s903 = scalar_lea.vmem %s4, %s902
        // Predicated region
        $region79: #{resnet18_forward.19} parent=57 // pred_check
          %p904 = pneg %p168
        $region80: #{resnet18_forward.19} parent=57 // pred_check_branch
          %906 = sbr.rel (%p904) target = $region82
        $region81: #{resnet18_forward.19} parent=57 // pred_region
          %s907 = smul.u32 3, %s24
          %s908 = smul.u32 2, %s25
        $region82: #{resnet18_forward.19} parent=57 // pred_fallthru
          _
        // Predicated region
        $region83: #{resnet18_forward.19} parent=57 // pred_check
          %p909 = pneg %p168
        $region84: #{resnet18_forward.19} parent=57 // pred_check_branch
          %911 = sbr.rel (%p909) target = $region86
        $region85: #{resnet18_forward.19} parent=57 // pred_region
          %s912 = smul.u32 3, %s24
          %s913 = smul.u32 2, %s25
          %p914 = scmp.lt.s32.totalorder %s912, 2
          %s915 = scalar_select %p914, %s912, 2
          %p916 = scmp.lt.s32.totalorder %s913, 1
          %s917 = scalar_select %p916, %s913, 1
          %s918 = smul.addr %s915, 2
          %s919 = sadd.s32 %s917, %s918
          %s920 = smul.addr %s919, 8
          %s921 = scalar_lea.vmem %s4, %s920
        $region86: #{resnet18_forward.19} parent=57 // pred_fallthru
          _
      $region58: #{resnet18_forward.19} parent=5 // pred_fallthru
        _
      %p922 = scmp.le.s32.totalorder 2, %s14
      // Predicated region
      $region87: #{resnet18_forward.19} parent=5 // pred_check
        %p923 = pneg %p922
      $region88: #{resnet18_forward.19} parent=5 // pred_check_branch
        %925 = sbr.rel (%p923) target = $region90
      $region89: #{resnet18_forward.19} parent=5 // pred_region
        %s926 = ssub.s32 %s14, 2
      $region90: #{resnet18_forward.19} parent=5 // pred_fallthru
        _
    $region6: #{resnet18_forward.19} parent=1 // loop_footer
      %s18 = sadd.s32 1, %s14
    $region7: #{resnet18_forward.19} parent=1 // loop_footer_branch
      %13 = sbr.rel target = $region3
    $region8: #{resnet18_forward.19} parent=1 // loop_exit
      _
    %927 = vsyncpa [#allocation4], 1
    %s928 = scalar_lea.sflag [#allocation4], 1
    %929 = vsyncpa %s928, 1
    %930 = vsyncpa [#allocation6], 1

// kernel: resnet18_forward.20
$region0: #{resnet18_forward.20}
  #allocation0 [shape = 'u32[]', space=smem, size = 0x4, offset = 0x4, fixed_abs, tag = 'smem constant byte address 0x4 - core index']
  #allocation1 [shape = 'u32[72,128]{1,0:T(1,128)}', space=vmem, size = 0x9000, scoped, tag = 'internal scratch']
  %s0 = inlined_call_operand.vmem [shape: bf16[8,256], index: 0, kind: input, shape index: {}]
  %s1 = inlined_call_operand.hbm [shape: bf16[256,512], index: 1, kind: input, shape index: {}]
  %s2 = inlined_call_operand.hbm [shape: f32[1,512], index: 2, kind: input, shape index: {}]
  %s3 = inlined_call_operand.vmem [shape: f32[8,512], index: 3, kind: output, shape index: {}]
  %s4 = sld [smem:[#allocation0]]
  $region61: #{resnet18_forward.20} parent=0
    _
  %s6 = ssub.s32 1, %s4
  %s7 = scalar_select 0, %s6, %s4
  $region1: #{resnet18_forward.20} parent=0
    #allocation2 [shape = 'u8[262144]{0}', space=vmem, size = 0x40000, scoped, tag = 'input window, operand 1']
    #allocation3 [shape = 's32[2]{0}', space=sflag, size = 0x8, scoped, tag = 'scoped memory for resnet18_forward.20']
    #allocation4 [shape = 'u8[2048]{0}', space=vmem, size = 0x800, scoped, tag = 'input window, operand 2']
    #allocation5 [shape = 's32[2]{0}', space=sflag, size = 0x8, scoped, tag = 'scoped memory for resnet18_forward.20']
    %8 = vsyncpa [#allocation3], 0
    %s9 = scalar_lea.sflag [#allocation3], 1
    %10 = vsyncpa %s9, 0
    %11 = vsyncpa [#allocation5], 0
    %s12 = scalar_lea.sflag [#allocation5], 1
    %13 = vsyncpa %s12, 0
    loop: start=0, step=1, limit=4
    $region2: #{resnet18_forward.20} parent=1 // loop_pre_header
      _
    $region3: #{resnet18_forward.20} parent=1 // loop_header
      %s15 = sphi 0, %s19
      %p16 = scmp.ge.s32.totalorder %s15, 4
      %s22 = sphi 0, %s41
      %s23 = sphi 0, %s37
      %s24 = sphi 0, %s33
      %s25 = sphi 0, %s22
      %s26 = sphi 0, %s23
      %s27 = sphi 0, %s24
      %s28 = sphi 0, %s25
      %s29 = sphi 0, %s26
      %s30 = sphi 0, %s27
      %s46 = sphi 0, %s48
      %s49 = sphi 0, %s46
      %s50 = sphi 0, %s49
      %s66 = sphi 0, %s50
      %s74 = sphi 0, %s76
      %s77 = sphi 0, %s74
      %s78 = sphi 0, %s77
      %s94 = sphi 0, %s78
      %s100 = sphi 0, %s102
      %s103 = sphi 0, %s100
      %s104 = sphi 0, %s103
      %s120 = sphi 0, %s104
      %s128 = sphi 0, %s130
      %s131 = sphi 0, %s128
      %s132 = sphi 0, %s131
      %s148 = sphi 0, %s132
    $region4: #{resnet18_forward.20} parent=1 // loop_header_branch
      %18 = sbr.rel (%p16) target = $region8
    $region5: #{resnet18_forward.20} parent=1 // loop_body
      %s20 = ssub.s32 %s15, 1
      %s21 = ssub.s32 %s15, 2
      %s31 = sadd.s32 1, %s24
      %p32 = scmp.ge.s32.totalorder %s31, 1
      %s33 = scalar_select %p32, 0, %s31
      %s34 = sadd.s32 1, %s23
      %s35 = scalar_select %p32, %s34, %s23
      %p36 = scmp.ge.s32.totalorder %s35, 2
      %s37 = scalar_select %p36, 0, %s35
      %s38 = sadd.s32 1, %s22
      %s39 = scalar_select %p36, %s38, %s22
      %p40 = scmp.ge.s32.totalorder %s39, 1
      %s41 = scalar_select %p40, 0, %s39
      %s42 = ssub.s32 %s22, %s41
      %s43 = ssub.s32 %s24, %s33
      %s44 = sor.u32 %s42, %s43
      %p45 = scmp.eq.s32.totalorder %s44, 0
      %s47 = sadd.s32 %s46, 1
      %s48 = scalar_select %p45, %s46, %s47
      %p51 = pneg %p45
      %p52 = scmp.eq.s32.totalorder %s15, 1
      %p53 = por %p51, %p52
      %p54 = scmp.ne.s32.totalorder %s46, %s49
      %p55 = scmp.eq.s32.totalorder %s15, 0
      %p56 = por %p54, %p55
      %p57 = scmp.ne.s32.totalorder %s46, %s49
      %p58 = scmp.eq.s32.totalorder %s20, 1
      %p59 = por %p57, %p58
      %p60 = scmp.ne.s32.totalorder %s49, %s50
      %p61 = scmp.eq.s32.totalorder %s20, 0
      %p62 = por %p60, %p61
      %p63 = scmp.ne.s32.totalorder %s49, %s50
      %p64 = scmp.eq.s32.totalorder %s21, 1
      %p65 = por %p63, %p64
      %p67 = scmp.ne.s32.totalorder %s50, %s66
      %p68 = scmp.eq.s32.totalorder %s21, 0
      %p69 = por %p67, %p68
      %s70 = ssub.s32 %s24, %s33
      %s71 = ssub.s32 %s23, %s37
      %s72 = sor.u32 %s70, %s71
      %p73 = scmp.eq.s32.totalorder %s72, 0
      %s75 = sadd.s32 %s74, 1
      %s76 = scalar_select %p73, %s74, %s75
      %p79 = pneg %p73
      %p80 = scmp.eq.s32.totalorder %s15, 1
      %p81 = por %p79, %p80
      %p82 = scmp.ne.s32.totalorder %s74, %s77
      %p83 = scmp.eq.s32.totalorder %s15, 0
      %p84 = por %p82, %p83
      %p85 = scmp.ne.s32.totalorder %s74, %s77
      %p86 = scmp.eq.s32.totalorder %s20, 1
      %p87 = por %p85, %p86
      %p88 = scmp.ne.s32.totalorder %s77, %s78
      %p89 = scmp.eq.s32.totalorder %s20, 0
      %p90 = por %p88, %p89
      %p91 = scmp.ne.s32.totalorder %s77, %s78
      %p92 = scmp.eq.s32.totalorder %s21, 1
      %p93 = por %p91, %p92
      %p95 = scmp.ne.s32.totalorder %s78, %s94
      %p96 = scmp.eq.s32.totalorder %s21, 0
      %p97 = por %p95, %p96
      %s98 = ssub.s32 %s23, %s37
      %p99 = scmp.eq.s32.totalorder %s98, 0
      %s101 = sadd.s32 %s100, 1
      %s102 = scalar_select %p99, %s100, %s101
      %p105 = pneg %p99
      %p106 = scmp.eq.s32.totalorder %s15, 1
      %p107 = por %p105, %p106
      %p108 = scmp.ne.s32.totalorder %s100, %s103
      %p109 = scmp.eq.s32.totalorder %s15, 0
      %p110 = por %p108, %p109
      %p111 = scmp.ne.s32.totalorder %s100, %s103
      %p112 = scmp.eq.s32.totalorder %s20, 1
      %p113 = por %p111, %p112
      %p114 = scmp.ne.s32.totalorder %s103, %s104
      %p115 = scmp.eq.s32.totalorder %s20, 0
      %p116 = por %p114, %p115
      %p117 = scmp.ne.s32.totalorder %s103, %s104
      %p118 = scmp.eq.s32.totalorder %s21, 1
      %p119 = por %p117, %p118
      %p121 = scmp.ne.s32.totalorder %s104, %s120
      %p122 = scmp.eq.s32.totalorder %s21, 0
      %p123 = por %p121, %p122
      %s124 = ssub.s32 %s22, %s41
      %s125 = ssub.s32 %s23, %s37
      %s126 = sor.u32 %s124, %s125
      %p127 = scmp.eq.s32.totalorder %s126, 0
      %s129 = sadd.s32 %s128, 1
      %s130 = scalar_select %p127, %s128, %s129
      %p133 = pneg %p127
      %p134 = scmp.eq.s32.totalorder %s15, 1
      %p135 = por %p133, %p134
      %p136 = scmp.ne.s32.totalorder %s128, %s131
      %p137 = scmp.eq.s32.totalorder %s15, 0
      %p138 = por %p136, %p137
      %p139 = scmp.ne.s32.totalorder %s128, %s131
      %p140 = scmp.eq.s32.totalorder %s20, 1
      %p141 = por %p139, %p140
      %p142 = scmp.ne.s32.totalorder %s131, %s132
      %p143 = scmp.eq.s32.totalorder %s20, 0
      %p144 = por %p142, %p143
      %p145 = scmp.ne.s32.totalorder %s131, %s132
      %p146 = scmp.eq.s32.totalorder %s21, 1
      %p147 = por %p145, %p146
      %p149 = scmp.ne.s32.totalorder %s132, %s148
      %p150 = scmp.eq.s32.totalorder %s21, 0
      %p151 = por %p149, %p150
      %p152 = scmp.le.s32.totalorder 1, %s15
      %p153 = scmp.lt.s32.totalorder %s15, 3
      %p154 = pnand %p152, %p153
      %p155 = pneg %p154
      // Predicated region
      $region9: #{resnet18_forward.20} parent=5 // pred_check
        _
      $region10: #{resnet18_forward.20} parent=5 // pred_check_branch
        %157 = sbr.rel (%p154) target = $region12
      $region11: #{resnet18_forward.20} parent=5 // pred_region
        %s158 = ssub.s32 %s15, 1
        // Predicated region
        $region13: #{resnet18_forward.20} parent=11 // pred_check
          %p159 = pneg %p62
        $region14: #{resnet18_forward.20} parent=11 // pred_check_branch
          %161 = sbr.rel (%p159) target = $region16
        $region15: #{resnet18_forward.20} parent=11 // pred_region
          %s162 = smul.u32 2, %s27
          %p163 = scmp.lt.s32.totalorder %s25, 0
          %s164 = scalar_select %p163, %s25, 0
          %p165 = scmp.lt.s32.totalorder %s162, 1
          %s166 = scalar_select %p165, %s162, 1
          %s167 = smul.addr %s164, 2
          %s168 = sadd.s32 %s166, %s167
          %s169 = smul.addr %s168, 4
          %s170 = scalar_lea.vmem %s0, %s169
          %s171 = smul.u32 2, %s27
        $region16: #{resnet18_forward.20} parent=11 // pred_fallthru
          _
      $region12: #{resnet18_forward.20} parent=5 // pred_fallthru
        _
      %p172 = scmp.lt.s32.totalorder %s15, 2
      // Predicated region
      $region17: #{resnet18_forward.20} parent=5 // pred_check
        %p173 = pneg %p172
      $region18: #{resnet18_forward.20} parent=5 // pred_check_branch
        %175 = sbr.rel (%p173) target = $region20
      $region19: #{resnet18_forward.20} parent=5 // pred_region
        // Predicated region
        $region21: #{resnet18_forward.20} parent=19 // pred_check
          %p176 = pneg %p84
        $region22: #{resnet18_forward.20} parent=19 // pred_check_branch
          %178 = sbr.rel (%p176) target = $region24
        $region23: #{resnet18_forward.20} parent=19 // pred_region
          %s179 = sand.u32 %s74, 1
          %s180 = scalar_lea.sflag [#allocation3], %s179
          %s181 = sand.u32 %s74, 1
          %s182 = smul.addr %s181, 256
          %s183 = scalar_lea.vmem [#allocation2], %s182
          %s184 = smul.u32 32, %s24
          %s185 = smul.u32 2, %s23
          %187 = vsyncadd %s180, 0
          %s188 = smul.addr %s184, 4
          %s189 = sadd.s32 %s185, %s188
          %s190 = smul.addr %s189, 4
          %s191 = scalar_lea.hbm %s1, %s190
          %s192 = sshll.u32 %s191, 4
          %s193 = int_to_ptr.hbm [resolvable:$true] %s192
          %s194 = sshll.u32 %s183, 4
          %s195 = int_to_ptr.vmem [resolvable:$true] %s194
          %200 = dma.hbm_to_vmem [thread:$0]  %s193, 4096, %s195, %s180, 256, 128, 8
        $region24: #{resnet18_forward.20} parent=19 // pred_fallthru
          _
        // Predicated region
        $region25: #{resnet18_forward.20} parent=19 // pred_check
          %p201 = pneg %p110
        $region26: #{resnet18_forward.20} parent=19 // pred_check_branch
          %203 = sbr.rel (%p201) target = $region28
        $region27: #{resnet18_forward.20} parent=19 // pred_region
          %s204 = sand.u32 %s100, 1
          %s205 = scalar_lea.sflag [#allocation5], %s204
          %s206 = sand.u32 %s100, 1
          %s207 = smul.addr %s206, 2
          %s208 = scalar_lea.vmem [#allocation4], %s207
          %s209 = smul.u32 2, %s23
          %211 = vsyncadd %s205, 0
          %s212 = scalar_lea.hbm %s2, %s209
          %s214 = sshll.u32 %s212, 4
          %s215 = int_to_ptr.hbm [resolvable:$true] %s214
          %s216 = sshll.u32 %s208, 4
          %s217 = int_to_ptr.vmem [resolvable:$true] %s216
          %219 = dma.hbm_to_vmem [thread:$0]  %s215, 32, %s217, %s205
        $region28: #{resnet18_forward.20} parent=19 // pred_fallthru
          _
      $region20: #{resnet18_forward.20} parent=5 // pred_fallthru
        _
      %p220 = scmp.le.s32.totalorder 1, %s15
      %p221 = scmp.lt.s32.totalorder %s15, 3
      %p222 = pnand %p220, %p221
      %p223 = pneg %p222
      // Predicated region
      $region29: #{resnet18_forward.20} parent=5 // pred_check
        _
      $region30: #{resnet18_forward.20} parent=5 // pred_check_branch
        %225 = sbr.rel (%p222) target = $region32
      $region31: #{resnet18_forward.20} parent=5 // pred_region
        %s226 = ssub.s32 %s15, 1
        %s227 = sand.u32 %s77, 1
        %s228 = scalar_lea.sflag [#allocation3], %s227
        %s229 = sand.u32 %s77, 1
        %s230 = smul.addr %s229, 256
        %s231 = scalar_lea.vmem [#allocation2], %s230
        // Predicated region
        $region33: #{resnet18_forward.20} parent=31 // pred_check
          %p232 = pneg %p90
        $region34: #{resnet18_forward.20} parent=31 // pred_check_branch
          %234 = sbr.rel (%p232) target = $region36
        $region35: #{resnet18_forward.20} parent=31 // pred_region
          %236 = dma.done %s228, 4096
        $region36: #{resnet18_forward.20} parent=31 // pred_fallthru
          _
        %s237 = sand.u32 %s103, 1
        %s238 = scalar_lea.sflag [#allocation5], %s237
        %s239 = sand.u32 %s103, 1
        %s240 = smul.addr %s239, 2
        %s241 = scalar_lea.vmem [#allocation4], %s240
        // Predicated region
        $region37: #{resnet18_forward.20} parent=31 // pred_check
          %p242 = pneg %p116
        $region38: #{resnet18_forward.20} parent=31 // pred_check_branch
          %244 = sbr.rel (%p242) target = $region40
        $region39: #{resnet18_forward.20} parent=31 // pred_region
          %246 = dma.done %s238, 32
        $region40: #{resnet18_forward.20} parent=31 // pred_fallthru
          _
        %s247 = smul.u32 2, %s27
        %p248 = scmp.lt.s32.totalorder %s25, 0
        %s249 = scalar_select %p248, %s25, 0
        %p250 = scmp.lt.s32.totalorder %s247, 1
        %s251 = scalar_select %p250, %s247, 1
        %s252 = smul.addr %s249, 2
        %s253 = sadd.s32 %s251, %s252
        %s254 = smul.addr %s253, 4
        %s255 = scalar_lea.vmem %s0, %s254
        %p256 = pneg %p62
        %p257 = pneg %p59
        %s258 = sand.u32 %s77, 1
        %s259 = scalar_lea.sflag [#allocation3], %s258
        %s260 = sand.u32 %s77, 1
        %s261 = smul.addr %s260, 256
        %s262 = scalar_lea.vmem [#allocation2], %s261
        %p263 = pneg %p90
        %p264 = pneg %p87
        %s265 = sand.u32 %s103, 1
        %s266 = scalar_lea.sflag [#allocation5], %s265
        %s267 = sand.u32 %s103, 1
        %s268 = smul.addr %s267, 2
        %s269 = scalar_lea.vmem [#allocation4], %s268
        %p270 = pneg %p116
        %p271 = pneg %p113
        %p272 = pneg %p144
        %p273 = pneg %p141
        %s274 = smul.u32 2, %s26
        %p275 = scmp.lt.s32.totalorder %s25, 0
        %s276 = scalar_select %p275, %s25, 0
        %p277 = scmp.lt.s32.totalorder %s274, 3
        %s278 = scalar_select %p277, %s274, 3
        %s279 = smul.addr %s276, 4
        %s280 = sadd.s32 %s278, %s279
        %s281 = smul.addr %s280, 8
        %s282 = scalar_lea.vmem %s3, %s281
        %s283 = smul.u32 2, %s27
        %p284 = scmp.lt.s32.totalorder %s25, 0
        %s285 = scalar_select %p284, %s25, 0
        %p286 = scmp.lt.s32.totalorder %s283, 1
        %s287 = scalar_select %p286, %s283, 1
        %s288 = smul.addr %s285, 2
        %s289 = sadd.s32 %s287, %s288
        %s290 = smul.addr %s289, 4
        %s291 = scalar_lea.vmem %s0, %s290
        %s292 = smul.u32 2, %s27
        %s293 = smul.u32 32, %s27
        %s294 = smul.u32 2, %s26
        %s295 = smul.u32 2, %s26
        %s296 = smul.u32 2, %s26
        %p297 = scmp.lt.s32.totalorder %s25, 0
        %s298 = scalar_select %p297, %s25, 0
        %p299 = scmp.lt.s32.totalorder %s296, 3
        %s300 = scalar_select %p299, %s296, 3
        %s301 = smul.addr %s298, 4
        %s302 = sadd.s32 %s300, %s301
        %s303 = smul.addr %s302, 8
        %s304 = scalar_lea.vmem %s3, %s303
        %s305 = smul.u32 2, %s26
        %p306 = scmp.eq.s32.totalorder %s27, 0
        // Predicated region
        $region41: #{resnet18_forward.20} parent=31 // pred_check
          %p307 = pneg %p306
        $region42: #{resnet18_forward.20} parent=31 // pred_check_branch
          %309 = sbr.rel (%p307) target = $region44
        $region43: #{resnet18_forward.20} parent=31 // pred_region
          %310 = vst [vmem:[%s304] sm:$0xff] 0.0
          %311 = vst [vmem:[%s304 + $0x8] sm:$0xff] 0.0
        $region44: #{resnet18_forward.20} parent=31 // pred_fallthru
          _
        %v312 = vld [vmem:[%s304] sm:$0xff]
        %v313 = vld [vmem:[%s304 + $0x8] sm:$0xff]
        %v314 = vld [vmem:[%s291] sm:$0xff]
        %v315 = vld [vmem:[%s231] sm:$0xff]
        %v316 = vld [vmem:[%s231 + $0x8] sm:$0xff]
        %v317 = vld [vmem:[%s231 + $0x10] sm:$0xff]
        %v318 = vld [vmem:[%s231 + $0x18] sm:$0xff]
        %v319 = vld [vmem:[%s231 + $0x20] sm:$0xff]
        %v320 = vld [vmem:[%s231 + $0x28] sm:$0xff]
        %v321 = vld [vmem:[%s231 + $0x30] sm:$0xff]
        %v322 = vld [vmem:[%s231 + $0x38] sm:$0xff]
        %v323 = vld [vmem:[%s231 + $0x40] sm:$0xff]
        %v324 = vld [vmem:[%s231 + $0x48] sm:$0xff]
        %v325 = vld [vmem:[%s231 + $0x50] sm:$0xff]
        %v326 = vld [vmem:[%s231 + $0x58] sm:$0xff]
        %v327 = vld [vmem:[%s231 + $0x60] sm:$0xff]
        %v328 = vld [vmem:[%s231 + $0x68] sm:$0xff]
        %v329 = vld [vmem:[%s231 + $0x70] sm:$0xff]
        %v330 = vld [vmem:[%s231 + $0x78] sm:$0xff]
        %v331 = vld [vmem:[%s231 + $0x80] sm:$0xff]
        %v332 = vld [vmem:[%s231 + $0x88] sm:$0xff]
        %v333 = vld [vmem:[%s231 + $0x90] sm:$0xff]
        %v334 = vld [vmem:[%s231 + $0x98] sm:$0xff]
        %v335 = vld [vmem:[%s231 + $0xa0] sm:$0xff]
        %v336 = vld [vmem:[%s231 + $0xa8] sm:$0xff]
        %v337 = vld [vmem:[%s231 + $0xb0] sm:$0xff]
        %v338 = vld [vmem:[%s231 + $0xb8] sm:$0xff]
        %v339 = vld [vmem:[%s231 + $0xc0] sm:$0xff]
        %v340 = vld [vmem:[%s231 + $0xc8] sm:$0xff]
        %v341 = vld [vmem:[%s231 + $0xd0] sm:$0xff]
        %v342 = vld [vmem:[%s231 + $0xd8] sm:$0xff]
        %v343 = vld [vmem:[%s231 + $0xe0] sm:$0xff]
        %v344 = vld [vmem:[%s231 + $0xe8] sm:$0xff]
        %v345 = vld [vmem:[%s231 + $0xf0] sm:$0xff]
        %v346 = vld [vmem:[%s231 + $0xf8] sm:$0xff]
        %v348 = vunpack.c.l.b16 %v314
        %v349 = vunpack.c.h.b16 %v314
        %v350 = vpack.c.b16 %v348, %v348
        %v351 = vpack.c.b16 %v349, %v349
        %v386 = vunpack.c.l.b16 %v315
        %v387 = vunpack.c.h.b16 %v315
        %v388 = vunpack.c.l.b16 %v316
        %v389 = vunpack.c.h.b16 %v316
        %v390 = vunpack.c.l.b16 %v317
        %v391 = vunpack.c.h.b16 %v317
        %v392 = vunpack.c.l.b16 %v318
        %v393 = vunpack.c.h.b16 %v318
        %v394 = vunpack.c.l.b16 %v319
        %v395 = vunpack.c.h.b16 %v319
        %v396 = vunpack.c.l.b16 %v320
        %v397 = vunpack.c.h.b16 %v320
        %v398 = vunpack.c.l.b16 %v321
        %v399 = vunpack.c.h.b16 %v321
        %v400 = vunpack.c.l.b16 %v322
        %v401 = vunpack.c.h.b16 %v322
        %v402 = vunpack.c.l.b16 %v323
        %v403 = vunpack.c.h.b16 %v323
        %v404 = vunpack.c.l.b16 %v324
        %v405 = vunpack.c.h.b16 %v324
        %v406 = vunpack.c.l.b16 %v325
        %v407 = vunpack.c.h.b16 %v325
        %v408 = vunpack.c.l.b16 %v326
        %v409 = vunpack.c.h.b16 %v326
        %v410 = vunpack.c.l.b16 %v327
        %v411 = vunpack.c.h.b16 %v327
        %v412 = vunpack.c.l.b16 %v328
        %v413 = vunpack.c.h.b16 %v328
        %v414 = vunpack.c.l.b16 %v329
        %v415 = vunpack.c.h.b16 %v329
        %v416 = vunpack.c.l.b16 %v330
        %v417 = vunpack.c.h.b16 %v330
        %v418 = vunpack.c.l.b16 %v331
        %v419 = vunpack.c.h.b16 %v331
        %v420 = vunpack.c.l.b16 %v332
        %v421 = vunpack.c.h.b16 %v332
        %v422 = vunpack.c.l.b16 %v333
        %v423 = vunpack.c.h.b16 %v333
        %v424 = vunpack.c.l.b16 %v334
        %v425 = vunpack.c.h.b16 %v334
        %v426 = vunpack.c.l.b16 %v335
        %v427 = vunpack.c.h.b16 %v335
        %v428 = vunpack.c.l.b16 %v336
        %v429 = vunpack.c.h.b16 %v336
        %v430 = vunpack.c.l.b16 %v337
        %v431 = vunpack.c.h.b16 %v337
        %v432 = vunpack.c.l.b16 %v338
        %v433 = vunpack.c.h.b16 %v338
        %v434 = vunpack.c.l.b16 %v339
        %v435 = vunpack.c.h.b16 %v339
        %v436 = vunpack.c.l.b16 %v340
        %v437 = vunpack.c.h.b16 %v340
        %v438 = vunpack.c.l.b16 %v341
        %v439 = vunpack.c.h.b16 %v341
        %v440 = vunpack.c.l.b16 %v342
        %v441 = vunpack.c.h.b16 %v342
        %v442 = vunpack.c.l.b16 %v343
        %v443 = vunpack.c.h.b16 %v343
        %v444 = vunpack.c.l.b16 %v344
        %v445 = vunpack.c.h.b16 %v344
        %v446 = vunpack.c.l.b16 %v345
        %v447 = vunpack.c.h.b16 %v345
        %v448 = vunpack.c.l.b16 %v346
        %v449 = vunpack.c.h.b16 %v346
        %v450 = vpack.c.b16 %v388, %v386
        %v451 = vpack.c.b16 %v389, %v387
        %v452 = vpack.c.b16 %v392, %v390
        %v453 = vpack.c.b16 %v393, %v391
        %v454 = vpack.c.b16 %v396, %v394
        %v455 = vpack.c.b16 %v397, %v395
        %v456 = vpack.c.b16 %v400, %v398
        %v457 = vpack.c.b16 %v401, %v399
        %v458 = vpack.c.b16 %v404, %v402
        %v459 = vpack.c.b16 %v405, %v403
        %v460 = vpack.c.b16 %v408, %v406
        %v461 = vpack.c.b16 %v409, %v407
        %v462 = vpack.c.b16 %v412, %v410
        %v463 = vpack.c.b16 %v413, %v411
        %v464 = vpack.c.b16 %v416, %v414
        %v465 = vpack.c.b16 %v417, %v415
        %v466 = vpack.c.b16 %v420, %v418
        %v467 = vpack.c.b16 %v421, %v419
        %v468 = vpack.c.b16 %v424, %v422
        %v469 = vpack.c.b16 %v425, %v423
        %v470 = vpack.c.b16 %v428, %v426
        %v471 = vpack.c.b16 %v429, %v427
        %v472 = vpack.c.b16 %v432, %v430
        %v473 = vpack.c.b16 %v433, %v431
        %v474 = vpack.c.b16 %v436, %v434
        %v475 = vpack.c.b16 %v437, %v435
        %v476 = vpack.c.b16 %v440, %v438
        %v477 = vpack.c.b16 %v441, %v439
        %v478 = vpack.c.b16 %v444, %v442
        %v479 = vpack.c.b16 %v445, %v443
        %v480 = vpack.c.b16 %v448, %v446
        %v481 = vpack.c.b16 %v449, %v447
        %514 = vmatpush.bf16.msra.mxu0 %v464
        %515 = vmatpush.bf16.msra.mxu0 %v462
        %516 = vmatpush.bf16.msra.mxu0 %v460
        %517 = vmatpush.bf16.msra.mxu0 %v458
        %518 = vmatpush.bf16.msra.mxu0 %v456
        %519 = vmatpush.bf16.msra.mxu0 %v454
        %520 = vmatpush.bf16.msra.mxu0 %v452
        %521 = vmatpush.bf16.msra.mxu0 %v450
        %522 = vmatmul.bf16.gmra.mxu0 %v350
        %v523 = vpop.f32.mrf.mxu0
        %v524 = vadd.f32 0.0, %v523
        %v525 = vpop.f32.mrf.mxu0
        %526 = vdwg.mxu0
        %527 = vmatpush.bf16.msra.mxu0 %v480
        %528 = vmatpush.bf16.msra.mxu0 %v478
        %529 = vmatpush.bf16.msra.mxu0 %v476
        %530 = vmatpush.bf16.msra.mxu0 %v474
        %531 = vmatpush.bf16.msra.mxu0 %v472
        %532 = vmatpush.bf16.msra.mxu0 %v470
        %533 = vmatpush.bf16.msra.mxu0 %v468
        %534 = vmatpush.bf16.msra.mxu0 %v466
        %535 = vmatmul.bf16.gmra.mxu0 %v351
        %v536 = vpop.f32.mrf.mxu0
        %v537 = vadd.f32 %v524, %v536
        %v538 = vpop.f32.mrf.mxu0
        %539 = vdwg.mxu0
        %540 = vmatpush.bf16.msra.mxu0 %v465
        %541 = vmatpush.bf16.msra.mxu0 %v463
        %542 = vmatpush.bf16.msra.mxu0 %v461
        %543 = vmatpush.bf16.msra.mxu0 %v459
        %544 = vmatpush.bf16.msra.mxu0 %v457
        %545 = vmatpush.bf16.msra.mxu0 %v455
        %546 = vmatpush.bf16.msra.mxu0 %v453
        %547 = vmatpush.bf16.msra.mxu0 %v451
        %548 = vmatmul.bf16.gmra.mxu0 %v350
        %v549 = vpop.f32.mrf.mxu0
        %v550 = vadd.f32 0.0, %v549
        %v551 = vpop.f32.mrf.mxu0
        %552 = vdwg.mxu0
        %553 = vmatpush.bf16.msra.mxu0 %v481
        %554 = vmatpush.bf16.msra.mxu0 %v479
        %555 = vmatpush.bf16.msra.mxu0 %v477
        %556 = vmatpush.bf16.msra.mxu0 %v475
        %557 = vmatpush.bf16.msra.mxu0 %v473
        %558 = vmatpush.bf16.msra.mxu0 %v471
        %559 = vmatpush.bf16.msra.mxu0 %v469
        %560 = vmatpush.bf16.msra.mxu0 %v467
        %561 = vmatmul.bf16.gmra.mxu0 %v351
        %v562 = vpop.f32.mrf.mxu0
        %v563 = vadd.f32 %v550, %v562
        %v564 = vpop.f32.mrf.mxu0
        %565 = vdwg.mxu0
        %v566 = vadd.f32 %v312, %v537
        %v567 = vadd.f32 %v313, %v563
        %568 = vst [vmem:[%s304] sm:$0xff] %v566
        %569 = vst [vmem:[%s304 + $0x8] sm:$0xff] %v567
        // Predicated region
        $region45: #{resnet18_forward.20} parent=31 // pred_check
          %p570 = pneg %p306
        $region46: #{resnet18_forward.20} parent=31 // pred_check_branch
          %572 = sbr.rel (%p570) target = $region48
        $region47: #{resnet18_forward.20} parent=31 // pred_region
          %v573 = vld [vmem:[%s304] sm:$0xff]
          %v574 = vld [vmem:[%s304 + $0x8] sm:$0xff]
          %v575 = vld [vmem:[%s241] sm:$0x3]
          %v577 = vperm.slane %v575, 0
          %v578 = vperm.slane %v575, 1
          %v581 = vadd.f32 %v573, %v577
          %v582 = vadd.f32 %v574, %v578
          %583 = vst [vmem:[%s304] sm:$0xff] %v581
          %584 = vst [vmem:[%s304 + $0x8] sm:$0xff] %v582
        $region48: #{resnet18_forward.20} parent=31 // pred_fallthru
          _
        %s585 = smul.u32 2, %s26
        %p586 = scmp.lt.s32.totalorder %s25, 0
        %s587 = scalar_select %p586, %s25, 0
        %p588 = scmp.lt.s32.totalorder %s585, 3
        %s589 = scalar_select %p588, %s585, 3
        %s590 = smul.addr %s587, 4
        %s591 = sadd.s32 %s589, %s590
        %s592 = smul.addr %s591, 8
        %s593 = scalar_lea.vmem %s3, %s592
        // Predicated region
        $region49: #{resnet18_forward.20} parent=31 // pred_check
          %p594 = pneg %p141
        $region50: #{resnet18_forward.20} parent=31 // pred_check_branch
          %596 = sbr.rel (%p594) target = $region52
        $region51: #{resnet18_forward.20} parent=31 // pred_region
          %s597 = smul.u32 2, %s26
        $region52: #{resnet18_forward.20} parent=31 // pred_fallthru
          _
      $region32: #{resnet18_forward.20} parent=5 // pred_fallthru
        _
      %p598 = scmp.le.s32.totalorder 2, %s15
      // Predicated region
      $region53: #{resnet18_forward.20} parent=5 // pred_check
        %p599 = pneg %p598
      $region54: #{resnet18_forward.20} parent=5 // pred_check_branch
        %601 = sbr.rel (%p599) target = $region56
      $region55: #{resnet18_forward.20} parent=5 // pred_region
        %s602 = ssub.s32 %s15, 2
        // Predicated region
        $region57: #{resnet18_forward.20} parent=55 // pred_check
          %p603 = pneg %p147
        $region58: #{resnet18_forward.20} parent=55 // pred_check_branch
          %605 = sbr.rel (%p603) target = $region60
        $region59: #{resnet18_forward.20} parent=55 // pred_region
          %s606 = smul.u32 2, %s29
          %p607 = scmp.lt.s32.totalorder %s28, 0
          %s608 = scalar_select %p607, %s28, 0
          %p609 = scmp.lt.s32.totalorder %s606, 3
          %s610 = scalar_select %p609, %s606, 3
          %s611 = smul.addr %s608, 4
          %s612 = sadd.s32 %s610, %s611
          %s613 = smul.addr %s612, 8
          %s614 = scalar_lea.vmem %s3, %s613
        $region60: #{resnet18_forward.20} parent=55 // pred_fallthru
          _
      $region56: #{resnet18_forward.20} parent=5 // pred_fallthru
        _
    $region6: #{resnet18_forward.20} parent=1 // loop_footer
      %s19 = sadd.s32 1, %s15
    $region7: #{resnet18_forward.20} parent=1 // loop_footer_branch
      %14 = sbr.rel target = $region3
    $region8: #{resnet18_forward.20} parent=1 // loop_exit
      _
    %615 = vsyncpa [#allocation3], 1
    %s616 = scalar_lea.sflag [#allocation3], 1
    %617 = vsyncpa %s616, 1
    %618 = vsyncpa [#allocation5], 1
    %s619 = scalar_lea.sflag [#allocation5], 1
    %620 = vsyncpa %s619, 1

// kernel: resnet18_forward.21
$region0: #{resnet18_forward.21}
  #allocation0 [shape = 'u32[]', space=smem, size = 0x4, offset = 0x4, fixed_abs, tag = 'smem constant byte address 0x4 - core index']
  #allocation1 [shape = 'u32[72,128]{1,0:T(1,128)}', space=vmem, size = 0x9000, scoped, tag = 'internal scratch']
  %s0 = inlined_call_operand.vmem [shape: bf16[8,2304], index: 0, kind: input, shape index: {}]
  %s1 = inlined_call_operand.vmem [shape: bf16[2304,512], index: 1, kind: input, shape index: {}]
  %s2 = inlined_call_operand.hbm [shape: f32[1,512], index: 2, kind: input, shape index: {}]
  %s3 = inlined_call_operand.vmem [shape: f32[8,512], index: 3, kind: output, shape index: {}]
  %s4 = sld [smem:[#allocation0]]
  $region95: #{resnet18_forward.21} parent=0
    _
  %s6 = ssub.s32 1, %s4
  %s7 = scalar_select 0, %s6, %s4
  $region1: #{resnet18_forward.21} parent=0
    #allocation2 [shape = 'u8[393216]{0}', space=vmem, size = 0x60000, scoped, tag = 'input window, operand 1']
    #allocation3 [shape = 'u8[2048]{0}', space=vmem, size = 0x800, scoped, tag = 'input window, operand 2']
    #allocation4 [shape = 's32[2]{0}', space=sflag, size = 0x8, scoped, tag = 'scoped memory for resnet18_forward.21']
    %8 = vsyncpa [#allocation4], 0
    %s9 = scalar_lea.sflag [#allocation4], 1
    %10 = vsyncpa %s9, 0
    loop: start=0, step=1, limit=14
    $region2: #{resnet18_forward.21} parent=1 // loop_pre_header
      _
    $region3: #{resnet18_forward.21} parent=1 // loop_header
      %s12 = sphi 0, %s16
      %p13 = scmp.ge.s32.totalorder %s12, 14
      %s19 = sphi 0, %s38
      %s20 = sphi 0, %s34
      %s21 = sphi 0, %s30
      %s22 = sphi 0, %s19
      %s23 = sphi 0, %s20
      %s24 = sphi 0, %s21
      %s25 = sphi 0, %s22
      %s26 = sphi 0, %s23
      %s27 = sphi 0, %s24
      %s43 = sphi 0, %s45
      %s46 = sphi 0, %s43
      %s47 = sphi 0, %s46
      %s63 = sphi 0, %s47
      %s71 = sphi 0, %s73
      %s74 = sphi 0, %s71
      %s75 = sphi 0, %s74
      %s91 = sphi 0, %s75
      %s97 = sphi 0, %s99
      %s100 = sphi 0, %s97
      %s101 = sphi 0, %s100
      %s117 = sphi 0, %s101
      %s125 = sphi 0, %s127
      %s128 = sphi 0, %s125
      %s129 = sphi 0, %s128
      %s145 = sphi 0, %s129
    $region4: #{resnet18_forward.21} parent=1 // loop_header_branch
      %15 = sbr.rel (%p13) target = $region8
    $region5: #{resnet18_forward.21} parent=1 // loop_body
      %s17 = ssub.s32 %s12, 1
      %s18 = ssub.s32 %s12, 2
      %s28 = sadd.s32 1, %s21
      %p29 = scmp.ge.s32.totalorder %s28, 6
      %s30 = scalar_select %p29, 0, %s28
      %s31 = sadd.s32 1, %s20
      %s32 = scalar_select %p29, %s31, %s20
      %p33 = scmp.ge.s32.totalorder %s32, 2
      %s34 = scalar_select %p33, 0, %s32
      %s35 = sadd.s32 1, %s19
      %s36 = scalar_select %p33, %s35, %s19
      %p37 = scmp.ge.s32.totalorder %s36, 1
      %s38 = scalar_select %p37, 0, %s36
      %s39 = ssub.s32 %s19, %s38
      %s40 = ssub.s32 %s21, %s30
      %s41 = sor.u32 %s39, %s40
      %p42 = scmp.eq.s32.totalorder %s41, 0
      %s44 = sadd.s32 %s43, 1
      %s45 = scalar_select %p42, %s43, %s44
      %p48 = pneg %p42
      %p49 = scmp.eq.s32.totalorder %s12, 11
      %p50 = por %p48, %p49
      %p51 = scmp.ne.s32.totalorder %s43, %s46
      %p52 = scmp.eq.s32.totalorder %s12, 0
      %p53 = por %p51, %p52
      %p54 = scmp.ne.s32.totalorder %s43, %s46
      %p55 = scmp.eq.s32.totalorder %s17, 11
      %p56 = por %p54, %p55
      %p57 = scmp.ne.s32.totalorder %s46, %s47
      %p58 = scmp.eq.s32.totalorder %s17, 0
      %p59 = por %p57, %p58
      %p60 = scmp.ne.s32.totalorder %s46, %s47
      %p61 = scmp.eq.s32.totalorder %s18, 11
      %p62 = por %p60, %p61
      %p64 = scmp.ne.s32.totalorder %s47, %s63
      %p65 = scmp.eq.s32.totalorder %s18, 0
      %p66 = por %p64, %p65
      %s67 = ssub.s32 %s21, %s30
      %s68 = ssub.s32 %s20, %s34
      %s69 = sor.u32 %s67, %s68
      %p70 = scmp.eq.s32.totalorder %s69, 0
      %s72 = sadd.s32 %s71, 1
      %s73 = scalar_select %p70, %s71, %s72
      %p76 = pneg %p70
      %p77 = scmp.eq.s32.totalorder %s12, 11
      %p78 = por %p76, %p77
      %p79 = scmp.ne.s32.totalorder %s71, %s74
      %p80 = scmp.eq.s32.totalorder %s12, 0
      %p81 = por %p79, %p80
      %p82 = scmp.ne.s32.totalorder %s71, %s74
      %p83 = scmp.eq.s32.totalorder %s17, 11
      %p84 = por %p82, %p83
      %p85 = scmp.ne.s32.totalorder %s74, %s75
      %p86 = scmp.eq.s32.totalorder %s17, 0
      %p87 = por %p85, %p86
      %p88 = scmp.ne.s32.totalorder %s74, %s75
      %p89 = scmp.eq.s32.totalorder %s18, 11
      %p90 = por %p88, %p89
      %p92 = scmp.ne.s32.totalorder %s75, %s91
      %p93 = scmp.eq.s32.totalorder %s18, 0
      %p94 = por %p92, %p93
      %s95 = ssub.s32 %s20, %s34
      %p96 = scmp.eq.s32.totalorder %s95, 0
      %s98 = sadd.s32 %s97, 1
      %s99 = scalar_select %p96, %s97, %s98
      %p102 = pneg %p96
      %p103 = scmp.eq.s32.totalorder %s12, 11
      %p104 = por %p102, %p103
      %p105 = scmp.ne.s32.totalorder %s97, %s100
      %p106 = scmp.eq.s32.totalorder %s12, 0
      %p107 = por %p105, %p106
      %p108 = scmp.ne.s32.totalorder %s97, %s100
      %p109 = scmp.eq.s32.totalorder %s17, 11
      %p110 = por %p108, %p109
      %p111 = scmp.ne.s32.totalorder %s100, %s101
      %p112 = scmp.eq.s32.totalorder %s17, 0
      %p113 = por %p111, %p112
      %p114 = scmp.ne.s32.totalorder %s100, %s101
      %p115 = scmp.eq.s32.totalorder %s18, 11
      %p116 = por %p114, %p115
      %p118 = scmp.ne.s32.totalorder %s101, %s117
      %p119 = scmp.eq.s32.totalorder %s18, 0
      %p120 = por %p118, %p119
      %s121 = ssub.s32 %s19, %s38
      %s122 = ssub.s32 %s20, %s34
      %s123 = sor.u32 %s121, %s122
      %p124 = scmp.eq.s32.totalorder %s123, 0
      %s126 = sadd.s32 %s125, 1
      %s127 = scalar_select %p124, %s125, %s126
      %p130 = pneg %p124
      %p131 = scmp.eq.s32.totalorder %s12, 11
      %p132 = por %p130, %p131
      %p133 = scmp.ne.s32.totalorder %s125, %s128
      %p134 = scmp.eq.s32.totalorder %s12, 0
      %p135 = por %p133, %p134
      %p136 = scmp.ne.s32.totalorder %s125, %s128
      %p137 = scmp.eq.s32.totalorder %s17, 11
      %p138 = por %p136, %p137
      %p139 = scmp.ne.s32.totalorder %s128, %s129
      %p140 = scmp.eq.s32.totalorder %s17, 0
      %p141 = por %p139, %p140
      %p142 = scmp.ne.s32.totalorder %s128, %s129
      %p143 = scmp.eq.s32.totalorder %s18, 11
      %p144 = por %p142, %p143
      %p146 = scmp.ne.s32.totalorder %s129, %s145
      %p147 = scmp.eq.s32.totalorder %s18, 0
      %p148 = por %p146, %p147
      %p149 = scmp.le.s32.totalorder 1, %s12
      %p150 = scmp.lt.s32.totalorder %s12, 13
      %p151 = pnand %p149, %p150
      %p152 = pneg %p151
      // Predicated region
      $region9: #{resnet18_forward.21} parent=5 // pred_check
        _
      $region10: #{resnet18_forward.21} parent=5 // pred_check_branch
        %154 = sbr.rel (%p151) target = $region12
      $region11: #{resnet18_forward.21} parent=5 // pred_region
        %s155 = ssub.s32 %s12, 1
      $region12: #{resnet18_forward.21} parent=5 // pred_fallthru
        _
      %p156 = scmp.lt.s32.totalorder %s12, 12
      // Predicated region
      $region13: #{resnet18_forward.21} parent=5 // pred_check
        %p157 = pneg %p156
      $region14: #{resnet18_forward.21} parent=5 // pred_check_branch
        %159 = sbr.rel (%p157) target = $region16
      $region15: #{resnet18_forward.21} parent=5 // pred_region
        // Predicated region
        $region17: #{resnet18_forward.21} parent=15 // pred_check
          %p160 = pneg %p53
        $region18: #{resnet18_forward.21} parent=15 // pred_check_branch
          %162 = sbr.rel (%p160) target = $region20
        $region19: #{resnet18_forward.21} parent=15 // pred_region
          %s163 = smul.u32 3, %s21
          %p164 = scmp.lt.s32.totalorder %s19, 0
          %s165 = scalar_select %p164, %s19, 0
          %p166 = scmp.lt.s32.totalorder %s163, 17
          %s167 = scalar_select %p166, %s163, 17
          %s168 = smul.addr %s165, 18
          %s169 = sadd.s32 %s167, %s168
          %s170 = smul.addr %s169, 4
          %s171 = scalar_lea.vmem %s0, %s170
          %s172 = smul.u32 3, %s21
        $region20: #{resnet18_forward.21} parent=15 // pred_fallthru
          _
        // Predicated region
        $region21: #{resnet18_forward.21} parent=15 // pred_check
          %p173 = pneg %p81
        $region22: #{resnet18_forward.21} parent=15 // pred_check_branch
          %175 = sbr.rel (%p173) target = $region24
        $region23: #{resnet18_forward.21} parent=15 // pred_region
          %s176 = sand.u32 %s71, 1
          %s177 = sand.u32 %s71, 1
          %s178 = smul.addr %s177, 384
          %s179 = scalar_lea.vmem [#allocation2], %s178
          %s180 = smul.u32 48, %s21
          %s181 = smul.u32 2, %s20
          %s182 = smul.addr %s180, 4
          %s183 = sadd.s32 %s181, %s182
          %s184 = smul.addr %s183, 4
          %s185 = scalar_lea.vmem %s1, %s184
          // Predicated region
          $region25: #{resnet18_forward.21} parent=23 // pred_check
            _
          $region26: #{resnet18_forward.21} parent=23 // pred_check_branch
            %187 = sbr.rel (0) target = $region28
          $region27: #{resnet18_forward.21} parent=23 // pred_region
            // Predicated region
            $region29: #{resnet18_forward.21} parent=27 // pred_check
              _
            $region30: #{resnet18_forward.21} parent=27 // pred_check_branch
              %189 = sbr.rel (0) target = $region32
            $region31: #{resnet18_forward.21} parent=27 // pred_region
              // Predicated region
              $region44: #{resnet18_forward.21} parent=31 // pred_check
                _
              $region45: #{resnet18_forward.21} parent=31 // pred_check_branch
                %299 = sbr.rel (0) target = $region47
              $region46: #{resnet18_forward.21} parent=31 // pred_region
                loop: start=0, step=1, limit=1
                $region48: #{resnet18_forward.21} parent=46 // loop_pre_header
                  _
                $region49: #{resnet18_forward.21} parent=46 // loop_header
                  %s301 = sphi 0, %s305
                  %p302 = scmp.ge.s32.totalorder %s301, 1
                  %s306 = sphi %s185, %s185
                  %s307 = sphi %s179, %s179
                $region50: #{resnet18_forward.21} parent=46 // loop_header_branch
                  %304 = sbr.rel (%p302) target = $region54
                $region51: #{resnet18_forward.21} parent=46 // loop_body
                  %v308 = vld [vmem:[%s306] sm:$0xff]
                  %309 = vst [vmem:[%s307] sm:$0xff] %v308
                  %v310 = vld [vmem:[%s306 + $0x10] sm:$0xff]
                  %311 = vst [vmem:[%s307 + $0x8] sm:$0xff] %v310
                  %v312 = vld [vmem:[%s306 + $0x20] sm:$0xff]
                  %313 = vst [vmem:[%s307 + $0x10] sm:$0xff] %v312
                  %v314 = vld [vmem:[%s306 + $0x30] sm:$0xff]
                  %315 = vst [vmem:[%s307 + $0x18] sm:$0xff] %v314
                  %v316 = vld [vmem:[%s306 + $0x40] sm:$0xff]
                  %317 = vst [vmem:[%s307 + $0x20] sm:$0xff] %v316
                  %v318 = vld [vmem:[%s306 + $0x50] sm:$0xff]
                  %319 = vst [vmem:[%s307 + $0x28] sm:$0xff] %v318
                  %v320 = vld [vmem:[%s306 + $0x60] sm:$0xff]
                  %321 = vst [vmem:[%s307 + $0x30] sm:$0xff] %v320
                  %v322 = vld [vmem:[%s306 + $0x70] sm:$0xff]
                  %323 = vst [vmem:[%s307 + $0x38] sm:$0xff] %v322
                  %v324 = vld [vmem:[%s306 + $0x80] sm:$0xff]
                  %325 = vst [vmem:[%s307 + $0x40] sm:$0xff] %v324
                  %v326 = vld [vmem:[%s306 + $0x90] sm:$0xff]
                  %327 = vst [vmem:[%s307 + $0x48] sm:$0xff] %v326
                  %v328 = vld [vmem:[%s306 + $0xa0] sm:$0xff]
                  %329 = vst [vmem:[%s307 + $0x50] sm:$0xff] %v328
                  %v330 = vld [vmem:[%s306 + $0xb0] sm:$0xff]
                  %331 = vst [vmem:[%s307 + $0x58] sm:$0xff] %v330
                  %v332 = vld [vmem:[%s306 + $0xc0] sm:$0xff]
                  %333 = vst [vmem:[%s307 + $0x60] sm:$0xff] %v332
                  %v334 = vld [vmem:[%s306 + $0xd0] sm:$0xff]
                  %335 = vst [vmem:[%s307 + $0x68] sm:$0xff] %v334
                  %v336 = vld [vmem:[%s306 + $0xe0] sm:$0xff]
                  %337 = vst [vmem:[%s307 + $0x70] sm:$0xff] %v336
                  %v338 = vld [vmem:[%s306 + $0xf0] sm:$0xff]
                  %339 = vst [vmem:[%s307 + $0x78] sm:$0xff] %v338
                  %v340 = vld [vmem:[%s306 + $0x100] sm:$0xff]
                  %341 = vst [vmem:[%s307 + $0x80] sm:$0xff] %v340
                  %v342 = vld [vmem:[%s306 + $0x110] sm:$0xff]
                  %343 = vst [vmem:[%s307 + $0x88] sm:$0xff] %v342
                  %v344 = vld [vmem:[%s306 + $0x120] sm:$0xff]
                  %345 = vst [vmem:[%s307 + $0x90] sm:$0xff] %v344
                  %v346 = vld [vmem:[%s306 + $0x130] sm:$0xff]
                  %347 = vst [vmem:[%s307 + $0x98] sm:$0xff] %v346
                  %v348 = vld [vmem:[%s306 + $0x140] sm:$0xff]
                  %349 = vst [vmem:[%s307 + $0xa0] sm:$0xff] %v348
                  %v350 = vld [vmem:[%s306 + $0x150] sm:$0xff]
                  %351 = vst [vmem:[%s307 + $0xa8] sm:$0xff] %v350
                  %v352 = vld [vmem:[%s306 + $0x160] sm:$0xff]
                  %353 = vst [vmem:[%s307 + $0xb0] sm:$0xff] %v352
                  %v354 = vld [vmem:[%s306 + $0x170] sm:$0xff]
                  %355 = vst [vmem:[%s307 + $0xb8] sm:$0xff] %v354
                  %v356 = vld [vmem:[%s306 + $0x180] sm:$0xff]
                  %357 = vst [vmem:[%s307 + $0xc0] sm:$0xff] %v356
                  %v358 = vld [vmem:[%s306 + $0x190] sm:$0xff]
                  %359 = vst [vmem:[%s307 + $0xc8] sm:$0xff] %v358
                  %v360 = vld [vmem:[%s306 + $0x1a0] sm:$0xff]
                  %361 = vst [vmem:[%s307 + $0xd0] sm:$0xff] %v360
                  %v362 = vld [vmem:[%s306 + $0x1b0] sm:$0xff]
                  %363 = vst [vmem:[%s307 + $0xd8] sm:$0xff] %v362
                  %v364 = vld [vmem:[%s306 + $0x1c0] sm:$0xff]
                  %365 = vst [vmem:[%s307 + $0xe0] sm:$0xff] %v364
                  %v366 = vld [vmem:[%s306 + $0x1d0] sm:$0xff]
                  %367 = vst [vmem:[%s307 + $0xe8] sm:$0xff] %v366
                  %v368 = vld [vmem:[%s306 + $0x1e0] sm:$0xff]
                  %369 = vst [vmem:[%s307 + $0xf0] sm:$0xff] %v368
                  %v370 = vld [vmem:[%s306 + $0x1f0] sm:$0xff]
                  %371 = vst [vmem:[%s307 + $0xf8] sm:$0xff] %v370
                  %v372 = vld [vmem:[%s306 + $0x200] sm:$0xff]
                  %373 = vst [vmem:[%s307 + $0x100] sm:$0xff] %v372
                  %v374 = vld [vmem:[%s306 + $0x210] sm:$0xff]
                  %375 = vst [vmem:[%s307 + $0x108] sm:$0xff] %v374
                  %v376 = vld [vmem:[%s306 + $0x220] sm:$0xff]
                  %377 = vst [vmem:[%s307 + $0x110] sm:$0xff] %v376
                  %v378 = vld [vmem:[%s306 + $0x230] sm:$0xff]
                  %379 = vst [vmem:[%s307 + $0x118] sm:$0xff] %v378
                  %v380 = vld [vmem:[%s306 + $0x240] sm:$0xff]
                  %381 = vst [vmem:[%s307 + $0x120] sm:$0xff] %v380
                  %v382 = vld [vmem:[%s306 + $0x250] sm:$0xff]
                  %383 = vst [vmem:[%s307 + $0x128] sm:$0xff] %v382
                  %v384 = vld [vmem:[%s306 + $0x260] sm:$0xff]
                  %385 = vst [vmem:[%s307 + $0x130] sm:$0xff] %v384
                  %v386 = vld [vmem:[%s306 + $0x270] sm:$0xff]
                  %387 = vst [vmem:[%s307 + $0x138] sm:$0xff] %v386
                  %v388 = vld [vmem:[%s306 + $0x280] sm:$0xff]
                  %389 = vst [vmem:[%s307 + $0x140] sm:$0xff] %v388
                  %v390 = vld [vmem:[%s306 + $0x290] sm:$0xff]
                  %391 = vst [vmem:[%s307 + $0x148] sm:$0xff] %v390
                  %v392 = vld [vmem:[%s306 + $0x2a0] sm:$0xff]
                  %393 = vst [vmem:[%s307 + $0x150] sm:$0xff] %v392
                  %v394 = vld [vmem:[%s306 + $0x2b0] sm:$0xff]
                  %395 = vst [vmem:[%s307 + $0x158] sm:$0xff] %v394
                  %v396 = vld [vmem:[%s306 + $0x2c0] sm:$0xff]
                  %397 = vst [vmem:[%s307 + $0x160] sm:$0xff] %v396
                  %v398 = vld [vmem:[%s306 + $0x2d0] sm:$0xff]
                  %399 = vst [vmem:[%s307 + $0x168] sm:$0xff] %v398
                  %v400 = vld [vmem:[%s306 + $0x2e0] sm:$0xff]
                  %401 = vst [vmem:[%s307 + $0x170] sm:$0xff] %v400
                  %v402 = vld [vmem:[%s306 + $0x2f0] sm:$0xff]
                  %403 = vst [vmem:[%s307 + $0x178] sm:$0xff] %v402
                $region52: #{resnet18_forward.21} parent=46 // loop_footer
                  %s305 = sadd.s32 1, %s301
                $region53: #{resnet18_forward.21} parent=46 // loop_footer_branch
                  %300 = sbr.rel target = $region49
                $region54: #{resnet18_forward.21} parent=46 // loop_exit
                  _
              $region47: #{resnet18_forward.21} parent=31 // pred_fallthru
                _
              // Predicated region
              $region55: #{resnet18_forward.21} parent=31 // pred_check
                _
              $region56: #{resnet18_forward.21} parent=31 // pred_check_branch
                %405 = sbr.rel target = $region58
              $region57: #{resnet18_forward.21} parent=31 // pred_region
                _
              $region58: #{resnet18_forward.21} parent=31 // pred_fallthru
                _
            $region32: #{resnet18_forward.21} parent=27 // pred_fallthru
              _
            // Predicated region
            $region33: #{resnet18_forward.21} parent=27 // pred_check
              _
            $region34: #{resnet18_forward.21} parent=27 // pred_check_branch
              %191 = sbr.rel target = $region36
            $region35: #{resnet18_forward.21} parent=27 // pred_region
              %s193 = ssub.s32 256, 1
              loop: start=0, step=1, limit=1
              $region37: #{resnet18_forward.21} parent=35 // loop_pre_header
                _
              $region38: #{resnet18_forward.21} parent=35 // loop_header
                %s195 = sphi 0, %s199
                %p196 = scmp.ge.s32.totalorder %s195, 1
                %s200 = sphi %s185, %s185
                %s201 = sphi %s179, %s179
              $region39: #{resnet18_forward.21} parent=35 // loop_header_branch
                %198 = sbr.rel (%p196) target = $region43
              $region40: #{resnet18_forward.21} parent=35 // loop_body
                %v202 = vld [vmem:[%s200] sm:%s193]
                %203 = vst [vmem:[%s201] sm:%s193] %v202
                %v204 = vld [vmem:[%s200 + $0x10] sm:%s193]
                %205 = vst [vmem:[%s201 + $0x8] sm:%s193] %v204
                %v206 = vld [vmem:[%s200 + $0x20] sm:%s193]
                %207 = vst [vmem:[%s201 + $0x10] sm:%s193] %v206
                %v208 = vld [vmem:[%s200 + $0x30] sm:%s193]
                %209 = vst [vmem:[%s201 + $0x18] sm:%s193] %v208
                %v210 = vld [vmem:[%s200 + $0x40] sm:%s193]
                %211 = vst [vmem:[%s201 + $0x20] sm:%s193] %v210
                %v212 = vld [vmem:[%s200 + $0x50] sm:%s193]
                %213 = vst [vmem:[%s201 + $0x28] sm:%s193] %v212
                %v214 = vld [vmem:[%s200 + $0x60] sm:%s193]
                %215 = vst [vmem:[%s201 + $0x30] sm:%s193] %v214
                %v216 = vld [vmem:[%s200 + $0x70] sm:%s193]
                %217 = vst [vmem:[%s201 + $0x38] sm:%s193] %v216
                %v218 = vld [vmem:[%s200 + $0x80] sm:%s193]
                %219 = vst [vmem:[%s201 + $0x40] sm:%s193] %v218
                %v220 = vld [vmem:[%s200 + $0x90] sm:%s193]
                %221 = vst [vmem:[%s201 + $0x48] sm:%s193] %v220
                %v222 = vld [vmem:[%s200 + $0xa0] sm:%s193]
                %223 = vst [vmem:[%s201 + $0x50] sm:%s193] %v222
                %v224 = vld [vmem:[%s200 + $0xb0] sm:%s193]
                %225 = vst [vmem:[%s201 + $0x58] sm:%s193] %v224
                %v226 = vld [vmem:[%s200 + $0xc0] sm:%s193]
                %227 = vst [vmem:[%s201 + $0x60] sm:%s193] %v226
                %v228 = vld [vmem:[%s200 + $0xd0] sm:%s193]
                %229 = vst [vmem:[%s201 + $0x68] sm:%s193] %v228
                %v230 = vld [vmem:[%s200 + $0xe0] sm:%s193]
                %231 = vst [vmem:[%s201 + $0x70] sm:%s193] %v230
                %v232 = vld [vmem:[%s200 + $0xf0] sm:%s193]
                %233 = vst [vmem:[%s201 + $0x78] sm:%s193] %v232
                %v234 = vld [vmem:[%s200 + $0x100] sm:%s193]
                %235 = vst [vmem:[%s201 + $0x80] sm:%s193] %v234
                %v236 = vld [vmem:[%s200 + $0x110] sm:%s193]
                %237 = vst [vmem:[%s201 + $0x88] sm:%s193] %v236
                %v238 = vld [vmem:[%s200 + $0x120] sm:%s193]
                %239 = vst [vmem:[%s201 + $0x90] sm:%s193] %v238
                %v240 = vld [vmem:[%s200 + $0x130] sm:%s193]
                %241 = vst [vmem:[%s201 + $0x98] sm:%s193] %v240
                %v242 = vld [vmem:[%s200 + $0x140] sm:%s193]
                %243 = vst [vmem:[%s201 + $0xa0] sm:%s193] %v242
                %v244 = vld [vmem:[%s200 + $0x150] sm:%s193]
                %245 = vst [vmem:[%s201 + $0xa8] sm:%s193] %v244
                %v246 = vld [vmem:[%s200 + $0x160] sm:%s193]
                %247 = vst [vmem:[%s201 + $0xb0] sm:%s193] %v246
                %v248 = vld [vmem:[%s200 + $0x170] sm:%s193]
                %249 = vst [vmem:[%s201 + $0xb8] sm:%s193] %v248
                %v250 = vld [vmem:[%s200 + $0x180] sm:%s193]
                %251 = vst [vmem:[%s201 + $0xc0] sm:%s193] %v250
                %v252 = vld [vmem:[%s200 + $0x190] sm:%s193]
                %253 = vst [vmem:[%s201 + $0xc8] sm:%s193] %v252
                %v254 = vld [vmem:[%s200 + $0x1a0] sm:%s193]
                %255 = vst [vmem:[%s201 + $0xd0] sm:%s193] %v254
                %v256 = vld [vmem:[%s200 + $0x1b0] sm:%s193]
                %257 = vst [vmem:[%s201 + $0xd8] sm:%s193] %v256
                %v258 = vld [vmem:[%s200 + $0x1c0] sm:%s193]
                %259 = vst [vmem:[%s201 + $0xe0] sm:%s193] %v258
                %v260 = vld [vmem:[%s200 + $0x1d0] sm:%s193]
                %261 = vst [vmem:[%s201 + $0xe8] sm:%s193] %v260
                %v262 = vld [vmem:[%s200 + $0x1e0] sm:%s193]
                %263 = vst [vmem:[%s201 + $0xf0] sm:%s193] %v262
                %v264 = vld [vmem:[%s200 + $0x1f0] sm:%s193]
                %265 = vst [vmem:[%s201 + $0xf8] sm:%s193] %v264
                %v266 = vld [vmem:[%s200 + $0x200] sm:%s193]
                %267 = vst [vmem:[%s201 + $0x100] sm:%s193] %v266
                %v268 = vld [vmem:[%s200 + $0x210] sm:%s193]
                %269 = vst [vmem:[%s201 + $0x108] sm:%s193] %v268
                %v270 = vld [vmem:[%s200 + $0x220] sm:%s193]
                %271 = vst [vmem:[%s201 + $0x110] sm:%s193] %v270
                %v272 = vld [vmem:[%s200 + $0x230] sm:%s193]
                %273 = vst [vmem:[%s201 + $0x118] sm:%s193] %v272
                %v274 = vld [vmem:[%s200 + $0x240] sm:%s193]
                %275 = vst [vmem:[%s201 + $0x120] sm:%s193] %v274
                %v276 = vld [vmem:[%s200 + $0x250] sm:%s193]
                %277 = vst [vmem:[%s201 + $0x128] sm:%s193] %v276
                %v278 = vld [vmem:[%s200 + $0x260] sm:%s193]
                %279 = vst [vmem:[%s201 + $0x130] sm:%s193] %v278
                %v280 = vld [vmem:[%s200 + $0x270] sm:%s193]
                %281 = vst [vmem:[%s201 + $0x138] sm:%s193] %v280
                %v282 = vld [vmem:[%s200 + $0x280] sm:%s193]
                %283 = vst [vmem:[%s201 + $0x140] sm:%s193] %v282
                %v284 = vld [vmem:[%s200 + $0x290] sm:%s193]
                %285 = vst [vmem:[%s201 + $0x148] sm:%s193] %v284
                %v286 = vld [vmem:[%s200 + $0x2a0] sm:%s193]
                %287 = vst [vmem:[%s201 + $0x150] sm:%s193] %v286
                %v288 = vld [vmem:[%s200 + $0x2b0] sm:%s193]
                %289 = vst [vmem:[%s201 + $0x158] sm:%s193] %v288
                %v290 = vld [vmem:[%s200 + $0x2c0] sm:%s193]
                %291 = vst [vmem:[%s201 + $0x160] sm:%s193] %v290
                %v292 = vld [vmem:[%s200 + $0x2d0] sm:%s193]
                %293 = vst [vmem:[%s201 + $0x168] sm:%s193] %v292
                %v294 = vld [vmem:[%s200 + $0x2e0] sm:%s193]
                %295 = vst [vmem:[%s201 + $0x170] sm:%s193] %v294
                %v296 = vld [vmem:[%s200 + $0x2f0] sm:%s193]
                %297 = vst [vmem:[%s201 + $0x178] sm:%s193] %v296
              $region41: #{resnet18_forward.21} parent=35 // loop_footer
                %s199 = sadd.s32 1, %s195
              $region42: #{resnet18_forward.21} parent=35 // loop_footer_branch
                %194 = sbr.rel target = $region38
              $region43: #{resnet18_forward.21} parent=35 // loop_exit
                _
            $region36: #{resnet18_forward.21} parent=27 // pred_fallthru
              _
          $region28: #{resnet18_forward.21} parent=23 // pred_fallthru
            _
          %406 = vnop
        $region24: #{resnet18_forward.21} parent=15 // pred_fallthru
          _
        // Predicated region
        $region59: #{resnet18_forward.21} parent=15 // pred_check
          %p407 = pneg %p107
        $region60: #{resnet18_forward.21} parent=15 // pred_check_branch
          %409 = sbr.rel (%p407) target = $region62
        $region61: #{resnet18_forward.21} parent=15 // pred_region
          %s410 = sand.u32 %s97, 1
          %s411 = scalar_lea.sflag [#allocation4], %s410
          %s412 = sand.u32 %s97, 1
          %s413 = smul.addr %s412, 2
          %s414 = scalar_lea.vmem [#allocation3], %s413
          %s415 = smul.u32 2, %s20
          %417 = vsyncadd %s411, 0
          %s418 = scalar_lea.hbm %s2, %s415
          %s420 = sshll.u32 %s418, 4
          %s421 = int_to_ptr.hbm [resolvable:$true] %s420
          %s422 = sshll.u32 %s414, 4
          %s423 = int_to_ptr.vmem [resolvable:$true] %s422
          %425 = dma.hbm_to_vmem [thread:$0]  %s421, 32, %s423, %s411
        $region62: #{resnet18_forward.21} parent=15 // pred_fallthru
          _
      $region16: #{resnet18_forward.21} parent=5 // pred_fallthru
        _
      %p426 = scmp.le.s32.totalorder 1, %s12
      %p427 = scmp.lt.s32.totalorder %s12, 13
      %p428 = pnand %p426, %p427
      %p429 = pneg %p428
      // Predicated region
      $region63: #{resnet18_forward.21} parent=5 // pred_check
        _
      $region64: #{resnet18_forward.21} parent=5 // pred_check_branch
        %431 = sbr.rel (%p428) target = $region66
      $region65: #{resnet18_forward.21} parent=5 // pred_region
        %s432 = ssub.s32 %s12, 1
        %s433 = sand.u32 %s74, 1
        %s434 = sand.u32 %s74, 1
        %s435 = smul.addr %s434, 384
        %s436 = scalar_lea.vmem [#allocation2], %s435
        // Predicated region
        $region67: #{resnet18_forward.21} parent=65 // pred_check
          %p437 = pneg %p87
        $region68: #{resnet18_forward.21} parent=65 // pred_check_branch
          %439 = sbr.rel (%p437) target = $region70
        $region69: #{resnet18_forward.21} parent=65 // pred_region
          _
        $region70: #{resnet18_forward.21} parent=65 // pred_fallthru
          _
        %s440 = sand.u32 %s100, 1
        %s441 = scalar_lea.sflag [#allocation4], %s440
        %s442 = sand.u32 %s100, 1
        %s443 = smul.addr %s442, 2
        %s444 = scalar_lea.vmem [#allocation3], %s443
        // Predicated region
        $region71: #{resnet18_forward.21} parent=65 // pred_check
          %p445 = pneg %p113
        $region72: #{resnet18_forward.21} parent=65 // pred_check_branch
          %447 = sbr.rel (%p445) target = $region74
        $region73: #{resnet18_forward.21} parent=65 // pred_region
          %449 = dma.done %s441, 32
        $region74: #{resnet18_forward.21} parent=65 // pred_fallthru
          _
        %s450 = smul.u32 3, %s24
        %p451 = scmp.lt.s32.totalorder %s22, 0
        %s452 = scalar_select %p451, %s22, 0
        %p453 = scmp.lt.s32.totalorder %s450, 17
        %s454 = scalar_select %p453, %s450, 17
        %s455 = smul.addr %s452, 18
        %s456 = sadd.s32 %s454, %s455
        %s457 = smul.addr %s456, 4
        %s458 = scalar_lea.vmem %s0, %s457
        %p459 = pneg %p59
        %p460 = pneg %p56
        %s461 = sand.u32 %s74, 1
        %s462 = sand.u32 %s74, 1
        %s463 = smul.addr %s462, 384
        %s464 = scalar_lea.vmem [#allocation2], %s463
        %p465 = pneg %p87
        %p466 = pneg %p84
        %s467 = sand.u32 %s100, 1
        %s468 = scalar_lea.sflag [#allocation4], %s467
        %s469 = sand.u32 %s100, 1
        %s470 = smul.addr %s469, 2
        %s471 = scalar_lea.vmem [#allocation3], %s470
        %p472 = pneg %p113
        %p473 = pneg %p110
        %p474 = pneg %p141
        %p475 = pneg %p138
        %s476 = smul.u32 2, %s23
        %p477 = scmp.lt.s32.totalorder %s22, 0
        %s478 = scalar_select %p477, %s22, 0
        %p479 = scmp.lt.s32.totalorder %s476, 3
        %s480 = scalar_select %p479, %s476, 3
        %s481 = smul.addr %s478, 4
        %s482 = sadd.s32 %s480, %s481
        %s483 = smul.addr %s482, 8
        %s484 = scalar_lea.vmem %s3, %s483
        %s485 = smul.u32 3, %s24
        %p486 = scmp.lt.s32.totalorder %s22, 0
        %s487 = scalar_select %p486, %s22, 0
        %p488 = scmp.lt.s32.totalorder %s485, 17
        %s489 = scalar_select %p488, %s485, 17
        %s490 = smul.addr %s487, 18
        %s491 = sadd.s32 %s489, %s490
        %s492 = smul.addr %s491, 4
        %s493 = scalar_lea.vmem %s0, %s492
        %s494 = smul.u32 3, %s24
        %s495 = smul.u32 48, %s24
        %s496 = smul.u32 2, %s23
        %s497 = smul.u32 2, %s23
        %s498 = smul.u32 2, %s23
        %p499 = scmp.lt.s32.totalorder %s22, 0
        %s500 = scalar_select %p499, %s22, 0
        %p501 = scmp.lt.s32.totalorder %s498, 3
        %s502 = scalar_select %p501, %s498, 3
        %s503 = smul.addr %s500, 4
        %s504 = sadd.s32 %s502, %s503
        %s505 = smul.addr %s504, 8
        %s506 = scalar_lea.vmem %s3, %s505
        %s507 = smul.u32 2, %s23
        %p508 = scmp.eq.s32.totalorder %s24, 0
        // Predicated region
        $region75: #{resnet18_forward.21} parent=65 // pred_check
          %p509 = pneg %p508
        $region76: #{resnet18_forward.21} parent=65 // pred_check_branch
          %511 = sbr.rel (%p509) target = $region78
        $region77: #{resnet18_forward.21} parent=65 // pred_region
          %512 = vst [vmem:[%s506] sm:$0xff] 0.0
          %513 = vst [vmem:[%s506 + $0x8] sm:$0xff] 0.0
        $region78: #{resnet18_forward.21} parent=65 // pred_fallthru
          _
        %v514 = vld [vmem:[%s506] sm:$0xff]
        %v515 = vld [vmem:[%s506 + $0x8] sm:$0xff]
        %v516 = vld [vmem:[%s493] sm:$0xff]
        %v517 = vld [vmem:[%s493 + $0x8] sm:$0xf]
        %v518 = vld [vmem:[%s436] sm:$0xff]
        %v519 = vld [vmem:[%s436 + $0x8] sm:$0xff]
        %v520 = vld [vmem:[%s436 + $0x10] sm:$0xff]
        %v521 = vld [vmem:[%s436 + $0x18] sm:$0xff]
        %v522 = vld [vmem:[%s436 + $0x20] sm:$0xff]
        %v523 = vld [vmem:[%s436 + $0x28] sm:$0xff]
        %v524 = vld [vmem:[%s436 + $0x30] sm:$0xff]
        %v525 = vld [vmem:[%s436 + $0x38] sm:$0xff]
        %v526 = vld [vmem:[%s436 + $0x40] sm:$0xff]
        %v527 = vld [vmem:[%s436 + $0x48] sm:$0xff]
        %v528 = vld [vmem:[%s436 + $0x50] sm:$0xff]
        %v529 = vld [vmem:[%s436 + $0x58] sm:$0xff]
        %v530 = vld [vmem:[%s436 + $0x60] sm:$0xff]
        %v531 = vld [vmem:[%s436 + $0x68] sm:$0xff]
        %v532 = vld [vmem:[%s436 + $0x70] sm:$0xff]
        %v533 = vld [vmem:[%s436 + $0x78] sm:$0xff]
        %v534 = vld [vmem:[%s436 + $0x80] sm:$0xff]
        %v535 = vld [vmem:[%s436 + $0x88] sm:$0xff]
        %v536 = vld [vmem:[%s436 + $0x90] sm:$0xff]
        %v537 = vld [vmem:[%s436 + $0x98] sm:$0xff]
        %v538 = vld [vmem:[%s436 + $0xa0] sm:$0xff]
        %v539 = vld [vmem:[%s436 + $0xa8] sm:$0xff]
        %v540 = vld [vmem:[%s436 + $0xb0] sm:$0xff]
        %v541 = vld [vmem:[%s436 + $0xb8] sm:$0xff]
        %v542 = vld [vmem:[%s436 + $0xc0] sm:$0xff]
        %v543 = vld [vmem:[%s436 + $0xc8] sm:$0xff]
        %v544 = vld [vmem:[%s436 + $0xd0] sm:$0xff]
        %v545 = vld [vmem:[%s436 + $0xd8] sm:$0xff]
        %v546 = vld [vmem:[%s436 + $0xe0] sm:$0xff]
        %v547 = vld [vmem:[%s436 + $0xe8] sm:$0xff]
        %v548 = vld [vmem:[%s436 + $0xf0] sm:$0xff]
        %v549 = vld [vmem:[%s436 + $0xf8] sm:$0xff]
        %v550 = vld [vmem:[%s436 + $0x100] sm:$0xff]
        %v551 = vld [vmem:[%s436 + $0x108] sm:$0xff]
        %v552 = vld [vmem:[%s436 + $0x110] sm:$0xff]
        %v553 = vld [vmem:[%s436 + $0x118] sm:$0xff]
        %v554 = vld [vmem:[%s436 + $0x120] sm:$0xff]
        %v555 = vld [vmem:[%s436 + $0x128] sm:$0xff]
        %v556 = vld [vmem:[%s436 + $0x130] sm:$0xff]
        %v557 = vld [vmem:[%s436 + $0x138] sm:$0xff]
        %v558 = vld [vmem:[%s436 + $0x140] sm:$0xff]
        %v559 = vld [vmem:[%s436 + $0x148] sm:$0xff]
        %v560 = vld [vmem:[%s436 + $0x150] sm:$0xff]
        %v561 = vld [vmem:[%s436 + $0x158] sm:$0xff]
        %v562 = vld [vmem:[%s436 + $0x160] sm:$0xff]
        %v563 = vld [vmem:[%s436 + $0x168] sm:$0xff]
        %v564 = vld [vmem:[%s436 + $0x170] sm:$0xff]
        %v565 = vld [vmem:[%s436 + $0x178] sm:$0xff]
        %v568 = vunpack.c.l.b16 %v516
        %v569 = vunpack.c.h.b16 %v516
        %v570 = vunpack.c.l.b16 %v517
        %v571 = vpack.c.b16 %v568, %v568
        %v572 = vpack.c.b16 %v569, %v569
        %v573 = vpack.c.b16 %v570, %v570
        %v625 = vunpack.c.l.b16 %v518
        %v626 = vunpack.c.h.b16 %v518
        %v627 = vunpack.c.l.b16 %v519
        %v628 = vunpack.c.h.b16 %v519
        %v629 = vunpack.c.l.b16 %v520
        %v630 = vunpack.c.h.b16 %v520
        %v631 = vunpack.c.l.b16 %v521
        %v632 = vunpack.c.h.b16 %v521
        %v633 = vunpack.c.l.b16 %v522
        %v634 = vunpack.c.h.b16 %v522
        %v635 = vunpack.c.l.b16 %v523
        %v636 = vunpack.c.h.b16 %v523
        %v637 = vunpack.c.l.b16 %v524
        %v638 = vunpack.c.h.b16 %v524
        %v639 = vunpack.c.l.b16 %v525
        %v640 = vunpack.c.h.b16 %v525
        %v641 = vunpack.c.l.b16 %v526
        %v642 = vunpack.c.h.b16 %v526
        %v643 = vunpack.c.l.b16 %v527
        %v644 = vunpack.c.h.b16 %v527
        %v645 = vunpack.c.l.b16 %v528
        %v646 = vunpack.c.h.b16 %v528
        %v647 = vunpack.c.l.b16 %v529
        %v648 = vunpack.c.h.b16 %v529
        %v649 = vunpack.c.l.b16 %v530
        %v650 = vunpack.c.h.b16 %v530
        %v651 = vunpack.c.l.b16 %v531
        %v652 = vunpack.c.h.b16 %v531
        %v653 = vunpack.c.l.b16 %v532
        %v654 = vunpack.c.h.b16 %v532
        %v655 = vunpack.c.l.b16 %v533
        %v656 = vunpack.c.h.b16 %v533
        %v657 = vunpack.c.l.b16 %v534
        %v658 = vunpack.c.h.b16 %v534
        %v659 = vunpack.c.l.b16 %v535
        %v660 = vunpack.c.h.b16 %v535
        %v661 = vunpack.c.l.b16 %v536
        %v662 = vunpack.c.h.b16 %v536
        %v663 = vunpack.c.l.b16 %v537
        %v664 = vunpack.c.h.b16 %v537
        %v665 = vunpack.c.l.b16 %v538
        %v666 = vunpack.c.h.b16 %v538
        %v667 = vunpack.c.l.b16 %v539
        %v668 = vunpack.c.h.b16 %v539
        %v669 = vunpack.c.l.b16 %v540
        %v670 = vunpack.c.h.b16 %v540
        %v671 = vunpack.c.l.b16 %v541
        %v672 = vunpack.c.h.b16 %v541
        %v673 = vunpack.c.l.b16 %v542
        %v674 = vunpack.c.h.b16 %v542
        %v675 = vunpack.c.l.b16 %v543
        %v676 = vunpack.c.h.b16 %v543
        %v677 = vunpack.c.l.b16 %v544
        %v678 = vunpack.c.h.b16 %v544
        %v679 = vunpack.c.l.b16 %v545
        %v680 = vunpack.c.h.b16 %v545
        %v681 = vunpack.c.l.b16 %v546
        %v682 = vunpack.c.h.b16 %v546
        %v683 = vunpack.c.l.b16 %v547
        %v684 = vunpack.c.h.b16 %v547
        %v685 = vunpack.c.l.b16 %v548
        %v686 = vunpack.c.h.b16 %v548
        %v687 = vunpack.c.l.b16 %v549
        %v688 = vunpack.c.h.b16 %v549
        %v689 = vunpack.c.l.b16 %v550
        %v690 = vunpack.c.h.b16 %v550
        %v691 = vunpack.c.l.b16 %v551
        %v692 = vunpack.c.h.b16 %v551
        %v693 = vunpack.c.l.b16 %v552
        %v694 = vunpack.c.h.b16 %v552
        %v695 = vunpack.c.l.b16 %v553
        %v696 = vunpack.c.h.b16 %v553
        %v697 = vunpack.c.l.b16 %v554
        %v698 = vunpack.c.h.b16 %v554
        %v699 = vunpack.c.l.b16 %v555
        %v700 = vunpack.c.h.b16 %v555
        %v701 = vunpack.c.l.b16 %v556
        %v702 = vunpack.c.h.b16 %v556
        %v703 = vunpack.c.l.b16 %v557
        %v704 = vunpack.c.h.b16 %v557
        %v705 = vunpack.c.l.b16 %v558
        %v706 = vunpack.c.h.b16 %v558
        %v707 = vunpack.c.l.b16 %v559
        %v708 = vunpack.c.h.b16 %v559
        %v709 = vunpack.c.l.b16 %v560
        %v710 = vunpack.c.h.b16 %v560
        %v711 = vunpack.c.l.b16 %v561
        %v712 = vunpack.c.h.b16 %v561
        %v713 = vunpack.c.l.b16 %v562
        %v714 = vunpack.c.h.b16 %v562
        %v715 = vunpack.c.l.b16 %v563
        %v716 = vunpack.c.h.b16 %v563
        %v717 = vunpack.c.l.b16 %v564
        %v718 = vunpack.c.h.b16 %v564
        %v719 = vunpack.c.l.b16 %v565
        %v720 = vunpack.c.h.b16 %v565
        %v721 = vpack.c.b16 %v627, %v625
        %v722 = vpack.c.b16 %v628, %v626
        %v723 = vpack.c.b16 %v631, %v629
        %v724 = vpack.c.b16 %v632, %v630
        %v725 = vpack.c.b16 %v635, %v633
        %v726 = vpack.c.b16 %v636, %v634
        %v727 = vpack.c.b16 %v639, %v637
        %v728 = vpack.c.b16 %v640, %v638
        %v729 = vpack.c.b16 %v643, %v641
        %v730 = vpack.c.b16 %v644, %v642
        %v731 = vpack.c.b16 %v647, %v645
        %v732 = vpack.c.b16 %v648, %v646
        %v733 = vpack.c.b16 %v651, %v649
        %v734 = vpack.c.b16 %v652, %v650
        %v735 = vpack.c.b16 %v655, %v653
        %v736 = vpack.c.b16 %v656, %v654
        %v737 = vpack.c.b16 %v659, %v657
        %v738 = vpack.c.b16 %v660, %v658
        %v739 = vpack.c.b16 %v663, %v661
        %v740 = vpack.c.b16 %v664, %v662
        %v741 = vpack.c.b16 %v667, %v665
        %v742 = vpack.c.b16 %v668, %v666
        %v743 = vpack.c.b16 %v671, %v669
        %v744 = vpack.c.b16 %v672, %v670
        %v745 = vpack.c.b16 %v675, %v673
        %v746 = vpack.c.b16 %v676, %v674
        %v747 = vpack.c.b16 %v679, %v677
        %v748 = vpack.c.b16 %v680, %v678
        %v749 = vpack.c.b16 %v683, %v681
        %v750 = vpack.c.b16 %v684, %v682
        %v751 = vpack.c.b16 %v687, %v685
        %v752 = vpack.c.b16 %v688, %v686
        %v753 = vpack.c.b16 %v691, %v689
        %v754 = vpack.c.b16 %v692, %v690
        %v755 = vpack.c.b16 %v695, %v693
        %v756 = vpack.c.b16 %v696, %v694
        %v757 = vpack.c.b16 %v699, %v697
        %v758 = vpack.c.b16 %v700, %v698
        %v759 = vpack.c.b16 %v703, %v701
        %v760 = vpack.c.b16 %v704, %v702
        %v761 = vpack.c.b16 %v707, %v705
        %v762 = vpack.c.b16 %v708, %v706
        %v763 = vpack.c.b16 %v711, %v709
        %v764 = vpack.c.b16 %v712, %v710
        %v765 = vpack.c.b16 %v715, %v713
        %v766 = vpack.c.b16 %v716, %v714
        %v767 = vpack.c.b16 %v719, %v717
        %v768 = vpack.c.b16 %v720, %v718
        %817 = vmatpush.bf16.msra.mxu0 %v735
        %818 = vmatpush.bf16.msra.mxu0 %v733
        %819 = vmatpush.bf16.msra.mxu0 %v731
        %820 = vmatpush.bf16.msra.mxu0 %v729
        %821 = vmatpush.bf16.msra.mxu0 %v727
        %822 = vmatpush.bf16.msra.mxu0 %v725
        %823 = vmatpush.bf16.msra.mxu0 %v723
        %824 = vmatpush.bf16.msra.mxu0 %v721
        %825 = vmatmul.bf16.gmra.mxu0 %v571
        %v826 = vpop.f32.mrf.mxu0
        %v827 = vadd.f32 0.0, %v826
        %v828 = vpop.f32.mrf.mxu0
        %829 = vdwg.mxu0
        %830 = vmatpush.bf16.msra.mxu0 %v751
        %831 = vmatpush.bf16.msra.mxu0 %v749
        %832 = vmatpush.bf16.msra.mxu0 %v747
        %833 = vmatpush.bf16.msra.mxu0 %v745
        %834 = vmatpush.bf16.msra.mxu0 %v743
        %835 = vmatpush.bf16.msra.mxu0 %v741
        %836 = vmatpush.bf16.msra.mxu0 %v739
        %837 = vmatpush.bf16.msra.mxu0 %v737
        %838 = vmatmul.bf16.gmra.mxu0 %v572
        %v839 = vpop.f32.mrf.mxu0
        %v840 = vadd.f32 %v827, %v839
        %v841 = vpop.f32.mrf.mxu0
        %842 = vdwg.mxu0
        %843 = vmatpush.bf16.msra.mxu0 %v767
        %844 = vmatpush.bf16.msra.mxu0 %v765
        %845 = vmatpush.bf16.msra.mxu0 %v763
        %846 = vmatpush.bf16.msra.mxu0 %v761
        %847 = vmatpush.bf16.msra.mxu0 %v759
        %848 = vmatpush.bf16.msra.mxu0 %v757
        %849 = vmatpush.bf16.msra.mxu0 %v755
        %850 = vmatpush.bf16.msra.mxu0 %v753
        %851 = vmatmul.bf16.gmra.mxu0 %v573
        %v852 = vpop.f32.mrf.mxu0
        %v853 = vadd.f32 %v840, %v852
        %v854 = vpop.f32.mrf.mxu0
        %855 = vdwg.mxu0
        %856 = vmatpush.bf16.msra.mxu0 %v736
        %857 = vmatpush.bf16.msra.mxu0 %v734
        %858 = vmatpush.bf16.msra.mxu0 %v732
        %859 = vmatpush.bf16.msra.mxu0 %v730
        %860 = vmatpush.bf16.msra.mxu0 %v728
        %861 = vmatpush.bf16.msra.mxu0 %v726
        %862 = vmatpush.bf16.msra.mxu0 %v724
        %863 = vmatpush.bf16.msra.mxu0 %v722
        %864 = vmatmul.bf16.gmra.mxu0 %v571
        %v865 = vpop.f32.mrf.mxu0
        %v866 = vadd.f32 0.0, %v865
        %v867 = vpop.f32.mrf.mxu0
        %868 = vdwg.mxu0
        %869 = vmatpush.bf16.msra.mxu0 %v752
        %870 = vmatpush.bf16.msra.mxu0 %v750
        %871 = vmatpush.bf16.msra.mxu0 %v748
        %872 = vmatpush.bf16.msra.mxu0 %v746
        %873 = vmatpush.bf16.msra.mxu0 %v744
        %874 = vmatpush.bf16.msra.mxu0 %v742
        %875 = vmatpush.bf16.msra.mxu0 %v740
        %876 = vmatpush.bf16.msra.mxu0 %v738
        %877 = vmatmul.bf16.gmra.mxu0 %v572
        %v878 = vpop.f32.mrf.mxu0
        %v879 = vadd.f32 %v866, %v878
        %v880 = vpop.f32.mrf.mxu0
        %881 = vdwg.mxu0
        %882 = vmatpush.bf16.msra.mxu0 %v768
        %883 = vmatpush.bf16.msra.mxu0 %v766
        %884 = vmatpush.bf16.msra.mxu0 %v764
        %885 = vmatpush.bf16.msra.mxu0 %v762
        %886 = vmatpush.bf16.msra.mxu0 %v760
        %887 = vmatpush.bf16.msra.mxu0 %v758
        %888 = vmatpush.bf16.msra.mxu0 %v756
        %889 = vmatpush.bf16.msra.mxu0 %v754
        %890 = vmatmul.bf16.gmra.mxu0 %v573
        %v891 = vpop.f32.mrf.mxu0
        %v892 = vadd.f32 %v879, %v891
        %v893 = vpop.f32.mrf.mxu0
        %894 = vdwg.mxu0
        %v895 = vadd.f32 %v514, %v853
        %v896 = vadd.f32 %v515, %v892
        %897 = vst [vmem:[%s506] sm:$0xff] %v895
        %898 = vst [vmem:[%s506 + $0x8] sm:$0xff] %v896
        %p899 = scmp.eq.s32.totalorder %s24, 5
        // Predicated region
        $region79: #{resnet18_forward.21} parent=65 // pred_check
          %p900 = pneg %p899
        $region80: #{resnet18_forward.21} parent=65 // pred_check_branch
          %902 = sbr.rel (%p900) target = $region82
        $region81: #{resnet18_forward.21} parent=65 // pred_region
          %v903 = vld [vmem:[%s506] sm:$0xff]
          %v904 = vld [vmem:[%s506 + $0x8] sm:$0xff]
          %v905 = vld [vmem:[%s444] sm:$0x3]
          %v907 = vperm.slane %v905, 0
          %v908 = vperm.slane %v905, 1
          %v911 = vadd.f32 %v903, %v907
          %v912 = vadd.f32 %v904, %v908
          %v913 = vmax.f32 %v911, 0.0
          %v914 = vmax.f32 %v912, 0.0
          %915 = vst [vmem:[%s506] sm:$0xff] %v913
          %916 = vst [vmem:[%s506 + $0x8] sm:$0xff] %v914
        $region82: #{resnet18_forward.21} parent=65 // pred_fallthru
          _
        %s917 = smul.u32 2, %s23
        %p918 = scmp.lt.s32.totalorder %s22, 0
        %s919 = scalar_select %p918, %s22, 0
        %p920 = scmp.lt.s32.totalorder %s917, 3
        %s921 = scalar_select %p920, %s917, 3
        %s922 = smul.addr %s919, 4
        %s923 = sadd.s32 %s921, %s922
        %s924 = smul.addr %s923, 8
        %s925 = scalar_lea.vmem %s3, %s924
        // Predicated region
        $region83: #{resnet18_forward.21} parent=65 // pred_check
          %p926 = pneg %p138
        $region84: #{resnet18_forward.21} parent=65 // pred_check_branch
          %928 = sbr.rel (%p926) target = $region86
        $region85: #{resnet18_forward.21} parent=65 // pred_region
          %s929 = smul.u32 2, %s23
        $region86: #{resnet18_forward.21} parent=65 // pred_fallthru
          _
      $region66: #{resnet18_forward.21} parent=5 // pred_fallthru
        _
      %p930 = scmp.le.s32.totalorder 2, %s12
      // Predicated region
      $region87: #{resnet18_forward.21} parent=5 // pred_check
        %p931 = pneg %p930
      $region88: #{resnet18_forward.21} parent=5 // pred_check_branch
        %933 = sbr.rel (%p931) target = $region90
      $region89: #{resnet18_forward.21} parent=5 // pred_region
        %s934 = ssub.s32 %s12, 2
        // Predicated region
        $region91: #{resnet18_forward.21} parent=89 // pred_check
          %p935 = pneg %p144
        $region92: #{resnet18_forward.21} parent=89 // pred_check_branch
          %937 = sbr.rel (%p935) target = $region94
        $region93: #{resnet18_forward.21} parent=89 // pred_region
          %s938 = smul.u32 2, %s26
          %p939 = scmp.lt.s32.totalorder %s25, 0
          %s940 = scalar_select %p939, %s25, 0
          %p941 = scmp.lt.s32.totalorder %s938, 3
          %s942 = scalar_select %p941, %s938, 3
          %s943 = smul.addr %s940, 4
          %s944 = sadd.s32 %s942, %s943
          %s945 = smul.addr %s944, 8
          %s946 = scalar_lea.vmem %s3, %s945
        $region94: #{resnet18_forward.21} parent=89 // pred_fallthru
          _
      $region90: #{resnet18_forward.21} parent=5 // pred_fallthru
        _
    $region6: #{resnet18_forward.21} parent=1 // loop_footer
      %s16 = sadd.s32 1, %s12
    $region7: #{resnet18_forward.21} parent=1 // loop_footer_branch
      %11 = sbr.rel target = $region3
    $region8: #{resnet18_forward.21} parent=1 // loop_exit
      _
    %947 = vsyncpa [#allocation4], 1
    %s948 = scalar_lea.sflag [#allocation4], 1
    %949 = vsyncpa %s948, 1

// kernel: resnet18_forward.22
$region0: #{resnet18_forward.22}
  #allocation0 [shape = 'u32[]', space=smem, size = 0x4, offset = 0x4, fixed_abs, tag = 'smem constant byte address 0x4 - core index']
  #allocation1 [shape = 'u32[72,128]{1,0:T(1,128)}', space=vmem, size = 0x9000, scoped, tag = 'internal scratch']
  %s0 = inlined_call_operand.vmem [shape: bf16[8,4608], index: 0, kind: input, shape index: {}]
  %s1 = inlined_call_operand.vmem [shape: bf16[4608,512], index: 1, kind: input, shape index: {}]
  %s2 = inlined_call_operand.hbm [shape: f32[1,512], index: 2, kind: input, shape index: {}]
  %s3 = inlined_call_operand.vmem [shape: f32[8,512], index: 3, kind: input, shape index: {}]
  %s4 = inlined_call_operand.vmem [shape: f32[8,512], index: 4, kind: output, shape index: {}]
  %s5 = sld [smem:[#allocation0]]
  $region99: #{resnet18_forward.22} parent=0
    _
  %s7 = ssub.s32 1, %s5
  %s8 = scalar_select 0, %s7, %s5
  $region1: #{resnet18_forward.22} parent=0
    #allocation2 [shape = 'u8[524288]{0}', space=vmem, size = 0x80000, scoped, tag = 'input window, operand 1']
    #allocation3 [shape = 'u8[2048]{0}', space=vmem, size = 0x800, scoped, tag = 'input window, operand 2']
    #allocation4 [shape = 's32[2]{0}', space=sflag, size = 0x8, scoped, tag = 'scoped memory for resnet18_forward.22']
    %9 = vsyncpa [#allocation4], 0
    %s10 = scalar_lea.sflag [#allocation4], 1
    %11 = vsyncpa %s10, 0
    loop: start=0, step=1, limit=20
    $region2: #{resnet18_forward.22} parent=1 // loop_pre_header
      _
    $region3: #{resnet18_forward.22} parent=1 // loop_header
      %s13 = sphi 0, %s17
      %p14 = scmp.ge.s32.totalorder %s13, 20
      %s20 = sphi 0, %s39
      %s21 = sphi 0, %s35
      %s22 = sphi 0, %s31
      %s23 = sphi 0, %s20
      %s24 = sphi 0, %s21
      %s25 = sphi 0, %s22
      %s26 = sphi 0, %s23
      %s27 = sphi 0, %s24
      %s28 = sphi 0, %s25
      %s44 = sphi 0, %s46
      %s47 = sphi 0, %s44
      %s48 = sphi 0, %s47
      %s64 = sphi 0, %s48
      %s72 = sphi 0, %s74
      %s75 = sphi 0, %s72
      %s76 = sphi 0, %s75
      %s92 = sphi 0, %s76
      %s98 = sphi 0, %s100
      %s101 = sphi 0, %s98
      %s102 = sphi 0, %s101
      %s118 = sphi 0, %s102
      %s126 = sphi 0, %s128
      %s129 = sphi 0, %s126
      %s130 = sphi 0, %s129
      %s146 = sphi 0, %s130
      %s154 = sphi 0, %s156
      %s157 = sphi 0, %s154
      %s158 = sphi 0, %s157
      %s174 = sphi 0, %s158
    $region4: #{resnet18_forward.22} parent=1 // loop_header_branch
      %16 = sbr.rel (%p14) target = $region8
    $region5: #{resnet18_forward.22} parent=1 // loop_body
      %s18 = ssub.s32 %s13, 1
      %s19 = ssub.s32 %s13, 2
      %s29 = sadd.s32 1, %s22
      %p30 = scmp.ge.s32.totalorder %s29, 9
      %s31 = scalar_select %p30, 0, %s29
      %s32 = sadd.s32 1, %s21
      %s33 = scalar_select %p30, %s32, %s21
      %p34 = scmp.ge.s32.totalorder %s33, 2
      %s35 = scalar_select %p34, 0, %s33
      %s36 = sadd.s32 1, %s20
      %s37 = scalar_select %p34, %s36, %s20
      %p38 = scmp.ge.s32.totalorder %s37, 1
      %s39 = scalar_select %p38, 0, %s37
      %s40 = ssub.s32 %s20, %s39
      %s41 = ssub.s32 %s22, %s31
      %s42 = sor.u32 %s40, %s41
      %p43 = scmp.eq.s32.totalorder %s42, 0
      %s45 = sadd.s32 %s44, 1
      %s46 = scalar_select %p43, %s44, %s45
      %p49 = pneg %p43
      %p50 = scmp.eq.s32.totalorder %s13, 17
      %p51 = por %p49, %p50
      %p52 = scmp.ne.s32.totalorder %s44, %s47
      %p53 = scmp.eq.s32.totalorder %s13, 0
      %p54 = por %p52, %p53
      %p55 = scmp.ne.s32.totalorder %s44, %s47
      %p56 = scmp.eq.s32.totalorder %s18, 17
      %p57 = por %p55, %p56
      %p58 = scmp.ne.s32.totalorder %s47, %s48
      %p59 = scmp.eq.s32.totalorder %s18, 0
      %p60 = por %p58, %p59
      %p61 = scmp.ne.s32.totalorder %s47, %s48
      %p62 = scmp.eq.s32.totalorder %s19, 17
      %p63 = por %p61, %p62
      %p65 = scmp.ne.s32.totalorder %s48, %s64
      %p66 = scmp.eq.s32.totalorder %s19, 0
      %p67 = por %p65, %p66
      %s68 = ssub.s32 %s22, %s31
      %s69 = ssub.s32 %s21, %s35
      %s70 = sor.u32 %s68, %s69
      %p71 = scmp.eq.s32.totalorder %s70, 0
      %s73 = sadd.s32 %s72, 1
      %s74 = scalar_select %p71, %s72, %s73
      %p77 = pneg %p71
      %p78 = scmp.eq.s32.totalorder %s13, 17
      %p79 = por %p77, %p78
      %p80 = scmp.ne.s32.totalorder %s72, %s75
      %p81 = scmp.eq.s32.totalorder %s13, 0
      %p82 = por %p80, %p81
      %p83 = scmp.ne.s32.totalorder %s72, %s75
      %p84 = scmp.eq.s32.totalorder %s18, 17
      %p85 = por %p83, %p84
      %p86 = scmp.ne.s32.totalorder %s75, %s76
      %p87 = scmp.eq.s32.totalorder %s18, 0
      %p88 = por %p86, %p87
      %p89 = scmp.ne.s32.totalorder %s75, %s76
      %p90 = scmp.eq.s32.totalorder %s19, 17
      %p91 = por %p89, %p90
      %p93 = scmp.ne.s32.totalorder %s76, %s92
      %p94 = scmp.eq.s32.totalorder %s19, 0
      %p95 = por %p93, %p94
      %s96 = ssub.s32 %s21, %s35
      %p97 = scmp.eq.s32.totalorder %s96, 0
      %s99 = sadd.s32 %s98, 1
      %s100 = scalar_select %p97, %s98, %s99
      %p103 = pneg %p97
      %p104 = scmp.eq.s32.totalorder %s13, 17
      %p105 = por %p103, %p104
      %p106 = scmp.ne.s32.totalorder %s98, %s101
      %p107 = scmp.eq.s32.totalorder %s13, 0
      %p108 = por %p106, %p107
      %p109 = scmp.ne.s32.totalorder %s98, %s101
      %p110 = scmp.eq.s32.totalorder %s18, 17
      %p111 = por %p109, %p110
      %p112 = scmp.ne.s32.totalorder %s101, %s102
      %p113 = scmp.eq.s32.totalorder %s18, 0
      %p114 = por %p112, %p113
      %p115 = scmp.ne.s32.totalorder %s101, %s102
      %p116 = scmp.eq.s32.totalorder %s19, 17
      %p117 = por %p115, %p116
      %p119 = scmp.ne.s32.totalorder %s102, %s118
      %p120 = scmp.eq.s32.totalorder %s19, 0
      %p121 = por %p119, %p120
      %s122 = ssub.s32 %s20, %s39
      %s123 = ssub.s32 %s21, %s35
      %s124 = sor.u32 %s122, %s123
      %p125 = scmp.eq.s32.totalorder %s124, 0
      %s127 = sadd.s32 %s126, 1
      %s128 = scalar_select %p125, %s126, %s127
      %p131 = pneg %p125
      %p132 = scmp.eq.s32.totalorder %s13, 17
      %p133 = por %p131, %p132
      %p134 = scmp.ne.s32.totalorder %s126, %s129
      %p135 = scmp.eq.s32.totalorder %s13, 0
      %p136 = por %p134, %p135
      %p137 = scmp.ne.s32.totalorder %s126, %s129
      %p138 = scmp.eq.s32.totalorder %s18, 17
      %p139 = por %p137, %p138
      %p140 = scmp.ne.s32.totalorder %s129, %s130
      %p141 = scmp.eq.s32.totalorder %s18, 0
      %p142 = por %p140, %p141
      %p143 = scmp.ne.s32.totalorder %s129, %s130
      %p144 = scmp.eq.s32.totalorder %s19, 17
      %p145 = por %p143, %p144
      %p147 = scmp.ne.s32.totalorder %s130, %s146
      %p148 = scmp.eq.s32.totalorder %s19, 0
      %p149 = por %p147, %p148
      %s150 = ssub.s32 %s20, %s39
      %s151 = ssub.s32 %s21, %s35
      %s152 = sor.u32 %s150, %s151
      %p153 = scmp.eq.s32.totalorder %s152, 0
      %s155 = sadd.s32 %s154, 1
      %s156 = scalar_select %p153, %s154, %s155
      %p159 = pneg %p153
      %p160 = scmp.eq.s32.totalorder %s13, 17
      %p161 = por %p159, %p160
      %p162 = scmp.ne.s32.totalorder %s154, %s157
      %p163 = scmp.eq.s32.totalorder %s13, 0
      %p164 = por %p162, %p163
      %p165 = scmp.ne.s32.totalorder %s154, %s157
      %p166 = scmp.eq.s32.totalorder %s18, 17
      %p167 = por %p165, %p166
      %p168 = scmp.ne.s32.totalorder %s157, %s158
      %p169 = scmp.eq.s32.totalorder %s18, 0
      %p170 = por %p168, %p169
      %p171 = scmp.ne.s32.totalorder %s157, %s158
      %p172 = scmp.eq.s32.totalorder %s19, 17
      %p173 = por %p171, %p172
      %p175 = scmp.ne.s32.totalorder %s158, %s174
      %p176 = scmp.eq.s32.totalorder %s19, 0
      %p177 = por %p175, %p176
      %p178 = scmp.le.s32.totalorder 1, %s13
      %p179 = scmp.lt.s32.totalorder %s13, 19
      %p180 = pnand %p178, %p179
      %p181 = pneg %p180
      // Predicated region
      $region9: #{resnet18_forward.22} parent=5 // pred_check
        _
      $region10: #{resnet18_forward.22} parent=5 // pred_check_branch
        %183 = sbr.rel (%p180) target = $region12
      $region11: #{resnet18_forward.22} parent=5 // pred_region
        %s184 = ssub.s32 %s13, 1
      $region12: #{resnet18_forward.22} parent=5 // pred_fallthru
        _
      %p185 = scmp.lt.s32.totalorder %s13, 18
      // Predicated region
      $region13: #{resnet18_forward.22} parent=5 // pred_check
        %p186 = pneg %p185
      $region14: #{resnet18_forward.22} parent=5 // pred_check_branch
        %188 = sbr.rel (%p186) target = $region16
      $region15: #{resnet18_forward.22} parent=5 // pred_region
        // Predicated region
        $region17: #{resnet18_forward.22} parent=15 // pred_check
          %p189 = pneg %p54
        $region18: #{resnet18_forward.22} parent=15 // pred_check_branch
          %191 = sbr.rel (%p189) target = $region20
        $region19: #{resnet18_forward.22} parent=15 // pred_region
          %s192 = smul.u32 4, %s22
          %p193 = scmp.lt.s32.totalorder %s20, 0
          %s194 = scalar_select %p193, %s20, 0
          %p195 = scmp.lt.s32.totalorder %s192, 35
          %s196 = scalar_select %p195, %s192, 35
          %s197 = smul.addr %s194, 36
          %s198 = sadd.s32 %s196, %s197
          %s199 = smul.addr %s198, 4
          %s200 = scalar_lea.vmem %s0, %s199
          %s201 = smul.u32 4, %s22
        $region20: #{resnet18_forward.22} parent=15 // pred_fallthru
          _
        // Predicated region
        $region21: #{resnet18_forward.22} parent=15 // pred_check
          %p202 = pneg %p82
        $region22: #{resnet18_forward.22} parent=15 // pred_check_branch
          %204 = sbr.rel (%p202) target = $region24
        $region23: #{resnet18_forward.22} parent=15 // pred_region
          %s205 = sand.u32 %s72, 1
          %s206 = sand.u32 %s72, 1
          %s207 = smul.addr %s206, 512
          %s208 = scalar_lea.vmem [#allocation2], %s207
          %s209 = smul.u32 64, %s22
          %s210 = smul.u32 2, %s21
          %s211 = smul.addr %s209, 4
          %s212 = sadd.s32 %s210, %s211
          %s213 = smul.addr %s212, 4
          %s214 = scalar_lea.vmem %s1, %s213
          // Predicated region
          $region25: #{resnet18_forward.22} parent=23 // pred_check
            _
          $region26: #{resnet18_forward.22} parent=23 // pred_check_branch
            %216 = sbr.rel (0) target = $region28
          $region27: #{resnet18_forward.22} parent=23 // pred_region
            // Predicated region
            $region29: #{resnet18_forward.22} parent=27 // pred_check
              _
            $region30: #{resnet18_forward.22} parent=27 // pred_check_branch
              %218 = sbr.rel (0) target = $region32
            $region31: #{resnet18_forward.22} parent=27 // pred_region
              // Predicated region
              $region44: #{resnet18_forward.22} parent=31 // pred_check
                _
              $region45: #{resnet18_forward.22} parent=31 // pred_check_branch
                %360 = sbr.rel (0) target = $region47
              $region46: #{resnet18_forward.22} parent=31 // pred_region
                loop: start=0, step=1, limit=1
                $region48: #{resnet18_forward.22} parent=46 // loop_pre_header
                  _
                $region49: #{resnet18_forward.22} parent=46 // loop_header
                  %s362 = sphi 0, %s366
                  %p363 = scmp.ge.s32.totalorder %s362, 1
                  %s367 = sphi %s214, %s214
                  %s368 = sphi %s208, %s208
                $region50: #{resnet18_forward.22} parent=46 // loop_header_branch
                  %365 = sbr.rel (%p363) target = $region54
                $region51: #{resnet18_forward.22} parent=46 // loop_body
                  %v369 = vld [vmem:[%s367] sm:$0xff]
                  %370 = vst [vmem:[%s368] sm:$0xff] %v369
                  %v371 = vld [vmem:[%s367 + $0x10] sm:$0xff]
                  %372 = vst [vmem:[%s368 + $0x8] sm:$0xff] %v371
                  %v373 = vld [vmem:[%s367 + $0x20] sm:$0xff]
                  %374 = vst [vmem:[%s368 + $0x10] sm:$0xff] %v373
                  %v375 = vld [vmem:[%s367 + $0x30] sm:$0xff]
                  %376 = vst [vmem:[%s368 + $0x18] sm:$0xff] %v375
                  %v377 = vld [vmem:[%s367 + $0x40] sm:$0xff]
                  %378 = vst [vmem:[%s368 + $0x20] sm:$0xff] %v377
                  %v379 = vld [vmem:[%s367 + $0x50] sm:$0xff]
                  %380 = vst [vmem:[%s368 + $0x28] sm:$0xff] %v379
                  %v381 = vld [vmem:[%s367 + $0x60] sm:$0xff]
                  %382 = vst [vmem:[%s368 + $0x30] sm:$0xff] %v381
                  %v383 = vld [vmem:[%s367 + $0x70] sm:$0xff]
                  %384 = vst [vmem:[%s368 + $0x38] sm:$0xff] %v383
                  %v385 = vld [vmem:[%s367 + $0x80] sm:$0xff]
                  %386 = vst [vmem:[%s368 + $0x40] sm:$0xff] %v385
                  %v387 = vld [vmem:[%s367 + $0x90] sm:$0xff]
                  %388 = vst [vmem:[%s368 + $0x48] sm:$0xff] %v387
                  %v389 = vld [vmem:[%s367 + $0xa0] sm:$0xff]
                  %390 = vst [vmem:[%s368 + $0x50] sm:$0xff] %v389
                  %v391 = vld [vmem:[%s367 + $0xb0] sm:$0xff]
                  %392 = vst [vmem:[%s368 + $0x58] sm:$0xff] %v391
                  %v393 = vld [vmem:[%s367 + $0xc0] sm:$0xff]
                  %394 = vst [vmem:[%s368 + $0x60] sm:$0xff] %v393
                  %v395 = vld [vmem:[%s367 + $0xd0] sm:$0xff]
                  %396 = vst [vmem:[%s368 + $0x68] sm:$0xff] %v395
                  %v397 = vld [vmem:[%s367 + $0xe0] sm:$0xff]
                  %398 = vst [vmem:[%s368 + $0x70] sm:$0xff] %v397
                  %v399 = vld [vmem:[%s367 + $0xf0] sm:$0xff]
                  %400 = vst [vmem:[%s368 + $0x78] sm:$0xff] %v399
                  %v401 = vld [vmem:[%s367 + $0x100] sm:$0xff]
                  %402 = vst [vmem:[%s368 + $0x80] sm:$0xff] %v401
                  %v403 = vld [vmem:[%s367 + $0x110] sm:$0xff]
                  %404 = vst [vmem:[%s368 + $0x88] sm:$0xff] %v403
                  %v405 = vld [vmem:[%s367 + $0x120] sm:$0xff]
                  %406 = vst [vmem:[%s368 + $0x90] sm:$0xff] %v405
                  %v407 = vld [vmem:[%s367 + $0x130] sm:$0xff]
                  %408 = vst [vmem:[%s368 + $0x98] sm:$0xff] %v407
                  %v409 = vld [vmem:[%s367 + $0x140] sm:$0xff]
                  %410 = vst [vmem:[%s368 + $0xa0] sm:$0xff] %v409
                  %v411 = vld [vmem:[%s367 + $0x150] sm:$0xff]
                  %412 = vst [vmem:[%s368 + $0xa8] sm:$0xff] %v411
                  %v413 = vld [vmem:[%s367 + $0x160] sm:$0xff]
                  %414 = vst [vmem:[%s368 + $0xb0] sm:$0xff] %v413
                  %v415 = vld [vmem:[%s367 + $0x170] sm:$0xff]
                  %416 = vst [vmem:[%s368 + $0xb8] sm:$0xff] %v415
                  %v417 = vld [vmem:[%s367 + $0x180] sm:$0xff]
                  %418 = vst [vmem:[%s368 + $0xc0] sm:$0xff] %v417
                  %v419 = vld [vmem:[%s367 + $0x190] sm:$0xff]
                  %420 = vst [vmem:[%s368 + $0xc8] sm:$0xff] %v419
                  %v421 = vld [vmem:[%s367 + $0x1a0] sm:$0xff]
                  %422 = vst [vmem:[%s368 + $0xd0] sm:$0xff] %v421
                  %v423 = vld [vmem:[%s367 + $0x1b0] sm:$0xff]
                  %424 = vst [vmem:[%s368 + $0xd8] sm:$0xff] %v423
                  %v425 = vld [vmem:[%s367 + $0x1c0] sm:$0xff]
                  %426 = vst [vmem:[%s368 + $0xe0] sm:$0xff] %v425
                  %v427 = vld [vmem:[%s367 + $0x1d0] sm:$0xff]
                  %428 = vst [vmem:[%s368 + $0xe8] sm:$0xff] %v427
                  %v429 = vld [vmem:[%s367 + $0x1e0] sm:$0xff]
                  %430 = vst [vmem:[%s368 + $0xf0] sm:$0xff] %v429
                  %v431 = vld [vmem:[%s367 + $0x1f0] sm:$0xff]
                  %432 = vst [vmem:[%s368 + $0xf8] sm:$0xff] %v431
                  %v433 = vld [vmem:[%s367 + $0x200] sm:$0xff]
                  %434 = vst [vmem:[%s368 + $0x100] sm:$0xff] %v433
                  %v435 = vld [vmem:[%s367 + $0x210] sm:$0xff]
                  %436 = vst [vmem:[%s368 + $0x108] sm:$0xff] %v435
                  %v437 = vld [vmem:[%s367 + $0x220] sm:$0xff]
                  %438 = vst [vmem:[%s368 + $0x110] sm:$0xff] %v437
                  %v439 = vld [vmem:[%s367 + $0x230] sm:$0xff]
                  %440 = vst [vmem:[%s368 + $0x118] sm:$0xff] %v439
                  %v441 = vld [vmem:[%s367 + $0x240] sm:$0xff]
                  %442 = vst [vmem:[%s368 + $0x120] sm:$0xff] %v441
                  %v443 = vld [vmem:[%s367 + $0x250] sm:$0xff]
                  %444 = vst [vmem:[%s368 + $0x128] sm:$0xff] %v443
                  %v445 = vld [vmem:[%s367 + $0x260] sm:$0xff]
                  %446 = vst [vmem:[%s368 + $0x130] sm:$0xff] %v445
                  %v447 = vld [vmem:[%s367 + $0x270] sm:$0xff]
                  %448 = vst [vmem:[%s368 + $0x138] sm:$0xff] %v447
                  %v449 = vld [vmem:[%s367 + $0x280] sm:$0xff]
                  %450 = vst [vmem:[%s368 + $0x140] sm:$0xff] %v449
                  %v451 = vld [vmem:[%s367 + $0x290] sm:$0xff]
                  %452 = vst [vmem:[%s368 + $0x148] sm:$0xff] %v451
                  %v453 = vld [vmem:[%s367 + $0x2a0] sm:$0xff]
                  %454 = vst [vmem:[%s368 + $0x150] sm:$0xff] %v453
                  %v455 = vld [vmem:[%s367 + $0x2b0] sm:$0xff]
                  %456 = vst [vmem:[%s368 + $0x158] sm:$0xff] %v455
                  %v457 = vld [vmem:[%s367 + $0x2c0] sm:$0xff]
                  %458 = vst [vmem:[%s368 + $0x160] sm:$0xff] %v457
                  %v459 = vld [vmem:[%s367 + $0x2d0] sm:$0xff]
                  %460 = vst [vmem:[%s368 + $0x168] sm:$0xff] %v459
                  %v461 = vld [vmem:[%s367 + $0x2e0] sm:$0xff]
                  %462 = vst [vmem:[%s368 + $0x170] sm:$0xff] %v461
                  %v463 = vld [vmem:[%s367 + $0x2f0] sm:$0xff]
                  %464 = vst [vmem:[%s368 + $0x178] sm:$0xff] %v463
                  %v465 = vld [vmem:[%s367 + $0x300] sm:$0xff]
                  %466 = vst [vmem:[%s368 + $0x180] sm:$0xff] %v465
                  %v467 = vld [vmem:[%s367 + $0x310] sm:$0xff]
                  %468 = vst [vmem:[%s368 + $0x188] sm:$0xff] %v467
                  %v469 = vld [vmem:[%s367 + $0x320] sm:$0xff]
                  %470 = vst [vmem:[%s368 + $0x190] sm:$0xff] %v469
                  %v471 = vld [vmem:[%s367 + $0x330] sm:$0xff]
                  %472 = vst [vmem:[%s368 + $0x198] sm:$0xff] %v471
                  %v473 = vld [vmem:[%s367 + $0x340] sm:$0xff]
                  %474 = vst [vmem:[%s368 + $0x1a0] sm:$0xff] %v473
                  %v475 = vld [vmem:[%s367 + $0x350] sm:$0xff]
                  %476 = vst [vmem:[%s368 + $0x1a8] sm:$0xff] %v475
                  %v477 = vld [vmem:[%s367 + $0x360] sm:$0xff]
                  %478 = vst [vmem:[%s368 + $0x1b0] sm:$0xff] %v477
                  %v479 = vld [vmem:[%s367 + $0x370] sm:$0xff]
                  %480 = vst [vmem:[%s368 + $0x1b8] sm:$0xff] %v479
                  %v481 = vld [vmem:[%s367 + $0x380] sm:$0xff]
                  %482 = vst [vmem:[%s368 + $0x1c0] sm:$0xff] %v481
                  %v483 = vld [vmem:[%s367 + $0x390] sm:$0xff]
                  %484 = vst [vmem:[%s368 + $0x1c8] sm:$0xff] %v483
                  %v485 = vld [vmem:[%s367 + $0x3a0] sm:$0xff]
                  %486 = vst [vmem:[%s368 + $0x1d0] sm:$0xff] %v485
                  %v487 = vld [vmem:[%s367 + $0x3b0] sm:$0xff]
                  %488 = vst [vmem:[%s368 + $0x1d8] sm:$0xff] %v487
                  %v489 = vld [vmem:[%s367 + $0x3c0] sm:$0xff]
                  %490 = vst [vmem:[%s368 + $0x1e0] sm:$0xff] %v489
                  %v491 = vld [vmem:[%s367 + $0x3d0] sm:$0xff]
                  %492 = vst [vmem:[%s368 + $0x1e8] sm:$0xff] %v491
                  %v493 = vld [vmem:[%s367 + $0x3e0] sm:$0xff]
                  %494 = vst [vmem:[%s368 + $0x1f0] sm:$0xff] %v493
                  %v495 = vld [vmem:[%s367 + $0x3f0] sm:$0xff]
                  %496 = vst [vmem:[%s368 + $0x1f8] sm:$0xff] %v495
                $region52: #{resnet18_forward.22} parent=46 // loop_footer
                  %s366 = sadd.s32 1, %s362
                $region53: #{resnet18_forward.22} parent=46 // loop_footer_branch
                  %361 = sbr.rel target = $region49
                $region54: #{resnet18_forward.22} parent=46 // loop_exit
                  _
              $region47: #{resnet18_forward.22} parent=31 // pred_fallthru
                _
              // Predicated region
              $region55: #{resnet18_forward.22} parent=31 // pred_check
                _
              $region56: #{resnet18_forward.22} parent=31 // pred_check_branch
                %498 = sbr.rel target = $region58
              $region57: #{resnet18_forward.22} parent=31 // pred_region
                _
              $region58: #{resnet18_forward.22} parent=31 // pred_fallthru
                _
            $region32: #{resnet18_forward.22} parent=27 // pred_fallthru
              _
            // Predicated region
            $region33: #{resnet18_forward.22} parent=27 // pred_check
              _
            $region34: #{resnet18_forward.22} parent=27 // pred_check_branch
              %220 = sbr.rel target = $region36
            $region35: #{resnet18_forward.22} parent=27 // pred_region
              %s222 = ssub.s32 256, 1
              loop: start=0, step=1, limit=1
              $region37: #{resnet18_forward.22} parent=35 // loop_pre_header
                _
              $region38: #{resnet18_forward.22} parent=35 // loop_header
                %s224 = sphi 0, %s228
                %p225 = scmp.ge.s32.totalorder %s224, 1
                %s229 = sphi %s214, %s214
                %s230 = sphi %s208, %s208
              $region39: #{resnet18_forward.22} parent=35 // loop_header_branch
                %227 = sbr.rel (%p225) target = $region43
              $region40: #{resnet18_forward.22} parent=35 // loop_body
                %v231 = vld [vmem:[%s229] sm:%s222]
                %232 = vst [vmem:[%s230] sm:%s222] %v231
                %v233 = vld [vmem:[%s229 + $0x10] sm:%s222]
                %234 = vst [vmem:[%s230 + $0x8] sm:%s222] %v233
                %v235 = vld [vmem:[%s229 + $0x20] sm:%s222]
                %236 = vst [vmem:[%s230 + $0x10] sm:%s222] %v235
                %v237 = vld [vmem:[%s229 + $0x30] sm:%s222]
                %238 = vst [vmem:[%s230 + $0x18] sm:%s222] %v237
                %v239 = vld [vmem:[%s229 + $0x40] sm:%s222]
                %240 = vst [vmem:[%s230 + $0x20] sm:%s222] %v239
                %v241 = vld [vmem:[%s229 + $0x50] sm:%s222]
                %242 = vst [vmem:[%s230 + $0x28] sm:%s222] %v241
                %v243 = vld [vmem:[%s229 + $0x60] sm:%s222]
                %244 = vst [vmem:[%s230 + $0x30] sm:%s222] %v243
                %v245 = vld [vmem:[%s229 + $0x70] sm:%s222]
                %246 = vst [vmem:[%s230 + $0x38] sm:%s222] %v245
                %v247 = vld [vmem:[%s229 + $0x80] sm:%s222]
                %248 = vst [vmem:[%s230 + $0x40] sm:%s222] %v247
                %v249 = vld [vmem:[%s229 + $0x90] sm:%s222]
                %250 = vst [vmem:[%s230 + $0x48] sm:%s222] %v249
                %v251 = vld [vmem:[%s229 + $0xa0] sm:%s222]
                %252 = vst [vmem:[%s230 + $0x50] sm:%s222] %v251
                %v253 = vld [vmem:[%s229 + $0xb0] sm:%s222]
                %254 = vst [vmem:[%s230 + $0x58] sm:%s222] %v253
                %v255 = vld [vmem:[%s229 + $0xc0] sm:%s222]
                %256 = vst [vmem:[%s230 + $0x60] sm:%s222] %v255
                %v257 = vld [vmem:[%s229 + $0xd0] sm:%s222]
                %258 = vst [vmem:[%s230 + $0x68] sm:%s222] %v257
                %v259 = vld [vmem:[%s229 + $0xe0] sm:%s222]
                %260 = vst [vmem:[%s230 + $0x70] sm:%s222] %v259
                %v261 = vld [vmem:[%s229 + $0xf0] sm:%s222]
                %262 = vst [vmem:[%s230 + $0x78] sm:%s222] %v261
                %v263 = vld [vmem:[%s229 + $0x100] sm:%s222]
                %264 = vst [vmem:[%s230 + $0x80] sm:%s222] %v263
                %v265 = vld [vmem:[%s229 + $0x110] sm:%s222]
                %266 = vst [vmem:[%s230 + $0x88] sm:%s222] %v265
                %v267 = vld [vmem:[%s229 + $0x120] sm:%s222]
                %268 = vst [vmem:[%s230 + $0x90] sm:%s222] %v267
                %v269 = vld [vmem:[%s229 + $0x130] sm:%s222]
                %270 = vst [vmem:[%s230 + $0x98] sm:%s222] %v269
                %v271 = vld [vmem:[%s229 + $0x140] sm:%s222]
                %272 = vst [vmem:[%s230 + $0xa0] sm:%s222] %v271
                %v273 = vld [vmem:[%s229 + $0x150] sm:%s222]
                %274 = vst [vmem:[%s230 + $0xa8] sm:%s222] %v273
                %v275 = vld [vmem:[%s229 + $0x160] sm:%s222]
                %276 = vst [vmem:[%s230 + $0xb0] sm:%s222] %v275
                %v277 = vld [vmem:[%s229 + $0x170] sm:%s222]
                %278 = vst [vmem:[%s230 + $0xb8] sm:%s222] %v277
                %v279 = vld [vmem:[%s229 + $0x180] sm:%s222]
                %280 = vst [vmem:[%s230 + $0xc0] sm:%s222] %v279
                %v281 = vld [vmem:[%s229 + $0x190] sm:%s222]
                %282 = vst [vmem:[%s230 + $0xc8] sm:%s222] %v281
                %v283 = vld [vmem:[%s229 + $0x1a0] sm:%s222]
                %284 = vst [vmem:[%s230 + $0xd0] sm:%s222] %v283
                %v285 = vld [vmem:[%s229 + $0x1b0] sm:%s222]
                %286 = vst [vmem:[%s230 + $0xd8] sm:%s222] %v285
                %v287 = vld [vmem:[%s229 + $0x1c0] sm:%s222]
                %288 = vst [vmem:[%s230 + $0xe0] sm:%s222] %v287
                %v289 = vld [vmem:[%s229 + $0x1d0] sm:%s222]
                %290 = vst [vmem:[%s230 + $0xe8] sm:%s222] %v289
                %v291 = vld [vmem:[%s229 + $0x1e0] sm:%s222]
                %292 = vst [vmem:[%s230 + $0xf0] sm:%s222] %v291
                %v293 = vld [vmem:[%s229 + $0x1f0] sm:%s222]
                %294 = vst [vmem:[%s230 + $0xf8] sm:%s222] %v293
                %v295 = vld [vmem:[%s229 + $0x200] sm:%s222]
                %296 = vst [vmem:[%s230 + $0x100] sm:%s222] %v295
                %v297 = vld [vmem:[%s229 + $0x210] sm:%s222]
                %298 = vst [vmem:[%s230 + $0x108] sm:%s222] %v297
                %v299 = vld [vmem:[%s229 + $0x220] sm:%s222]
                %300 = vst [vmem:[%s230 + $0x110] sm:%s222] %v299
                %v301 = vld [vmem:[%s229 + $0x230] sm:%s222]
                %302 = vst [vmem:[%s230 + $0x118] sm:%s222] %v301
                %v303 = vld [vmem:[%s229 + $0x240] sm:%s222]
                %304 = vst [vmem:[%s230 + $0x120] sm:%s222] %v303
                %v305 = vld [vmem:[%s229 + $0x250] sm:%s222]
                %306 = vst [vmem:[%s230 + $0x128] sm:%s222] %v305
                %v307 = vld [vmem:[%s229 + $0x260] sm:%s222]
                %308 = vst [vmem:[%s230 + $0x130] sm:%s222] %v307
                %v309 = vld [vmem:[%s229 + $0x270] sm:%s222]
                %310 = vst [vmem:[%s230 + $0x138] sm:%s222] %v309
                %v311 = vld [vmem:[%s229 + $0x280] sm:%s222]
                %312 = vst [vmem:[%s230 + $0x140] sm:%s222] %v311
                %v313 = vld [vmem:[%s229 + $0x290] sm:%s222]
                %314 = vst [vmem:[%s230 + $0x148] sm:%s222] %v313
                %v315 = vld [vmem:[%s229 + $0x2a0] sm:%s222]
                %316 = vst [vmem:[%s230 + $0x150] sm:%s222] %v315
                %v317 = vld [vmem:[%s229 + $0x2b0] sm:%s222]
                %318 = vst [vmem:[%s230 + $0x158] sm:%s222] %v317
                %v319 = vld [vmem:[%s229 + $0x2c0] sm:%s222]
                %320 = vst [vmem:[%s230 + $0x160] sm:%s222] %v319
                %v321 = vld [vmem:[%s229 + $0x2d0] sm:%s222]
                %322 = vst [vmem:[%s230 + $0x168] sm:%s222] %v321
                %v323 = vld [vmem:[%s229 + $0x2e0] sm:%s222]
                %324 = vst [vmem:[%s230 + $0x170] sm:%s222] %v323
                %v325 = vld [vmem:[%s229 + $0x2f0] sm:%s222]
                %326 = vst [vmem:[%s230 + $0x178] sm:%s222] %v325
                %v327 = vld [vmem:[%s229 + $0x300] sm:%s222]
                %328 = vst [vmem:[%s230 + $0x180] sm:%s222] %v327
                %v329 = vld [vmem:[%s229 + $0x310] sm:%s222]
                %330 = vst [vmem:[%s230 + $0x188] sm:%s222] %v329
                %v331 = vld [vmem:[%s229 + $0x320] sm:%s222]
                %332 = vst [vmem:[%s230 + $0x190] sm:%s222] %v331
                %v333 = vld [vmem:[%s229 + $0x330] sm:%s222]
                %334 = vst [vmem:[%s230 + $0x198] sm:%s222] %v333
                %v335 = vld [vmem:[%s229 + $0x340] sm:%s222]
                %336 = vst [vmem:[%s230 + $0x1a0] sm:%s222] %v335
                %v337 = vld [vmem:[%s229 + $0x350] sm:%s222]
                %338 = vst [vmem:[%s230 + $0x1a8] sm:%s222] %v337
                %v339 = vld [vmem:[%s229 + $0x360] sm:%s222]
                %340 = vst [vmem:[%s230 + $0x1b0] sm:%s222] %v339
                %v341 = vld [vmem:[%s229 + $0x370] sm:%s222]
                %342 = vst [vmem:[%s230 + $0x1b8] sm:%s222] %v341
                %v343 = vld [vmem:[%s229 + $0x380] sm:%s222]
                %344 = vst [vmem:[%s230 + $0x1c0] sm:%s222] %v343
                %v345 = vld [vmem:[%s229 + $0x390] sm:%s222]
                %346 = vst [vmem:[%s230 + $0x1c8] sm:%s222] %v345
                %v347 = vld [vmem:[%s229 + $0x3a0] sm:%s222]
                %348 = vst [vmem:[%s230 + $0x1d0] sm:%s222] %v347
                %v349 = vld [vmem:[%s229 + $0x3b0] sm:%s222]
                %350 = vst [vmem:[%s230 + $0x1d8] sm:%s222] %v349
                %v351 = vld [vmem:[%s229 + $0x3c0] sm:%s222]
                %352 = vst [vmem:[%s230 + $0x1e0] sm:%s222] %v351
                %v353 = vld [vmem:[%s229 + $0x3d0] sm:%s222]
                %354 = vst [vmem:[%s230 + $0x1e8] sm:%s222] %v353
                %v355 = vld [vmem:[%s229 + $0x3e0] sm:%s222]
                %356 = vst [vmem:[%s230 + $0x1f0] sm:%s222] %v355
                %v357 = vld [vmem:[%s229 + $0x3f0] sm:%s222]
                %358 = vst [vmem:[%s230 + $0x1f8] sm:%s222] %v357
              $region41: #{resnet18_forward.22} parent=35 // loop_footer
                %s228 = sadd.s32 1, %s224
              $region42: #{resnet18_forward.22} parent=35 // loop_footer_branch
                %223 = sbr.rel target = $region38
              $region43: #{resnet18_forward.22} parent=35 // loop_exit
                _
            $region36: #{resnet18_forward.22} parent=27 // pred_fallthru
              _
          $region28: #{resnet18_forward.22} parent=23 // pred_fallthru
            _
          %499 = vnop
        $region24: #{resnet18_forward.22} parent=15 // pred_fallthru
          _
        // Predicated region
        $region59: #{resnet18_forward.22} parent=15 // pred_check
          %p500 = pneg %p108
        $region60: #{resnet18_forward.22} parent=15 // pred_check_branch
          %502 = sbr.rel (%p500) target = $region62
        $region61: #{resnet18_forward.22} parent=15 // pred_region
          %s503 = sand.u32 %s98, 1
          %s504 = scalar_lea.sflag [#allocation4], %s503
          %s505 = sand.u32 %s98, 1
          %s506 = smul.addr %s505, 2
          %s507 = scalar_lea.vmem [#allocation3], %s506
          %s508 = smul.u32 2, %s21
          %510 = vsyncadd %s504, 0
          %s511 = scalar_lea.hbm %s2, %s508
          %s513 = sshll.u32 %s511, 4
          %s514 = int_to_ptr.hbm [resolvable:$true] %s513
          %s515 = sshll.u32 %s507, 4
          %s516 = int_to_ptr.vmem [resolvable:$true] %s515
          %518 = dma.hbm_to_vmem [thread:$0]  %s514, 32, %s516, %s504
        $region62: #{resnet18_forward.22} parent=15 // pred_fallthru
          _
        // Predicated region
        $region63: #{resnet18_forward.22} parent=15 // pred_check
          %p519 = pneg %p136
        $region64: #{resnet18_forward.22} parent=15 // pred_check_branch
          %521 = sbr.rel (%p519) target = $region66
        $region65: #{resnet18_forward.22} parent=15 // pred_region
          %s522 = smul.u32 2, %s21
          %p523 = scmp.lt.s32.totalorder %s20, 0
          %s524 = scalar_select %p523, %s20, 0
          %p525 = scmp.lt.s32.totalorder %s522, 3
          %s526 = scalar_select %p525, %s522, 3
          %s527 = smul.addr %s524, 4
          %s528 = sadd.s32 %s526, %s527
          %s529 = smul.addr %s528, 8
          %s530 = scalar_lea.vmem %s3, %s529
          %s531 = smul.u32 2, %s21
        $region66: #{resnet18_forward.22} parent=15 // pred_fallthru
          _
      $region16: #{resnet18_forward.22} parent=5 // pred_fallthru
        _
      %p532 = scmp.le.s32.totalorder 1, %s13
      %p533 = scmp.lt.s32.totalorder %s13, 19
      %p534 = pnand %p532, %p533
      %p535 = pneg %p534
      // Predicated region
      $region67: #{resnet18_forward.22} parent=5 // pred_check
        _
      $region68: #{resnet18_forward.22} parent=5 // pred_check_branch
        %537 = sbr.rel (%p534) target = $region70
      $region69: #{resnet18_forward.22} parent=5 // pred_region
        %s538 = ssub.s32 %s13, 1
        %s539 = sand.u32 %s75, 1
        %s540 = sand.u32 %s75, 1
        %s541 = smul.addr %s540, 512
        %s542 = scalar_lea.vmem [#allocation2], %s541
        // Predicated region
        $region71: #{resnet18_forward.22} parent=69 // pred_check
          %p543 = pneg %p88
        $region72: #{resnet18_forward.22} parent=69 // pred_check_branch
          %545 = sbr.rel (%p543) target = $region74
        $region73: #{resnet18_forward.22} parent=69 // pred_region
          _
        $region74: #{resnet18_forward.22} parent=69 // pred_fallthru
          _
        %s546 = sand.u32 %s101, 1
        %s547 = scalar_lea.sflag [#allocation4], %s546
        %s548 = sand.u32 %s101, 1
        %s549 = smul.addr %s548, 2
        %s550 = scalar_lea.vmem [#allocation3], %s549
        // Predicated region
        $region75: #{resnet18_forward.22} parent=69 // pred_check
          %p551 = pneg %p114
        $region76: #{resnet18_forward.22} parent=69 // pred_check_branch
          %553 = sbr.rel (%p551) target = $region78
        $region77: #{resnet18_forward.22} parent=69 // pred_region
          %555 = dma.done %s547, 32
        $region78: #{resnet18_forward.22} parent=69 // pred_fallthru
          _
        %s556 = smul.u32 4, %s25
        %p557 = scmp.lt.s32.totalorder %s23, 0
        %s558 = scalar_select %p557, %s23, 0
        %p559 = scmp.lt.s32.totalorder %s556, 35
        %s560 = scalar_select %p559, %s556, 35
        %s561 = smul.addr %s558, 36
        %s562 = sadd.s32 %s560, %s561
        %s563 = smul.addr %s562, 4
        %s564 = scalar_lea.vmem %s0, %s563
        %p565 = pneg %p60
        %p566 = pneg %p57
        %s567 = sand.u32 %s75, 1
        %s568 = sand.u32 %s75, 1
        %s569 = smul.addr %s568, 512
        %s570 = scalar_lea.vmem [#allocation2], %s569
        %p571 = pneg %p88
        %p572 = pneg %p85
        %s573 = sand.u32 %s101, 1
        %s574 = scalar_lea.sflag [#allocation4], %s573
        %s575 = sand.u32 %s101, 1
        %s576 = smul.addr %s575, 2
        %s577 = scalar_lea.vmem [#allocation3], %s576
        %p578 = pneg %p114
        %p579 = pneg %p111
        %s580 = smul.u32 2, %s24
        %p581 = scmp.lt.s32.totalorder %s23, 0
        %s582 = scalar_select %p581, %s23, 0
        %p583 = scmp.lt.s32.totalorder %s580, 3
        %s584 = scalar_select %p583, %s580, 3
        %s585 = smul.addr %s582, 4
        %s586 = sadd.s32 %s584, %s585
        %s587 = smul.addr %s586, 8
        %s588 = scalar_lea.vmem %s3, %s587
        %p589 = pneg %p142
        %p590 = pneg %p139
        %p591 = pneg %p170
        %p592 = pneg %p167
        %s593 = smul.u32 2, %s24
        %p594 = scmp.lt.s32.totalorder %s23, 0
        %s595 = scalar_select %p594, %s23, 0
        %p596 = scmp.lt.s32.totalorder %s593, 3
        %s597 = scalar_select %p596, %s593, 3
        %s598 = smul.addr %s595, 4
        %s599 = sadd.s32 %s597, %s598
        %s600 = smul.addr %s599, 8
        %s601 = scalar_lea.vmem %s4, %s600
        %s602 = smul.u32 4, %s25
        %p603 = scmp.lt.s32.totalorder %s23, 0
        %s604 = scalar_select %p603, %s23, 0
        %p605 = scmp.lt.s32.totalorder %s602, 35
        %s606 = scalar_select %p605, %s602, 35
        %s607 = smul.addr %s604, 36
        %s608 = sadd.s32 %s606, %s607
        %s609 = smul.addr %s608, 4
        %s610 = scalar_lea.vmem %s0, %s609
        %s611 = smul.u32 4, %s25
        %s612 = smul.u32 64, %s25
        %s613 = smul.u32 2, %s24
        %s614 = smul.u32 2, %s24
        %s615 = smul.u32 2, %s24
        %p616 = scmp.lt.s32.totalorder %s23, 0
        %s617 = scalar_select %p616, %s23, 0
        %p618 = scmp.lt.s32.totalorder %s615, 3
        %s619 = scalar_select %p618, %s615, 3
        %s620 = smul.addr %s617, 4
        %s621 = sadd.s32 %s619, %s620
        %s622 = smul.addr %s621, 8
        %s623 = scalar_lea.vmem %s3, %s622
        %s624 = smul.u32 2, %s24
        %s625 = smul.u32 2, %s24
        %p626 = scmp.lt.s32.totalorder %s23, 0
        %s627 = scalar_select %p626, %s23, 0
        %p628 = scmp.lt.s32.totalorder %s625, 3
        %s629 = scalar_select %p628, %s625, 3
        %s630 = smul.addr %s627, 4
        %s631 = sadd.s32 %s629, %s630
        %s632 = smul.addr %s631, 8
        %s633 = scalar_lea.vmem %s4, %s632
        %s634 = smul.u32 2, %s24
        %p635 = scmp.eq.s32.totalorder %s25, 0
        // Predicated region
        $region79: #{resnet18_forward.22} parent=69 // pred_check
          %p636 = pneg %p635
        $region80: #{resnet18_forward.22} parent=69 // pred_check_branch
          %638 = sbr.rel (%p636) target = $region82
        $region81: #{resnet18_forward.22} parent=69 // pred_region
          %639 = vst [vmem:[%s633] sm:$0xff] 0.0
          %640 = vst [vmem:[%s633 + $0x8] sm:$0xff] 0.0
        $region82: #{resnet18_forward.22} parent=69 // pred_fallthru
          _
        %v641 = vld [vmem:[%s633] sm:$0xff]
        %v642 = vld [vmem:[%s633 + $0x8] sm:$0xff]
        %v643 = vld [vmem:[%s610] sm:$0xff]
        %v644 = vld [vmem:[%s610 + $0x8] sm:$0xff]
        %v645 = vld [vmem:[%s542] sm:$0xff]
        %v646 = vld [vmem:[%s542 + $0x8] sm:$0xff]
        %v647 = vld [vmem:[%s542 + $0x10] sm:$0xff]
        %v648 = vld [vmem:[%s542 + $0x18] sm:$0xff]
        %v649 = vld [vmem:[%s542 + $0x20] sm:$0xff]
        %v650 = vld [vmem:[%s542 + $0x28] sm:$0xff]
        %v651 = vld [vmem:[%s542 + $0x30] sm:$0xff]
        %v652 = vld [vmem:[%s542 + $0x38] sm:$0xff]
        %v653 = vld [vmem:[%s542 + $0x40] sm:$0xff]
        %v654 = vld [vmem:[%s542 + $0x48] sm:$0xff]
        %v655 = vld [vmem:[%s542 + $0x50] sm:$0xff]
        %v656 = vld [vmem:[%s542 + $0x58] sm:$0xff]
        %v657 = vld [vmem:[%s542 + $0x60] sm:$0xff]
        %v658 = vld [vmem:[%s542 + $0x68] sm:$0xff]
        %v659 = vld [vmem:[%s542 + $0x70] sm:$0xff]
        %v660 = vld [vmem:[%s542 + $0x78] sm:$0xff]
        %v661 = vld [vmem:[%s542 + $0x80] sm:$0xff]
        %v662 = vld [vmem:[%s542 + $0x88] sm:$0xff]
        %v663 = vld [vmem:[%s542 + $0x90] sm:$0xff]
        %v664 = vld [vmem:[%s542 + $0x98] sm:$0xff]
        %v665 = vld [vmem:[%s542 + $0xa0] sm:$0xff]
        %v666 = vld [vmem:[%s542 + $0xa8] sm:$0xff]
        %v667 = vld [vmem:[%s542 + $0xb0] sm:$0xff]
        %v668 = vld [vmem:[%s542 + $0xb8] sm:$0xff]
        %v669 = vld [vmem:[%s542 + $0xc0] sm:$0xff]
        %v670 = vld [vmem:[%s542 + $0xc8] sm:$0xff]
        %v671 = vld [vmem:[%s542 + $0xd0] sm:$0xff]
        %v672 = vld [vmem:[%s542 + $0xd8] sm:$0xff]
        %v673 = vld [vmem:[%s542 + $0xe0] sm:$0xff]
        %v674 = vld [vmem:[%s542 + $0xe8] sm:$0xff]
        %v675 = vld [vmem:[%s542 + $0xf0] sm:$0xff]
        %v676 = vld [vmem:[%s542 + $0xf8] sm:$0xff]
        %v677 = vld [vmem:[%s542 + $0x100] sm:$0xff]
        %v678 = vld [vmem:[%s542 + $0x108] sm:$0xff]
        %v679 = vld [vmem:[%s542 + $0x110] sm:$0xff]
        %v680 = vld [vmem:[%s542 + $0x118] sm:$0xff]
        %v681 = vld [vmem:[%s542 + $0x120] sm:$0xff]
        %v682 = vld [vmem:[%s542 + $0x128] sm:$0xff]
        %v683 = vld [vmem:[%s542 + $0x130] sm:$0xff]
        %v684 = vld [vmem:[%s542 + $0x138] sm:$0xff]
        %v685 = vld [vmem:[%s542 + $0x140] sm:$0xff]
        %v686 = vld [vmem:[%s542 + $0x148] sm:$0xff]
        %v687 = vld [vmem:[%s542 + $0x150] sm:$0xff]
        %v688 = vld [vmem:[%s542 + $0x158] sm:$0xff]
        %v689 = vld [vmem:[%s542 + $0x160] sm:$0xff]
        %v690 = vld [vmem:[%s542 + $0x168] sm:$0xff]
        %v691 = vld [vmem:[%s542 + $0x170] sm:$0xff]
        %v692 = vld [vmem:[%s542 + $0x178] sm:$0xff]
        %v693 = vld [vmem:[%s542 + $0x180] sm:$0xff]
        %v694 = vld [vmem:[%s542 + $0x188] sm:$0xff]
        %v695 = vld [vmem:[%s542 + $0x190] sm:$0xff]
        %v696 = vld [vmem:[%s542 + $0x198] sm:$0xff]
        %v697 = vld [vmem:[%s542 + $0x1a0] sm:$0xff]
        %v698 = vld [vmem:[%s542 + $0x1a8] sm:$0xff]
        %v699 = vld [vmem:[%s542 + $0x1b0] sm:$0xff]
        %v700 = vld [vmem:[%s542 + $0x1b8] sm:$0xff]
        %v701 = vld [vmem:[%s542 + $0x1c0] sm:$0xff]
        %v702 = vld [vmem:[%s542 + $0x1c8] sm:$0xff]
        %v703 = vld [vmem:[%s542 + $0x1d0] sm:$0xff]
        %v704 = vld [vmem:[%s542 + $0x1d8] sm:$0xff]
        %v705 = vld [vmem:[%s542 + $0x1e0] sm:$0xff]
        %v706 = vld [vmem:[%s542 + $0x1e8] sm:$0xff]
        %v707 = vld [vmem:[%s542 + $0x1f0] sm:$0xff]
        %v708 = vld [vmem:[%s542 + $0x1f8] sm:$0xff]
        %v711 = vunpack.c.l.b16 %v643
        %v712 = vunpack.c.h.b16 %v643
        %v713 = vunpack.c.l.b16 %v644
        %v714 = vunpack.c.h.b16 %v644
        %v715 = vpack.c.b16 %v711, %v711
        %v716 = vpack.c.b16 %v712, %v712
        %v717 = vpack.c.b16 %v713, %v713
        %v718 = vpack.c.b16 %v714, %v714
        %v787 = vunpack.c.l.b16 %v645
        %v788 = vunpack.c.h.b16 %v645
        %v789 = vunpack.c.l.b16 %v646
        %v790 = vunpack.c.h.b16 %v646
        %v791 = vunpack.c.l.b16 %v647
        %v792 = vunpack.c.h.b16 %v647
        %v793 = vunpack.c.l.b16 %v648
        %v794 = vunpack.c.h.b16 %v648
        %v795 = vunpack.c.l.b16 %v649
        %v796 = vunpack.c.h.b16 %v649
        %v797 = vunpack.c.l.b16 %v650
        %v798 = vunpack.c.h.b16 %v650
        %v799 = vunpack.c.l.b16 %v651
        %v800 = vunpack.c.h.b16 %v651
        %v801 = vunpack.c.l.b16 %v652
        %v802 = vunpack.c.h.b16 %v652
        %v803 = vunpack.c.l.b16 %v653
        %v804 = vunpack.c.h.b16 %v653
        %v805 = vunpack.c.l.b16 %v654
        %v806 = vunpack.c.h.b16 %v654
        %v807 = vunpack.c.l.b16 %v655
        %v808 = vunpack.c.h.b16 %v655
        %v809 = vunpack.c.l.b16 %v656
        %v810 = vunpack.c.h.b16 %v656
        %v811 = vunpack.c.l.b16 %v657
        %v812 = vunpack.c.h.b16 %v657
        %v813 = vunpack.c.l.b16 %v658
        %v814 = vunpack.c.h.b16 %v658
        %v815 = vunpack.c.l.b16 %v659
        %v816 = vunpack.c.h.b16 %v659
        %v817 = vunpack.c.l.b16 %v660
        %v818 = vunpack.c.h.b16 %v660
        %v819 = vunpack.c.l.b16 %v661
        %v820 = vunpack.c.h.b16 %v661
        %v821 = vunpack.c.l.b16 %v662
        %v822 = vunpack.c.h.b16 %v662
        %v823 = vunpack.c.l.b16 %v663
        %v824 = vunpack.c.h.b16 %v663
        %v825 = vunpack.c.l.b16 %v664
        %v826 = vunpack.c.h.b16 %v664
        %v827 = vunpack.c.l.b16 %v665
        %v828 = vunpack.c.h.b16 %v665
        %v829 = vunpack.c.l.b16 %v666
        %v830 = vunpack.c.h.b16 %v666
        %v831 = vunpack.c.l.b16 %v667
        %v832 = vunpack.c.h.b16 %v667
        %v833 = vunpack.c.l.b16 %v668
        %v834 = vunpack.c.h.b16 %v668
        %v835 = vunpack.c.l.b16 %v669
        %v836 = vunpack.c.h.b16 %v669
        %v837 = vunpack.c.l.b16 %v670
        %v838 = vunpack.c.h.b16 %v670
        %v839 = vunpack.c.l.b16 %v671
        %v840 = vunpack.c.h.b16 %v671
        %v841 = vunpack.c.l.b16 %v672
        %v842 = vunpack.c.h.b16 %v672
        %v843 = vunpack.c.l.b16 %v673
        %v844 = vunpack.c.h.b16 %v673
        %v845 = vunpack.c.l.b16 %v674
        %v846 = vunpack.c.h.b16 %v674
        %v847 = vunpack.c.l.b16 %v675
        %v848 = vunpack.c.h.b16 %v675
        %v849 = vunpack.c.l.b16 %v676
        %v850 = vunpack.c.h.b16 %v676
        %v851 = vunpack.c.l.b16 %v677
        %v852 = vunpack.c.h.b16 %v677
        %v853 = vunpack.c.l.b16 %v678
        %v854 = vunpack.c.h.b16 %v678
        %v855 = vunpack.c.l.b16 %v679
        %v856 = vunpack.c.h.b16 %v679
        %v857 = vunpack.c.l.b16 %v680
        %v858 = vunpack.c.h.b16 %v680
        %v859 = vunpack.c.l.b16 %v681
        %v860 = vunpack.c.h.b16 %v681
        %v861 = vunpack.c.l.b16 %v682
        %v862 = vunpack.c.h.b16 %v682
        %v863 = vunpack.c.l.b16 %v683
        %v864 = vunpack.c.h.b16 %v683
        %v865 = vunpack.c.l.b16 %v684
        %v866 = vunpack.c.h.b16 %v684
        %v867 = vunpack.c.l.b16 %v685
        %v868 = vunpack.c.h.b16 %v685
        %v869 = vunpack.c.l.b16 %v686
        %v870 = vunpack.c.h.b16 %v686
        %v871 = vunpack.c.l.b16 %v687
        %v872 = vunpack.c.h.b16 %v687
        %v873 = vunpack.c.l.b16 %v688
        %v874 = vunpack.c.h.b16 %v688
        %v875 = vunpack.c.l.b16 %v689
        %v876 = vunpack.c.h.b16 %v689
        %v877 = vunpack.c.l.b16 %v690
        %v878 = vunpack.c.h.b16 %v690
        %v879 = vunpack.c.l.b16 %v691
        %v880 = vunpack.c.h.b16 %v691
        %v881 = vunpack.c.l.b16 %v692
        %v882 = vunpack.c.h.b16 %v692
        %v883 = vunpack.c.l.b16 %v693
        %v884 = vunpack.c.h.b16 %v693
        %v885 = vunpack.c.l.b16 %v694
        %v886 = vunpack.c.h.b16 %v694
        %v887 = vunpack.c.l.b16 %v695
        %v888 = vunpack.c.h.b16 %v695
        %v889 = vunpack.c.l.b16 %v696
        %v890 = vunpack.c.h.b16 %v696
        %v891 = vunpack.c.l.b16 %v697
        %v892 = vunpack.c.h.b16 %v697
        %v893 = vunpack.c.l.b16 %v698
        %v894 = vunpack.c.h.b16 %v698
        %v895 = vunpack.c.l.b16 %v699
        %v896 = vunpack.c.h.b16 %v699
        %v897 = vunpack.c.l.b16 %v700
        %v898 = vunpack.c.h.b16 %v700
        %v899 = vunpack.c.l.b16 %v701
        %v900 = vunpack.c.h.b16 %v701
        %v901 = vunpack.c.l.b16 %v702
        %v902 = vunpack.c.h.b16 %v702
        %v903 = vunpack.c.l.b16 %v703
        %v904 = vunpack.c.h.b16 %v703
        %v905 = vunpack.c.l.b16 %v704
        %v906 = vunpack.c.h.b16 %v704
        %v907 = vunpack.c.l.b16 %v705
        %v908 = vunpack.c.h.b16 %v705
        %v909 = vunpack.c.l.b16 %v706
        %v910 = vunpack.c.h.b16 %v706
        %v911 = vunpack.c.l.b16 %v707
        %v912 = vunpack.c.h.b16 %v707
        %v913 = vunpack.c.l.b16 %v708
        %v914 = vunpack.c.h.b16 %v708
        %v915 = vpack.c.b16 %v789, %v787
        %v916 = vpack.c.b16 %v790, %v788
        %v917 = vpack.c.b16 %v793, %v791
        %v918 = vpack.c.b16 %v794, %v792
        %v919 = vpack.c.b16 %v797, %v795
        %v920 = vpack.c.b16 %v798, %v796
        %v921 = vpack.c.b16 %v801, %v799
        %v922 = vpack.c.b16 %v802, %v800
        %v923 = vpack.c.b16 %v805, %v803
        %v924 = vpack.c.b16 %v806, %v804
        %v925 = vpack.c.b16 %v809, %v807
        %v926 = vpack.c.b16 %v810, %v808
        %v927 = vpack.c.b16 %v813, %v811
        %v928 = vpack.c.b16 %v814, %v812
        %v929 = vpack.c.b16 %v817, %v815
        %v930 = vpack.c.b16 %v818, %v816
        %v931 = vpack.c.b16 %v821, %v819
        %v932 = vpack.c.b16 %v822, %v820
        %v933 = vpack.c.b16 %v825, %v823
        %v934 = vpack.c.b16 %v826, %v824
        %v935 = vpack.c.b16 %v829, %v827
        %v936 = vpack.c.b16 %v830, %v828
        %v937 = vpack.c.b16 %v833, %v831
        %v938 = vpack.c.b16 %v834, %v832
        %v939 = vpack.c.b16 %v837, %v835
        %v940 = vpack.c.b16 %v838, %v836
        %v941 = vpack.c.b16 %v841, %v839
        %v942 = vpack.c.b16 %v842, %v840
        %v943 = vpack.c.b16 %v845, %v843
        %v944 = vpack.c.b16 %v846, %v844
        %v945 = vpack.c.b16 %v849, %v847
        %v946 = vpack.c.b16 %v850, %v848
        %v947 = vpack.c.b16 %v853, %v851
        %v948 = vpack.c.b16 %v854, %v852
        %v949 = vpack.c.b16 %v857, %v855
        %v950 = vpack.c.b16 %v858, %v856
        %v951 = vpack.c.b16 %v861, %v859
        %v952 = vpack.c.b16 %v862, %v860
        %v953 = vpack.c.b16 %v865, %v863
        %v954 = vpack.c.b16 %v866, %v864
        %v955 = vpack.c.b16 %v869, %v867
        %v956 = vpack.c.b16 %v870, %v868
        %v957 = vpack.c.b16 %v873, %v871
        %v958 = vpack.c.b16 %v874, %v872
        %v959 = vpack.c.b16 %v877, %v875
        %v960 = vpack.c.b16 %v878, %v876
        %v961 = vpack.c.b16 %v881, %v879
        %v962 = vpack.c.b16 %v882, %v880
        %v963 = vpack.c.b16 %v885, %v883
        %v964 = vpack.c.b16 %v886, %v884
        %v965 = vpack.c.b16 %v889, %v887
        %v966 = vpack.c.b16 %v890, %v888
        %v967 = vpack.c.b16 %v893, %v891
        %v968 = vpack.c.b16 %v894, %v892
        %v969 = vpack.c.b16 %v897, %v895
        %v970 = vpack.c.b16 %v898, %v896
        %v971 = vpack.c.b16 %v901, %v899
        %v972 = vpack.c.b16 %v902, %v900
        %v973 = vpack.c.b16 %v905, %v903
        %v974 = vpack.c.b16 %v906, %v904
        %v975 = vpack.c.b16 %v909, %v907
        %v976 = vpack.c.b16 %v910, %v908
        %v977 = vpack.c.b16 %v913, %v911
        %v978 = vpack.c.b16 %v914, %v912
        %1043 = vmatpush.bf16.msra.mxu0 %v929
        %1044 = vmatpush.bf16.msra.mxu0 %v927
        %1045 = vmatpush.bf16.msra.mxu0 %v925
        %1046 = vmatpush.bf16.msra.mxu0 %v923
        %1047 = vmatpush.bf16.msra.mxu0 %v921
        %1048 = vmatpush.bf16.msra.mxu0 %v919
        %1049 = vmatpush.bf16.msra.mxu0 %v917
        %1050 = vmatpush.bf16.msra.mxu0 %v915
        %1051 = vmatmul.bf16.gmra.mxu0 %v715
        %v1052 = vpop.f32.mrf.mxu0
        %v1053 = vadd.f32 0.0, %v1052
        %v1054 = vpop.f32.mrf.mxu0
        %1055 = vdwg.mxu0
        %1056 = vmatpush.bf16.msra.mxu0 %v945
        %1057 = vmatpush.bf16.msra.mxu0 %v943
        %1058 = vmatpush.bf16.msra.mxu0 %v941
        %1059 = vmatpush.bf16.msra.mxu0 %v939
        %1060 = vmatpush.bf16.msra.mxu0 %v937
        %1061 = vmatpush.bf16.msra.mxu0 %v935
        %1062 = vmatpush.bf16.msra.mxu0 %v933
        %1063 = vmatpush.bf16.msra.mxu0 %v931
        %1064 = vmatmul.bf16.gmra.mxu0 %v716
        %v1065 = vpop.f32.mrf.mxu0
        %v1066 = vadd.f32 %v1053, %v1065
        %v1067 = vpop.f32.mrf.mxu0
        %1068 = vdwg.mxu0
        %1069 = vmatpush.bf16.msra.mxu0 %v961
        %1070 = vmatpush.bf16.msra.mxu0 %v959
        %1071 = vmatpush.bf16.msra.mxu0 %v957
        %1072 = vmatpush.bf16.msra.mxu0 %v955
        %1073 = vmatpush.bf16.msra.mxu0 %v953
        %1074 = vmatpush.bf16.msra.mxu0 %v951
        %1075 = vmatpush.bf16.msra.mxu0 %v949
        %1076 = vmatpush.bf16.msra.mxu0 %v947
        %1077 = vmatmul.bf16.gmra.mxu0 %v717
        %v1078 = vpop.f32.mrf.mxu0
        %v1079 = vadd.f32 %v1066, %v1078
        %v1080 = vpop.f32.mrf.mxu0
        %1081 = vdwg.mxu0
        %1082 = vmatpush.bf16.msra.mxu0 %v977
        %1083 = vmatpush.bf16.msra.mxu0 %v975
        %1084 = vmatpush.bf16.msra.mxu0 %v973
        %1085 = vmatpush.bf16.msra.mxu0 %v971
        %1086 = vmatpush.bf16.msra.mxu0 %v969
        %1087 = vmatpush.bf16.msra.mxu0 %v967
        %1088 = vmatpush.bf16.msra.mxu0 %v965
        %1089 = vmatpush.bf16.msra.mxu0 %v963
        %1090 = vmatmul.bf16.gmra.mxu0 %v718
        %v1091 = vpop.f32.mrf.mxu0
        %v1092 = vadd.f32 %v1079, %v1091
        %v1093 = vpop.f32.mrf.mxu0
        %1094 = vdwg.mxu0
        %1095 = vmatpush.bf16.msra.mxu0 %v930
        %1096 = vmatpush.bf16.msra.mxu0 %v928
        %1097 = vmatpush.bf16.msra.mxu0 %v926
        %1098 = vmatpush.bf16.msra.mxu0 %v924
        %1099 = vmatpush.bf16.msra.mxu0 %v922
        %1100 = vmatpush.bf16.msra.mxu0 %v920
        %1101 = vmatpush.bf16.msra.mxu0 %v918
        %1102 = vmatpush.bf16.msra.mxu0 %v916
        %1103 = vmatmul.bf16.gmra.mxu0 %v715
        %v1104 = vpop.f32.mrf.mxu0
        %v1105 = vadd.f32 0.0, %v1104
        %v1106 = vpop.f32.mrf.mxu0
        %1107 = vdwg.mxu0
        %1108 = vmatpush.bf16.msra.mxu0 %v946
        %1109 = vmatpush.bf16.msra.mxu0 %v944
        %1110 = vmatpush.bf16.msra.mxu0 %v942
        %1111 = vmatpush.bf16.msra.mxu0 %v940
        %1112 = vmatpush.bf16.msra.mxu0 %v938
        %1113 = vmatpush.bf16.msra.mxu0 %v936
        %1114 = vmatpush.bf16.msra.mxu0 %v934
        %1115 = vmatpush.bf16.msra.mxu0 %v932
        %1116 = vmatmul.bf16.gmra.mxu0 %v716
        %v1117 = vpop.f32.mrf.mxu0
        %v1118 = vadd.f32 %v1105, %v1117
        %v1119 = vpop.f32.mrf.mxu0
        %1120 = vdwg.mxu0
        %1121 = vmatpush.bf16.msra.mxu0 %v962
        %1122 = vmatpush.bf16.msra.mxu0 %v960
        %1123 = vmatpush.bf16.msra.mxu0 %v958
        %1124 = vmatpush.bf16.msra.mxu0 %v956
        %1125 = vmatpush.bf16.msra.mxu0 %v954
        %1126 = vmatpush.bf16.msra.mxu0 %v952
        %1127 = vmatpush.bf16.msra.mxu0 %v950
        %1128 = vmatpush.bf16.msra.mxu0 %v948
        %1129 = vmatmul.bf16.gmra.mxu0 %v717
        %v1130 = vpop.f32.mrf.mxu0
        %v1131 = vadd.f32 %v1118, %v1130
        %v1132 = vpop.f32.mrf.mxu0
        %1133 = vdwg.mxu0
        %1134 = vmatpush.bf16.msra.mxu0 %v978
        %1135 = vmatpush.bf16.msra.mxu0 %v976
        %1136 = vmatpush.bf16.msra.mxu0 %v974
        %1137 = vmatpush.bf16.msra.mxu0 %v972
        %1138 = vmatpush.bf16.msra.mxu0 %v970
        %1139 = vmatpush.bf16.msra.mxu0 %v968
        %1140 = vmatpush.bf16.msra.mxu0 %v966
        %1141 = vmatpush.bf16.msra.mxu0 %v964
        %1142 = vmatmul.bf16.gmra.mxu0 %v718
        %v1143 = vpop.f32.mrf.mxu0
        %v1144 = vadd.f32 %v1131, %v1143
        %v1145 = vpop.f32.mrf.mxu0
        %1146 = vdwg.mxu0
        %v1147 = vadd.f32 %v641, %v1092
        %v1148 = vadd.f32 %v642, %v1144
        %1149 = vst [vmem:[%s633] sm:$0xff] %v1147
        %1150 = vst [vmem:[%s633 + $0x8] sm:$0xff] %v1148
        %p1151 = scmp.eq.s32.totalorder %s25, 8
        // Predicated region
        $region83: #{resnet18_forward.22} parent=69 // pred_check
          %p1152 = pneg %p1151
        $region84: #{resnet18_forward.22} parent=69 // pred_check_branch
          %1154 = sbr.rel (%p1152) target = $region86
        $region85: #{resnet18_forward.22} parent=69 // pred_region
          %v1155 = vld [vmem:[%s633] sm:$0xff]
          %v1156 = vld [vmem:[%s633 + $0x8] sm:$0xff]
          %v1157 = vld [vmem:[%s550] sm:$0x3]
          %v1159 = vperm.slane %v1157, 0
          %v1160 = vperm.slane %v1157, 1
          %v1163 = vadd.f32 %v1155, %v1159
          %v1164 = vadd.f32 %v1156, %v1160
          %v1165 = vld [vmem:[%s623] sm:$0xff]
          %v1166 = vld [vmem:[%s623 + $0x8] sm:$0xff]
          %v1167 = vadd.f32 %v1163, %v1165
          %v1168 = vadd.f32 %v1164, %v1166
          %v1169 = vmax.f32 %v1167, 0.0
          %v1170 = vmax.f32 %v1168, 0.0
          %1171 = vst [vmem:[%s633] sm:$0xff] %v1169
          %1172 = vst [vmem:[%s633 + $0x8] sm:$0xff] %v1170
        $region86: #{resnet18_forward.22} parent=69 // pred_fallthru
          _
        %s1173 = smul.u32 2, %s24
        %p1174 = scmp.lt.s32.totalorder %s23, 0
        %s1175 = scalar_select %p1174, %s23, 0
        %p1176 = scmp.lt.s32.totalorder %s1173, 3
        %s1177 = scalar_select %p1176, %s1173, 3
        %s1178 = smul.addr %s1175, 4
        %s1179 = sadd.s32 %s1177, %s1178
        %s1180 = smul.addr %s1179, 8
        %s1181 = scalar_lea.vmem %s4, %s1180
        // Predicated region
        $region87: #{resnet18_forward.22} parent=69 // pred_check
          %p1182 = pneg %p167
        $region88: #{resnet18_forward.22} parent=69 // pred_check_branch
          %1184 = sbr.rel (%p1182) target = $region90
        $region89: #{resnet18_forward.22} parent=69 // pred_region
          %s1185 = smul.u32 2, %s24
        $region90: #{resnet18_forward.22} parent=69 // pred_fallthru
          _
      $region70: #{resnet18_forward.22} parent=5 // pred_fallthru
        _
      %p1186 = scmp.le.s32.totalorder 2, %s13
      // Predicated region
      $region91: #{resnet18_forward.22} parent=5 // pred_check
        %p1187 = pneg %p1186
      $region92: #{resnet18_forward.22} parent=5 // pred_check_branch
        %1189 = sbr.rel (%p1187) target = $region94
      $region93: #{resnet18_forward.22} parent=5 // pred_region
        %s1190 = ssub.s32 %s13, 2
        // Predicated region
        $region95: #{resnet18_forward.22} parent=93 // pred_check
          %p1191 = pneg %p173
        $region96: #{resnet18_forward.22} parent=93 // pred_check_branch
          %1193 = sbr.rel (%p1191) target = $region98
        $region97: #{resnet18_forward.22} parent=93 // pred_region
          %s1194 = smul.u32 2, %s27
          %p1195 = scmp.lt.s32.totalorder %s26, 0
          %s1196 = scalar_select %p1195, %s26, 0
          %p1197 = scmp.lt.s32.totalorder %s1194, 3
          %s1198 = scalar_select %p1197, %s1194, 3
          %s1199 = smul.addr %s1196, 4
          %s1200 = sadd.s32 %s1198, %s1199
          %s1201 = smul.addr %s1200, 8
          %s1202 = scalar_lea.vmem %s4, %s1201
        $region98: #{resnet18_forward.22} parent=93 // pred_fallthru
          _
      $region94: #{resnet18_forward.22} parent=5 // pred_fallthru
        _
    $region6: #{resnet18_forward.22} parent=1 // loop_footer
      %s17 = sadd.s32 1, %s13
    $region7: #{resnet18_forward.22} parent=1 // loop_footer_branch
      %12 = sbr.rel target = $region3
    $region8: #{resnet18_forward.22} parent=1 // loop_exit
      _
    %1203 = vsyncpa [#allocation4], 1
    %s1204 = scalar_lea.sflag [#allocation4], 1
    %1205 = vsyncpa %s1204, 1

// kernel: resnet18_forward.24
$region0: #{resnet18_forward.24}
  #allocation0 [shape = 'u32[]', space=smem, size = 0x4, offset = 0x4, fixed_abs, tag = 'smem constant byte address 0x4 - core index']
  #allocation1 [shape = 'u32[72,128]{1,0:T(1,128)}', space=vmem, size = 0x9000, scoped, tag = 'internal scratch']
  %s0 = inlined_call_operand.vmem [shape: bf16[8,4608], index: 0, kind: input, shape index: {}]
  %s1 = inlined_call_operand.hbm [shape: bf16[4608,512], index: 1, kind: input, shape index: {}]
  %s2 = inlined_call_operand.vmem [shape: f32[1,512], index: 2, kind: input, shape index: {}]
  %s3 = inlined_call_operand.vmem [shape: f32[8,512], index: 3, kind: input, shape index: {}]
  %s4 = inlined_call_operand.vmem [shape: f32[8,512], index: 4, kind: output, shape index: {}]
  %s5 = sld [smem:[#allocation0]]
  $region61: #{resnet18_forward.24} parent=0
    _
  %s7 = ssub.s32 1, %s5
  %s8 = scalar_select 0, %s7, %s5
  $region1: #{resnet18_forward.24} parent=0
    #allocation2 [shape = 'u8[524288]{0}', space=vmem, size = 0x80000, scoped, tag = 'input window, operand 1']
    #allocation3 [shape = 's32[2]{0}', space=sflag, size = 0x8, scoped, tag = 'scoped memory for resnet18_forward.24']
    %9 = vsyncpa [#allocation3], 0
    %s10 = scalar_lea.sflag [#allocation3], 1
    %11 = vsyncpa %s10, 0
    loop: start=0, step=1, limit=20
    $region2: #{resnet18_forward.24} parent=1 // loop_pre_header
      _
    $region3: #{resnet18_forward.24} parent=1 // loop_header
      %s13 = sphi 0, %s17
      %p14 = scmp.ge.s32.totalorder %s13, 20
      %s20 = sphi 0, %s39
      %s21 = sphi 0, %s35
      %s22 = sphi 0, %s31
      %s23 = sphi 0, %s20
      %s24 = sphi 0, %s21
      %s25 = sphi 0, %s22
      %s26 = sphi 0, %s23
      %s27 = sphi 0, %s24
      %s28 = sphi 0, %s25
      %s44 = sphi 0, %s46
      %s47 = sphi 0, %s44
      %s48 = sphi 0, %s47
      %s64 = sphi 0, %s48
      %s72 = sphi 0, %s74
      %s75 = sphi 0, %s72
      %s76 = sphi 0, %s75
      %s92 = sphi 0, %s76
      %s98 = sphi 0, %s100
      %s101 = sphi 0, %s98
      %s102 = sphi 0, %s101
      %s118 = sphi 0, %s102
      %s126 = sphi 0, %s128
      %s129 = sphi 0, %s126
      %s130 = sphi 0, %s129
      %s146 = sphi 0, %s130
      %s154 = sphi 0, %s156
      %s157 = sphi 0, %s154
      %s158 = sphi 0, %s157
      %s174 = sphi 0, %s158
    $region4: #{resnet18_forward.24} parent=1 // loop_header_branch
      %16 = sbr.rel (%p14) target = $region8
    $region5: #{resnet18_forward.24} parent=1 // loop_body
      %s18 = ssub.s32 %s13, 1
      %s19 = ssub.s32 %s13, 2
      %s29 = sadd.s32 1, %s22
      %p30 = scmp.ge.s32.totalorder %s29, 9
      %s31 = scalar_select %p30, 0, %s29
      %s32 = sadd.s32 1, %s21
      %s33 = scalar_select %p30, %s32, %s21
      %p34 = scmp.ge.s32.totalorder %s33, 2
      %s35 = scalar_select %p34, 0, %s33
      %s36 = sadd.s32 1, %s20
      %s37 = scalar_select %p34, %s36, %s20
      %p38 = scmp.ge.s32.totalorder %s37, 1
      %s39 = scalar_select %p38, 0, %s37
      %s40 = ssub.s32 %s20, %s39
      %s41 = ssub.s32 %s22, %s31
      %s42 = sor.u32 %s40, %s41
      %p43 = scmp.eq.s32.totalorder %s42, 0
      %s45 = sadd.s32 %s44, 1
      %s46 = scalar_select %p43, %s44, %s45
      %p49 = pneg %p43
      %p50 = scmp.eq.s32.totalorder %s13, 17
      %p51 = por %p49, %p50
      %p52 = scmp.ne.s32.totalorder %s44, %s47
      %p53 = scmp.eq.s32.totalorder %s13, 0
      %p54 = por %p52, %p53
      %p55 = scmp.ne.s32.totalorder %s44, %s47
      %p56 = scmp.eq.s32.totalorder %s18, 17
      %p57 = por %p55, %p56
      %p58 = scmp.ne.s32.totalorder %s47, %s48
      %p59 = scmp.eq.s32.totalorder %s18, 0
      %p60 = por %p58, %p59
      %p61 = scmp.ne.s32.totalorder %s47, %s48
      %p62 = scmp.eq.s32.totalorder %s19, 17
      %p63 = por %p61, %p62
      %p65 = scmp.ne.s32.totalorder %s48, %s64
      %p66 = scmp.eq.s32.totalorder %s19, 0
      %p67 = por %p65, %p66
      %s68 = ssub.s32 %s22, %s31
      %s69 = ssub.s32 %s21, %s35
      %s70 = sor.u32 %s68, %s69
      %p71 = scmp.eq.s32.totalorder %s70, 0
      %s73 = sadd.s32 %s72, 1
      %s74 = scalar_select %p71, %s72, %s73
      %p77 = pneg %p71
      %p78 = scmp.eq.s32.totalorder %s13, 17
      %p79 = por %p77, %p78
      %p80 = scmp.ne.s32.totalorder %s72, %s75
      %p81 = scmp.eq.s32.totalorder %s13, 0
      %p82 = por %p80, %p81
      %p83 = scmp.ne.s32.totalorder %s72, %s75
      %p84 = scmp.eq.s32.totalorder %s18, 17
      %p85 = por %p83, %p84
      %p86 = scmp.ne.s32.totalorder %s75, %s76
      %p87 = scmp.eq.s32.totalorder %s18, 0
      %p88 = por %p86, %p87
      %p89 = scmp.ne.s32.totalorder %s75, %s76
      %p90 = scmp.eq.s32.totalorder %s19, 17
      %p91 = por %p89, %p90
      %p93 = scmp.ne.s32.totalorder %s76, %s92
      %p94 = scmp.eq.s32.totalorder %s19, 0
      %p95 = por %p93, %p94
      %s96 = ssub.s32 %s21, %s35
      %p97 = scmp.eq.s32.totalorder %s96, 0
      %s99 = sadd.s32 %s98, 1
      %s100 = scalar_select %p97, %s98, %s99
      %p103 = pneg %p97
      %p104 = scmp.eq.s32.totalorder %s13, 17
      %p105 = por %p103, %p104
      %p106 = scmp.ne.s32.totalorder %s98, %s101
      %p107 = scmp.eq.s32.totalorder %s13, 0
      %p108 = por %p106, %p107
      %p109 = scmp.ne.s32.totalorder %s98, %s101
      %p110 = scmp.eq.s32.totalorder %s18, 17
      %p111 = por %p109, %p110
      %p112 = scmp.ne.s32.totalorder %s101, %s102
      %p113 = scmp.eq.s32.totalorder %s18, 0
      %p114 = por %p112, %p113
      %p115 = scmp.ne.s32.totalorder %s101, %s102
      %p116 = scmp.eq.s32.totalorder %s19, 17
      %p117 = por %p115, %p116
      %p119 = scmp.ne.s32.totalorder %s102, %s118
      %p120 = scmp.eq.s32.totalorder %s19, 0
      %p121 = por %p119, %p120
      %s122 = ssub.s32 %s20, %s39
      %s123 = ssub.s32 %s21, %s35
      %s124 = sor.u32 %s122, %s123
      %p125 = scmp.eq.s32.totalorder %s124, 0
      %s127 = sadd.s32 %s126, 1
      %s128 = scalar_select %p125, %s126, %s127
      %p131 = pneg %p125
      %p132 = scmp.eq.s32.totalorder %s13, 17
      %p133 = por %p131, %p132
      %p134 = scmp.ne.s32.totalorder %s126, %s129
      %p135 = scmp.eq.s32.totalorder %s13, 0
      %p136 = por %p134, %p135
      %p137 = scmp.ne.s32.totalorder %s126, %s129
      %p138 = scmp.eq.s32.totalorder %s18, 17
      %p139 = por %p137, %p138
      %p140 = scmp.ne.s32.totalorder %s129, %s130
      %p141 = scmp.eq.s32.totalorder %s18, 0
      %p142 = por %p140, %p141
      %p143 = scmp.ne.s32.totalorder %s129, %s130
      %p144 = scmp.eq.s32.totalorder %s19, 17
      %p145 = por %p143, %p144
      %p147 = scmp.ne.s32.totalorder %s130, %s146
      %p148 = scmp.eq.s32.totalorder %s19, 0
      %p149 = por %p147, %p148
      %s150 = ssub.s32 %s20, %s39
      %s151 = ssub.s32 %s21, %s35
      %s152 = sor.u32 %s150, %s151
      %p153 = scmp.eq.s32.totalorder %s152, 0
      %s155 = sadd.s32 %s154, 1
      %s156 = scalar_select %p153, %s154, %s155
      %p159 = pneg %p153
      %p160 = scmp.eq.s32.totalorder %s13, 17
      %p161 = por %p159, %p160
      %p162 = scmp.ne.s32.totalorder %s154, %s157
      %p163 = scmp.eq.s32.totalorder %s13, 0
      %p164 = por %p162, %p163
      %p165 = scmp.ne.s32.totalorder %s154, %s157
      %p166 = scmp.eq.s32.totalorder %s18, 17
      %p167 = por %p165, %p166
      %p168 = scmp.ne.s32.totalorder %s157, %s158
      %p169 = scmp.eq.s32.totalorder %s18, 0
      %p170 = por %p168, %p169
      %p171 = scmp.ne.s32.totalorder %s157, %s158
      %p172 = scmp.eq.s32.totalorder %s19, 17
      %p173 = por %p171, %p172
      %p175 = scmp.ne.s32.totalorder %s158, %s174
      %p176 = scmp.eq.s32.totalorder %s19, 0
      %p177 = por %p175, %p176
      %p178 = scmp.le.s32.totalorder 1, %s13
      %p179 = scmp.lt.s32.totalorder %s13, 19
      %p180 = pnand %p178, %p179
      %p181 = pneg %p180
      // Predicated region
      $region9: #{resnet18_forward.24} parent=5 // pred_check
        _
      $region10: #{resnet18_forward.24} parent=5 // pred_check_branch
        %183 = sbr.rel (%p180) target = $region12
      $region11: #{resnet18_forward.24} parent=5 // pred_region
        %s184 = ssub.s32 %s13, 1
      $region12: #{resnet18_forward.24} parent=5 // pred_fallthru
        _
      %p185 = scmp.lt.s32.totalorder %s13, 18
      // Predicated region
      $region13: #{resnet18_forward.24} parent=5 // pred_check
        %p186 = pneg %p185
      $region14: #{resnet18_forward.24} parent=5 // pred_check_branch
        %188 = sbr.rel (%p186) target = $region16
      $region15: #{resnet18_forward.24} parent=5 // pred_region
        // Predicated region
        $region17: #{resnet18_forward.24} parent=15 // pred_check
          %p189 = pneg %p54
        $region18: #{resnet18_forward.24} parent=15 // pred_check_branch
          %191 = sbr.rel (%p189) target = $region20
        $region19: #{resnet18_forward.24} parent=15 // pred_region
          %s192 = smul.u32 4, %s22
          %p193 = scmp.lt.s32.totalorder %s20, 0
          %s194 = scalar_select %p193, %s20, 0
          %p195 = scmp.lt.s32.totalorder %s192, 35
          %s196 = scalar_select %p195, %s192, 35
          %s197 = smul.addr %s194, 36
          %s198 = sadd.s32 %s196, %s197
          %s199 = smul.addr %s198, 4
          %s200 = scalar_lea.vmem %s0, %s199
          %s201 = smul.u32 4, %s22
        $region20: #{resnet18_forward.24} parent=15 // pred_fallthru
          _
        // Predicated region
        $region21: #{resnet18_forward.24} parent=15 // pred_check
          %p202 = pneg %p82
        $region22: #{resnet18_forward.24} parent=15 // pred_check_branch
          %204 = sbr.rel (%p202) target = $region24
        $region23: #{resnet18_forward.24} parent=15 // pred_region
          %s205 = sand.u32 %s72, 1
          %s206 = scalar_lea.sflag [#allocation3], %s205
          %s207 = sand.u32 %s72, 1
          %s208 = smul.addr %s207, 512
          %s209 = scalar_lea.vmem [#allocation2], %s208
          %s210 = smul.u32 64, %s22
          %s211 = smul.u32 2, %s21
          %213 = vsyncadd %s206, 0
          %s214 = smul.addr %s210, 4
          %s215 = sadd.s32 %s211, %s214
          %s216 = smul.addr %s215, 4
          %s217 = scalar_lea.hbm %s1, %s216
          %s218 = sshll.u32 %s217, 4
          %s219 = int_to_ptr.hbm [resolvable:$true] %s218
          %s220 = sshll.u32 %s209, 4
          %s221 = int_to_ptr.vmem [resolvable:$true] %s220
          %226 = dma.hbm_to_vmem [thread:$0]  %s219, 8192, %s221, %s206, 256, 128, 8
        $region24: #{resnet18_forward.24} parent=15 // pred_fallthru
          _
        // Predicated region
        $region25: #{resnet18_forward.24} parent=15 // pred_check
          %p227 = pneg %p108
        $region26: #{resnet18_forward.24} parent=15 // pred_check_branch
          %229 = sbr.rel (%p227) target = $region28
        $region27: #{resnet18_forward.24} parent=15 // pred_region
          %s230 = smul.u32 2, %s21
          %p231 = scmp.lt.s32.totalorder %s230, 3
          %s232 = scalar_select %p231, %s230, 3
          %s233 = scalar_lea.vmem %s2, %s232
          %s234 = smul.u32 2, %s21
        $region28: #{resnet18_forward.24} parent=15 // pred_fallthru
          _
        // Predicated region
        $region29: #{resnet18_forward.24} parent=15 // pred_check
          %p235 = pneg %p136
        $region30: #{resnet18_forward.24} parent=15 // pred_check_branch
          %237 = sbr.rel (%p235) target = $region32
        $region31: #{resnet18_forward.24} parent=15 // pred_region
          %s238 = smul.u32 2, %s21
          %p239 = scmp.lt.s32.totalorder %s20, 0
          %s240 = scalar_select %p239, %s20, 0
          %p241 = scmp.lt.s32.totalorder %s238, 3
          %s242 = scalar_select %p241, %s238, 3
          %s243 = smul.addr %s240, 4
          %s244 = sadd.s32 %s242, %s243
          %s245 = smul.addr %s244, 8
          %s246 = scalar_lea.vmem %s3, %s245
          %s247 = smul.u32 2, %s21
        $region32: #{resnet18_forward.24} parent=15 // pred_fallthru
          _
      $region16: #{resnet18_forward.24} parent=5 // pred_fallthru
        _
      %p248 = scmp.le.s32.totalorder 1, %s13
      %p249 = scmp.lt.s32.totalorder %s13, 19
      %p250 = pnand %p248, %p249
      %p251 = pneg %p250
      // Predicated region
      $region33: #{resnet18_forward.24} parent=5 // pred_check
        _
      $region34: #{resnet18_forward.24} parent=5 // pred_check_branch
        %253 = sbr.rel (%p250) target = $region36
      $region35: #{resnet18_forward.24} parent=5 // pred_region
        %s254 = ssub.s32 %s13, 1
        %s255 = sand.u32 %s75, 1
        %s256 = scalar_lea.sflag [#allocation3], %s255
        %s257 = sand.u32 %s75, 1
        %s258 = smul.addr %s257, 512
        %s259 = scalar_lea.vmem [#allocation2], %s258
        // Predicated region
        $region37: #{resnet18_forward.24} parent=35 // pred_check
          %p260 = pneg %p88
        $region38: #{resnet18_forward.24} parent=35 // pred_check_branch
          %262 = sbr.rel (%p260) target = $region40
        $region39: #{resnet18_forward.24} parent=35 // pred_region
          %264 = dma.done %s256, 8192
        $region40: #{resnet18_forward.24} parent=35 // pred_fallthru
          _
        %s265 = smul.u32 4, %s25
        %p266 = scmp.lt.s32.totalorder %s23, 0
        %s267 = scalar_select %p266, %s23, 0
        %p268 = scmp.lt.s32.totalorder %s265, 35
        %s269 = scalar_select %p268, %s265, 35
        %s270 = smul.addr %s267, 36
        %s271 = sadd.s32 %s269, %s270
        %s272 = smul.addr %s271, 4
        %s273 = scalar_lea.vmem %s0, %s272
        %p274 = pneg %p60
        %p275 = pneg %p57
        %s276 = sand.u32 %s75, 1
        %s277 = scalar_lea.sflag [#allocation3], %s276
        %s278 = sand.u32 %s75, 1
        %s279 = smul.addr %s278, 512
        %s280 = scalar_lea.vmem [#allocation2], %s279
        %p281 = pneg %p88
        %p282 = pneg %p85
        %s283 = smul.u32 2, %s24
        %p284 = scmp.lt.s32.totalorder %s283, 3
        %s285 = scalar_select %p284, %s283, 3
        %s286 = scalar_lea.vmem %s2, %s285
        %p287 = pneg %p114
        %p288 = pneg %p111
        %s289 = smul.u32 2, %s24
        %p290 = scmp.lt.s32.totalorder %s23, 0
        %s291 = scalar_select %p290, %s23, 0
        %p292 = scmp.lt.s32.totalorder %s289, 3
        %s293 = scalar_select %p292, %s289, 3
        %s294 = smul.addr %s291, 4
        %s295 = sadd.s32 %s293, %s294
        %s296 = smul.addr %s295, 8
        %s297 = scalar_lea.vmem %s3, %s296
        %p298 = pneg %p142
        %p299 = pneg %p139
        %p300 = pneg %p170
        %p301 = pneg %p167
        %s302 = smul.u32 2, %s24
        %p303 = scmp.lt.s32.totalorder %s23, 0
        %s304 = scalar_select %p303, %s23, 0
        %p305 = scmp.lt.s32.totalorder %s302, 3
        %s306 = scalar_select %p305, %s302, 3
        %s307 = smul.addr %s304, 4
        %s308 = sadd.s32 %s306, %s307
        %s309 = smul.addr %s308, 8
        %s310 = scalar_lea.vmem %s4, %s309
        %s311 = smul.u32 4, %s25
        %p312 = scmp.lt.s32.totalorder %s23, 0
        %s313 = scalar_select %p312, %s23, 0
        %p314 = scmp.lt.s32.totalorder %s311, 35
        %s315 = scalar_select %p314, %s311, 35
        %s316 = smul.addr %s313, 36
        %s317 = sadd.s32 %s315, %s316
        %s318 = smul.addr %s317, 4
        %s319 = scalar_lea.vmem %s0, %s318
        %s320 = smul.u32 4, %s25
        %s321 = smul.u32 64, %s25
        %s322 = smul.u32 2, %s24
        %s323 = smul.u32 2, %s24
        %p324 = scmp.lt.s32.totalorder %s323, 3
        %s325 = scalar_select %p324, %s323, 3
        %s326 = scalar_lea.vmem %s2, %s325
        %s327 = smul.u32 2, %s24
        %s328 = smul.u32 2, %s24
        %p329 = scmp.lt.s32.totalorder %s23, 0
        %s330 = scalar_select %p329, %s23, 0
        %p331 = scmp.lt.s32.totalorder %s328, 3
        %s332 = scalar_select %p331, %s328, 3
        %s333 = smul.addr %s330, 4
        %s334 = sadd.s32 %s332, %s333
        %s335 = smul.addr %s334, 8
        %s336 = scalar_lea.vmem %s3, %s335
        %s337 = smul.u32 2, %s24
        %s338 = smul.u32 2, %s24
        %p339 = scmp.lt.s32.totalorder %s23, 0
        %s340 = scalar_select %p339, %s23, 0
        %p341 = scmp.lt.s32.totalorder %s338, 3
        %s342 = scalar_select %p341, %s338, 3
        %s343 = smul.addr %s340, 4
        %s344 = sadd.s32 %s342, %s343
        %s345 = smul.addr %s344, 8
        %s346 = scalar_lea.vmem %s4, %s345
        %s347 = smul.u32 2, %s24
        %p348 = scmp.eq.s32.totalorder %s25, 0
        // Predicated region
        $region41: #{resnet18_forward.24} parent=35 // pred_check
          %p349 = pneg %p348
        $region42: #{resnet18_forward.24} parent=35 // pred_check_branch
          %351 = sbr.rel (%p349) target = $region44
        $region43: #{resnet18_forward.24} parent=35 // pred_region
          %352 = vst [vmem:[%s346] sm:$0xff] 0.0
          %353 = vst [vmem:[%s346 + $0x8] sm:$0xff] 0.0
        $region44: #{resnet18_forward.24} parent=35 // pred_fallthru
          _
        %v354 = vld [vmem:[%s346] sm:$0xff]
        %v355 = vld [vmem:[%s346 + $0x8] sm:$0xff]
        %v356 = vld [vmem:[%s319] sm:$0xff]
        %v357 = vld [vmem:[%s319 + $0x8] sm:$0xff]
        %v358 = vld [vmem:[%s259] sm:$0xff]
        %v359 = vld [vmem:[%s259 + $0x8] sm:$0xff]
        %v360 = vld [vmem:[%s259 + $0x10] sm:$0xff]
        %v361 = vld [vmem:[%s259 + $0x18] sm:$0xff]
        %v362 = vld [vmem:[%s259 + $0x20] sm:$0xff]
        %v363 = vld [vmem:[%s259 + $0x28] sm:$0xff]
        %v364 = vld [vmem:[%s259 + $0x30] sm:$0xff]
        %v365 = vld [vmem:[%s259 + $0x38] sm:$0xff]
        %v366 = vld [vmem:[%s259 + $0x40] sm:$0xff]
        %v367 = vld [vmem:[%s259 + $0x48] sm:$0xff]
        %v368 = vld [vmem:[%s259 + $0x50] sm:$0xff]
        %v369 = vld [vmem:[%s259 + $0x58] sm:$0xff]
        %v370 = vld [vmem:[%s259 + $0x60] sm:$0xff]
        %v371 = vld [vmem:[%s259 + $0x68] sm:$0xff]
        %v372 = vld [vmem:[%s259 + $0x70] sm:$0xff]
        %v373 = vld [vmem:[%s259 + $0x78] sm:$0xff]
        %v374 = vld [vmem:[%s259 + $0x80] sm:$0xff]
        %v375 = vld [vmem:[%s259 + $0x88] sm:$0xff]
        %v376 = vld [vmem:[%s259 + $0x90] sm:$0xff]
        %v377 = vld [vmem:[%s259 + $0x98] sm:$0xff]
        %v378 = vld [vmem:[%s259 + $0xa0] sm:$0xff]
        %v379 = vld [vmem:[%s259 + $0xa8] sm:$0xff]
        %v380 = vld [vmem:[%s259 + $0xb0] sm:$0xff]
        %v381 = vld [vmem:[%s259 + $0xb8] sm:$0xff]
        %v382 = vld [vmem:[%s259 + $0xc0] sm:$0xff]
        %v383 = vld [vmem:[%s259 + $0xc8] sm:$0xff]
        %v384 = vld [vmem:[%s259 + $0xd0] sm:$0xff]
        %v385 = vld [vmem:[%s259 + $0xd8] sm:$0xff]
        %v386 = vld [vmem:[%s259 + $0xe0] sm:$0xff]
        %v387 = vld [vmem:[%s259 + $0xe8] sm:$0xff]
        %v388 = vld [vmem:[%s259 + $0xf0] sm:$0xff]
        %v389 = vld [vmem:[%s259 + $0xf8] sm:$0xff]
        %v390 = vld [vmem:[%s259 + $0x100] sm:$0xff]
        %v391 = vld [vmem:[%s259 + $0x108] sm:$0xff]
        %v392 = vld [vmem:[%s259 + $0x110] sm:$0xff]
        %v393 = vld [vmem:[%s259 + $0x118] sm:$0xff]
        %v394 = vld [vmem:[%s259 + $0x120] sm:$0xff]
        %v395 = vld [vmem:[%s259 + $0x128] sm:$0xff]
        %v396 = vld [vmem:[%s259 + $0x130] sm:$0xff]
        %v397 = vld [vmem:[%s259 + $0x138] sm:$0xff]
        %v398 = vld [vmem:[%s259 + $0x140] sm:$0xff]
        %v399 = vld [vmem:[%s259 + $0x148] sm:$0xff]
        %v400 = vld [vmem:[%s259 + $0x150] sm:$0xff]
        %v401 = vld [vmem:[%s259 + $0x158] sm:$0xff]
        %v402 = vld [vmem:[%s259 + $0x160] sm:$0xff]
        %v403 = vld [vmem:[%s259 + $0x168] sm:$0xff]
        %v404 = vld [vmem:[%s259 + $0x170] sm:$0xff]
        %v405 = vld [vmem:[%s259 + $0x178] sm:$0xff]
        %v406 = vld [vmem:[%s259 + $0x180] sm:$0xff]
        %v407 = vld [vmem:[%s259 + $0x188] sm:$0xff]
        %v408 = vld [vmem:[%s259 + $0x190] sm:$0xff]
        %v409 = vld [vmem:[%s259 + $0x198] sm:$0xff]
        %v410 = vld [vmem:[%s259 + $0x1a0] sm:$0xff]
        %v411 = vld [vmem:[%s259 + $0x1a8] sm:$0xff]
        %v412 = vld [vmem:[%s259 + $0x1b0] sm:$0xff]
        %v413 = vld [vmem:[%s259 + $0x1b8] sm:$0xff]
        %v414 = vld [vmem:[%s259 + $0x1c0] sm:$0xff]
        %v415 = vld [vmem:[%s259 + $0x1c8] sm:$0xff]
        %v416 = vld [vmem:[%s259 + $0x1d0] sm:$0xff]
        %v417 = vld [vmem:[%s259 + $0x1d8] sm:$0xff]
        %v418 = vld [vmem:[%s259 + $0x1e0] sm:$0xff]
        %v419 = vld [vmem:[%s259 + $0x1e8] sm:$0xff]
        %v420 = vld [vmem:[%s259 + $0x1f0] sm:$0xff]
        %v421 = vld [vmem:[%s259 + $0x1f8] sm:$0xff]
        %v424 = vunpack.c.l.b16 %v356
        %v425 = vunpack.c.h.b16 %v356
        %v426 = vunpack.c.l.b16 %v357
        %v427 = vunpack.c.h.b16 %v357
        %v428 = vpack.c.b16 %v424, %v424
        %v429 = vpack.c.b16 %v425, %v425
        %v430 = vpack.c.b16 %v426, %v426
        %v431 = vpack.c.b16 %v427, %v427
        %v500 = vunpack.c.l.b16 %v358
        %v501 = vunpack.c.h.b16 %v358
        %v502 = vunpack.c.l.b16 %v359
        %v503 = vunpack.c.h.b16 %v359
        %v504 = vunpack.c.l.b16 %v360
        %v505 = vunpack.c.h.b16 %v360
        %v506 = vunpack.c.l.b16 %v361
        %v507 = vunpack.c.h.b16 %v361
        %v508 = vunpack.c.l.b16 %v362
        %v509 = vunpack.c.h.b16 %v362
        %v510 = vunpack.c.l.b16 %v363
        %v511 = vunpack.c.h.b16 %v363
        %v512 = vunpack.c.l.b16 %v364
        %v513 = vunpack.c.h.b16 %v364
        %v514 = vunpack.c.l.b16 %v365
        %v515 = vunpack.c.h.b16 %v365
        %v516 = vunpack.c.l.b16 %v366
        %v517 = vunpack.c.h.b16 %v366
        %v518 = vunpack.c.l.b16 %v367
        %v519 = vunpack.c.h.b16 %v367
        %v520 = vunpack.c.l.b16 %v368
        %v521 = vunpack.c.h.b16 %v368
        %v522 = vunpack.c.l.b16 %v369
        %v523 = vunpack.c.h.b16 %v369
        %v524 = vunpack.c.l.b16 %v370
        %v525 = vunpack.c.h.b16 %v370
        %v526 = vunpack.c.l.b16 %v371
        %v527 = vunpack.c.h.b16 %v371
        %v528 = vunpack.c.l.b16 %v372
        %v529 = vunpack.c.h.b16 %v372
        %v530 = vunpack.c.l.b16 %v373
        %v531 = vunpack.c.h.b16 %v373
        %v532 = vunpack.c.l.b16 %v374
        %v533 = vunpack.c.h.b16 %v374
        %v534 = vunpack.c.l.b16 %v375
        %v535 = vunpack.c.h.b16 %v375
        %v536 = vunpack.c.l.b16 %v376
        %v537 = vunpack.c.h.b16 %v376
        %v538 = vunpack.c.l.b16 %v377
        %v539 = vunpack.c.h.b16 %v377
        %v540 = vunpack.c.l.b16 %v378
        %v541 = vunpack.c.h.b16 %v378
        %v542 = vunpack.c.l.b16 %v379
        %v543 = vunpack.c.h.b16 %v379
        %v544 = vunpack.c.l.b16 %v380
        %v545 = vunpack.c.h.b16 %v380
        %v546 = vunpack.c.l.b16 %v381
        %v547 = vunpack.c.h.b16 %v381
        %v548 = vunpack.c.l.b16 %v382
        %v549 = vunpack.c.h.b16 %v382
        %v550 = vunpack.c.l.b16 %v383
        %v551 = vunpack.c.h.b16 %v383
        %v552 = vunpack.c.l.b16 %v384
        %v553 = vunpack.c.h.b16 %v384
        %v554 = vunpack.c.l.b16 %v385
        %v555 = vunpack.c.h.b16 %v385
        %v556 = vunpack.c.l.b16 %v386
        %v557 = vunpack.c.h.b16 %v386
        %v558 = vunpack.c.l.b16 %v387
        %v559 = vunpack.c.h.b16 %v387
        %v560 = vunpack.c.l.b16 %v388
        %v561 = vunpack.c.h.b16 %v388
        %v562 = vunpack.c.l.b16 %v389
        %v563 = vunpack.c.h.b16 %v389
        %v564 = vunpack.c.l.b16 %v390
        %v565 = vunpack.c.h.b16 %v390
        %v566 = vunpack.c.l.b16 %v391
        %v567 = vunpack.c.h.b16 %v391
        %v568 = vunpack.c.l.b16 %v392
        %v569 = vunpack.c.h.b16 %v392
        %v570 = vunpack.c.l.b16 %v393
        %v571 = vunpack.c.h.b16 %v393
        %v572 = vunpack.c.l.b16 %v394
        %v573 = vunpack.c.h.b16 %v394
        %v574 = vunpack.c.l.b16 %v395
        %v575 = vunpack.c.h.b16 %v395
        %v576 = vunpack.c.l.b16 %v396
        %v577 = vunpack.c.h.b16 %v396
        %v578 = vunpack.c.l.b16 %v397
        %v579 = vunpack.c.h.b16 %v397
        %v580 = vunpack.c.l.b16 %v398
        %v581 = vunpack.c.h.b16 %v398
        %v582 = vunpack.c.l.b16 %v399
        %v583 = vunpack.c.h.b16 %v399
        %v584 = vunpack.c.l.b16 %v400
        %v585 = vunpack.c.h.b16 %v400
        %v586 = vunpack.c.l.b16 %v401
        %v587 = vunpack.c.h.b16 %v401
        %v588 = vunpack.c.l.b16 %v402
        %v589 = vunpack.c.h.b16 %v402
        %v590 = vunpack.c.l.b16 %v403
        %v591 = vunpack.c.h.b16 %v403
        %v592 = vunpack.c.l.b16 %v404
        %v593 = vunpack.c.h.b16 %v404
        %v594 = vunpack.c.l.b16 %v405
        %v595 = vunpack.c.h.b16 %v405
        %v596 = vunpack.c.l.b16 %v406
        %v597 = vunpack.c.h.b16 %v406
        %v598 = vunpack.c.l.b16 %v407
        %v599 = vunpack.c.h.b16 %v407
        %v600 = vunpack.c.l.b16 %v408
        %v601 = vunpack.c.h.b16 %v408
        %v602 = vunpack.c.l.b16 %v409
        %v603 = vunpack.c.h.b16 %v409
        %v604 = vunpack.c.l.b16 %v410
        %v605 = vunpack.c.h.b16 %v410
        %v606 = vunpack.c.l.b16 %v411
        %v607 = vunpack.c.h.b16 %v411
        %v608 = vunpack.c.l.b16 %v412
        %v609 = vunpack.c.h.b16 %v412
        %v610 = vunpack.c.l.b16 %v413
        %v611 = vunpack.c.h.b16 %v413
        %v612 = vunpack.c.l.b16 %v414
        %v613 = vunpack.c.h.b16 %v414
        %v614 = vunpack.c.l.b16 %v415
        %v615 = vunpack.c.h.b16 %v415
        %v616 = vunpack.c.l.b16 %v416
        %v617 = vunpack.c.h.b16 %v416
        %v618 = vunpack.c.l.b16 %v417
        %v619 = vunpack.c.h.b16 %v417
        %v620 = vunpack.c.l.b16 %v418
        %v621 = vunpack.c.h.b16 %v418
        %v622 = vunpack.c.l.b16 %v419
        %v623 = vunpack.c.h.b16 %v419
        %v624 = vunpack.c.l.b16 %v420
        %v625 = vunpack.c.h.b16 %v420
        %v626 = vunpack.c.l.b16 %v421
        %v627 = vunpack.c.h.b16 %v421
        %v628 = vpack.c.b16 %v502, %v500
        %v629 = vpack.c.b16 %v503, %v501
        %v630 = vpack.c.b16 %v506, %v504
        %v631 = vpack.c.b16 %v507, %v505
        %v632 = vpack.c.b16 %v510, %v508
        %v633 = vpack.c.b16 %v511, %v509
        %v634 = vpack.c.b16 %v514, %v512
        %v635 = vpack.c.b16 %v515, %v513
        %v636 = vpack.c.b16 %v518, %v516
        %v637 = vpack.c.b16 %v519, %v517
        %v638 = vpack.c.b16 %v522, %v520
        %v639 = vpack.c.b16 %v523, %v521
        %v640 = vpack.c.b16 %v526, %v524
        %v641 = vpack.c.b16 %v527, %v525
        %v642 = vpack.c.b16 %v530, %v528
        %v643 = vpack.c.b16 %v531, %v529
        %v644 = vpack.c.b16 %v534, %v532
        %v645 = vpack.c.b16 %v535, %v533
        %v646 = vpack.c.b16 %v538, %v536
        %v647 = vpack.c.b16 %v539, %v537
        %v648 = vpack.c.b16 %v542, %v540
        %v649 = vpack.c.b16 %v543, %v541
        %v650 = vpack.c.b16 %v546, %v544
        %v651 = vpack.c.b16 %v547, %v545
        %v652 = vpack.c.b16 %v550, %v548
        %v653 = vpack.c.b16 %v551, %v549
        %v654 = vpack.c.b16 %v554, %v552
        %v655 = vpack.c.b16 %v555, %v553
        %v656 = vpack.c.b16 %v558, %v556
        %v657 = vpack.c.b16 %v559, %v557
        %v658 = vpack.c.b16 %v562, %v560
        %v659 = vpack.c.b16 %v563, %v561
        %v660 = vpack.c.b16 %v566, %v564
        %v661 = vpack.c.b16 %v567, %v565
        %v662 = vpack.c.b16 %v570, %v568
        %v663 = vpack.c.b16 %v571, %v569
        %v664 = vpack.c.b16 %v574, %v572
        %v665 = vpack.c.b16 %v575, %v573
        %v666 = vpack.c.b16 %v578, %v576
        %v667 = vpack.c.b16 %v579, %v577
        %v668 = vpack.c.b16 %v582, %v580
        %v669 = vpack.c.b16 %v583, %v581
        %v670 = vpack.c.b16 %v586, %v584
        %v671 = vpack.c.b16 %v587, %v585
        %v672 = vpack.c.b16 %v590, %v588
        %v673 = vpack.c.b16 %v591, %v589
        %v674 = vpack.c.b16 %v594, %v592
        %v675 = vpack.c.b16 %v595, %v593
        %v676 = vpack.c.b16 %v598, %v596
        %v677 = vpack.c.b16 %v599, %v597
        %v678 = vpack.c.b16 %v602, %v600
        %v679 = vpack.c.b16 %v603, %v601
        %v680 = vpack.c.b16 %v606, %v604
        %v681 = vpack.c.b16 %v607, %v605
        %v682 = vpack.c.b16 %v610, %v608
        %v683 = vpack.c.b16 %v611, %v609
        %v684 = vpack.c.b16 %v614, %v612
        %v685 = vpack.c.b16 %v615, %v613
        %v686 = vpack.c.b16 %v618, %v616
        %v687 = vpack.c.b16 %v619, %v617
        %v688 = vpack.c.b16 %v622, %v620
        %v689 = vpack.c.b16 %v623, %v621
        %v690 = vpack.c.b16 %v626, %v624
        %v691 = vpack.c.b16 %v627, %v625
        %756 = vmatpush.bf16.msra.mxu0 %v642
        %757 = vmatpush.bf16.msra.mxu0 %v640
        %758 = vmatpush.bf16.msra.mxu0 %v638
        %759 = vmatpush.bf16.msra.mxu0 %v636
        %760 = vmatpush.bf16.msra.mxu0 %v634
        %761 = vmatpush.bf16.msra.mxu0 %v632
        %762 = vmatpush.bf16.msra.mxu0 %v630
        %763 = vmatpush.bf16.msra.mxu0 %v628
        %764 = vmatmul.bf16.gmra.mxu0 %v428
        %v765 = vpop.f32.mrf.mxu0
        %v766 = vadd.f32 0.0, %v765
        %v767 = vpop.f32.mrf.mxu0
        %768 = vdwg.mxu0
        %769 = vmatpush.bf16.msra.mxu0 %v658
        %770 = vmatpush.bf16.msra.mxu0 %v656
        %771 = vmatpush.bf16.msra.mxu0 %v654
        %772 = vmatpush.bf16.msra.mxu0 %v652
        %773 = vmatpush.bf16.msra.mxu0 %v650
        %774 = vmatpush.bf16.msra.mxu0 %v648
        %775 = vmatpush.bf16.msra.mxu0 %v646
        %776 = vmatpush.bf16.msra.mxu0 %v644
        %777 = vmatmul.bf16.gmra.mxu0 %v429
        %v778 = vpop.f32.mrf.mxu0
        %v779 = vadd.f32 %v766, %v778
        %v780 = vpop.f32.mrf.mxu0
        %781 = vdwg.mxu0
        %782 = vmatpush.bf16.msra.mxu0 %v674
        %783 = vmatpush.bf16.msra.mxu0 %v672
        %784 = vmatpush.bf16.msra.mxu0 %v670
        %785 = vmatpush.bf16.msra.mxu0 %v668
        %786 = vmatpush.bf16.msra.mxu0 %v666
        %787 = vmatpush.bf16.msra.mxu0 %v664
        %788 = vmatpush.bf16.msra.mxu0 %v662
        %789 = vmatpush.bf16.msra.mxu0 %v660
        %790 = vmatmul.bf16.gmra.mxu0 %v430
        %v791 = vpop.f32.mrf.mxu0
        %v792 = vadd.f32 %v779, %v791
        %v793 = vpop.f32.mrf.mxu0
        %794 = vdwg.mxu0
        %795 = vmatpush.bf16.msra.mxu0 %v690
        %796 = vmatpush.bf16.msra.mxu0 %v688
        %797 = vmatpush.bf16.msra.mxu0 %v686
        %798 = vmatpush.bf16.msra.mxu0 %v684
        %799 = vmatpush.bf16.msra.mxu0 %v682
        %800 = vmatpush.bf16.msra.mxu0 %v680
        %801 = vmatpush.bf16.msra.mxu0 %v678
        %802 = vmatpush.bf16.msra.mxu0 %v676
        %803 = vmatmul.bf16.gmra.mxu0 %v431
        %v804 = vpop.f32.mrf.mxu0
        %v805 = vadd.f32 %v792, %v804
        %v806 = vpop.f32.mrf.mxu0
        %807 = vdwg.mxu0
        %808 = vmatpush.bf16.msra.mxu0 %v643
        %809 = vmatpush.bf16.msra.mxu0 %v641
        %810 = vmatpush.bf16.msra.mxu0 %v639
        %811 = vmatpush.bf16.msra.mxu0 %v637
        %812 = vmatpush.bf16.msra.mxu0 %v635
        %813 = vmatpush.bf16.msra.mxu0 %v633
        %814 = vmatpush.bf16.msra.mxu0 %v631
        %815 = vmatpush.bf16.msra.mxu0 %v629
        %816 = vmatmul.bf16.gmra.mxu0 %v428
        %v817 = vpop.f32.mrf.mxu0
        %v818 = vadd.f32 0.0, %v817
        %v819 = vpop.f32.mrf.mxu0
        %820 = vdwg.mxu0
        %821 = vmatpush.bf16.msra.mxu0 %v659
        %822 = vmatpush.bf16.msra.mxu0 %v657
        %823 = vmatpush.bf16.msra.mxu0 %v655
        %824 = vmatpush.bf16.msra.mxu0 %v653
        %825 = vmatpush.bf16.msra.mxu0 %v651
        %826 = vmatpush.bf16.msra.mxu0 %v649
        %827 = vmatpush.bf16.msra.mxu0 %v647
        %828 = vmatpush.bf16.msra.mxu0 %v645
        %829 = vmatmul.bf16.gmra.mxu0 %v429
        %v830 = vpop.f32.mrf.mxu0
        %v831 = vadd.f32 %v818, %v830
        %v832 = vpop.f32.mrf.mxu0
        %833 = vdwg.mxu0
        %834 = vmatpush.bf16.msra.mxu0 %v675
        %835 = vmatpush.bf16.msra.mxu0 %v673
        %836 = vmatpush.bf16.msra.mxu0 %v671
        %837 = vmatpush.bf16.msra.mxu0 %v669
        %838 = vmatpush.bf16.msra.mxu0 %v667
        %839 = vmatpush.bf16.msra.mxu0 %v665
        %840 = vmatpush.bf16.msra.mxu0 %v663
        %841 = vmatpush.bf16.msra.mxu0 %v661
        %842 = vmatmul.bf16.gmra.mxu0 %v430
        %v843 = vpop.f32.mrf.mxu0
        %v844 = vadd.f32 %v831, %v843
        %v845 = vpop.f32.mrf.mxu0
        %846 = vdwg.mxu0
        %847 = vmatpush.bf16.msra.mxu0 %v691
        %848 = vmatpush.bf16.msra.mxu0 %v689
        %849 = vmatpush.bf16.msra.mxu0 %v687
        %850 = vmatpush.bf16.msra.mxu0 %v685
        %851 = vmatpush.bf16.msra.mxu0 %v683
        %852 = vmatpush.bf16.msra.mxu0 %v681
        %853 = vmatpush.bf16.msra.mxu0 %v679
        %854 = vmatpush.bf16.msra.mxu0 %v677
        %855 = vmatmul.bf16.gmra.mxu0 %v431
        %v856 = vpop.f32.mrf.mxu0
        %v857 = vadd.f32 %v844, %v856
        %v858 = vpop.f32.mrf.mxu0
        %859 = vdwg.mxu0
        %v860 = vadd.f32 %v354, %v805
        %v861 = vadd.f32 %v355, %v857
        %862 = vst [vmem:[%s346] sm:$0xff] %v860
        %863 = vst [vmem:[%s346 + $0x8] sm:$0xff] %v861
        %p864 = scmp.eq.s32.totalorder %s25, 8
        // Predicated region
        $region45: #{resnet18_forward.24} parent=35 // pred_check
          %p865 = pneg %p864
        $region46: #{resnet18_forward.24} parent=35 // pred_check_branch
          %867 = sbr.rel (%p865) target = $region48
        $region47: #{resnet18_forward.24} parent=35 // pred_region
          %v868 = vld [vmem:[%s346] sm:$0xff]
          %v869 = vld [vmem:[%s346 + $0x8] sm:$0xff]
          %v870 = vld [vmem:[%s326] sm:$0x3]
          %v872 = vperm.slane %v870, 0
          %v873 = vperm.slane %v870, 1
          %v876 = vadd.f32 %v868, %v872
          %v877 = vadd.f32 %v869, %v873
          %v878 = vld [vmem:[%s336] sm:$0xff]
          %v879 = vld [vmem:[%s336 + $0x8] sm:$0xff]
          %v880 = vadd.f32 %v876, %v878
          %v881 = vadd.f32 %v877, %v879
          %v882 = vmax.f32 %v880, 0.0
          %v883 = vmax.f32 %v881, 0.0
          %884 = vst [vmem:[%s346] sm:$0xff] %v882
          %885 = vst [vmem:[%s346 + $0x8] sm:$0xff] %v883
        $region48: #{resnet18_forward.24} parent=35 // pred_fallthru
          _
        %s886 = smul.u32 2, %s24
        %p887 = scmp.lt.s32.totalorder %s23, 0
        %s888 = scalar_select %p887, %s23, 0
        %p889 = scmp.lt.s32.totalorder %s886, 3
        %s890 = scalar_select %p889, %s886, 3
        %s891 = smul.addr %s888, 4
        %s892 = sadd.s32 %s890, %s891
        %s893 = smul.addr %s892, 8
        %s894 = scalar_lea.vmem %s4, %s893
        // Predicated region
        $region49: #{resnet18_forward.24} parent=35 // pred_check
          %p895 = pneg %p167
        $region50: #{resnet18_forward.24} parent=35 // pred_check_branch
          %897 = sbr.rel (%p895) target = $region52
        $region51: #{resnet18_forward.24} parent=35 // pred_region
          %s898 = smul.u32 2, %s24
        $region52: #{resnet18_forward.24} parent=35 // pred_fallthru
          _
      $region36: #{resnet18_forward.24} parent=5 // pred_fallthru
        _
      %p899 = scmp.le.s32.totalorder 2, %s13
      // Predicated region
      $region53: #{resnet18_forward.24} parent=5 // pred_check
        %p900 = pneg %p899
      $region54: #{resnet18_forward.24} parent=5 // pred_check_branch
        %902 = sbr.rel (%p900) target = $region56
      $region55: #{resnet18_forward.24} parent=5 // pred_region
        %s903 = ssub.s32 %s13, 2
        // Predicated region
        $region57: #{resnet18_forward.24} parent=55 // pred_check
          %p904 = pneg %p173
        $region58: #{resnet18_forward.24} parent=55 // pred_check_branch
          %906 = sbr.rel (%p904) target = $region60
        $region59: #{resnet18_forward.24} parent=55 // pred_region
          %s907 = smul.u32 2, %s27
          %p908 = scmp.lt.s32.totalorder %s26, 0
          %s909 = scalar_select %p908, %s26, 0
          %p910 = scmp.lt.s32.totalorder %s907, 3
          %s911 = scalar_select %p910, %s907, 3
          %s912 = smul.addr %s909, 4
          %s913 = sadd.s32 %s911, %s912
          %s914 = smul.addr %s913, 8
          %s915 = scalar_lea.vmem %s4, %s914
        $region60: #{resnet18_forward.24} parent=55 // pred_fallthru
          _
      $region56: #{resnet18_forward.24} parent=5 // pred_fallthru
        _
    $region6: #{resnet18_forward.24} parent=1 // loop_footer
      %s17 = sadd.s32 1, %s13
    $region7: #{resnet18_forward.24} parent=1 // loop_footer_branch
      %12 = sbr.rel target = $region3
    $region8: #{resnet18_forward.24} parent=1 // loop_exit
      _
    %916 = vsyncpa [#allocation3], 1
    %s917 = scalar_lea.sflag [#allocation3], 1
    %918 = vsyncpa %s917, 1

// kernel: resnet18_forward.23
$region0: #{resnet18_forward.23}
  #allocation0 [shape = 'u32[]', space=smem, size = 0x4, offset = 0x4, fixed_abs, tag = 'smem constant byte address 0x4 - core index']
  #allocation1 [shape = 'u32[72,128]{1,0:T(1,128)}', space=vmem, size = 0x9000, scoped, tag = 'internal scratch']
  %s0 = inlined_call_operand.vmem [shape: bf16[8,4608], index: 0, kind: input, shape index: {}]
  %s1 = inlined_call_operand.hbm [shape: bf16[4608,512], index: 1, kind: input, shape index: {}]
  %s2 = inlined_call_operand.vmem [shape: f32[1,512], index: 2, kind: input, shape index: {}]
  %s3 = inlined_call_operand.vmem [shape: f32[8,512], index: 3, kind: output, shape index: {}]
  %s4 = sld [smem:[#allocation0]]
  $region57: #{resnet18_forward.23} parent=0
    _
  %s6 = ssub.s32 1, %s4
  %s7 = scalar_select 0, %s6, %s4
  $region1: #{resnet18_forward.23} parent=0
    #allocation2 [shape = 'u8[524288]{0}', space=vmem, size = 0x80000, scoped, tag = 'input window, operand 1']
    #allocation3 [shape = 's32[2]{0}', space=sflag, size = 0x8, scoped, tag = 'scoped memory for resnet18_forward.23']
    %8 = vsyncpa [#allocation3], 0
    %s9 = scalar_lea.sflag [#allocation3], 1
    %10 = vsyncpa %s9, 0
    loop: start=0, step=1, limit=20
    $region2: #{resnet18_forward.23} parent=1 // loop_pre_header
      _
    $region3: #{resnet18_forward.23} parent=1 // loop_header
      %s12 = sphi 0, %s16
      %p13 = scmp.ge.s32.totalorder %s12, 20
      %s19 = sphi 0, %s38
      %s20 = sphi 0, %s34
      %s21 = sphi 0, %s30
      %s22 = sphi 0, %s19
      %s23 = sphi 0, %s20
      %s24 = sphi 0, %s21
      %s25 = sphi 0, %s22
      %s26 = sphi 0, %s23
      %s27 = sphi 0, %s24
      %s43 = sphi 0, %s45
      %s46 = sphi 0, %s43
      %s47 = sphi 0, %s46
      %s63 = sphi 0, %s47
      %s71 = sphi 0, %s73
      %s74 = sphi 0, %s71
      %s75 = sphi 0, %s74
      %s91 = sphi 0, %s75
      %s97 = sphi 0, %s99
      %s100 = sphi 0, %s97
      %s101 = sphi 0, %s100
      %s117 = sphi 0, %s101
      %s125 = sphi 0, %s127
      %s128 = sphi 0, %s125
      %s129 = sphi 0, %s128
      %s145 = sphi 0, %s129
    $region4: #{resnet18_forward.23} parent=1 // loop_header_branch
      %15 = sbr.rel (%p13) target = $region8
    $region5: #{resnet18_forward.23} parent=1 // loop_body
      %s17 = ssub.s32 %s12, 1
      %s18 = ssub.s32 %s12, 2
      %s28 = sadd.s32 1, %s21
      %p29 = scmp.ge.s32.totalorder %s28, 9
      %s30 = scalar_select %p29, 0, %s28
      %s31 = sadd.s32 1, %s20
      %s32 = scalar_select %p29, %s31, %s20
      %p33 = scmp.ge.s32.totalorder %s32, 2
      %s34 = scalar_select %p33, 0, %s32
      %s35 = sadd.s32 1, %s19
      %s36 = scalar_select %p33, %s35, %s19
      %p37 = scmp.ge.s32.totalorder %s36, 1
      %s38 = scalar_select %p37, 0, %s36
      %s39 = ssub.s32 %s19, %s38
      %s40 = ssub.s32 %s21, %s30
      %s41 = sor.u32 %s39, %s40
      %p42 = scmp.eq.s32.totalorder %s41, 0
      %s44 = sadd.s32 %s43, 1
      %s45 = scalar_select %p42, %s43, %s44
      %p48 = pneg %p42
      %p49 = scmp.eq.s32.totalorder %s12, 17
      %p50 = por %p48, %p49
      %p51 = scmp.ne.s32.totalorder %s43, %s46
      %p52 = scmp.eq.s32.totalorder %s12, 0
      %p53 = por %p51, %p52
      %p54 = scmp.ne.s32.totalorder %s43, %s46
      %p55 = scmp.eq.s32.totalorder %s17, 17
      %p56 = por %p54, %p55
      %p57 = scmp.ne.s32.totalorder %s46, %s47
      %p58 = scmp.eq.s32.totalorder %s17, 0
      %p59 = por %p57, %p58
      %p60 = scmp.ne.s32.totalorder %s46, %s47
      %p61 = scmp.eq.s32.totalorder %s18, 17
      %p62 = por %p60, %p61
      %p64 = scmp.ne.s32.totalorder %s47, %s63
      %p65 = scmp.eq.s32.totalorder %s18, 0
      %p66 = por %p64, %p65
      %s67 = ssub.s32 %s21, %s30
      %s68 = ssub.s32 %s20, %s34
      %s69 = sor.u32 %s67, %s68
      %p70 = scmp.eq.s32.totalorder %s69, 0
      %s72 = sadd.s32 %s71, 1
      %s73 = scalar_select %p70, %s71, %s72
      %p76 = pneg %p70
      %p77 = scmp.eq.s32.totalorder %s12, 17
      %p78 = por %p76, %p77
      %p79 = scmp.ne.s32.totalorder %s71, %s74
      %p80 = scmp.eq.s32.totalorder %s12, 0
      %p81 = por %p79, %p80
      %p82 = scmp.ne.s32.totalorder %s71, %s74
      %p83 = scmp.eq.s32.totalorder %s17, 17
      %p84 = por %p82, %p83
      %p85 = scmp.ne.s32.totalorder %s74, %s75
      %p86 = scmp.eq.s32.totalorder %s17, 0
      %p87 = por %p85, %p86
      %p88 = scmp.ne.s32.totalorder %s74, %s75
      %p89 = scmp.eq.s32.totalorder %s18, 17
      %p90 = por %p88, %p89
      %p92 = scmp.ne.s32.totalorder %s75, %s91
      %p93 = scmp.eq.s32.totalorder %s18, 0
      %p94 = por %p92, %p93
      %s95 = ssub.s32 %s20, %s34
      %p96 = scmp.eq.s32.totalorder %s95, 0
      %s98 = sadd.s32 %s97, 1
      %s99 = scalar_select %p96, %s97, %s98
      %p102 = pneg %p96
      %p103 = scmp.eq.s32.totalorder %s12, 17
      %p104 = por %p102, %p103
      %p105 = scmp.ne.s32.totalorder %s97, %s100
      %p106 = scmp.eq.s32.totalorder %s12, 0
      %p107 = por %p105, %p106
      %p108 = scmp.ne.s32.totalorder %s97, %s100
      %p109 = scmp.eq.s32.totalorder %s17, 17
      %p110 = por %p108, %p109
      %p111 = scmp.ne.s32.totalorder %s100, %s101
      %p112 = scmp.eq.s32.totalorder %s17, 0
      %p113 = por %p111, %p112
      %p114 = scmp.ne.s32.totalorder %s100, %s101
      %p115 = scmp.eq.s32.totalorder %s18, 17
      %p116 = por %p114, %p115
      %p118 = scmp.ne.s32.totalorder %s101, %s117
      %p119 = scmp.eq.s32.totalorder %s18, 0
      %p120 = por %p118, %p119
      %s121 = ssub.s32 %s19, %s38
      %s122 = ssub.s32 %s20, %s34
      %s123 = sor.u32 %s121, %s122
      %p124 = scmp.eq.s32.totalorder %s123, 0
      %s126 = sadd.s32 %s125, 1
      %s127 = scalar_select %p124, %s125, %s126
      %p130 = pneg %p124
      %p131 = scmp.eq.s32.totalorder %s12, 17
      %p132 = por %p130, %p131
      %p133 = scmp.ne.s32.totalorder %s125, %s128
      %p134 = scmp.eq.s32.totalorder %s12, 0
      %p135 = por %p133, %p134
      %p136 = scmp.ne.s32.totalorder %s125, %s128
      %p137 = scmp.eq.s32.totalorder %s17, 17
      %p138 = por %p136, %p137
      %p139 = scmp.ne.s32.totalorder %s128, %s129
      %p140 = scmp.eq.s32.totalorder %s17, 0
      %p141 = por %p139, %p140
      %p142 = scmp.ne.s32.totalorder %s128, %s129
      %p143 = scmp.eq.s32.totalorder %s18, 17
      %p144 = por %p142, %p143
      %p146 = scmp.ne.s32.totalorder %s129, %s145
      %p147 = scmp.eq.s32.totalorder %s18, 0
      %p148 = por %p146, %p147
      %p149 = scmp.le.s32.totalorder 1, %s12
      %p150 = scmp.lt.s32.totalorder %s12, 19
      %p151 = pnand %p149, %p150
      %p152 = pneg %p151
      // Predicated region
      $region9: #{resnet18_forward.23} parent=5 // pred_check
        _
      $region10: #{resnet18_forward.23} parent=5 // pred_check_branch
        %154 = sbr.rel (%p151) target = $region12
      $region11: #{resnet18_forward.23} parent=5 // pred_region
        %s155 = ssub.s32 %s12, 1
      $region12: #{resnet18_forward.23} parent=5 // pred_fallthru
        _
      %p156 = scmp.lt.s32.totalorder %s12, 18
      // Predicated region
      $region13: #{resnet18_forward.23} parent=5 // pred_check
        %p157 = pneg %p156
      $region14: #{resnet18_forward.23} parent=5 // pred_check_branch
        %159 = sbr.rel (%p157) target = $region16
      $region15: #{resnet18_forward.23} parent=5 // pred_region
        // Predicated region
        $region17: #{resnet18_forward.23} parent=15 // pred_check
          %p160 = pneg %p53
        $region18: #{resnet18_forward.23} parent=15 // pred_check_branch
          %162 = sbr.rel (%p160) target = $region20
        $region19: #{resnet18_forward.23} parent=15 // pred_region
          %s163 = smul.u32 4, %s21
          %p164 = scmp.lt.s32.totalorder %s19, 0
          %s165 = scalar_select %p164, %s19, 0
          %p166 = scmp.lt.s32.totalorder %s163, 35
          %s167 = scalar_select %p166, %s163, 35
          %s168 = smul.addr %s165, 36
          %s169 = sadd.s32 %s167, %s168
          %s170 = smul.addr %s169, 4
          %s171 = scalar_lea.vmem %s0, %s170
          %s172 = smul.u32 4, %s21
        $region20: #{resnet18_forward.23} parent=15 // pred_fallthru
          _
        // Predicated region
        $region21: #{resnet18_forward.23} parent=15 // pred_check
          %p173 = pneg %p81
        $region22: #{resnet18_forward.23} parent=15 // pred_check_branch
          %175 = sbr.rel (%p173) target = $region24
        $region23: #{resnet18_forward.23} parent=15 // pred_region
          %s176 = sand.u32 %s71, 1
          %s177 = scalar_lea.sflag [#allocation3], %s176
          %s178 = sand.u32 %s71, 1
          %s179 = smul.addr %s178, 512
          %s180 = scalar_lea.vmem [#allocation2], %s179
          %s181 = smul.u32 64, %s21
          %s182 = smul.u32 2, %s20
          %184 = vsyncadd %s177, 0
          %s185 = smul.addr %s181, 4
          %s186 = sadd.s32 %s182, %s185
          %s187 = smul.addr %s186, 4
          %s188 = scalar_lea.hbm %s1, %s187
          %s189 = sshll.u32 %s188, 4
          %s190 = int_to_ptr.hbm [resolvable:$true] %s189
          %s191 = sshll.u32 %s180, 4
          %s192 = int_to_ptr.vmem [resolvable:$true] %s191
          %197 = dma.hbm_to_vmem [thread:$0]  %s190, 8192, %s192, %s177, 256, 128, 8
        $region24: #{resnet18_forward.23} parent=15 // pred_fallthru
          _
        // Predicated region
        $region25: #{resnet18_forward.23} parent=15 // pred_check
          %p198 = pneg %p107
        $region26: #{resnet18_forward.23} parent=15 // pred_check_branch
          %200 = sbr.rel (%p198) target = $region28
        $region27: #{resnet18_forward.23} parent=15 // pred_region
          %s201 = smul.u32 2, %s20
          %p202 = scmp.lt.s32.totalorder %s201, 3
          %s203 = scalar_select %p202, %s201, 3
          %s204 = scalar_lea.vmem %s2, %s203
          %s205 = smul.u32 2, %s20
        $region28: #{resnet18_forward.23} parent=15 // pred_fallthru
          _
      $region16: #{resnet18_forward.23} parent=5 // pred_fallthru
        _
      %p206 = scmp.le.s32.totalorder 1, %s12
      %p207 = scmp.lt.s32.totalorder %s12, 19
      %p208 = pnand %p206, %p207
      %p209 = pneg %p208
      // Predicated region
      $region29: #{resnet18_forward.23} parent=5 // pred_check
        _
      $region30: #{resnet18_forward.23} parent=5 // pred_check_branch
        %211 = sbr.rel (%p208) target = $region32
      $region31: #{resnet18_forward.23} parent=5 // pred_region
        %s212 = ssub.s32 %s12, 1
        %s213 = sand.u32 %s74, 1
        %s214 = scalar_lea.sflag [#allocation3], %s213
        %s215 = sand.u32 %s74, 1
        %s216 = smul.addr %s215, 512
        %s217 = scalar_lea.vmem [#allocation2], %s216
        // Predicated region
        $region33: #{resnet18_forward.23} parent=31 // pred_check
          %p218 = pneg %p87
        $region34: #{resnet18_forward.23} parent=31 // pred_check_branch
          %220 = sbr.rel (%p218) target = $region36
        $region35: #{resnet18_forward.23} parent=31 // pred_region
          %222 = dma.done %s214, 8192
        $region36: #{resnet18_forward.23} parent=31 // pred_fallthru
          _
        %s223 = smul.u32 4, %s24
        %p224 = scmp.lt.s32.totalorder %s22, 0
        %s225 = scalar_select %p224, %s22, 0
        %p226 = scmp.lt.s32.totalorder %s223, 35
        %s227 = scalar_select %p226, %s223, 35
        %s228 = smul.addr %s225, 36
        %s229 = sadd.s32 %s227, %s228
        %s230 = smul.addr %s229, 4
        %s231 = scalar_lea.vmem %s0, %s230
        %p232 = pneg %p59
        %p233 = pneg %p56
        %s234 = sand.u32 %s74, 1
        %s235 = scalar_lea.sflag [#allocation3], %s234
        %s236 = sand.u32 %s74, 1
        %s237 = smul.addr %s236, 512
        %s238 = scalar_lea.vmem [#allocation2], %s237
        %p239 = pneg %p87
        %p240 = pneg %p84
        %s241 = smul.u32 2, %s23
        %p242 = scmp.lt.s32.totalorder %s241, 3
        %s243 = scalar_select %p242, %s241, 3
        %s244 = scalar_lea.vmem %s2, %s243
        %p245 = pneg %p113
        %p246 = pneg %p110
        %p247 = pneg %p141
        %p248 = pneg %p138
        %s249 = smul.u32 2, %s23
        %p250 = scmp.lt.s32.totalorder %s22, 0
        %s251 = scalar_select %p250, %s22, 0
        %p252 = scmp.lt.s32.totalorder %s249, 3
        %s253 = scalar_select %p252, %s249, 3
        %s254 = smul.addr %s251, 4
        %s255 = sadd.s32 %s253, %s254
        %s256 = smul.addr %s255, 8
        %s257 = scalar_lea.vmem %s3, %s256
        %s258 = smul.u32 4, %s24
        %p259 = scmp.lt.s32.totalorder %s22, 0
        %s260 = scalar_select %p259, %s22, 0
        %p261 = scmp.lt.s32.totalorder %s258, 35
        %s262 = scalar_select %p261, %s258, 35
        %s263 = smul.addr %s260, 36
        %s264 = sadd.s32 %s262, %s263
        %s265 = smul.addr %s264, 4
        %s266 = scalar_lea.vmem %s0, %s265
        %s267 = smul.u32 4, %s24
        %s268 = smul.u32 64, %s24
        %s269 = smul.u32 2, %s23
        %s270 = smul.u32 2, %s23
        %p271 = scmp.lt.s32.totalorder %s270, 3
        %s272 = scalar_select %p271, %s270, 3
        %s273 = scalar_lea.vmem %s2, %s272
        %s274 = smul.u32 2, %s23
        %s275 = smul.u32 2, %s23
        %p276 = scmp.lt.s32.totalorder %s22, 0
        %s277 = scalar_select %p276, %s22, 0
        %p278 = scmp.lt.s32.totalorder %s275, 3
        %s279 = scalar_select %p278, %s275, 3
        %s280 = smul.addr %s277, 4
        %s281 = sadd.s32 %s279, %s280
        %s282 = smul.addr %s281, 8
        %s283 = scalar_lea.vmem %s3, %s282
        %s284 = smul.u32 2, %s23
        %p285 = scmp.eq.s32.totalorder %s24, 0
        // Predicated region
        $region37: #{resnet18_forward.23} parent=31 // pred_check
          %p286 = pneg %p285
        $region38: #{resnet18_forward.23} parent=31 // pred_check_branch
          %288 = sbr.rel (%p286) target = $region40
        $region39: #{resnet18_forward.23} parent=31 // pred_region
          %289 = vst [vmem:[%s283] sm:$0xff] 0.0
          %290 = vst [vmem:[%s283 + $0x8] sm:$0xff] 0.0
        $region40: #{resnet18_forward.23} parent=31 // pred_fallthru
          _
        %v291 = vld [vmem:[%s283] sm:$0xff]
        %v292 = vld [vmem:[%s283 + $0x8] sm:$0xff]
        %v293 = vld [vmem:[%s266] sm:$0xff]
        %v294 = vld [vmem:[%s266 + $0x8] sm:$0xff]
        %v295 = vld [vmem:[%s217] sm:$0xff]
        %v296 = vld [vmem:[%s217 + $0x8] sm:$0xff]
        %v297 = vld [vmem:[%s217 + $0x10] sm:$0xff]
        %v298 = vld [vmem:[%s217 + $0x18] sm:$0xff]
        %v299 = vld [vmem:[%s217 + $0x20] sm:$0xff]
        %v300 = vld [vmem:[%s217 + $0x28] sm:$0xff]
        %v301 = vld [vmem:[%s217 + $0x30] sm:$0xff]
        %v302 = vld [vmem:[%s217 + $0x38] sm:$0xff]
        %v303 = vld [vmem:[%s217 + $0x40] sm:$0xff]
        %v304 = vld [vmem:[%s217 + $0x48] sm:$0xff]
        %v305 = vld [vmem:[%s217 + $0x50] sm:$0xff]
        %v306 = vld [vmem:[%s217 + $0x58] sm:$0xff]
        %v307 = vld [vmem:[%s217 + $0x60] sm:$0xff]
        %v308 = vld [vmem:[%s217 + $0x68] sm:$0xff]
        %v309 = vld [vmem:[%s217 + $0x70] sm:$0xff]
        %v310 = vld [vmem:[%s217 + $0x78] sm:$0xff]
        %v311 = vld [vmem:[%s217 + $0x80] sm:$0xff]
        %v312 = vld [vmem:[%s217 + $0x88] sm:$0xff]
        %v313 = vld [vmem:[%s217 + $0x90] sm:$0xff]
        %v314 = vld [vmem:[%s217 + $0x98] sm:$0xff]
        %v315 = vld [vmem:[%s217 + $0xa0] sm:$0xff]
        %v316 = vld [vmem:[%s217 + $0xa8] sm:$0xff]
        %v317 = vld [vmem:[%s217 + $0xb0] sm:$0xff]
        %v318 = vld [vmem:[%s217 + $0xb8] sm:$0xff]
        %v319 = vld [vmem:[%s217 + $0xc0] sm:$0xff]
        %v320 = vld [vmem:[%s217 + $0xc8] sm:$0xff]
        %v321 = vld [vmem:[%s217 + $0xd0] sm:$0xff]
        %v322 = vld [vmem:[%s217 + $0xd8] sm:$0xff]
        %v323 = vld [vmem:[%s217 + $0xe0] sm:$0xff]
        %v324 = vld [vmem:[%s217 + $0xe8] sm:$0xff]
        %v325 = vld [vmem:[%s217 + $0xf0] sm:$0xff]
        %v326 = vld [vmem:[%s217 + $0xf8] sm:$0xff]
        %v327 = vld [vmem:[%s217 + $0x100] sm:$0xff]
        %v328 = vld [vmem:[%s217 + $0x108] sm:$0xff]
        %v329 = vld [vmem:[%s217 + $0x110] sm:$0xff]
        %v330 = vld [vmem:[%s217 + $0x118] sm:$0xff]
        %v331 = vld [vmem:[%s217 + $0x120] sm:$0xff]
        %v332 = vld [vmem:[%s217 + $0x128] sm:$0xff]
        %v333 = vld [vmem:[%s217 + $0x130] sm:$0xff]
        %v334 = vld [vmem:[%s217 + $0x138] sm:$0xff]
        %v335 = vld [vmem:[%s217 + $0x140] sm:$0xff]
        %v336 = vld [vmem:[%s217 + $0x148] sm:$0xff]
        %v337 = vld [vmem:[%s217 + $0x150] sm:$0xff]
        %v338 = vld [vmem:[%s217 + $0x158] sm:$0xff]
        %v339 = vld [vmem:[%s217 + $0x160] sm:$0xff]
        %v340 = vld [vmem:[%s217 + $0x168] sm:$0xff]
        %v341 = vld [vmem:[%s217 + $0x170] sm:$0xff]
        %v342 = vld [vmem:[%s217 + $0x178] sm:$0xff]
        %v343 = vld [vmem:[%s217 + $0x180] sm:$0xff]
        %v344 = vld [vmem:[%s217 + $0x188] sm:$0xff]
        %v345 = vld [vmem:[%s217 + $0x190] sm:$0xff]
        %v346 = vld [vmem:[%s217 + $0x198] sm:$0xff]
        %v347 = vld [vmem:[%s217 + $0x1a0] sm:$0xff]
        %v348 = vld [vmem:[%s217 + $0x1a8] sm:$0xff]
        %v349 = vld [vmem:[%s217 + $0x1b0] sm:$0xff]
        %v350 = vld [vmem:[%s217 + $0x1b8] sm:$0xff]
        %v351 = vld [vmem:[%s217 + $0x1c0] sm:$0xff]
        %v352 = vld [vmem:[%s217 + $0x1c8] sm:$0xff]
        %v353 = vld [vmem:[%s217 + $0x1d0] sm:$0xff]
        %v354 = vld [vmem:[%s217 + $0x1d8] sm:$0xff]
        %v355 = vld [vmem:[%s217 + $0x1e0] sm:$0xff]
        %v356 = vld [vmem:[%s217 + $0x1e8] sm:$0xff]
        %v357 = vld [vmem:[%s217 + $0x1f0] sm:$0xff]
        %v358 = vld [vmem:[%s217 + $0x1f8] sm:$0xff]
        %v361 = vunpack.c.l.b16 %v293
        %v362 = vunpack.c.h.b16 %v293
        %v363 = vunpack.c.l.b16 %v294
        %v364 = vunpack.c.h.b16 %v294
        %v365 = vpack.c.b16 %v361, %v361
        %v366 = vpack.c.b16 %v362, %v362
        %v367 = vpack.c.b16 %v363, %v363
        %v368 = vpack.c.b16 %v364, %v364
        %v437 = vunpack.c.l.b16 %v295
        %v438 = vunpack.c.h.b16 %v295
        %v439 = vunpack.c.l.b16 %v296
        %v440 = vunpack.c.h.b16 %v296
        %v441 = vunpack.c.l.b16 %v297
        %v442 = vunpack.c.h.b16 %v297
        %v443 = vunpack.c.l.b16 %v298
        %v444 = vunpack.c.h.b16 %v298
        %v445 = vunpack.c.l.b16 %v299
        %v446 = vunpack.c.h.b16 %v299
        %v447 = vunpack.c.l.b16 %v300
        %v448 = vunpack.c.h.b16 %v300
        %v449 = vunpack.c.l.b16 %v301
        %v450 = vunpack.c.h.b16 %v301
        %v451 = vunpack.c.l.b16 %v302
        %v452 = vunpack.c.h.b16 %v302
        %v453 = vunpack.c.l.b16 %v303
        %v454 = vunpack.c.h.b16 %v303
        %v455 = vunpack.c.l.b16 %v304
        %v456 = vunpack.c.h.b16 %v304
        %v457 = vunpack.c.l.b16 %v305
        %v458 = vunpack.c.h.b16 %v305
        %v459 = vunpack.c.l.b16 %v306
        %v460 = vunpack.c.h.b16 %v306
        %v461 = vunpack.c.l.b16 %v307
        %v462 = vunpack.c.h.b16 %v307
        %v463 = vunpack.c.l.b16 %v308
        %v464 = vunpack.c.h.b16 %v308
        %v465 = vunpack.c.l.b16 %v309
        %v466 = vunpack.c.h.b16 %v309
        %v467 = vunpack.c.l.b16 %v310
        %v468 = vunpack.c.h.b16 %v310
        %v469 = vunpack.c.l.b16 %v311
        %v470 = vunpack.c.h.b16 %v311
        %v471 = vunpack.c.l.b16 %v312
        %v472 = vunpack.c.h.b16 %v312
        %v473 = vunpack.c.l.b16 %v313
        %v474 = vunpack.c.h.b16 %v313
        %v475 = vunpack.c.l.b16 %v314
        %v476 = vunpack.c.h.b16 %v314
        %v477 = vunpack.c.l.b16 %v315
        %v478 = vunpack.c.h.b16 %v315
        %v479 = vunpack.c.l.b16 %v316
        %v480 = vunpack.c.h.b16 %v316
        %v481 = vunpack.c.l.b16 %v317
        %v482 = vunpack.c.h.b16 %v317
        %v483 = vunpack.c.l.b16 %v318
        %v484 = vunpack.c.h.b16 %v318
        %v485 = vunpack.c.l.b16 %v319
        %v486 = vunpack.c.h.b16 %v319
        %v487 = vunpack.c.l.b16 %v320
        %v488 = vunpack.c.h.b16 %v320
        %v489 = vunpack.c.l.b16 %v321
        %v490 = vunpack.c.h.b16 %v321
        %v491 = vunpack.c.l.b16 %v322
        %v492 = vunpack.c.h.b16 %v322
        %v493 = vunpack.c.l.b16 %v323
        %v494 = vunpack.c.h.b16 %v323
        %v495 = vunpack.c.l.b16 %v324
        %v496 = vunpack.c.h.b16 %v324
        %v497 = vunpack.c.l.b16 %v325
        %v498 = vunpack.c.h.b16 %v325
        %v499 = vunpack.c.l.b16 %v326
        %v500 = vunpack.c.h.b16 %v326
        %v501 = vunpack.c.l.b16 %v327
        %v502 = vunpack.c.h.b16 %v327
        %v503 = vunpack.c.l.b16 %v328
        %v504 = vunpack.c.h.b16 %v328
        %v505 = vunpack.c.l.b16 %v329
        %v506 = vunpack.c.h.b16 %v329
        %v507 = vunpack.c.l.b16 %v330
        %v508 = vunpack.c.h.b16 %v330
        %v509 = vunpack.c.l.b16 %v331
        %v510 = vunpack.c.h.b16 %v331
        %v511 = vunpack.c.l.b16 %v332
        %v512 = vunpack.c.h.b16 %v332
        %v513 = vunpack.c.l.b16 %v333
        %v514 = vunpack.c.h.b16 %v333
        %v515 = vunpack.c.l.b16 %v334
        %v516 = vunpack.c.h.b16 %v334
        %v517 = vunpack.c.l.b16 %v335
        %v518 = vunpack.c.h.b16 %v335
        %v519 = vunpack.c.l.b16 %v336
        %v520 = vunpack.c.h.b16 %v336
        %v521 = vunpack.c.l.b16 %v337
        %v522 = vunpack.c.h.b16 %v337
        %v523 = vunpack.c.l.b16 %v338
        %v524 = vunpack.c.h.b16 %v338
        %v525 = vunpack.c.l.b16 %v339
        %v526 = vunpack.c.h.b16 %v339
        %v527 = vunpack.c.l.b16 %v340
        %v528 = vunpack.c.h.b16 %v340
        %v529 = vunpack.c.l.b16 %v341
        %v530 = vunpack.c.h.b16 %v341
        %v531 = vunpack.c.l.b16 %v342
        %v532 = vunpack.c.h.b16 %v342
        %v533 = vunpack.c.l.b16 %v343
        %v534 = vunpack.c.h.b16 %v343
        %v535 = vunpack.c.l.b16 %v344
        %v536 = vunpack.c.h.b16 %v344
        %v537 = vunpack.c.l.b16 %v345
        %v538 = vunpack.c.h.b16 %v345
        %v539 = vunpack.c.l.b16 %v346
        %v540 = vunpack.c.h.b16 %v346
        %v541 = vunpack.c.l.b16 %v347
        %v542 = vunpack.c.h.b16 %v347
        %v543 = vunpack.c.l.b16 %v348
        %v544 = vunpack.c.h.b16 %v348
        %v545 = vunpack.c.l.b16 %v349
        %v546 = vunpack.c.h.b16 %v349
        %v547 = vunpack.c.l.b16 %v350
        %v548 = vunpack.c.h.b16 %v350
        %v549 = vunpack.c.l.b16 %v351
        %v550 = vunpack.c.h.b16 %v351
        %v551 = vunpack.c.l.b16 %v352
        %v552 = vunpack.c.h.b16 %v352
        %v553 = vunpack.c.l.b16 %v353
        %v554 = vunpack.c.h.b16 %v353
        %v555 = vunpack.c.l.b16 %v354
        %v556 = vunpack.c.h.b16 %v354
        %v557 = vunpack.c.l.b16 %v355
        %v558 = vunpack.c.h.b16 %v355
        %v559 = vunpack.c.l.b16 %v356
        %v560 = vunpack.c.h.b16 %v356
        %v561 = vunpack.c.l.b16 %v357
        %v562 = vunpack.c.h.b16 %v357
        %v563 = vunpack.c.l.b16 %v358
        %v564 = vunpack.c.h.b16 %v358
        %v565 = vpack.c.b16 %v439, %v437
        %v566 = vpack.c.b16 %v440, %v438
        %v567 = vpack.c.b16 %v443, %v441
        %v568 = vpack.c.b16 %v444, %v442
        %v569 = vpack.c.b16 %v447, %v445
        %v570 = vpack.c.b16 %v448, %v446
        %v571 = vpack.c.b16 %v451, %v449
        %v572 = vpack.c.b16 %v452, %v450
        %v573 = vpack.c.b16 %v455, %v453
        %v574 = vpack.c.b16 %v456, %v454
        %v575 = vpack.c.b16 %v459, %v457
        %v576 = vpack.c.b16 %v460, %v458
        %v577 = vpack.c.b16 %v463, %v461
        %v578 = vpack.c.b16 %v464, %v462
        %v579 = vpack.c.b16 %v467, %v465
        %v580 = vpack.c.b16 %v468, %v466
        %v581 = vpack.c.b16 %v471, %v469
        %v582 = vpack.c.b16 %v472, %v470
        %v583 = vpack.c.b16 %v475, %v473
        %v584 = vpack.c.b16 %v476, %v474
        %v585 = vpack.c.b16 %v479, %v477
        %v586 = vpack.c.b16 %v480, %v478
        %v587 = vpack.c.b16 %v483, %v481
        %v588 = vpack.c.b16 %v484, %v482
        %v589 = vpack.c.b16 %v487, %v485
        %v590 = vpack.c.b16 %v488, %v486
        %v591 = vpack.c.b16 %v491, %v489
        %v592 = vpack.c.b16 %v492, %v490
        %v593 = vpack.c.b16 %v495, %v493
        %v594 = vpack.c.b16 %v496, %v494
        %v595 = vpack.c.b16 %v499, %v497
        %v596 = vpack.c.b16 %v500, %v498
        %v597 = vpack.c.b16 %v503, %v501
        %v598 = vpack.c.b16 %v504, %v502
        %v599 = vpack.c.b16 %v507, %v505
        %v600 = vpack.c.b16 %v508, %v506
        %v601 = vpack.c.b16 %v511, %v509
        %v602 = vpack.c.b16 %v512, %v510
        %v603 = vpack.c.b16 %v515, %v513
        %v604 = vpack.c.b16 %v516, %v514
        %v605 = vpack.c.b16 %v519, %v517
        %v606 = vpack.c.b16 %v520, %v518
        %v607 = vpack.c.b16 %v523, %v521
        %v608 = vpack.c.b16 %v524, %v522
        %v609 = vpack.c.b16 %v527, %v525
        %v610 = vpack.c.b16 %v528, %v526
        %v611 = vpack.c.b16 %v531, %v529
        %v612 = vpack.c.b16 %v532, %v530
        %v613 = vpack.c.b16 %v535, %v533
        %v614 = vpack.c.b16 %v536, %v534
        %v615 = vpack.c.b16 %v539, %v537
        %v616 = vpack.c.b16 %v540, %v538
        %v617 = vpack.c.b16 %v543, %v541
        %v618 = vpack.c.b16 %v544, %v542
        %v619 = vpack.c.b16 %v547, %v545
        %v620 = vpack.c.b16 %v548, %v546
        %v621 = vpack.c.b16 %v551, %v549
        %v622 = vpack.c.b16 %v552, %v550
        %v623 = vpack.c.b16 %v555, %v553
        %v624 = vpack.c.b16 %v556, %v554
        %v625 = vpack.c.b16 %v559, %v557
        %v626 = vpack.c.b16 %v560, %v558
        %v627 = vpack.c.b16 %v563, %v561
        %v628 = vpack.c.b16 %v564, %v562
        %693 = vmatpush.bf16.msra.mxu0 %v579
        %694 = vmatpush.bf16.msra.mxu0 %v577
        %695 = vmatpush.bf16.msra.mxu0 %v575
        %696 = vmatpush.bf16.msra.mxu0 %v573
        %697 = vmatpush.bf16.msra.mxu0 %v571
        %698 = vmatpush.bf16.msra.mxu0 %v569
        %699 = vmatpush.bf16.msra.mxu0 %v567
        %700 = vmatpush.bf16.msra.mxu0 %v565
        %701 = vmatmul.bf16.gmra.mxu0 %v365
        %v702 = vpop.f32.mrf.mxu0
        %v703 = vadd.f32 0.0, %v702
        %v704 = vpop.f32.mrf.mxu0
        %705 = vdwg.mxu0
        %706 = vmatpush.bf16.msra.mxu0 %v595
        %707 = vmatpush.bf16.msra.mxu0 %v593
        %708 = vmatpush.bf16.msra.mxu0 %v591
        %709 = vmatpush.bf16.msra.mxu0 %v589
        %710 = vmatpush.bf16.msra.mxu0 %v587
        %711 = vmatpush.bf16.msra.mxu0 %v585
        %712 = vmatpush.bf16.msra.mxu0 %v583
        %713 = vmatpush.bf16.msra.mxu0 %v581
        %714 = vmatmul.bf16.gmra.mxu0 %v366
        %v715 = vpop.f32.mrf.mxu0
        %v716 = vadd.f32 %v703, %v715
        %v717 = vpop.f32.mrf.mxu0
        %718 = vdwg.mxu0
        %719 = vmatpush.bf16.msra.mxu0 %v611
        %720 = vmatpush.bf16.msra.mxu0 %v609
        %721 = vmatpush.bf16.msra.mxu0 %v607
        %722 = vmatpush.bf16.msra.mxu0 %v605
        %723 = vmatpush.bf16.msra.mxu0 %v603
        %724 = vmatpush.bf16.msra.mxu0 %v601
        %725 = vmatpush.bf16.msra.mxu0 %v599
        %726 = vmatpush.bf16.msra.mxu0 %v597
        %727 = vmatmul.bf16.gmra.mxu0 %v367
        %v728 = vpop.f32.mrf.mxu0
        %v729 = vadd.f32 %v716, %v728
        %v730 = vpop.f32.mrf.mxu0
        %731 = vdwg.mxu0
        %732 = vmatpush.bf16.msra.mxu0 %v627
        %733 = vmatpush.bf16.msra.mxu0 %v625
        %734 = vmatpush.bf16.msra.mxu0 %v623
        %735 = vmatpush.bf16.msra.mxu0 %v621
        %736 = vmatpush.bf16.msra.mxu0 %v619
        %737 = vmatpush.bf16.msra.mxu0 %v617
        %738 = vmatpush.bf16.msra.mxu0 %v615
        %739 = vmatpush.bf16.msra.mxu0 %v613
        %740 = vmatmul.bf16.gmra.mxu0 %v368
        %v741 = vpop.f32.mrf.mxu0
        %v742 = vadd.f32 %v729, %v741
        %v743 = vpop.f32.mrf.mxu0
        %744 = vdwg.mxu0
        %745 = vmatpush.bf16.msra.mxu0 %v580
        %746 = vmatpush.bf16.msra.mxu0 %v578
        %747 = vmatpush.bf16.msra.mxu0 %v576
        %748 = vmatpush.bf16.msra.mxu0 %v574
        %749 = vmatpush.bf16.msra.mxu0 %v572
        %750 = vmatpush.bf16.msra.mxu0 %v570
        %751 = vmatpush.bf16.msra.mxu0 %v568
        %752 = vmatpush.bf16.msra.mxu0 %v566
        %753 = vmatmul.bf16.gmra.mxu0 %v365
        %v754 = vpop.f32.mrf.mxu0
        %v755 = vadd.f32 0.0, %v754
        %v756 = vpop.f32.mrf.mxu0
        %757 = vdwg.mxu0
        %758 = vmatpush.bf16.msra.mxu0 %v596
        %759 = vmatpush.bf16.msra.mxu0 %v594
        %760 = vmatpush.bf16.msra.mxu0 %v592
        %761 = vmatpush.bf16.msra.mxu0 %v590
        %762 = vmatpush.bf16.msra.mxu0 %v588
        %763 = vmatpush.bf16.msra.mxu0 %v586
        %764 = vmatpush.bf16.msra.mxu0 %v584
        %765 = vmatpush.bf16.msra.mxu0 %v582
        %766 = vmatmul.bf16.gmra.mxu0 %v366
        %v767 = vpop.f32.mrf.mxu0
        %v768 = vadd.f32 %v755, %v767
        %v769 = vpop.f32.mrf.mxu0
        %770 = vdwg.mxu0
        %771 = vmatpush.bf16.msra.mxu0 %v612
        %772 = vmatpush.bf16.msra.mxu0 %v610
        %773 = vmatpush.bf16.msra.mxu0 %v608
        %774 = vmatpush.bf16.msra.mxu0 %v606
        %775 = vmatpush.bf16.msra.mxu0 %v604
        %776 = vmatpush.bf16.msra.mxu0 %v602
        %777 = vmatpush.bf16.msra.mxu0 %v600
        %778 = vmatpush.bf16.msra.mxu0 %v598
        %779 = vmatmul.bf16.gmra.mxu0 %v367
        %v780 = vpop.f32.mrf.mxu0
        %v781 = vadd.f32 %v768, %v780
        %v782 = vpop.f32.mrf.mxu0
        %783 = vdwg.mxu0
        %784 = vmatpush.bf16.msra.mxu0 %v628
        %785 = vmatpush.bf16.msra.mxu0 %v626
        %786 = vmatpush.bf16.msra.mxu0 %v624
        %787 = vmatpush.bf16.msra.mxu0 %v622
        %788 = vmatpush.bf16.msra.mxu0 %v620
        %789 = vmatpush.bf16.msra.mxu0 %v618
        %790 = vmatpush.bf16.msra.mxu0 %v616
        %791 = vmatpush.bf16.msra.mxu0 %v614
        %792 = vmatmul.bf16.gmra.mxu0 %v368
        %v793 = vpop.f32.mrf.mxu0
        %v794 = vadd.f32 %v781, %v793
        %v795 = vpop.f32.mrf.mxu0
        %796 = vdwg.mxu0
        %v797 = vadd.f32 %v291, %v742
        %v798 = vadd.f32 %v292, %v794
        %799 = vst [vmem:[%s283] sm:$0xff] %v797
        %800 = vst [vmem:[%s283 + $0x8] sm:$0xff] %v798
        %p801 = scmp.eq.s32.totalorder %s24, 8
        // Predicated region
        $region41: #{resnet18_forward.23} parent=31 // pred_check
          %p802 = pneg %p801
        $region42: #{resnet18_forward.23} parent=31 // pred_check_branch
          %804 = sbr.rel (%p802) target = $region44
        $region43: #{resnet18_forward.23} parent=31 // pred_region
          %v805 = vld [vmem:[%s283] sm:$0xff]
          %v806 = vld [vmem:[%s283 + $0x8] sm:$0xff]
          %v807 = vld [vmem:[%s273] sm:$0x3]
          %v809 = vperm.slane %v807, 0
          %v810 = vperm.slane %v807, 1
          %v813 = vadd.f32 %v805, %v809
          %v814 = vadd.f32 %v806, %v810
          %v815 = vmax.f32 %v813, 0.0
          %v816 = vmax.f32 %v814, 0.0
          %817 = vst [vmem:[%s283] sm:$0xff] %v815
          %818 = vst [vmem:[%s283 + $0x8] sm:$0xff] %v816
        $region44: #{resnet18_forward.23} parent=31 // pred_fallthru
          _
        %s819 = smul.u32 2, %s23
        %p820 = scmp.lt.s32.totalorder %s22, 0
        %s821 = scalar_select %p820, %s22, 0
        %p822 = scmp.lt.s32.totalorder %s819, 3
        %s823 = scalar_select %p822, %s819, 3
        %s824 = smul.addr %s821, 4
        %s825 = sadd.s32 %s823, %s824
        %s826 = smul.addr %s825, 8
        %s827 = scalar_lea.vmem %s3, %s826
        // Predicated region
        $region45: #{resnet18_forward.23} parent=31 // pred_check
          %p828 = pneg %p138
        $region46: #{resnet18_forward.23} parent=31 // pred_check_branch
          %830 = sbr.rel (%p828) target = $region48
        $region47: #{resnet18_forward.23} parent=31 // pred_region
          %s831 = smul.u32 2, %s23
        $region48: #{resnet18_forward.23} parent=31 // pred_fallthru
          _
      $region32: #{resnet18_forward.23} parent=5 // pred_fallthru
        _
      %p832 = scmp.le.s32.totalorder 2, %s12
      // Predicated region
      $region49: #{resnet18_forward.23} parent=5 // pred_check
        %p833 = pneg %p832
      $region50: #{resnet18_forward.23} parent=5 // pred_check_branch
        %835 = sbr.rel (%p833) target = $region52
      $region51: #{resnet18_forward.23} parent=5 // pred_region
        %s836 = ssub.s32 %s12, 2
        // Predicated region
        $region53: #{resnet18_forward.23} parent=51 // pred_check
          %p837 = pneg %p144
        $region54: #{resnet18_forward.23} parent=51 // pred_check_branch
          %839 = sbr.rel (%p837) target = $region56
        $region55: #{resnet18_forward.23} parent=51 // pred_region
          %s840 = smul.u32 2, %s26
          %p841 = scmp.lt.s32.totalorder %s25, 0
          %s842 = scalar_select %p841, %s25, 0
          %p843 = scmp.lt.s32.totalorder %s840, 3
          %s844 = scalar_select %p843, %s840, 3
          %s845 = smul.addr %s842, 4
          %s846 = sadd.s32 %s844, %s845
          %s847 = smul.addr %s846, 8
          %s848 = scalar_lea.vmem %s3, %s847
        $region56: #{resnet18_forward.23} parent=51 // pred_fallthru
          _
      $region52: #{resnet18_forward.23} parent=5 // pred_fallthru
        _
    $region6: #{resnet18_forward.23} parent=1 // loop_footer
      %s16 = sadd.s32 1, %s12
    $region7: #{resnet18_forward.23} parent=1 // loop_footer_branch
      %11 = sbr.rel target = $region3
    $region8: #{resnet18_forward.23} parent=1 // loop_exit
      _
    %849 = vsyncpa [#allocation3], 1
    %s850 = scalar_lea.sflag [#allocation3], 1
    %851 = vsyncpa %s850, 1

// kernel: resnet18_forward.25
$region0: #{resnet18_forward.25}
  #allocation0 [shape = 'u32[]', space=smem, size = 0x4, offset = 0x4, fixed_abs, tag = 'smem constant byte address 0x4 - core index']
  #allocation1 [shape = 'u32[72,128]{1,0:T(1,128)}', space=vmem, size = 0x9000, scoped, tag = 'internal scratch']
  %s0 = inlined_call_operand.vmem [shape: bf16[8,512], index: 0, kind: input, shape index: {}]
  %s1 = inlined_call_operand.vmem [shape: bf16[512,128], index: 1, kind: input, shape index: {}]
  %s2 = inlined_call_operand.vmem [shape: f32[1,128], index: 2, kind: input, shape index: {}]
  %s3 = inlined_call_operand.vmem [shape: f32[8,128], index: 3, kind: output, shape index: {}]
  %s4 = sld [smem:[#allocation0]]
  $region30: #{resnet18_forward.25} parent=0
    _
  %s6 = ssub.s32 1, %s4
  %s7 = scalar_select 0, %s6, %s4
  // Predicated region
  $region2: #{resnet18_forward.25} parent=0 // pred_check
    _
  $region3: #{resnet18_forward.25} parent=0 // pred_check_branch
    %9 = sbr.rel (0) target = $region5
  $region4: #{resnet18_forward.25} parent=0 // pred_region
    _
  $region5: #{resnet18_forward.25} parent=0 // pred_fallthru
    _
  // Predicated region
  $region6: #{resnet18_forward.25} parent=0 // pred_check
    _
  $region7: #{resnet18_forward.25} parent=0 // pred_check_branch
    %11 = sbr.rel (0) target = $region9
  $region8: #{resnet18_forward.25} parent=0 // pred_region
    _
  $region9: #{resnet18_forward.25} parent=0 // pred_fallthru
    _
  // Predicated region
  $region10: #{resnet18_forward.25} parent=0 // pred_check
    _
  $region11: #{resnet18_forward.25} parent=0 // pred_check_branch
    %13 = sbr.rel (0) target = $region13
  $region12: #{resnet18_forward.25} parent=0 // pred_region
    _
  $region13: #{resnet18_forward.25} parent=0 // pred_fallthru
    _
  %p14 = scmp.eq.s32.totalorder 0, 0
  // Predicated region
  $region14: #{resnet18_forward.25} parent=0 // pred_check
    %p15 = pneg %p14
  $region15: #{resnet18_forward.25} parent=0 // pred_check_branch
    %17 = sbr.rel (%p15) target = $region17
  $region16: #{resnet18_forward.25} parent=0 // pred_region
    %18 = vst [vmem:[%s3] sm:$0xff] 0.0
  $region17: #{resnet18_forward.25} parent=0 // pred_fallthru
    _
  %v19 = vld [vmem:[%s3] sm:$0xff]
  %v20 = vld [vmem:[%s0] sm:$0xff]
  %v21 = vld [vmem:[%s0 + $0x8] sm:$0xff]
  %v22 = vld [vmem:[%s1] sm:$0xf]
  %v23 = vld [vmem:[%s1 + $0x4] sm:$0xf]
  %v24 = vld [vmem:[%s1 + $0x8] sm:$0xf]
  %v25 = vld [vmem:[%s1 + $0xc] sm:$0xf]
  %v26 = vld [vmem:[%s1 + $0x10] sm:$0xf]
  %v27 = vld [vmem:[%s1 + $0x14] sm:$0xf]
  %v28 = vld [vmem:[%s1 + $0x18] sm:$0xf]
  %v29 = vld [vmem:[%s1 + $0x1c] sm:$0xf]
  %v30 = vld [vmem:[%s1 + $0x20] sm:$0xf]
  %v31 = vld [vmem:[%s1 + $0x24] sm:$0xf]
  %v32 = vld [vmem:[%s1 + $0x28] sm:$0xf]
  %v33 = vld [vmem:[%s1 + $0x2c] sm:$0xf]
  %v34 = vld [vmem:[%s1 + $0x30] sm:$0xf]
  %v35 = vld [vmem:[%s1 + $0x34] sm:$0xf]
  %v36 = vld [vmem:[%s1 + $0x38] sm:$0xf]
  %v37 = vld [vmem:[%s1 + $0x3c] sm:$0xf]
  %v38 = vld [vmem:[%s1 + $0x40] sm:$0xf]
  %v39 = vld [vmem:[%s1 + $0x44] sm:$0xf]
  %v40 = vld [vmem:[%s1 + $0x48] sm:$0xf]
  %v41 = vld [vmem:[%s1 + $0x4c] sm:$0xf]
  %v42 = vld [vmem:[%s1 + $0x50] sm:$0xf]
  %v43 = vld [vmem:[%s1 + $0x54] sm:$0xf]
  %v44 = vld [vmem:[%s1 + $0x58] sm:$0xf]
  %v45 = vld [vmem:[%s1 + $0x5c] sm:$0xf]
  %v46 = vld [vmem:[%s1 + $0x60] sm:$0xf]
  %v47 = vld [vmem:[%s1 + $0x64] sm:$0xf]
  %v48 = vld [vmem:[%s1 + $0x68] sm:$0xf]
  %v49 = vld [vmem:[%s1 + $0x6c] sm:$0xf]
  %v50 = vld [vmem:[%s1 + $0x70] sm:$0xf]
  %v51 = vld [vmem:[%s1 + $0x74] sm:$0xf]
  %v52 = vld [vmem:[%s1 + $0x78] sm:$0xf]
  %v53 = vld [vmem:[%s1 + $0x7c] sm:$0xf]
  %v54 = vld [vmem:[%s1 + $0x80] sm:$0xf]
  %v55 = vld [vmem:[%s1 + $0x84] sm:$0xf]
  %v56 = vld [vmem:[%s1 + $0x88] sm:$0xf]
  %v57 = vld [vmem:[%s1 + $0x8c] sm:$0xf]
  %v58 = vld [vmem:[%s1 + $0x90] sm:$0xf]
  %v59 = vld [vmem:[%s1 + $0x94] sm:$0xf]
  %v60 = vld [vmem:[%s1 + $0x98] sm:$0xf]
  %v61 = vld [vmem:[%s1 + $0x9c] sm:$0xf]
  %v62 = vld [vmem:[%s1 + $0xa0] sm:$0xf]
  %v63 = vld [vmem:[%s1 + $0xa4] sm:$0xf]
  %v64 = vld [vmem:[%s1 + $0xa8] sm:$0xf]
  %v65 = vld [vmem:[%s1 + $0xac] sm:$0xf]
  %v66 = vld [vmem:[%s1 + $0xb0] sm:$0xf]
  %v67 = vld [vmem:[%s1 + $0xb4] sm:$0xf]
  %v68 = vld [vmem:[%s1 + $0xb8] sm:$0xf]
  %v69 = vld [vmem:[%s1 + $0xbc] sm:$0xf]
  %v70 = vld [vmem:[%s1 + $0xc0] sm:$0xf]
  %v71 = vld [vmem:[%s1 + $0xc4] sm:$0xf]
  %v72 = vld [vmem:[%s1 + $0xc8] sm:$0xf]
  %v73 = vld [vmem:[%s1 + $0xcc] sm:$0xf]
  %v74 = vld [vmem:[%s1 + $0xd0] sm:$0xf]
  %v75 = vld [vmem:[%s1 + $0xd4] sm:$0xf]
  %v76 = vld [vmem:[%s1 + $0xd8] sm:$0xf]
  %v77 = vld [vmem:[%s1 + $0xdc] sm:$0xf]
  %v78 = vld [vmem:[%s1 + $0xe0] sm:$0xf]
  %v79 = vld [vmem:[%s1 + $0xe4] sm:$0xf]
  %v80 = vld [vmem:[%s1 + $0xe8] sm:$0xf]
  %v81 = vld [vmem:[%s1 + $0xec] sm:$0xf]
  %v82 = vld [vmem:[%s1 + $0xf0] sm:$0xf]
  %v83 = vld [vmem:[%s1 + $0xf4] sm:$0xf]
  %v84 = vld [vmem:[%s1 + $0xf8] sm:$0xf]
  %v85 = vld [vmem:[%s1 + $0xfc] sm:$0xf]
  %v88 = vunpack.c.l.b16 %v20
  %v89 = vunpack.c.h.b16 %v20
  %v90 = vunpack.c.l.b16 %v21
  %v91 = vunpack.c.h.b16 %v21
  %v92 = vpack.c.b16 %v88, %v88
  %v93 = vpack.c.b16 %v89, %v89
  %v94 = vpack.c.b16 %v90, %v90
  %v95 = vpack.c.b16 %v91, %v91
  %v164 = vunpack.c.l.b16 %v22
  %v165 = vunpack.c.l.b16 %v23
  %v166 = vunpack.c.l.b16 %v24
  %v167 = vunpack.c.l.b16 %v25
  %v168 = vunpack.c.l.b16 %v26
  %v169 = vunpack.c.l.b16 %v27
  %v170 = vunpack.c.l.b16 %v28
  %v171 = vunpack.c.l.b16 %v29
  %v172 = vunpack.c.l.b16 %v30
  %v173 = vunpack.c.l.b16 %v31
  %v174 = vunpack.c.l.b16 %v32
  %v175 = vunpack.c.l.b16 %v33
  %v176 = vunpack.c.l.b16 %v34
  %v177 = vunpack.c.l.b16 %v35
  %v178 = vunpack.c.l.b16 %v36
  %v179 = vunpack.c.l.b16 %v37
  %v180 = vunpack.c.l.b16 %v38
  %v181 = vunpack.c.l.b16 %v39
  %v182 = vunpack.c.l.b16 %v40
  %v183 = vunpack.c.l.b16 %v41
  %v184 = vunpack.c.l.b16 %v42
  %v185 = vunpack.c.l.b16 %v43
  %v186 = vunpack.c.l.b16 %v44
  %v187 = vunpack.c.l.b16 %v45
  %v188 = vunpack.c.l.b16 %v46
  %v189 = vunpack.c.l.b16 %v47
  %v190 = vunpack.c.l.b16 %v48
  %v191 = vunpack.c.l.b16 %v49
  %v192 = vunpack.c.l.b16 %v50
  %v193 = vunpack.c.l.b16 %v51
  %v194 = vunpack.c.l.b16 %v52
  %v195 = vunpack.c.l.b16 %v53
  %v196 = vunpack.c.l.b16 %v54
  %v197 = vunpack.c.l.b16 %v55
  %v198 = vunpack.c.l.b16 %v56
  %v199 = vunpack.c.l.b16 %v57
  %v200 = vunpack.c.l.b16 %v58
  %v201 = vunpack.c.l.b16 %v59
  %v202 = vunpack.c.l.b16 %v60
  %v203 = vunpack.c.l.b16 %v61
  %v204 = vunpack.c.l.b16 %v62
  %v205 = vunpack.c.l.b16 %v63
  %v206 = vunpack.c.l.b16 %v64
  %v207 = vunpack.c.l.b16 %v65
  %v208 = vunpack.c.l.b16 %v66
  %v209 = vunpack.c.l.b16 %v67
  %v210 = vunpack.c.l.b16 %v68
  %v211 = vunpack.c.l.b16 %v69
  %v212 = vunpack.c.l.b16 %v70
  %v213 = vunpack.c.l.b16 %v71
  %v214 = vunpack.c.l.b16 %v72
  %v215 = vunpack.c.l.b16 %v73
  %v216 = vunpack.c.l.b16 %v74
  %v217 = vunpack.c.l.b16 %v75
  %v218 = vunpack.c.l.b16 %v76
  %v219 = vunpack.c.l.b16 %v77
  %v220 = vunpack.c.l.b16 %v78
  %v221 = vunpack.c.l.b16 %v79
  %v222 = vunpack.c.l.b16 %v80
  %v223 = vunpack.c.l.b16 %v81
  %v224 = vunpack.c.l.b16 %v82
  %v225 = vunpack.c.l.b16 %v83
  %v226 = vunpack.c.l.b16 %v84
  %v227 = vunpack.c.l.b16 %v85
  %v228 = vpack.c.b16 %v165, %v164
  %v229 = vpack.c.b16 %v167, %v166
  %v230 = vpack.c.b16 %v169, %v168
  %v231 = vpack.c.b16 %v171, %v170
  %v232 = vpack.c.b16 %v173, %v172
  %v233 = vpack.c.b16 %v175, %v174
  %v234 = vpack.c.b16 %v177, %v176
  %v235 = vpack.c.b16 %v179, %v178
  %v236 = vpack.c.b16 %v181, %v180
  %v237 = vpack.c.b16 %v183, %v182
  %v238 = vpack.c.b16 %v185, %v184
  %v239 = vpack.c.b16 %v187, %v186
  %v240 = vpack.c.b16 %v189, %v188
  %v241 = vpack.c.b16 %v191, %v190
  %v242 = vpack.c.b16 %v193, %v192
  %v243 = vpack.c.b16 %v195, %v194
  %v244 = vpack.c.b16 %v197, %v196
  %v245 = vpack.c.b16 %v199, %v198
  %v246 = vpack.c.b16 %v201, %v200
  %v247 = vpack.c.b16 %v203, %v202
  %v248 = vpack.c.b16 %v205, %v204
  %v249 = vpack.c.b16 %v207, %v206
  %v250 = vpack.c.b16 %v209, %v208
  %v251 = vpack.c.b16 %v211, %v210
  %v252 = vpack.c.b16 %v213, %v212
  %v253 = vpack.c.b16 %v215, %v214
  %v254 = vpack.c.b16 %v217, %v216
  %v255 = vpack.c.b16 %v219, %v218
  %v256 = vpack.c.b16 %v221, %v220
  %v257 = vpack.c.b16 %v223, %v222
  %v258 = vpack.c.b16 %v225, %v224
  %v259 = vpack.c.b16 %v227, %v226
  %292 = vmatpush.bf16.msra.mxu0 %v235
  %293 = vmatpush.bf16.msra.mxu0 %v234
  %294 = vmatpush.bf16.msra.mxu0 %v233
  %295 = vmatpush.bf16.msra.mxu0 %v232
  %296 = vmatpush.bf16.msra.mxu0 %v231
  %297 = vmatpush.bf16.msra.mxu0 %v230
  %298 = vmatpush.bf16.msra.mxu0 %v229
  %299 = vmatpush.bf16.msra.mxu0 %v228
  %300 = vmatmul.bf16.gmra.mxu0 %v92
  %v301 = vpop.f32.mrf.mxu0
  %v302 = vadd.f32 0.0, %v301
  %v303 = vpop.f32.mrf.mxu0
  %304 = vdwg.mxu0
  %305 = vmatpush.bf16.msra.mxu0 %v243
  %306 = vmatpush.bf16.msra.mxu0 %v242
  %307 = vmatpush.bf16.msra.mxu0 %v241
  %308 = vmatpush.bf16.msra.mxu0 %v240
  %309 = vmatpush.bf16.msra.mxu0 %v239
  %310 = vmatpush.bf16.msra.mxu0 %v238
  %311 = vmatpush.bf16.msra.mxu0 %v237
  %312 = vmatpush.bf16.msra.mxu0 %v236
  %313 = vmatmul.bf16.gmra.mxu0 %v93
  %v314 = vpop.f32.mrf.mxu0
  %v315 = vadd.f32 %v302, %v314
  %v316 = vpop.f32.mrf.mxu0
  %317 = vdwg.mxu0
  %318 = vmatpush.bf16.msra.mxu0 %v251
  %319 = vmatpush.bf16.msra.mxu0 %v250
  %320 = vmatpush.bf16.msra.mxu0 %v249
  %321 = vmatpush.bf16.msra.mxu0 %v248
  %322 = vmatpush.bf16.msra.mxu0 %v247
  %323 = vmatpush.bf16.msra.mxu0 %v246
  %324 = vmatpush.bf16.msra.mxu0 %v245
  %325 = vmatpush.bf16.msra.mxu0 %v244
  %326 = vmatmul.bf16.gmra.mxu0 %v94
  %v327 = vpop.f32.mrf.mxu0
  %v328 = vadd.f32 %v315, %v327
  %v329 = vpop.f32.mrf.mxu0
  %330 = vdwg.mxu0
  %331 = vmatpush.bf16.msra.mxu0 %v259
  %332 = vmatpush.bf16.msra.mxu0 %v258
  %333 = vmatpush.bf16.msra.mxu0 %v257
  %334 = vmatpush.bf16.msra.mxu0 %v256
  %335 = vmatpush.bf16.msra.mxu0 %v255
  %336 = vmatpush.bf16.msra.mxu0 %v254
  %337 = vmatpush.bf16.msra.mxu0 %v253
  %338 = vmatpush.bf16.msra.mxu0 %v252
  %339 = vmatmul.bf16.gmra.mxu0 %v95
  %v340 = vpop.f32.mrf.mxu0
  %v341 = vadd.f32 %v328, %v340
  %v342 = vpop.f32.mrf.mxu0
  %343 = vdwg.mxu0
  %v344 = vadd.f32 %v19, %v341
  %345 = vst [vmem:[%s3] sm:$0xff] %v344
  // Predicated region
  $region18: #{resnet18_forward.25} parent=0 // pred_check
    %p346 = pneg %p14
  $region19: #{resnet18_forward.25} parent=0 // pred_check_branch
    %348 = sbr.rel (%p346) target = $region21
  $region20: #{resnet18_forward.25} parent=0 // pred_region
    %v349 = vld [vmem:[%s3] sm:$0xff]
    %v350 = vld [vmem:[%s2] sm:$0x1]
    %v352 = vperm.slane %v350, 0
    %v354 = vadd.f32 %v349, %v352
    %355 = vst [vmem:[%s3] sm:$0xff] %v354
  $region21: #{resnet18_forward.25} parent=0 // pred_fallthru
    _
  // Predicated region
  $region22: #{resnet18_forward.25} parent=0 // pred_check
    _
  $region23: #{resnet18_forward.25} parent=0 // pred_check_branch
    %357 = sbr.rel (0) target = $region25
  $region24: #{resnet18_forward.25} parent=0 // pred_region
    _
  $region25: #{resnet18_forward.25} parent=0 // pred_fallthru
    _
  // Predicated region
  $region26: #{resnet18_forward.25} parent=0 // pred_check
    _
  $region27: #{resnet18_forward.25} parent=0 // pred_check_branch
    %359 = sbr.rel (0) target = $region29
  $region28: #{resnet18_forward.25} parent=0 // pred_region
    _
  $region29: #{resnet18_forward.25} parent=0 // pred_fallthru
    _

</llo_original>
